<compile_context>
chip_gen: v7x
topology: tpu7x:2x2x1
jax: 0.10.0
libtpu: 0.0.40
codegen_flags: <defaults>
</compile_context>

<pallas_src>
import functools

import jax
import jax.numpy as jnp
from jax import lax
from jax.experimental import pallas as pl
from jax.experimental.pallas import tpu as pltpu


TIME_EMBED_DIM = 256
COND_EMBED_DIM = 256
EMBED_CH = 64          # embedding_channels
IN_CH = 1              # in_channels
NUM_GROUPS = 32
GN_EPS = 1e-5


# ---------------------------------------------------------------------------
# Fused forward kernel. One grid step == NB images (lane-concatenated).
# ---------------------------------------------------------------------------
def _fused_forward_kernel(
    # per-step blocks
    t_ref, c_ref,                     # (1, NB)
    x_ref,                            # (1, L)  with L = NB*H*W
    # resident weights / constants (constant index maps -> stay in VMEM)
    w2_ref, b2_ref,                   # (512, 2), (512, 1)   packed t/c embed
    wp_ref, bp_ref,                   # (C, 512), (C, 1)     packed projections
    w_in_ref, b_in_ref,               # (C, 9), (C, 1)
    gamma_ref, beta_ref,              # (C, 1), (C, 1)
    w_outT_ref,                       # (9, C)
    p_ref,                            # (C, C)   group indicator
    e_ref, et_ref,                    # (NB, L), (L, NB) image indicator
    m9_ref,                           # (9, L)   per-tap border masks (f32)
    b_out_ref,                        # (1,) SMEM scalar
    # output
    o_ref,                            # (1, L)
    *, H, W, NB, C, G, eps):
  HW = H * W
  L = NB * HW
  shifts = [(kh - 1) * W + (kw - 1) for kh in range(3) for kw in range(3)]

  def tap(row, k):
    """row: (1, L).  out[p] = row[p + shifts[k]], zero at padded-border reads.

    Masks are per-image positions, so reads that would cross a concatenated
    image boundary are always masked to zero.
    """
    s = shifts[k]
    r = row if s == 0 else pltpu.roll(row, shift=(-s) % L, axis=1)
    if s == 0:
      return r
    return r * m9_ref[k:k + 1, :]

  # ---- Time_Embed / cond_embed + projection to C channels (MXU) -----------
  tc = jnp.concatenate([t_ref[...], c_ref[...]], axis=0)            # (2, NB)
  emb = jnp.maximum(
      jnp.dot(w2_ref[...], tc, preferred_element_type=jnp.float32)
      + b2_ref[...], 0.0)                                           # (512, NB)
  cond = jnp.dot(wp_ref[...], emb,
                 preferred_element_type=jnp.float32) + bp_ref[...]  # (C, NB)

  # ---- conv_in: 3x3, Cin=1 -> C  (taps on 1-row data + one MXU matmul) -----
  x_row = x_ref[...]                                                # (1, L)
  x9 = jnp.concatenate([tap(x_row, k) for k in range(9)], axis=0)   # (9, L)
  h = jnp.dot(w_in_ref[...], x9, preferred_element_type=jnp.float32)
  h = h + b_in_ref[...] + jnp.dot(cond, e_ref[...],
                                  preferred_element_type=jnp.float32)  # (C, L)

  # ---- GroupNorm(G) + affine + ReLU (stats on the MXU) ---------------------
  inv_cnt = 1.0 / float((C // G) * HW)
  et = et_ref[...]                                                  # (L, NB)
  s1 = jnp.dot(h, et, preferred_element_type=jnp.float32)           # (C, NB)
  s2 = jnp.dot(h * h, et, preferred_element_type=jnp.float32)       # (C, NB)
  gsum = jnp.dot(p_ref[...], s1, preferred_element_type=jnp.float32)
  gsum2 = jnp.dot(p_ref[...], s2, preferred_element_type=jnp.float32)
  mean = gsum * inv_cnt
  var = jnp.maximum(gsum2 * inv_cnt - mean * mean, 0.0)             # clamp >= 0
  inv_std = lax.rsqrt(var + eps)
  a_cols = gamma_ref[...] * inv_std                                 # (C, NB)
  b_cols = beta_ref[...] - mean * a_cols                            # (C, NB)
  e_mat = e_ref[...]
  a_full = jnp.dot(a_cols, e_mat, preferred_element_type=jnp.float32)
  b_full = jnp.dot(b_cols, e_mat, preferred_element_type=jnp.float32)
  h2 = jnp.maximum(h * a_full + b_full, 0.0)                        # (C, L)

  # ---- conv_out: 3x3, C -> 1  (MXU channel contraction, then 1-row taps) ---
  a9 = jnp.dot(w_outT_ref[...], h2,
               preferred_element_type=jnp.float32)                  # (9, L)
  out = tap(a9[4:5, :], 4)
  for k in range(9):
    if k == 4:
      continue
    out = out + tap(a9[k:k + 1, :], k)
  out = out + b_out_ref[0]
  o_ref[...] = out.astype(o_ref.dtype)


# ---------------------------------------------------------------------------
# Parameters (deterministic, synthetic), torch-equivalent layouts:
#   te_w/ce_w: (1, 256)      == Linear(1, 256).weight.T
#   tproj_w/cproj_w: (64, 256) == Linear(256, 64).weight
#   w_in:  (64, 9)  with w_in[c, kh*3+kw]  == conv_in.weight[c, 0, kh, kw]
#   w_out: (64, 9)  with w_out[c, kh*3+kw] == conv_out.weight[0, c, kh, kw]
# ---------------------------------------------------------------------------
def init_params(key):
  ks = jax.random.split(key, 10)
  s = 0.05
  C = EMBED_CH
  return {
      "te_w": jax.random.normal(ks[0], (1, TIME_EMBED_DIM), jnp.float32) * s,
      "te_b": jax.random.normal(ks[1], (1, TIME_EMBED_DIM), jnp.float32) * s,
      "ce_w": jax.random.normal(ks[2], (1, COND_EMBED_DIM), jnp.float32) * s,
      "ce_b": jax.random.normal(ks[3], (1, COND_EMBED_DIM), jnp.float32) * s,
      "w_in": jax.random.normal(ks[4], (C, 9), jnp.float32) * s,
      "b_in": jax.random.normal(ks[5], (C, 1), jnp.float32) * s,
      "tproj_w": jax.random.normal(ks[6], (C, TIME_EMBED_DIM), jnp.float32) * s,
      "tproj_b": jnp.zeros((C, 1), jnp.float32),
      "cproj_w": jax.random.normal(ks[7], (C, COND_EMBED_DIM), jnp.float32) * s,
      "cproj_b": jnp.zeros((C, 1), jnp.float32),
      "gn_gamma": jnp.ones((C, 1), jnp.float32),
      "gn_beta": jnp.zeros((C, 1), jnp.float32),
      "w_out": jax.random.normal(ks[8], (C, 9), jnp.float32) * s,
      "b_out": jax.random.normal(ks[9], (1,), jnp.float32) * s,
  }


# ---------------------------------------------------------------------------
# CombinedModel.forward  (single fused pallas_call)
# ---------------------------------------------------------------------------
@functools.partial(jax.jit, static_argnames=("nb",))
def combined_forward(params, x_nchw, t, c, nb=4):
  N, cin, H, W = x_nchw.shape
  assert cin == IN_CH
  HW = H * W
  C, G = EMBED_CH, NUM_GROUPS
  D = TIME_EMBED_DIM
  f32 = jnp.float32

  nb = min(nb, N)
  assert N % nb == 0, "batch must be divisible by the per-step batch nb"
  steps = N // nb
  L = nb * HW

  # Lane-concatenate nb images per grid step (free, contiguous reshapes).
  x3 = x_nchw.reshape(steps, 1, L)
  t3 = t.reshape(steps, 1, nb)
  c3 = c.reshape(steps, 1, nb)

  # ---- pack weights into kernel-friendly layouts (tiny, traced once) -------
  zero = jnp.zeros((D, 1), f32)
  w2 = jnp.concatenate([
      jnp.concatenate([params["te_w"].reshape(D, 1), zero], axis=1),
      jnp.concatenate([zero, params["ce_w"].reshape(D, 1)], axis=1)],
      axis=0)                                                      # (512, 2)
  b2 = jnp.concatenate([params["te_b"].reshape(D, 1),
                        params["ce_b"].reshape(D, 1)], axis=0)     # (512, 1)
  wp = jnp.concatenate([params["tproj_w"], params["cproj_w"]], axis=1)  # (C,512)
  bp = params["tproj_b"] + params["cproj_b"]                       # (C, 1)
  w_outT = params["w_out"].T                                       # (9, C)

  # ---- constant helper matrices (VMEM-resident across grid steps) ----------
  img = jnp.arange(L, dtype=jnp.int32) // HW
  e_mat = (img[None, :] ==
           jnp.arange(nb, dtype=jnp.int32)[:, None]).astype(f32)   # (nb, L)
  et_mat = jnp.transpose(e_mat)                                    # (L, nb)
  grp = jnp.arange(C, dtype=jnp.int32) // (C // G)
  p_mat = (grp[:, None] == grp[None, :]).astype(f32)               # (C, C)

  pos = jnp.arange(L, dtype=jnp.int32) % HW
  prow = pos // W
  pcol = pos % W
  mrows = []
  for kh in range(3):
    for kw in range(3):
      dh, dw = kh - 1, kw - 1
      m = jnp.ones((L,), bool)
      if dh == -1:
        m = m & (prow >= 1)
      if dh == 1:
        m = m & (prow <= H - 2)
      if dw == -1:
        m = m & (pcol >= 1)
      if dw == 1:
        m = m & (pcol <= W - 2)
      mrows.append(m)
  mask9 = jnp.stack(mrows, axis=0).astype(f32)                     # (9, L)

  kernel = functools.partial(_fused_forward_kernel, H=H, W=W, NB=nb, C=C,
                             G=G, eps=GN_EPS)

  def resident(arr):               # full-array block, resident across steps
    return pl.BlockSpec(arr.shape, lambda s: (0, 0))

  def per_step(shape):             # (Squeezed, ...) per-grid-step block
    return pl.BlockSpec((pl.Squeezed(),) + shape, lambda s: (s, 0, 0))

  out = pl.pallas_call(
      kernel,
      out_shape=jax.ShapeDtypeStruct((steps, 1, L), f32),
      grid=(steps,),
      in_specs=[
          per_step((1, nb)),                                     # t
          per_step((1, nb)),                                     # c
          per_step((1, L)),                                      # x
          resident(w2), resident(b2), resident(wp), resident(bp),
          resident(params["w_in"]), resident(params["b_in"]),
          resident(params["gn_gamma"]), resident(params["gn_beta"]),
          resident(w_outT), resident(p_mat), resident(e_mat),
          resident(et_mat), resident(mask9),
          pl.BlockSpec(memory_space=pltpu.MemorySpace.SMEM),     # b_out scalar
      ],
      out_specs=per_step((1, L)),
      compiler_params=pltpu.CompilerParams(
          dimension_semantics=("parallel",)),
  )(t3, c3, x3,
    w2, b2, wp, bp,
    params["w_in"], params["b_in"],
    params["gn_gamma"], params["gn_beta"],
    w_outT, p_mat, e_mat, et_mat, mask9,
    params["b_out"])
  return out.reshape(N, IN_CH, H, W)


if __name__ == "__main__":
  key = jax.random.PRNGKey(0)
  kp, kx, kt, kc = jax.random.split(key, 4)

  params = init_params(kp)

  N, H, W = 8, 16, 16
  x = jax.random.normal(kx, (N, IN_CH, H, W), jnp.float32)   # NCHW like torch
  t = jax.random.uniform(kt, (N, 1), jnp.float32)            # scalar timestep
  c = jax.random.uniform(kc, (N, 1), jnp.float32)            # scalar condition

  # nb=4 -> 2 grid steps, so the batch axis still splits across both
  # TensorCores on v7x; on v5e/v6e nb may be raised all the way to N.
  out = combined_forward(params, x, t, c, nb=4)
  out = jax.block_until_ready(out)
  assert out.shape == (N, IN_CH, H, W)
  assert bool(jnp.all(jnp.isfinite(out)))
  print("KERNEL_OK")
</pallas_src>

<mosaic_0001>
module attributes {stable_mosaic.version = 11 : i64} {
  func.func @_fused_forward_kernel(%arg0: i32, %arg1: memref<1x1x4xf32, #tpu.memory_space<vmem>>, %arg2: memref<1x1x4xf32, #tpu.memory_space<vmem>>, %arg3: memref<1x1x1024xf32, #tpu.memory_space<vmem>>, %arg4: memref<512x2xf32, #tpu.memory_space<vmem>>, %arg5: memref<512x1xf32, #tpu.memory_space<vmem>>, %arg6: memref<64x512xf32, #tpu.memory_space<vmem>>, %arg7: memref<64x1xf32, #tpu.memory_space<vmem>>, %arg8: memref<64x9xf32, #tpu.memory_space<vmem>>, %arg9: memref<64x1xf32, #tpu.memory_space<vmem>>, %arg10: memref<64x1xf32, #tpu.memory_space<vmem>>, %arg11: memref<64x1xf32, #tpu.memory_space<vmem>>, %arg12: memref<9x64xf32, #tpu.memory_space<vmem>>, %arg13: memref<64x64xf32, #tpu.memory_space<vmem>>, %arg14: memref<4x1024xf32, #tpu.memory_space<vmem>>, %arg15: memref<1024x4xf32, #tpu.memory_space<vmem>>, %arg16: memref<9x1024xf32, #tpu.memory_space<vmem>>, %arg17: memref<1xf32, #tpu.memory_space<smem>>, %arg18: memref<1x1x1024xf32, #tpu.memory_space<vmem>>) attributes {dimension_semantics = [#tpu.dimension_semantics<parallel>], iteration_bounds = array<i64: 2>, scalar_prefetch = 0 : i64, scratch_operands = 0 : i64, tpu.core_type = #tpu.core_type<tc>, window_params = [{transform_indices = @transform_0, window_bounds = array<i64: 1, 1, 4>}, {transform_indices = @transform_1, window_bounds = array<i64: 1, 1, 4>}, {transform_indices = @transform_2, window_bounds = array<i64: 1, 1, 1024>}, {pipeline_mode = #tpu.pipeline_mode<synchronous>, transform_indices = @transform_3, window_bounds = array<i64: 512, 2>}, {pipeline_mode = #tpu.pipeline_mode<synchronous>, transform_indices = @transform_4, window_bounds = array<i64: 512, 1>}, {pipeline_mode = #tpu.pipeline_mode<synchronous>, transform_indices = @transform_5, window_bounds = array<i64: 64, 512>}, {pipeline_mode = #tpu.pipeline_mode<synchronous>, transform_indices = @transform_6, window_bounds = array<i64: 64, 1>}, {pipeline_mode = #tpu.pipeline_mode<synchronous>, transform_indices = @transform_7, window_bounds = array<i64: 64, 9>}, {pipeline_mode = #tpu.pipeline_mode<synchronous>, transform_indices = @transform_8, window_bounds = array<i64: 64, 1>}, {pipeline_mode = #tpu.pipeline_mode<synchronous>, transform_indices = @transform_9, window_bounds = array<i64: 64, 1>}, {pipeline_mode = #tpu.pipeline_mode<synchronous>, transform_indices = @transform_10, window_bounds = array<i64: 64, 1>}, {pipeline_mode = #tpu.pipeline_mode<synchronous>, transform_indices = @transform_11, window_bounds = array<i64: 9, 64>}, {pipeline_mode = #tpu.pipeline_mode<synchronous>, transform_indices = @transform_12, window_bounds = array<i64: 64, 64>}, {pipeline_mode = #tpu.pipeline_mode<synchronous>, transform_indices = @transform_13, window_bounds = array<i64: 4, 1024>}, {pipeline_mode = #tpu.pipeline_mode<synchronous>, transform_indices = @transform_14, window_bounds = array<i64: 1024, 4>}, {pipeline_mode = #tpu.pipeline_mode<synchronous>, transform_indices = @transform_15, window_bounds = array<i64: 9, 1024>}, {transform_indices = @transform_16, window_bounds = array<i64: 1>}, {transform_indices = @transform_17, window_bounds = array<i64: 1, 1, 1024>}]} {
    %c0 = arith.constant 0 : index
    %c0_0 = arith.constant 0 : index
    %c0_1 = arith.constant 0 : index
    %0 = vector.load %arg1[%c0, %c0_0, %c0_1] : memref<1x1x4xf32, #tpu.memory_space<vmem>>, vector<1x1x4xf32>
    %1 = vector.shape_cast %0 : vector<1x1x4xf32> to vector<1x4xf32>
    %c0_2 = arith.constant 0 : index
    %c0_3 = arith.constant 0 : index
    %c0_4 = arith.constant 0 : index
    %2 = vector.load %arg2[%c0_2, %c0_3, %c0_4] : memref<1x1x4xf32, #tpu.memory_space<vmem>>, vector<1x1x4xf32>
    %3 = vector.shape_cast %2 : vector<1x1x4xf32> to vector<1x4xf32>
    %4 = tpu.concatenate %1, %3 in 0 : vector<1x4xf32>, vector<1x4xf32> -> vector<2x4xf32>
    %c0_5 = arith.constant 0 : index
    %c0_6 = arith.constant 0 : index
    %5 = vector.load %arg4[%c0_5, %c0_6] : memref<512x2xf32, #tpu.memory_space<vmem>>, vector<512x2xf32>
    %cst = arith.constant dense<0.000000e+00> : vector<512x4xf32>
    %6 = tpu.matmul %5, %4, %cst {dimension_numbers = #tpu.dot_dimension_numbers<[1], [0], [0], [1], [0, 0, 1, 1], [], []>} : vector<512x2xf32>, vector<2x4xf32>, vector<512x4xf32> -> vector<512x4xf32>
    %c0_7 = arith.constant 0 : index
    %c0_8 = arith.constant 0 : index
    %7 = vector.load %arg5[%c0_7, %c0_8] : memref<512x1xf32, #tpu.memory_space<vmem>>, vector<512x1xf32>
    %8 = vector.broadcast %7 : vector<512x1xf32> to vector<512x4xf32>
    %9 = arith.addf %6, %8 : vector<512x4xf32>
    %cst_9 = arith.constant 0.000000e+00 : f32
    %10 = vector.broadcast %cst_9 : f32 to vector<512x4xf32>
    %11 = arith.maximumf %9, %10 : vector<512x4xf32>
    %c0_10 = arith.constant 0 : index
    %c0_11 = arith.constant 0 : index
    %12 = vector.load %arg6[%c0_10, %c0_11] : memref<64x512xf32, #tpu.memory_space<vmem>>, vector<64x512xf32>
    %cst_12 = arith.constant dense<0.000000e+00> : vector<64x4xf32>
    %13 = tpu.matmul %12, %11, %cst_12 {dimension_numbers = #tpu.dot_dimension_numbers<[1], [0], [0], [1], [0, 0, 1, 1], [], []>} : vector<64x512xf32>, vector<512x4xf32>, vector<64x4xf32> -> vector<64x4xf32>
    %c0_13 = arith.constant 0 : index
    %c0_14 = arith.constant 0 : index
    %14 = vector.load %arg7[%c0_13, %c0_14] : memref<64x1xf32, #tpu.memory_space<vmem>>, vector<64x1xf32>
    %15 = vector.broadcast %14 : vector<64x1xf32> to vector<64x4xf32>
    %16 = arith.addf %13, %15 : vector<64x4xf32>
    %c0_15 = arith.constant 0 : index
    %c0_16 = arith.constant 0 : index
    %c0_17 = arith.constant 0 : index
    %17 = vector.load %arg3[%c0_15, %c0_16, %c0_17] : memref<1x1x1024xf32, #tpu.memory_space<vmem>>, vector<1x1x1024xf32>
    %18 = vector.shape_cast %17 : vector<1x1x1024xf32> to vector<1x1024xf32>
    %c17_i32 = arith.constant 17 : i32
    %19 = tpu.dynamic_rotate %18 by %c17_i32 dim 1 : vector<1x1024xf32>, i32 -> vector<1x1024xf32>
    %c0_18 = arith.constant 0 : index
    %c0_19 = arith.constant 0 : index
    %20 = vector.load %arg16[%c0_18, %c0_19] : memref<9x1024xf32, #tpu.memory_space<vmem>>, vector<1x1024xf32>
    %21 = arith.mulf %19, %20 : vector<1x1024xf32>
    %c16_i32 = arith.constant 16 : i32
    %22 = tpu.dynamic_rotate %18 by %c16_i32 dim 1 : vector<1x1024xf32>, i32 -> vector<1x1024xf32>
    %c1 = arith.constant 1 : index
    %c0_20 = arith.constant 0 : index
    %23 = vector.load %arg16[%c1, %c0_20] : memref<9x1024xf32, #tpu.memory_space<vmem>>, vector<1x1024xf32>
    %24 = arith.mulf %22, %23 : vector<1x1024xf32>
    %c15_i32 = arith.constant 15 : i32
    %25 = tpu.dynamic_rotate %18 by %c15_i32 dim 1 : vector<1x1024xf32>, i32 -> vector<1x1024xf32>
    %c2 = arith.constant 2 : index
    %c0_21 = arith.constant 0 : index
    %26 = vector.load %arg16[%c2, %c0_21] : memref<9x1024xf32, #tpu.memory_space<vmem>>, vector<1x1024xf32>
    %27 = arith.mulf %25, %26 : vector<1x1024xf32>
    %c1_i32 = arith.constant 1 : i32
    %28 = tpu.dynamic_rotate %18 by %c1_i32 dim 1 : vector<1x1024xf32>, i32 -> vector<1x1024xf32>
    %c3 = arith.constant 3 : index
    %c0_22 = arith.constant 0 : index
    %29 = vector.load %arg16[%c3, %c0_22] : memref<9x1024xf32, #tpu.memory_space<vmem>>, vector<1x1024xf32>
    %30 = arith.mulf %28, %29 : vector<1x1024xf32>
    %c1023_i32 = arith.constant 1023 : i32
    %31 = tpu.dynamic_rotate %18 by %c1023_i32 dim 1 : vector<1x1024xf32>, i32 -> vector<1x1024xf32>
    %c5 = arith.constant 5 : index
    %c0_23 = arith.constant 0 : index
    %32 = vector.load %arg16[%c5, %c0_23] : memref<9x1024xf32, #tpu.memory_space<vmem>>, vector<1x1024xf32>
    %33 = arith.mulf %31, %32 : vector<1x1024xf32>
    %c1009_i32 = arith.constant 1009 : i32
    %34 = tpu.dynamic_rotate %18 by %c1009_i32 dim 1 : vector<1x1024xf32>, i32 -> vector<1x1024xf32>
    %c6 = arith.constant 6 : index
    %c0_24 = arith.constant 0 : index
    %35 = vector.load %arg16[%c6, %c0_24] : memref<9x1024xf32, #tpu.memory_space<vmem>>, vector<1x1024xf32>
    %36 = arith.mulf %34, %35 : vector<1x1024xf32>
    %c1008_i32 = arith.constant 1008 : i32
    %37 = tpu.dynamic_rotate %18 by %c1008_i32 dim 1 : vector<1x1024xf32>, i32 -> vector<1x1024xf32>
    %c7 = arith.constant 7 : index
    %c0_25 = arith.constant 0 : index
    %38 = vector.load %arg16[%c7, %c0_25] : memref<9x1024xf32, #tpu.memory_space<vmem>>, vector<1x1024xf32>
    %39 = arith.mulf %37, %38 : vector<1x1024xf32>
    %c1007_i32 = arith.constant 1007 : i32
    %40 = tpu.dynamic_rotate %18 by %c1007_i32 dim 1 : vector<1x1024xf32>, i32 -> vector<1x1024xf32>
    %c8 = arith.constant 8 : index
    %c0_26 = arith.constant 0 : index
    %41 = vector.load %arg16[%c8, %c0_26] : memref<9x1024xf32, #tpu.memory_space<vmem>>, vector<1x1024xf32>
    %42 = arith.mulf %40, %41 : vector<1x1024xf32>
    %43 = tpu.concatenate %21, %24, %27, %30, %18, %33, %36, %39, %42 in 0 : vector<1x1024xf32>, vector<1x1024xf32>, vector<1x1024xf32>, vector<1x1024xf32>, vector<1x1024xf32>, vector<1x1024xf32>, vector<1x1024xf32>, vector<1x1024xf32>, vector<1x1024xf32> -> vector<9x1024xf32>
    %c0_27 = arith.constant 0 : index
    %c0_28 = arith.constant 0 : index
    %44 = vector.load %arg8[%c0_27, %c0_28] : memref<64x9xf32, #tpu.memory_space<vmem>>, vector<64x9xf32>
    %cst_29 = arith.constant dense<0.000000e+00> : vector<64x1024xf32>
    %45 = tpu.matmul %44, %43, %cst_29 {dimension_numbers = #tpu.dot_dimension_numbers<[1], [0], [0], [1], [0, 0, 1, 1], [], []>} : vector<64x9xf32>, vector<9x1024xf32>, vector<64x1024xf32> -> vector<64x1024xf32>
    %c0_30 = arith.constant 0 : index
    %c0_31 = arith.constant 0 : index
    %46 = vector.load %arg9[%c0_30, %c0_31] : memref<64x1xf32, #tpu.memory_space<vmem>>, vector<64x1xf32>
    %47 = vector.broadcast %46 : vector<64x1xf32> to vector<64x1024xf32>
    %48 = arith.addf %45, %47 : vector<64x1024xf32>
    %c0_32 = arith.constant 0 : index
    %c0_33 = arith.constant 0 : index
    %49 = vector.load %arg14[%c0_32, %c0_33] : memref<4x1024xf32, #tpu.memory_space<vmem>>, vector<4x1024xf32>
    %cst_34 = arith.constant dense<0.000000e+00> : vector<64x1024xf32>
    %50 = tpu.matmul %16, %49, %cst_34 {dimension_numbers = #tpu.dot_dimension_numbers<[1], [0], [0], [1], [0, 0, 1, 1], [], []>} : vector<64x4xf32>, vector<4x1024xf32>, vector<64x1024xf32> -> vector<64x1024xf32>
    %51 = arith.addf %48, %50 : vector<64x1024xf32>
    %c0_35 = arith.constant 0 : index
    %c0_36 = arith.constant 0 : index
    %52 = vector.load %arg15[%c0_35, %c0_36] : memref<1024x4xf32, #tpu.memory_space<vmem>>, vector<1024x4xf32>
    %cst_37 = arith.constant dense<0.000000e+00> : vector<64x4xf32>
    %53 = tpu.matmul %51, %52, %cst_37 {dimension_numbers = #tpu.dot_dimension_numbers<[1], [0], [0], [1], [0, 0, 1, 1], [], []>} : vector<64x1024xf32>, vector<1024x4xf32>, vector<64x4xf32> -> vector<64x4xf32>
    %54 = arith.mulf %51, %51 : vector<64x1024xf32>
    %cst_38 = arith.constant dense<0.000000e+00> : vector<64x4xf32>
    %55 = tpu.matmul %54, %52, %cst_38 {dimension_numbers = #tpu.dot_dimension_numbers<[1], [0], [0], [1], [0, 0, 1, 1], [], []>} : vector<64x1024xf32>, vector<1024x4xf32>, vector<64x4xf32> -> vector<64x4xf32>
    %c0_39 = arith.constant 0 : index
    %c0_40 = arith.constant 0 : index
    %56 = vector.load %arg13[%c0_39, %c0_40] : memref<64x64xf32, #tpu.memory_space<vmem>>, vector<64x64xf32>
    %cst_41 = arith.constant dense<0.000000e+00> : vector<64x4xf32>
    %57 = tpu.matmul %56, %53, %cst_41 {dimension_numbers = #tpu.dot_dimension_numbers<[1], [0], [0], [1], [0, 0, 1, 1], [], []>} : vector<64x64xf32>, vector<64x4xf32>, vector<64x4xf32> -> vector<64x4xf32>
    %c0_42 = arith.constant 0 : index
    %c0_43 = arith.constant 0 : index
    %58 = vector.load %arg13[%c0_42, %c0_43] : memref<64x64xf32, #tpu.memory_space<vmem>>, vector<64x64xf32>
    %cst_44 = arith.constant dense<0.000000e+00> : vector<64x4xf32>
    %59 = tpu.matmul %58, %55, %cst_44 {dimension_numbers = #tpu.dot_dimension_numbers<[1], [0], [0], [1], [0, 0, 1, 1], [], []>} : vector<64x64xf32>, vector<64x4xf32>, vector<64x4xf32> -> vector<64x4xf32>
    %cst_45 = arith.constant 0.001953125 : f32
    %60 = vector.broadcast %cst_45 : f32 to vector<64x4xf32>
    %61 = arith.mulf %57, %60 : vector<64x4xf32>
    %cst_46 = arith.constant 0.001953125 : f32
    %62 = vector.broadcast %cst_46 : f32 to vector<64x4xf32>
    %63 = arith.mulf %59, %62 : vector<64x4xf32>
    %64 = arith.mulf %61, %61 : vector<64x4xf32>
    %65 = arith.subf %63, %64 : vector<64x4xf32>
    %cst_47 = arith.constant 0.000000e+00 : f32
    %66 = vector.broadcast %cst_47 : f32 to vector<64x4xf32>
    %67 = arith.maximumf %65, %66 : vector<64x4xf32>
    %cst_48 = arith.constant 9.99999974E-6 : f32
    %68 = vector.broadcast %cst_48 : f32 to vector<64x4xf32>
    %69 = arith.addf %67, %68 : vector<64x4xf32>
    %70 = math.rsqrt %69 : vector<64x4xf32>
    %c0_49 = arith.constant 0 : index
    %c0_50 = arith.constant 0 : index
    %71 = vector.load %arg10[%c0_49, %c0_50] : memref<64x1xf32, #tpu.memory_space<vmem>>, vector<64x1xf32>
    %72 = vector.broadcast %71 : vector<64x1xf32> to vector<64x4xf32>
    %73 = arith.mulf %72, %70 : vector<64x4xf32>
    %c0_51 = arith.constant 0 : index
    %c0_52 = arith.constant 0 : index
    %74 = vector.load %arg11[%c0_51, %c0_52] : memref<64x1xf32, #tpu.memory_space<vmem>>, vector<64x1xf32>
    %75 = arith.mulf %61, %73 : vector<64x4xf32>
    %76 = vector.broadcast %74 : vector<64x1xf32> to vector<64x4xf32>
    %77 = arith.subf %76, %75 : vector<64x4xf32>
    %c0_53 = arith.constant 0 : index
    %c0_54 = arith.constant 0 : index
    %78 = vector.load %arg14[%c0_53, %c0_54] : memref<4x1024xf32, #tpu.memory_space<vmem>>, vector<4x1024xf32>
    %cst_55 = arith.constant dense<0.000000e+00> : vector<64x1024xf32>
    %79 = tpu.matmul %73, %78, %cst_55 {dimension_numbers = #tpu.dot_dimension_numbers<[1], [0], [0], [1], [0, 0, 1, 1], [], []>} : vector<64x4xf32>, vector<4x1024xf32>, vector<64x1024xf32> -> vector<64x1024xf32>
    %cst_56 = arith.constant dense<0.000000e+00> : vector<64x1024xf32>
    %80 = tpu.matmul %77, %78, %cst_56 {dimension_numbers = #tpu.dot_dimension_numbers<[1], [0], [0], [1], [0, 0, 1, 1], [], []>} : vector<64x4xf32>, vector<4x1024xf32>, vector<64x1024xf32> -> vector<64x1024xf32>
    %81 = arith.mulf %51, %79 : vector<64x1024xf32>
    %82 = arith.addf %81, %80 : vector<64x1024xf32>
    %cst_57 = arith.constant 0.000000e+00 : f32
    %83 = vector.broadcast %cst_57 : f32 to vector<64x1024xf32>
    %84 = arith.maximumf %82, %83 : vector<64x1024xf32>
    %c0_58 = arith.constant 0 : index
    %c0_59 = arith.constant 0 : index
    %85 = vector.load %arg12[%c0_58, %c0_59] : memref<9x64xf32, #tpu.memory_space<vmem>>, vector<9x64xf32>
    %cst_60 = arith.constant dense<0.000000e+00> : vector<9x1024xf32>
    %86 = tpu.matmul %85, %84, %cst_60 {dimension_numbers = #tpu.dot_dimension_numbers<[1], [0], [0], [1], [0, 0, 1, 1], [], []>} : vector<9x64xf32>, vector<64x1024xf32>, vector<9x1024xf32> -> vector<9x1024xf32>
    %87 = vector.extract_strided_slice %86 {offsets = [4, 0], sizes = [1, 1024], strides = [1, 1]} : vector<9x1024xf32> to vector<1x1024xf32>
    %88 = vector.extract_strided_slice %86 {offsets = [0, 0], sizes = [1, 1024], strides = [1, 1]} : vector<9x1024xf32> to vector<1x1024xf32>
    %c17_i32_61 = arith.constant 17 : i32
    %89 = tpu.dynamic_rotate %88 by %c17_i32_61 dim 1 : vector<1x1024xf32>, i32 -> vector<1x1024xf32>
    %c0_62 = arith.constant 0 : index
    %c0_63 = arith.constant 0 : index
    %90 = vector.load %arg16[%c0_62, %c0_63] : memref<9x1024xf32, #tpu.memory_space<vmem>>, vector<1x1024xf32>
    %91 = arith.mulf %89, %90 : vector<1x1024xf32>
    %92 = arith.addf %87, %91 : vector<1x1024xf32>
    %93 = vector.extract_strided_slice %86 {offsets = [1, 0], sizes = [1, 1024], strides = [1, 1]} : vector<9x1024xf32> to vector<1x1024xf32>
    %c16_i32_64 = arith.constant 16 : i32
    %94 = tpu.dynamic_rotate %93 by %c16_i32_64 dim 1 : vector<1x1024xf32>, i32 -> vector<1x1024xf32>
    %c1_65 = arith.constant 1 : index
    %c0_66 = arith.constant 0 : index
    %95 = vector.load %arg16[%c1_65, %c0_66] : memref<9x1024xf32, #tpu.memory_space<vmem>>, vector<1x1024xf32>
    %96 = arith.mulf %94, %95 : vector<1x1024xf32>
    %97 = arith.addf %92, %96 : vector<1x1024xf32>
    %98 = vector.extract_strided_slice %86 {offsets = [2, 0], sizes = [1, 1024], strides = [1, 1]} : vector<9x1024xf32> to vector<1x1024xf32>
    %c15_i32_67 = arith.constant 15 : i32
    %99 = tpu.dynamic_rotate %98 by %c15_i32_67 dim 1 : vector<1x1024xf32>, i32 -> vector<1x1024xf32>
    %c2_68 = arith.constant 2 : index
    %c0_69 = arith.constant 0 : index
    %100 = vector.load %arg16[%c2_68, %c0_69] : memref<9x1024xf32, #tpu.memory_space<vmem>>, vector<1x1024xf32>
    %101 = arith.mulf %99, %100 : vector<1x1024xf32>
    %102 = arith.addf %97, %101 : vector<1x1024xf32>
    %103 = vector.extract_strided_slice %86 {offsets = [3, 0], sizes = [1, 1024], strides = [1, 1]} : vector<9x1024xf32> to vector<1x1024xf32>
    %c1_i32_70 = arith.constant 1 : i32
    %104 = tpu.dynamic_rotate %103 by %c1_i32_70 dim 1 : vector<1x1024xf32>, i32 -> vector<1x1024xf32>
    %c3_71 = arith.constant 3 : index
    %c0_72 = arith.constant 0 : index
    %105 = vector.load %arg16[%c3_71, %c0_72] : memref<9x1024xf32, #tpu.memory_space<vmem>>, vector<1x1024xf32>
    %106 = arith.mulf %104, %105 : vector<1x1024xf32>
    %107 = arith.addf %102, %106 : vector<1x1024xf32>
    %108 = vector.extract_strided_slice %86 {offsets = [5, 0], sizes = [1, 1024], strides = [1, 1]} : vector<9x1024xf32> to vector<1x1024xf32>
    %c1023_i32_73 = arith.constant 1023 : i32
    %109 = tpu.dynamic_rotate %108 by %c1023_i32_73 dim 1 : vector<1x1024xf32>, i32 -> vector<1x1024xf32>
    %c5_74 = arith.constant 5 : index
    %c0_75 = arith.constant 0 : index
    %110 = vector.load %arg16[%c5_74, %c0_75] : memref<9x1024xf32, #tpu.memory_space<vmem>>, vector<1x1024xf32>
    %111 = arith.mulf %109, %110 : vector<1x1024xf32>
    %112 = arith.addf %107, %111 : vector<1x1024xf32>
    %113 = vector.extract_strided_slice %86 {offsets = [6, 0], sizes = [1, 1024], strides = [1, 1]} : vector<9x1024xf32> to vector<1x1024xf32>
    %c1009_i32_76 = arith.constant 1009 : i32
    %114 = tpu.dynamic_rotate %113 by %c1009_i32_76 dim 1 : vector<1x1024xf32>, i32 -> vector<1x1024xf32>
    %c6_77 = arith.constant 6 : index
    %c0_78 = arith.constant 0 : index
    %115 = vector.load %arg16[%c6_77, %c0_78] : memref<9x1024xf32, #tpu.memory_space<vmem>>, vector<1x1024xf32>
    %116 = arith.mulf %114, %115 : vector<1x1024xf32>
    %117 = arith.addf %112, %116 : vector<1x1024xf32>
    %118 = vector.extract_strided_slice %86 {offsets = [7, 0], sizes = [1, 1024], strides = [1, 1]} : vector<9x1024xf32> to vector<1x1024xf32>
    %c1008_i32_79 = arith.constant 1008 : i32
    %119 = tpu.dynamic_rotate %118 by %c1008_i32_79 dim 1 : vector<1x1024xf32>, i32 -> vector<1x1024xf32>
    %c7_80 = arith.constant 7 : index
    %c0_81 = arith.constant 0 : index
    %120 = vector.load %arg16[%c7_80, %c0_81] : memref<9x1024xf32, #tpu.memory_space<vmem>>, vector<1x1024xf32>
    %121 = arith.mulf %119, %120 : vector<1x1024xf32>
    %122 = arith.addf %117, %121 : vector<1x1024xf32>
    %123 = vector.extract_strided_slice %86 {offsets = [8, 0], sizes = [1, 1024], strides = [1, 1]} : vector<9x1024xf32> to vector<1x1024xf32>
    %c1007_i32_82 = arith.constant 1007 : i32
    %124 = tpu.dynamic_rotate %123 by %c1007_i32_82 dim 1 : vector<1x1024xf32>, i32 -> vector<1x1024xf32>
    %c8_83 = arith.constant 8 : index
    %c0_84 = arith.constant 0 : index
    %125 = vector.load %arg16[%c8_83, %c0_84] : memref<9x1024xf32, #tpu.memory_space<vmem>>, vector<1x1024xf32>
    %126 = arith.mulf %124, %125 : vector<1x1024xf32>
    %127 = arith.addf %122, %126 : vector<1x1024xf32>
    %c0_85 = arith.constant 0 : index
    %128 = memref.load %arg17[%c0_85] : memref<1xf32, #tpu.memory_space<smem>>
    %129 = vector.broadcast %128 : f32 to vector<1x1024xf32>
    %130 = arith.addf %127, %129 : vector<1x1024xf32>
    %c0_86 = arith.constant 0 : index
    %c0_87 = arith.constant 0 : index
    %c0_88 = arith.constant 0 : index
    %131 = vector.load %arg18[%c0_86, %c0_87, %c0_88] : memref<1x1x1024xf32, #tpu.memory_space<vmem>>, vector<1x1x1024xf32>
    %132 = vector.shape_cast %131 : vector<1x1x1024xf32> to vector<1x1024xf32>
    %133 = vector.shape_cast %130 : vector<1x1024xf32> to vector<1x1x1024xf32>
    tpu.vector_store %arg18[%c0_86, %c0_87, %c0_88], %133 {strides = array<i32>} : memref<1x1x1024xf32, #tpu.memory_space<vmem>>, vector<1x1x1024xf32>,
    return
  }
  func.func @transform_0(%arg0: i32) -> (i32, i32, i32) {
    %c0_i32 = arith.constant 0 : i32
    %c0_i32_0 = arith.constant 0 : i32
    %c0_i32_1 = arith.constant 0 : i32
    return %arg0, %c0_i32, %c0_i32_0 : i32, i32, i32
  }
  func.func @transform_1(%arg0: i32) -> (i32, i32, i32) {
    %c0_i32 = arith.constant 0 : i32
    %c0_i32_0 = arith.constant 0 : i32
    %c0_i32_1 = arith.constant 0 : i32
    return %arg0, %c0_i32, %c0_i32_0 : i32, i32, i32
  }
  func.func @transform_2(%arg0: i32) -> (i32, i32, i32) {
    %c0_i32 = arith.constant 0 : i32
    %c0_i32_0 = arith.constant 0 : i32
    %c0_i32_1 = arith.constant 0 : i32
    return %arg0, %c0_i32, %c0_i32_0 : i32, i32, i32
  }
  func.func @transform_3(%arg0: i32) -> (i32, i32) {
    %c0_i32 = arith.constant 0 : i32
    %c0_i32_0 = arith.constant 0 : i32
    %c0_i32_1 = arith.constant 0 : i32
    return %c0_i32, %c0_i32_0 : i32, i32
  }
  func.func @transform_4(%arg0: i32) -> (i32, i32) {
    %c0_i32 = arith.constant 0 : i32
    %c0_i32_0 = arith.constant 0 : i32
    %c0_i32_1 = arith.constant 0 : i32
    return %c0_i32, %c0_i32_0 : i32, i32
  }
  func.func @transform_5(%arg0: i32) -> (i32, i32) {
    %c0_i32 = arith.constant 0 : i32
    %c0_i32_0 = arith.constant 0 : i32
    %c0_i32_1 = arith.constant 0 : i32
    return %c0_i32, %c0_i32_0 : i32, i32
  }
  func.func @transform_6(%arg0: i32) -> (i32, i32) {
    %c0_i32 = arith.constant 0 : i32
    %c0_i32_0 = arith.constant 0 : i32
    %c0_i32_1 = arith.constant 0 : i32
    return %c0_i32, %c0_i32_0 : i32, i32
  }
  func.func @transform_7(%arg0: i32) -> (i32, i32) {
    %c0_i32 = arith.constant 0 : i32
    %c0_i32_0 = arith.constant 0 : i32
    %c0_i32_1 = arith.constant 0 : i32
    return %c0_i32, %c0_i32_0 : i32, i32
  }
  func.func @transform_8(%arg0: i32) -> (i32, i32) {
    %c0_i32 = arith.constant 0 : i32
    %c0_i32_0 = arith.constant 0 : i32
    %c0_i32_1 = arith.constant 0 : i32
    return %c0_i32, %c0_i32_0 : i32, i32
  }
  func.func @transform_9(%arg0: i32) -> (i32, i32) {
    %c0_i32 = arith.constant 0 : i32
    %c0_i32_0 = arith.constant 0 : i32
    %c0_i32_1 = arith.constant 0 : i32
    return %c0_i32, %c0_i32_0 : i32, i32
  }
  func.func @transform_10(%arg0: i32) -> (i32, i32) {
    %c0_i32 = arith.constant 0 : i32
    %c0_i32_0 = arith.constant 0 : i32
    %c0_i32_1 = arith.constant 0 : i32
    return %c0_i32, %c0_i32_0 : i32, i32
  }
  func.func @transform_11(%arg0: i32) -> (i32, i32) {
    %c0_i32 = arith.constant 0 : i32
    %c0_i32_0 = arith.constant 0 : i32
    %c0_i32_1 = arith.constant 0 : i32
    return %c0_i32, %c0_i32_0 : i32, i32
  }
  func.func @transform_12(%arg0: i32) -> (i32, i32) {
    %c0_i32 = arith.constant 0 : i32
    %c0_i32_0 = arith.constant 0 : i32
    %c0_i32_1 = arith.constant 0 : i32
    return %c0_i32, %c0_i32_0 : i32, i32
  }
  func.func @transform_13(%arg0: i32) -> (i32, i32) {
    %c0_i32 = arith.constant 0 : i32
    %c0_i32_0 = arith.constant 0 : i32
    %c0_i32_1 = arith.constant 0 : i32
    return %c0_i32, %c0_i32_0 : i32, i32
  }
  func.func @transform_14(%arg0: i32) -> (i32, i32) {
    %c0_i32 = arith.constant 0 : i32
    %c0_i32_0 = arith.constant 0 : i32
    %c0_i32_1 = arith.constant 0 : i32
    return %c0_i32, %c0_i32_0 : i32, i32
  }
  func.func @transform_15(%arg0: i32) -> (i32, i32) {
    %c0_i32 = arith.constant 0 : i32
    %c0_i32_0 = arith.constant 0 : i32
    %c0_i32_1 = arith.constant 0 : i32
    return %c0_i32, %c0_i32_0 : i32, i32
  }
  func.func @transform_16(%arg0: i32) -> i32 {
    %c0_i32 = arith.constant 0 : i32
    %c0_i32_0 = arith.constant 0 : i32
    return %c0_i32 : i32
  }
  func.func @transform_17(%arg0: i32) -> (i32, i32, i32) {
    %c0_i32 = arith.constant 0 : i32
    %c0_i32_0 = arith.constant 0 : i32
    %c0_i32_1 = arith.constant 0 : i32
    return %arg0, %c0_i32, %c0_i32_0 : i32, i32, i32
  }
}

</mosaic_0001>

<llo_original>
// kernel: combined_forward.1
$region0: #{combined_forward.1}
  #allocation0 [shape = 'u32[]', space=smem, size = 0x4, offset = 0x4, fixed_abs, tag = 'smem constant byte address 0x4 - core index']
  #allocation1 [shape = 'u32[144,128]{1,0:T(1,128)}', space=vmem, size = 0x12000, scoped, tag = 'internal scratch']
  #allocation2 [shape = 'f32[1]{0:T(128)S(6)}', space=smem, size = 0x200, scoped, tag = 'scoped memory for combined_forward.1']
  %s0 = inlined_call_operand.vmem [shape: f32[2,1,4], index: 0, kind: input, shape index: {}]
  %s1 = inlined_call_operand.vmem [shape: f32[2,1,4], index: 1, kind: input, shape index: {}]
  %s2 = inlined_call_operand.vmem [shape: f32[2,1,1024], index: 2, kind: input, shape index: {}]
  %s3 = inlined_call_operand.vmem [shape: f32[512,2], index: 3, kind: input, shape index: {}]
  %s4 = inlined_call_operand.vmem [shape: f32[512,1], index: 4, kind: input, shape index: {}]
  %s5 = inlined_call_operand.vmem [shape: f32[64,512], index: 5, kind: input, shape index: {}]
  %s6 = inlined_call_operand.vmem [shape: f32[64,1], index: 6, kind: input, shape index: {}]
  %s7 = inlined_call_operand.vmem [shape: f32[64,9], index: 7, kind: input, shape index: {}]
  %s8 = inlined_call_operand.vmem [shape: f32[64,1], index: 8, kind: input, shape index: {}]
  %s9 = inlined_call_operand.vmem [shape: f32[64,1], index: 9, kind: input, shape index: {}]
  %s10 = inlined_call_operand.vmem [shape: f32[64,1], index: 10, kind: input, shape index: {}]
  %s11 = inlined_call_operand.vmem [shape: f32[9,64], index: 11, kind: input, shape index: {}]
  %s12 = inlined_call_operand.vmem [shape: f32[64,64], index: 12, kind: input, shape index: {}]
  %s13 = inlined_call_operand.vmem [shape: f32[4,1024], index: 13, kind: input, shape index: {}]
  %s14 = inlined_call_operand.vmem [shape: f32[1024,4], index: 14, kind: input, shape index: {}]
  %s15 = inlined_call_operand.vmem [shape: f32[9,1024], index: 15, kind: input, shape index: {}]
  %s16 = inlined_call_operand.<no memory space> [shape: f32[1], index: 16, kind: input, shape index: {}]
  %s17 = inlined_call_operand.vmem [shape: f32[2,1,1024], index: 17, kind: output, shape index: {}]
  %s18 = sld [smem:[#allocation0]]
  $region101: #{combined_forward.1} parent=0
    _
  %s20 = ssub.s32 1, %s18
  %s21 = scalar_select 0, %s20, %s18
  %22 = sst [smem:[#allocation2]] %s16
  loop: start=0, step=1, limit=4
  $region2: #{combined_forward.1} parent=0 // loop_pre_header
    _
  $region3: #{combined_forward.1} parent=0 // loop_header
    %s24 = sphi 0, %s28
    %p25 = scmp.ge.s32.totalorder %s24, 4
    %s34 = sphi 0, %s36
    %s37 = sphi 0, %s34
    %s38 = sphi 0, %s37
    %s54 = sphi 0, %s38
    %s60 = sphi 0, %s62
    %s63 = sphi 0, %s60
    %s64 = sphi 0, %s63
    %s80 = sphi 0, %s64
    %s86 = sphi 0, %s88
    %s89 = sphi 0, %s86
    %s90 = sphi 0, %s89
    %s106 = sphi 0, %s90
    %s110 = sphi 0, %s110
    %s112 = sphi 0, %s110
    %s113 = sphi 0, %s112
    %s127 = sphi 0, %s113
    %s131 = sphi 0, %s131
    %s133 = sphi 0, %s131
    %s134 = sphi 0, %s133
    %s148 = sphi 0, %s134
    %s152 = sphi 0, %s152
    %s154 = sphi 0, %s152
    %s155 = sphi 0, %s154
    %s169 = sphi 0, %s155
    %s173 = sphi 0, %s173
    %s175 = sphi 0, %s173
    %s176 = sphi 0, %s175
    %s190 = sphi 0, %s176
    %s194 = sphi 0, %s194
    %s196 = sphi 0, %s194
    %s197 = sphi 0, %s196
    %s211 = sphi 0, %s197
    %s215 = sphi 0, %s215
    %s217 = sphi 0, %s215
    %s218 = sphi 0, %s217
    %s232 = sphi 0, %s218
    %s236 = sphi 0, %s236
    %s238 = sphi 0, %s236
    %s239 = sphi 0, %s238
    %s253 = sphi 0, %s239
    %s257 = sphi 0, %s257
    %s259 = sphi 0, %s257
    %s260 = sphi 0, %s259
    %s274 = sphi 0, %s260
    %s278 = sphi 0, %s278
    %s280 = sphi 0, %s278
    %s281 = sphi 0, %s280
    %s295 = sphi 0, %s281
    %s299 = sphi 0, %s299
    %s301 = sphi 0, %s299
    %s302 = sphi 0, %s301
    %s316 = sphi 0, %s302
    %s320 = sphi 0, %s320
    %s322 = sphi 0, %s320
    %s323 = sphi 0, %s322
    %s337 = sphi 0, %s323
    %s341 = sphi 0, %s341
    %s343 = sphi 0, %s341
    %s344 = sphi 0, %s343
    %s358 = sphi 0, %s344
    %s362 = sphi 0, %s362
    %s364 = sphi 0, %s362
    %s365 = sphi 0, %s364
    %s379 = sphi 0, %s365
    %s383 = sphi 0, %s383
    %s385 = sphi 0, %s383
    %s386 = sphi 0, %s385
    %s400 = sphi 0, %s386
    %s406 = sphi 0, %s408
    %s409 = sphi 0, %s406
    %s410 = sphi 0, %s409
    %s426 = sphi 0, %s410
  $region4: #{combined_forward.1} parent=0 // loop_header_branch
    %27 = sbr.rel (%p25) target = $region8
  $region5: #{combined_forward.1} parent=0 // loop_body
    %s29 = ssub.s32 %s24, 1
    %s30 = ssub.s32 %s24, 2
    %s31 = sadd.s32 %s24, 1
    %s32 = ssub.s32 %s24, %s31
    %p33 = scmp.eq.s32.totalorder %s32, 0
    %s35 = sadd.s32 %s34, 1
    %s36 = scalar_select %p33, %s34, %s35
    %p39 = pneg %p33
    %p40 = scmp.eq.s32.totalorder %s24, 1
    %p41 = por %p39, %p40
    %p42 = scmp.ne.s32.totalorder %s34, %s37
    %p43 = scmp.eq.s32.totalorder %s24, 0
    %p44 = por %p42, %p43
    %p45 = scmp.ne.s32.totalorder %s34, %s37
    %p46 = scmp.eq.s32.totalorder %s29, 1
    %p47 = por %p45, %p46
    %p48 = scmp.ne.s32.totalorder %s37, %s38
    %p49 = scmp.eq.s32.totalorder %s29, 0
    %p50 = por %p48, %p49
    %p51 = scmp.ne.s32.totalorder %s37, %s38
    %p52 = scmp.eq.s32.totalorder %s30, 1
    %p53 = por %p51, %p52
    %p55 = scmp.ne.s32.totalorder %s38, %s54
    %p56 = scmp.eq.s32.totalorder %s30, 0
    %p57 = por %p55, %p56
    %s58 = ssub.s32 %s24, %s31
    %p59 = scmp.eq.s32.totalorder %s58, 0
    %s61 = sadd.s32 %s60, 1
    %s62 = scalar_select %p59, %s60, %s61
    %p65 = pneg %p59
    %p66 = scmp.eq.s32.totalorder %s24, 1
    %p67 = por %p65, %p66
    %p68 = scmp.ne.s32.totalorder %s60, %s63
    %p69 = scmp.eq.s32.totalorder %s24, 0
    %p70 = por %p68, %p69
    %p71 = scmp.ne.s32.totalorder %s60, %s63
    %p72 = scmp.eq.s32.totalorder %s29, 1
    %p73 = por %p71, %p72
    %p74 = scmp.ne.s32.totalorder %s63, %s64
    %p75 = scmp.eq.s32.totalorder %s29, 0
    %p76 = por %p74, %p75
    %p77 = scmp.ne.s32.totalorder %s63, %s64
    %p78 = scmp.eq.s32.totalorder %s30, 1
    %p79 = por %p77, %p78
    %p81 = scmp.ne.s32.totalorder %s64, %s80
    %p82 = scmp.eq.s32.totalorder %s30, 0
    %p83 = por %p81, %p82
    %s84 = ssub.s32 %s24, %s31
    %p85 = scmp.eq.s32.totalorder %s84, 0
    %s87 = sadd.s32 %s86, 1
    %s88 = scalar_select %p85, %s86, %s87
    %p91 = pneg %p85
    %p92 = scmp.eq.s32.totalorder %s24, 1
    %p93 = por %p91, %p92
    %p94 = scmp.ne.s32.totalorder %s86, %s89
    %p95 = scmp.eq.s32.totalorder %s24, 0
    %p96 = por %p94, %p95
    %p97 = scmp.ne.s32.totalorder %s86, %s89
    %p98 = scmp.eq.s32.totalorder %s29, 1
    %p99 = por %p97, %p98
    %p100 = scmp.ne.s32.totalorder %s89, %s90
    %p101 = scmp.eq.s32.totalorder %s29, 0
    %p102 = por %p100, %p101
    %p103 = scmp.ne.s32.totalorder %s89, %s90
    %p104 = scmp.eq.s32.totalorder %s30, 1
    %p105 = por %p103, %p104
    %p107 = scmp.ne.s32.totalorder %s90, %s106
    %p108 = scmp.eq.s32.totalorder %s30, 0
    %p109 = por %p107, %p108
    %s111 = sadd.s32 %s110, 1
    %p114 = scmp.eq.s32.totalorder %s24, 1
    %p115 = scmp.ne.s32.totalorder %s110, %s112
    %p116 = scmp.eq.s32.totalorder %s24, 0
    %p117 = por %p115, %p116
    %p118 = scmp.ne.s32.totalorder %s110, %s112
    %p119 = scmp.eq.s32.totalorder %s29, 1
    %p120 = por %p118, %p119
    %p121 = scmp.ne.s32.totalorder %s112, %s113
    %p122 = scmp.eq.s32.totalorder %s29, 0
    %p123 = por %p121, %p122
    %p124 = scmp.ne.s32.totalorder %s112, %s113
    %p125 = scmp.eq.s32.totalorder %s30, 1
    %p126 = por %p124, %p125
    %p128 = scmp.ne.s32.totalorder %s113, %s127
    %p129 = scmp.eq.s32.totalorder %s30, 0
    %p130 = por %p128, %p129
    %s132 = sadd.s32 %s131, 1
    %p135 = scmp.eq.s32.totalorder %s24, 1
    %p136 = scmp.ne.s32.totalorder %s131, %s133
    %p137 = scmp.eq.s32.totalorder %s24, 0
    %p138 = por %p136, %p137
    %p139 = scmp.ne.s32.totalorder %s131, %s133
    %p140 = scmp.eq.s32.totalorder %s29, 1
    %p141 = por %p139, %p140
    %p142 = scmp.ne.s32.totalorder %s133, %s134
    %p143 = scmp.eq.s32.totalorder %s29, 0
    %p144 = por %p142, %p143
    %p145 = scmp.ne.s32.totalorder %s133, %s134
    %p146 = scmp.eq.s32.totalorder %s30, 1
    %p147 = por %p145, %p146
    %p149 = scmp.ne.s32.totalorder %s134, %s148
    %p150 = scmp.eq.s32.totalorder %s30, 0
    %p151 = por %p149, %p150
    %s153 = sadd.s32 %s152, 1
    %p156 = scmp.eq.s32.totalorder %s24, 1
    %p157 = scmp.ne.s32.totalorder %s152, %s154
    %p158 = scmp.eq.s32.totalorder %s24, 0
    %p159 = por %p157, %p158
    %p160 = scmp.ne.s32.totalorder %s152, %s154
    %p161 = scmp.eq.s32.totalorder %s29, 1
    %p162 = por %p160, %p161
    %p163 = scmp.ne.s32.totalorder %s154, %s155
    %p164 = scmp.eq.s32.totalorder %s29, 0
    %p165 = por %p163, %p164
    %p166 = scmp.ne.s32.totalorder %s154, %s155
    %p167 = scmp.eq.s32.totalorder %s30, 1
    %p168 = por %p166, %p167
    %p170 = scmp.ne.s32.totalorder %s155, %s169
    %p171 = scmp.eq.s32.totalorder %s30, 0
    %p172 = por %p170, %p171
    %s174 = sadd.s32 %s173, 1
    %p177 = scmp.eq.s32.totalorder %s24, 1
    %p178 = scmp.ne.s32.totalorder %s173, %s175
    %p179 = scmp.eq.s32.totalorder %s24, 0
    %p180 = por %p178, %p179
    %p181 = scmp.ne.s32.totalorder %s173, %s175
    %p182 = scmp.eq.s32.totalorder %s29, 1
    %p183 = por %p181, %p182
    %p184 = scmp.ne.s32.totalorder %s175, %s176
    %p185 = scmp.eq.s32.totalorder %s29, 0
    %p186 = por %p184, %p185
    %p187 = scmp.ne.s32.totalorder %s175, %s176
    %p188 = scmp.eq.s32.totalorder %s30, 1
    %p189 = por %p187, %p188
    %p191 = scmp.ne.s32.totalorder %s176, %s190
    %p192 = scmp.eq.s32.totalorder %s30, 0
    %p193 = por %p191, %p192
    %s195 = sadd.s32 %s194, 1
    %p198 = scmp.eq.s32.totalorder %s24, 1
    %p199 = scmp.ne.s32.totalorder %s194, %s196
    %p200 = scmp.eq.s32.totalorder %s24, 0
    %p201 = por %p199, %p200
    %p202 = scmp.ne.s32.totalorder %s194, %s196
    %p203 = scmp.eq.s32.totalorder %s29, 1
    %p204 = por %p202, %p203
    %p205 = scmp.ne.s32.totalorder %s196, %s197
    %p206 = scmp.eq.s32.totalorder %s29, 0
    %p207 = por %p205, %p206
    %p208 = scmp.ne.s32.totalorder %s196, %s197
    %p209 = scmp.eq.s32.totalorder %s30, 1
    %p210 = por %p208, %p209
    %p212 = scmp.ne.s32.totalorder %s197, %s211
    %p213 = scmp.eq.s32.totalorder %s30, 0
    %p214 = por %p212, %p213
    %s216 = sadd.s32 %s215, 1
    %p219 = scmp.eq.s32.totalorder %s24, 1
    %p220 = scmp.ne.s32.totalorder %s215, %s217
    %p221 = scmp.eq.s32.totalorder %s24, 0
    %p222 = por %p220, %p221
    %p223 = scmp.ne.s32.totalorder %s215, %s217
    %p224 = scmp.eq.s32.totalorder %s29, 1
    %p225 = por %p223, %p224
    %p226 = scmp.ne.s32.totalorder %s217, %s218
    %p227 = scmp.eq.s32.totalorder %s29, 0
    %p228 = por %p226, %p227
    %p229 = scmp.ne.s32.totalorder %s217, %s218
    %p230 = scmp.eq.s32.totalorder %s30, 1
    %p231 = por %p229, %p230
    %p233 = scmp.ne.s32.totalorder %s218, %s232
    %p234 = scmp.eq.s32.totalorder %s30, 0
    %p235 = por %p233, %p234
    %s237 = sadd.s32 %s236, 1
    %p240 = scmp.eq.s32.totalorder %s24, 1
    %p241 = scmp.ne.s32.totalorder %s236, %s238
    %p242 = scmp.eq.s32.totalorder %s24, 0
    %p243 = por %p241, %p242
    %p244 = scmp.ne.s32.totalorder %s236, %s238
    %p245 = scmp.eq.s32.totalorder %s29, 1
    %p246 = por %p244, %p245
    %p247 = scmp.ne.s32.totalorder %s238, %s239
    %p248 = scmp.eq.s32.totalorder %s29, 0
    %p249 = por %p247, %p248
    %p250 = scmp.ne.s32.totalorder %s238, %s239
    %p251 = scmp.eq.s32.totalorder %s30, 1
    %p252 = por %p250, %p251
    %p254 = scmp.ne.s32.totalorder %s239, %s253
    %p255 = scmp.eq.s32.totalorder %s30, 0
    %p256 = por %p254, %p255
    %s258 = sadd.s32 %s257, 1
    %p261 = scmp.eq.s32.totalorder %s24, 1
    %p262 = scmp.ne.s32.totalorder %s257, %s259
    %p263 = scmp.eq.s32.totalorder %s24, 0
    %p264 = por %p262, %p263
    %p265 = scmp.ne.s32.totalorder %s257, %s259
    %p266 = scmp.eq.s32.totalorder %s29, 1
    %p267 = por %p265, %p266
    %p268 = scmp.ne.s32.totalorder %s259, %s260
    %p269 = scmp.eq.s32.totalorder %s29, 0
    %p270 = por %p268, %p269
    %p271 = scmp.ne.s32.totalorder %s259, %s260
    %p272 = scmp.eq.s32.totalorder %s30, 1
    %p273 = por %p271, %p272
    %p275 = scmp.ne.s32.totalorder %s260, %s274
    %p276 = scmp.eq.s32.totalorder %s30, 0
    %p277 = por %p275, %p276
    %s279 = sadd.s32 %s278, 1
    %p282 = scmp.eq.s32.totalorder %s24, 1
    %p283 = scmp.ne.s32.totalorder %s278, %s280
    %p284 = scmp.eq.s32.totalorder %s24, 0
    %p285 = por %p283, %p284
    %p286 = scmp.ne.s32.totalorder %s278, %s280
    %p287 = scmp.eq.s32.totalorder %s29, 1
    %p288 = por %p286, %p287
    %p289 = scmp.ne.s32.totalorder %s280, %s281
    %p290 = scmp.eq.s32.totalorder %s29, 0
    %p291 = por %p289, %p290
    %p292 = scmp.ne.s32.totalorder %s280, %s281
    %p293 = scmp.eq.s32.totalorder %s30, 1
    %p294 = por %p292, %p293
    %p296 = scmp.ne.s32.totalorder %s281, %s295
    %p297 = scmp.eq.s32.totalorder %s30, 0
    %p298 = por %p296, %p297
    %s300 = sadd.s32 %s299, 1
    %p303 = scmp.eq.s32.totalorder %s24, 1
    %p304 = scmp.ne.s32.totalorder %s299, %s301
    %p305 = scmp.eq.s32.totalorder %s24, 0
    %p306 = por %p304, %p305
    %p307 = scmp.ne.s32.totalorder %s299, %s301
    %p308 = scmp.eq.s32.totalorder %s29, 1
    %p309 = por %p307, %p308
    %p310 = scmp.ne.s32.totalorder %s301, %s302
    %p311 = scmp.eq.s32.totalorder %s29, 0
    %p312 = por %p310, %p311
    %p313 = scmp.ne.s32.totalorder %s301, %s302
    %p314 = scmp.eq.s32.totalorder %s30, 1
    %p315 = por %p313, %p314
    %p317 = scmp.ne.s32.totalorder %s302, %s316
    %p318 = scmp.eq.s32.totalorder %s30, 0
    %p319 = por %p317, %p318
    %s321 = sadd.s32 %s320, 1
    %p324 = scmp.eq.s32.totalorder %s24, 1
    %p325 = scmp.ne.s32.totalorder %s320, %s322
    %p326 = scmp.eq.s32.totalorder %s24, 0
    %p327 = por %p325, %p326
    %p328 = scmp.ne.s32.totalorder %s320, %s322
    %p329 = scmp.eq.s32.totalorder %s29, 1
    %p330 = por %p328, %p329
    %p331 = scmp.ne.s32.totalorder %s322, %s323
    %p332 = scmp.eq.s32.totalorder %s29, 0
    %p333 = por %p331, %p332
    %p334 = scmp.ne.s32.totalorder %s322, %s323
    %p335 = scmp.eq.s32.totalorder %s30, 1
    %p336 = por %p334, %p335
    %p338 = scmp.ne.s32.totalorder %s323, %s337
    %p339 = scmp.eq.s32.totalorder %s30, 0
    %p340 = por %p338, %p339
    %s342 = sadd.s32 %s341, 1
    %p345 = scmp.eq.s32.totalorder %s24, 1
    %p346 = scmp.ne.s32.totalorder %s341, %s343
    %p347 = scmp.eq.s32.totalorder %s24, 0
    %p348 = por %p346, %p347
    %p349 = scmp.ne.s32.totalorder %s341, %s343
    %p350 = scmp.eq.s32.totalorder %s29, 1
    %p351 = por %p349, %p350
    %p352 = scmp.ne.s32.totalorder %s343, %s344
    %p353 = scmp.eq.s32.totalorder %s29, 0
    %p354 = por %p352, %p353
    %p355 = scmp.ne.s32.totalorder %s343, %s344
    %p356 = scmp.eq.s32.totalorder %s30, 1
    %p357 = por %p355, %p356
    %p359 = scmp.ne.s32.totalorder %s344, %s358
    %p360 = scmp.eq.s32.totalorder %s30, 0
    %p361 = por %p359, %p360
    %s363 = sadd.s32 %s362, 1
    %p366 = scmp.eq.s32.totalorder %s24, 1
    %p367 = scmp.ne.s32.totalorder %s362, %s364
    %p368 = scmp.eq.s32.totalorder %s24, 0
    %p369 = por %p367, %p368
    %p370 = scmp.ne.s32.totalorder %s362, %s364
    %p371 = scmp.eq.s32.totalorder %s29, 1
    %p372 = por %p370, %p371
    %p373 = scmp.ne.s32.totalorder %s364, %s365
    %p374 = scmp.eq.s32.totalorder %s29, 0
    %p375 = por %p373, %p374
    %p376 = scmp.ne.s32.totalorder %s364, %s365
    %p377 = scmp.eq.s32.totalorder %s30, 1
    %p378 = por %p376, %p377
    %p380 = scmp.ne.s32.totalorder %s365, %s379
    %p381 = scmp.eq.s32.totalorder %s30, 0
    %p382 = por %p380, %p381
    %s384 = sadd.s32 %s383, 1
    %p387 = scmp.eq.s32.totalorder %s24, 1
    %p388 = scmp.ne.s32.totalorder %s383, %s385
    %p389 = scmp.eq.s32.totalorder %s24, 0
    %p390 = por %p388, %p389
    %p391 = scmp.ne.s32.totalorder %s383, %s385
    %p392 = scmp.eq.s32.totalorder %s29, 1
    %p393 = por %p391, %p392
    %p394 = scmp.ne.s32.totalorder %s385, %s386
    %p395 = scmp.eq.s32.totalorder %s29, 0
    %p396 = por %p394, %p395
    %p397 = scmp.ne.s32.totalorder %s385, %s386
    %p398 = scmp.eq.s32.totalorder %s30, 1
    %p399 = por %p397, %p398
    %p401 = scmp.ne.s32.totalorder %s386, %s400
    %p402 = scmp.eq.s32.totalorder %s30, 0
    %p403 = por %p401, %p402
    %s404 = ssub.s32 %s24, %s31
    %p405 = scmp.eq.s32.totalorder %s404, 0
    %s407 = sadd.s32 %s406, 1
    %s408 = scalar_select %p405, %s406, %s407
    %p411 = pneg %p405
    %p412 = scmp.eq.s32.totalorder %s24, 1
    %p413 = por %p411, %p412
    %p414 = scmp.ne.s32.totalorder %s406, %s409
    %p415 = scmp.eq.s32.totalorder %s24, 0
    %p416 = por %p414, %p415
    %p417 = scmp.ne.s32.totalorder %s406, %s409
    %p418 = scmp.eq.s32.totalorder %s29, 1
    %p419 = por %p417, %p418
    %p420 = scmp.ne.s32.totalorder %s409, %s410
    %p421 = scmp.eq.s32.totalorder %s29, 0
    %p422 = por %p420, %p421
    %p423 = scmp.ne.s32.totalorder %s409, %s410
    %p424 = scmp.eq.s32.totalorder %s30, 1
    %p425 = por %p423, %p424
    %p427 = scmp.ne.s32.totalorder %s410, %s426
    %p428 = scmp.eq.s32.totalorder %s30, 0
    %p429 = por %p427, %p428
    %p430 = scmp.le.s32.totalorder 1, %s24
    %p431 = scmp.lt.s32.totalorder %s24, 3
    %p432 = pnand %p430, %p431
    %p433 = pneg %p432
    // Predicated region
    $region9: #{combined_forward.1} parent=5 // pred_check
      _
    $region10: #{combined_forward.1} parent=5 // pred_check_branch
      %435 = sbr.rel (%p432) target = $region12
    $region11: #{combined_forward.1} parent=5 // pred_region
      %s436 = ssub.s32 %s24, 1
      // Predicated region
      $region13: #{combined_forward.1} parent=11 // pred_check
        %p437 = pneg %p123
      $region14: #{combined_forward.1} parent=11 // pred_check_branch
        %439 = sbr.rel (%p437) target = $region16
      $region15: #{combined_forward.1} parent=11 // pred_region
        _
      $region16: #{combined_forward.1} parent=11 // pred_fallthru
        _
      // Predicated region
      $region17: #{combined_forward.1} parent=11 // pred_check
        %p440 = pneg %p144
      $region18: #{combined_forward.1} parent=11 // pred_check_branch
        %442 = sbr.rel (%p440) target = $region20
      $region19: #{combined_forward.1} parent=11 // pred_region
        _
      $region20: #{combined_forward.1} parent=11 // pred_fallthru
        _
      // Predicated region
      $region21: #{combined_forward.1} parent=11 // pred_check
        %p443 = pneg %p165
      $region22: #{combined_forward.1} parent=11 // pred_check_branch
        %445 = sbr.rel (%p443) target = $region24
      $region23: #{combined_forward.1} parent=11 // pred_region
        _
      $region24: #{combined_forward.1} parent=11 // pred_fallthru
        _
      // Predicated region
      $region25: #{combined_forward.1} parent=11 // pred_check
        %p446 = pneg %p186
      $region26: #{combined_forward.1} parent=11 // pred_check_branch
        %448 = sbr.rel (%p446) target = $region28
      $region27: #{combined_forward.1} parent=11 // pred_region
        _
      $region28: #{combined_forward.1} parent=11 // pred_fallthru
        _
      // Predicated region
      $region29: #{combined_forward.1} parent=11 // pred_check
        %p449 = pneg %p207
      $region30: #{combined_forward.1} parent=11 // pred_check_branch
        %451 = sbr.rel (%p449) target = $region32
      $region31: #{combined_forward.1} parent=11 // pred_region
        _
      $region32: #{combined_forward.1} parent=11 // pred_fallthru
        _
      // Predicated region
      $region33: #{combined_forward.1} parent=11 // pred_check
        %p452 = pneg %p228
      $region34: #{combined_forward.1} parent=11 // pred_check_branch
        %454 = sbr.rel (%p452) target = $region36
      $region35: #{combined_forward.1} parent=11 // pred_region
        _
      $region36: #{combined_forward.1} parent=11 // pred_fallthru
        _
      // Predicated region
      $region37: #{combined_forward.1} parent=11 // pred_check
        %p455 = pneg %p249
      $region38: #{combined_forward.1} parent=11 // pred_check_branch
        %457 = sbr.rel (%p455) target = $region40
      $region39: #{combined_forward.1} parent=11 // pred_region
        _
      $region40: #{combined_forward.1} parent=11 // pred_fallthru
        _
      // Predicated region
      $region41: #{combined_forward.1} parent=11 // pred_check
        %p458 = pneg %p270
      $region42: #{combined_forward.1} parent=11 // pred_check_branch
        %460 = sbr.rel (%p458) target = $region44
      $region43: #{combined_forward.1} parent=11 // pred_region
        _
      $region44: #{combined_forward.1} parent=11 // pred_fallthru
        _
      // Predicated region
      $region45: #{combined_forward.1} parent=11 // pred_check
        %p461 = pneg %p291
      $region46: #{combined_forward.1} parent=11 // pred_check_branch
        %463 = sbr.rel (%p461) target = $region48
      $region47: #{combined_forward.1} parent=11 // pred_region
        _
      $region48: #{combined_forward.1} parent=11 // pred_fallthru
        _
      // Predicated region
      $region49: #{combined_forward.1} parent=11 // pred_check
        %p464 = pneg %p312
      $region50: #{combined_forward.1} parent=11 // pred_check_branch
        %466 = sbr.rel (%p464) target = $region52
      $region51: #{combined_forward.1} parent=11 // pred_region
        _
      $region52: #{combined_forward.1} parent=11 // pred_fallthru
        _
      // Predicated region
      $region53: #{combined_forward.1} parent=11 // pred_check
        %p467 = pneg %p333
      $region54: #{combined_forward.1} parent=11 // pred_check_branch
        %469 = sbr.rel (%p467) target = $region56
      $region55: #{combined_forward.1} parent=11 // pred_region
        _
      $region56: #{combined_forward.1} parent=11 // pred_fallthru
        _
      // Predicated region
      $region57: #{combined_forward.1} parent=11 // pred_check
        %p470 = pneg %p354
      $region58: #{combined_forward.1} parent=11 // pred_check_branch
        %472 = sbr.rel (%p470) target = $region60
      $region59: #{combined_forward.1} parent=11 // pred_region
        _
      $region60: #{combined_forward.1} parent=11 // pred_fallthru
        _
      // Predicated region
      $region61: #{combined_forward.1} parent=11 // pred_check
        %p473 = pneg %p375
      $region62: #{combined_forward.1} parent=11 // pred_check_branch
        %475 = sbr.rel (%p473) target = $region64
      $region63: #{combined_forward.1} parent=11 // pred_region
        _
      $region64: #{combined_forward.1} parent=11 // pred_fallthru
        _
      // Predicated region
      $region65: #{combined_forward.1} parent=11 // pred_check
        %p476 = pneg %p396
      $region66: #{combined_forward.1} parent=11 // pred_check_branch
        %478 = sbr.rel (%p476) target = $region68
      $region67: #{combined_forward.1} parent=11 // pred_region
        _
      $region68: #{combined_forward.1} parent=11 // pred_fallthru
        _
    $region12: #{combined_forward.1} parent=5 // pred_fallthru
      _
    %p479 = scmp.lt.s32.totalorder %s24, 2
    // Predicated region
    $region69: #{combined_forward.1} parent=5 // pred_check
      %p480 = pneg %p479
    $region70: #{combined_forward.1} parent=5 // pred_check_branch
      %482 = sbr.rel (%p480) target = $region72
    $region71: #{combined_forward.1} parent=5 // pred_region
      // Predicated region
      $region73: #{combined_forward.1} parent=71 // pred_check
        %p483 = pneg %p44
      $region74: #{combined_forward.1} parent=71 // pred_check_branch
        %485 = sbr.rel (%p483) target = $region76
      $region75: #{combined_forward.1} parent=71 // pred_region
        %p486 = scmp.lt.s32.totalorder %s24, 1
        %s487 = scalar_select %p486, %s24, 1
        %s488 = scalar_lea.vmem %s0, %s487
      $region76: #{combined_forward.1} parent=71 // pred_fallthru
        _
      // Predicated region
      $region77: #{combined_forward.1} parent=71 // pred_check
        %p489 = pneg %p70
      $region78: #{combined_forward.1} parent=71 // pred_check_branch
        %491 = sbr.rel (%p489) target = $region80
      $region79: #{combined_forward.1} parent=71 // pred_region
        %p492 = scmp.lt.s32.totalorder %s24, 1
        %s493 = scalar_select %p492, %s24, 1
        %s494 = scalar_lea.vmem %s1, %s493
      $region80: #{combined_forward.1} parent=71 // pred_fallthru
        _
      // Predicated region
      $region81: #{combined_forward.1} parent=71 // pred_check
        %p495 = pneg %p96
      $region82: #{combined_forward.1} parent=71 // pred_check_branch
        %497 = sbr.rel (%p495) target = $region84
      $region83: #{combined_forward.1} parent=71 // pred_region
        %p498 = scmp.lt.s32.totalorder %s24, 1
        %s499 = scalar_select %p498, %s24, 1
        %s500 = smul.addr %s499, 8
        %s501 = scalar_lea.vmem %s2, %s500
      $region84: #{combined_forward.1} parent=71 // pred_fallthru
        _
    $region72: #{combined_forward.1} parent=5 // pred_fallthru
      _
    %p502 = scmp.le.s32.totalorder 1, %s24
    %p503 = scmp.lt.s32.totalorder %s24, 3
    %p504 = pnand %p502, %p503
    %p505 = pneg %p504
    // Predicated region
    $region85: #{combined_forward.1} parent=5 // pred_check
      _
    $region86: #{combined_forward.1} parent=5 // pred_check_branch
      %507 = sbr.rel (%p504) target = $region88
    $region87: #{combined_forward.1} parent=5 // pred_region
      %s508 = ssub.s32 %s24, 1
      %p509 = scmp.lt.s32.totalorder %s29, 1
      %s510 = scalar_select %p509, %s29, 1
      %s511 = scalar_lea.vmem %s0, %s510
      %p512 = pneg %p50
      %p513 = pneg %p47
      %p514 = scmp.lt.s32.totalorder %s29, 1
      %s515 = scalar_select %p514, %s29, 1
      %s516 = scalar_lea.vmem %s1, %s515
      %p517 = pneg %p76
      %p518 = pneg %p73
      %p519 = scmp.lt.s32.totalorder %s29, 1
      %s520 = scalar_select %p519, %s29, 1
      %s521 = smul.addr %s520, 8
      %s522 = scalar_lea.vmem %s2, %s521
      %p523 = pneg %p102
      %p524 = pneg %p99
      %p525 = pneg %p123
      %p526 = pneg %p120
      %p527 = pneg %p144
      %p528 = pneg %p141
      %p529 = pneg %p165
      %p530 = pneg %p162
      %p531 = pneg %p186
      %p532 = pneg %p183
      %p533 = pneg %p207
      %p534 = pneg %p204
      %p535 = pneg %p228
      %p536 = pneg %p225
      %p537 = pneg %p249
      %p538 = pneg %p246
      %p539 = pneg %p270
      %p540 = pneg %p267
      %p541 = pneg %p291
      %p542 = pneg %p288
      %p543 = pneg %p312
      %p544 = pneg %p309
      %p545 = pneg %p333
      %p546 = pneg %p330
      %p547 = pneg %p354
      %p548 = pneg %p351
      %p549 = pneg %p375
      %p550 = pneg %p372
      %p551 = pneg %p396
      %p552 = pneg %p393
      %p553 = pneg %p422
      %p554 = pneg %p419
      %p555 = scmp.lt.s32.totalorder %s29, 1
      %s556 = scalar_select %p555, %s29, 1
      %s557 = smul.addr %s556, 8
      %s558 = scalar_lea.vmem %s17, %s557
      %p559 = scmp.lt.s32.totalorder %s29, 1
      %s560 = scalar_select %p559, %s29, 1
      %s561 = scalar_lea.vmem %s0, %s560
      %p562 = scmp.lt.s32.totalorder %s29, 1
      %s563 = scalar_select %p562, %s29, 1
      %s564 = scalar_lea.vmem %s1, %s563
      %p565 = scmp.lt.s32.totalorder %s29, 1
      %s566 = scalar_select %p565, %s29, 1
      %s567 = smul.addr %s566, 8
      %s568 = scalar_lea.vmem %s2, %s567
      %p569 = scmp.lt.s32.totalorder %s29, 1
      %s570 = scalar_select %p569, %s29, 1
      %s571 = smul.addr %s570, 8
      %s572 = scalar_lea.vmem %s17, %s571
      %v573 = vld [vmem:[%s561] sm:$0x1]
      %v574 = vld [vmem:[%s564] sm:$0x1]
      %v576 = vlaneseq
      %v577 = vshrl.u32 %v576, 7
      %v578 = vsub.s32 0, %v577
      %v579 = vrot.slane %v574, %v578
      %vm581 = vcmask 1040384
      %v582 = vsel %vm581, %v573, %v579
      %v583 = vld [vmem:[%s3] sm:$0xff]
      %v584 = vld [vmem:[%s3 + $0x8] sm:$0xff]
      %v585 = vld [vmem:[%s3 + $0x10] sm:$0xff]
      %v586 = vld [vmem:[%s3 + $0x18] sm:$0xff]
      %v587 = vld [vmem:[%s3 + $0x20] sm:$0xff]
      %v588 = vld [vmem:[%s3 + $0x28] sm:$0xff]
      %v589 = vld [vmem:[%s3 + $0x30] sm:$0xff]
      %v590 = vld [vmem:[%s3 + $0x38] sm:$0xff]
      %v591 = vld [vmem:[%s3 + $0x40] sm:$0xff]
      %v592 = vld [vmem:[%s3 + $0x48] sm:$0xff]
      %v593 = vld [vmem:[%s3 + $0x50] sm:$0xff]
      %v594 = vld [vmem:[%s3 + $0x58] sm:$0xff]
      %v595 = vld [vmem:[%s3 + $0x60] sm:$0xff]
      %v596 = vld [vmem:[%s3 + $0x68] sm:$0xff]
      %v597 = vld [vmem:[%s3 + $0x70] sm:$0xff]
      %v598 = vld [vmem:[%s3 + $0x78] sm:$0xff]
      %v599 = vld [vmem:[%s3 + $0x80] sm:$0xff]
      %v600 = vld [vmem:[%s3 + $0x88] sm:$0xff]
      %v601 = vld [vmem:[%s3 + $0x90] sm:$0xff]
      %v602 = vld [vmem:[%s3 + $0x98] sm:$0xff]
      %v603 = vld [vmem:[%s3 + $0xa0] sm:$0xff]
      %v604 = vld [vmem:[%s3 + $0xa8] sm:$0xff]
      %v605 = vld [vmem:[%s3 + $0xb0] sm:$0xff]
      %v606 = vld [vmem:[%s3 + $0xb8] sm:$0xff]
      %v607 = vld [vmem:[%s3 + $0xc0] sm:$0xff]
      %v608 = vld [vmem:[%s3 + $0xc8] sm:$0xff]
      %v609 = vld [vmem:[%s3 + $0xd0] sm:$0xff]
      %v610 = vld [vmem:[%s3 + $0xd8] sm:$0xff]
      %v611 = vld [vmem:[%s3 + $0xe0] sm:$0xff]
      %v612 = vld [vmem:[%s3 + $0xe8] sm:$0xff]
      %v613 = vld [vmem:[%s3 + $0xf0] sm:$0xff]
      %v614 = vld [vmem:[%s3 + $0xf8] sm:$0xff]
      %v615 = vld [vmem:[%s3 + $0x100] sm:$0xff]
      %v616 = vld [vmem:[%s3 + $0x108] sm:$0xff]
      %v617 = vld [vmem:[%s3 + $0x110] sm:$0xff]
      %v618 = vld [vmem:[%s3 + $0x118] sm:$0xff]
      %v619 = vld [vmem:[%s3 + $0x120] sm:$0xff]
      %v620 = vld [vmem:[%s3 + $0x128] sm:$0xff]
      %v621 = vld [vmem:[%s3 + $0x130] sm:$0xff]
      %v622 = vld [vmem:[%s3 + $0x138] sm:$0xff]
      %v623 = vld [vmem:[%s3 + $0x140] sm:$0xff]
      %v624 = vld [vmem:[%s3 + $0x148] sm:$0xff]
      %v625 = vld [vmem:[%s3 + $0x150] sm:$0xff]
      %v626 = vld [vmem:[%s3 + $0x158] sm:$0xff]
      %v627 = vld [vmem:[%s3 + $0x160] sm:$0xff]
      %v628 = vld [vmem:[%s3 + $0x168] sm:$0xff]
      %v629 = vld [vmem:[%s3 + $0x170] sm:$0xff]
      %v630 = vld [vmem:[%s3 + $0x178] sm:$0xff]
      %v631 = vld [vmem:[%s3 + $0x180] sm:$0xff]
      %v632 = vld [vmem:[%s3 + $0x188] sm:$0xff]
      %v633 = vld [vmem:[%s3 + $0x190] sm:$0xff]
      %v634 = vld [vmem:[%s3 + $0x198] sm:$0xff]
      %v635 = vld [vmem:[%s3 + $0x1a0] sm:$0xff]
      %v636 = vld [vmem:[%s3 + $0x1a8] sm:$0xff]
      %v637 = vld [vmem:[%s3 + $0x1b0] sm:$0xff]
      %v638 = vld [vmem:[%s3 + $0x1b8] sm:$0xff]
      %v639 = vld [vmem:[%s3 + $0x1c0] sm:$0xff]
      %v640 = vld [vmem:[%s3 + $0x1c8] sm:$0xff]
      %v641 = vld [vmem:[%s3 + $0x1d0] sm:$0xff]
      %v642 = vld [vmem:[%s3 + $0x1d8] sm:$0xff]
      %v643 = vld [vmem:[%s3 + $0x1e0] sm:$0xff]
      %v644 = vld [vmem:[%s3 + $0x1e8] sm:$0xff]
      %v645 = vld [vmem:[%s3 + $0x1f0] sm:$0xff]
      %v646 = vld [vmem:[%s3 + $0x1f8] sm:$0xff]
      %v647 = vld [vmem:[%s4] sm:$0xff]
      %v648 = vld [vmem:[%s4 + $0x8] sm:$0xff]
      %v649 = vld [vmem:[%s4 + $0x10] sm:$0xff]
      %v650 = vld [vmem:[%s4 + $0x18] sm:$0xff]
      %v651 = vld [vmem:[%s4 + $0x20] sm:$0xff]
      %v652 = vld [vmem:[%s4 + $0x28] sm:$0xff]
      %v653 = vld [vmem:[%s4 + $0x30] sm:$0xff]
      %v654 = vld [vmem:[%s4 + $0x38] sm:$0xff]
      %v655 = vld [vmem:[%s4 + $0x40] sm:$0xff]
      %v656 = vld [vmem:[%s4 + $0x48] sm:$0xff]
      %v657 = vld [vmem:[%s4 + $0x50] sm:$0xff]
      %v658 = vld [vmem:[%s4 + $0x58] sm:$0xff]
      %v659 = vld [vmem:[%s4 + $0x60] sm:$0xff]
      %v660 = vld [vmem:[%s4 + $0x68] sm:$0xff]
      %v661 = vld [vmem:[%s4 + $0x70] sm:$0xff]
      %v662 = vld [vmem:[%s4 + $0x78] sm:$0xff]
      %v663 = vld [vmem:[%s4 + $0x80] sm:$0xff]
      %v664 = vld [vmem:[%s4 + $0x88] sm:$0xff]
      %v665 = vld [vmem:[%s4 + $0x90] sm:$0xff]
      %v666 = vld [vmem:[%s4 + $0x98] sm:$0xff]
      %v667 = vld [vmem:[%s4 + $0xa0] sm:$0xff]
      %v668 = vld [vmem:[%s4 + $0xa8] sm:$0xff]
      %v669 = vld [vmem:[%s4 + $0xb0] sm:$0xff]
      %v670 = vld [vmem:[%s4 + $0xb8] sm:$0xff]
      %v671 = vld [vmem:[%s4 + $0xc0] sm:$0xff]
      %v672 = vld [vmem:[%s4 + $0xc8] sm:$0xff]
      %v673 = vld [vmem:[%s4 + $0xd0] sm:$0xff]
      %v674 = vld [vmem:[%s4 + $0xd8] sm:$0xff]
      %v675 = vld [vmem:[%s4 + $0xe0] sm:$0xff]
      %v676 = vld [vmem:[%s4 + $0xe8] sm:$0xff]
      %v677 = vld [vmem:[%s4 + $0xf0] sm:$0xff]
      %v678 = vld [vmem:[%s4 + $0xf8] sm:$0xff]
      %v679 = vld [vmem:[%s4 + $0x100] sm:$0xff]
      %v680 = vld [vmem:[%s4 + $0x108] sm:$0xff]
      %v681 = vld [vmem:[%s4 + $0x110] sm:$0xff]
      %v682 = vld [vmem:[%s4 + $0x118] sm:$0xff]
      %v683 = vld [vmem:[%s4 + $0x120] sm:$0xff]
      %v684 = vld [vmem:[%s4 + $0x128] sm:$0xff]
      %v685 = vld [vmem:[%s4 + $0x130] sm:$0xff]
      %v686 = vld [vmem:[%s4 + $0x138] sm:$0xff]
      %v687 = vld [vmem:[%s4 + $0x140] sm:$0xff]
      %v688 = vld [vmem:[%s4 + $0x148] sm:$0xff]
      %v689 = vld [vmem:[%s4 + $0x150] sm:$0xff]
      %v690 = vld [vmem:[%s4 + $0x158] sm:$0xff]
      %v691 = vld [vmem:[%s4 + $0x160] sm:$0xff]
      %v692 = vld [vmem:[%s4 + $0x168] sm:$0xff]
      %v693 = vld [vmem:[%s4 + $0x170] sm:$0xff]
      %v694 = vld [vmem:[%s4 + $0x178] sm:$0xff]
      %v695 = vld [vmem:[%s4 + $0x180] sm:$0xff]
      %v696 = vld [vmem:[%s4 + $0x188] sm:$0xff]
      %v697 = vld [vmem:[%s4 + $0x190] sm:$0xff]
      %v698 = vld [vmem:[%s4 + $0x198] sm:$0xff]
      %v699 = vld [vmem:[%s4 + $0x1a0] sm:$0xff]
      %v700 = vld [vmem:[%s4 + $0x1a8] sm:$0xff]
      %v701 = vld [vmem:[%s4 + $0x1b0] sm:$0xff]
      %v702 = vld [vmem:[%s4 + $0x1b8] sm:$0xff]
      %v703 = vld [vmem:[%s4 + $0x1c0] sm:$0xff]
      %v704 = vld [vmem:[%s4 + $0x1c8] sm:$0xff]
      %v705 = vld [vmem:[%s4 + $0x1d0] sm:$0xff]
      %v706 = vld [vmem:[%s4 + $0x1d8] sm:$0xff]
      %v707 = vld [vmem:[%s4 + $0x1e0] sm:$0xff]
      %v708 = vld [vmem:[%s4 + $0x1e8] sm:$0xff]
      %v709 = vld [vmem:[%s4 + $0x1f0] sm:$0xff]
      %v710 = vld [vmem:[%s4 + $0x1f8] sm:$0xff]
      %712 = vset.pattern.permute.xlu0 0
      %713 = vperm.xlu0 %712, %v647
      %v714 = vpop.permute.xlu0 %713
      %717 = vset.pattern.permute.xlu0 0
      %718 = vperm.xlu0 %717, %v648
      %v719 = vpop.permute.xlu0 %718
      %722 = vset.pattern.permute.xlu0 0
      %723 = vperm.xlu0 %722, %v649
      %v724 = vpop.permute.xlu0 %723
      %727 = vset.pattern.permute.xlu0 0
      %728 = vperm.xlu0 %727, %v650
      %v729 = vpop.permute.xlu0 %728
      %732 = vset.pattern.permute.xlu0 0
      %733 = vperm.xlu0 %732, %v651
      %v734 = vpop.permute.xlu0 %733
      %737 = vset.pattern.permute.xlu0 0
      %738 = vperm.xlu0 %737, %v652
      %v739 = vpop.permute.xlu0 %738
      %742 = vset.pattern.permute.xlu0 0
      %743 = vperm.xlu0 %742, %v653
      %v744 = vpop.permute.xlu0 %743
      %747 = vset.pattern.permute.xlu0 0
      %748 = vperm.xlu0 %747, %v654
      %v749 = vpop.permute.xlu0 %748
      %752 = vset.pattern.permute.xlu0 0
      %753 = vperm.xlu0 %752, %v655
      %v754 = vpop.permute.xlu0 %753
      %757 = vset.pattern.permute.xlu0 0
      %758 = vperm.xlu0 %757, %v656
      %v759 = vpop.permute.xlu0 %758
      %762 = vset.pattern.permute.xlu0 0
      %763 = vperm.xlu0 %762, %v657
      %v764 = vpop.permute.xlu0 %763
      %767 = vset.pattern.permute.xlu0 0
      %768 = vperm.xlu0 %767, %v658
      %v769 = vpop.permute.xlu0 %768
      %772 = vset.pattern.permute.xlu0 0
      %773 = vperm.xlu0 %772, %v659
      %v774 = vpop.permute.xlu0 %773
      %777 = vset.pattern.permute.xlu0 0
      %778 = vperm.xlu0 %777, %v660
      %v779 = vpop.permute.xlu0 %778
      %782 = vset.pattern.permute.xlu0 0
      %783 = vperm.xlu0 %782, %v661
      %v784 = vpop.permute.xlu0 %783
      %787 = vset.pattern.permute.xlu0 0
      %788 = vperm.xlu0 %787, %v662
      %v789 = vpop.permute.xlu0 %788
      %792 = vset.pattern.permute.xlu0 0
      %793 = vperm.xlu0 %792, %v663
      %v794 = vpop.permute.xlu0 %793
      %797 = vset.pattern.permute.xlu0 0
      %798 = vperm.xlu0 %797, %v664
      %v799 = vpop.permute.xlu0 %798
      %802 = vset.pattern.permute.xlu0 0
      %803 = vperm.xlu0 %802, %v665
      %v804 = vpop.permute.xlu0 %803
      %807 = vset.pattern.permute.xlu0 0
      %808 = vperm.xlu0 %807, %v666
      %v809 = vpop.permute.xlu0 %808
      %812 = vset.pattern.permute.xlu0 0
      %813 = vperm.xlu0 %812, %v667
      %v814 = vpop.permute.xlu0 %813
      %817 = vset.pattern.permute.xlu0 0
      %818 = vperm.xlu0 %817, %v668
      %v819 = vpop.permute.xlu0 %818
      %822 = vset.pattern.permute.xlu0 0
      %823 = vperm.xlu0 %822, %v669
      %v824 = vpop.permute.xlu0 %823
      %827 = vset.pattern.permute.xlu0 0
      %828 = vperm.xlu0 %827, %v670
      %v829 = vpop.permute.xlu0 %828
      %832 = vset.pattern.permute.xlu0 0
      %833 = vperm.xlu0 %832, %v671
      %v834 = vpop.permute.xlu0 %833
      %837 = vset.pattern.permute.xlu0 0
      %838 = vperm.xlu0 %837, %v672
      %v839 = vpop.permute.xlu0 %838
      %842 = vset.pattern.permute.xlu0 0
      %843 = vperm.xlu0 %842, %v673
      %v844 = vpop.permute.xlu0 %843
      %847 = vset.pattern.permute.xlu0 0
      %848 = vperm.xlu0 %847, %v674
      %v849 = vpop.permute.xlu0 %848
      %852 = vset.pattern.permute.xlu0 0
      %853 = vperm.xlu0 %852, %v675
      %v854 = vpop.permute.xlu0 %853
      %857 = vset.pattern.permute.xlu0 0
      %858 = vperm.xlu0 %857, %v676
      %v859 = vpop.permute.xlu0 %858
      %862 = vset.pattern.permute.xlu0 0
      %863 = vperm.xlu0 %862, %v677
      %v864 = vpop.permute.xlu0 %863
      %867 = vset.pattern.permute.xlu0 0
      %868 = vperm.xlu0 %867, %v678
      %v869 = vpop.permute.xlu0 %868
      %872 = vset.pattern.permute.xlu0 0
      %873 = vperm.xlu0 %872, %v679
      %v874 = vpop.permute.xlu0 %873
      %877 = vset.pattern.permute.xlu0 0
      %878 = vperm.xlu0 %877, %v680
      %v879 = vpop.permute.xlu0 %878
      %882 = vset.pattern.permute.xlu0 0
      %883 = vperm.xlu0 %882, %v681
      %v884 = vpop.permute.xlu0 %883
      %887 = vset.pattern.permute.xlu0 0
      %888 = vperm.xlu0 %887, %v682
      %v889 = vpop.permute.xlu0 %888
      %892 = vset.pattern.permute.xlu0 0
      %893 = vperm.xlu0 %892, %v683
      %v894 = vpop.permute.xlu0 %893
      %897 = vset.pattern.permute.xlu0 0
      %898 = vperm.xlu0 %897, %v684
      %v899 = vpop.permute.xlu0 %898
      %902 = vset.pattern.permute.xlu0 0
      %903 = vperm.xlu0 %902, %v685
      %v904 = vpop.permute.xlu0 %903
      %907 = vset.pattern.permute.xlu0 0
      %908 = vperm.xlu0 %907, %v686
      %v909 = vpop.permute.xlu0 %908
      %912 = vset.pattern.permute.xlu0 0
      %913 = vperm.xlu0 %912, %v687
      %v914 = vpop.permute.xlu0 %913
      %917 = vset.pattern.permute.xlu0 0
      %918 = vperm.xlu0 %917, %v688
      %v919 = vpop.permute.xlu0 %918
      %922 = vset.pattern.permute.xlu0 0
      %923 = vperm.xlu0 %922, %v689
      %v924 = vpop.permute.xlu0 %923
      %927 = vset.pattern.permute.xlu0 0
      %928 = vperm.xlu0 %927, %v690
      %v929 = vpop.permute.xlu0 %928
      %932 = vset.pattern.permute.xlu0 0
      %933 = vperm.xlu0 %932, %v691
      %v934 = vpop.permute.xlu0 %933
      %937 = vset.pattern.permute.xlu0 0
      %938 = vperm.xlu0 %937, %v692
      %v939 = vpop.permute.xlu0 %938
      %942 = vset.pattern.permute.xlu0 0
      %943 = vperm.xlu0 %942, %v693
      %v944 = vpop.permute.xlu0 %943
      %947 = vset.pattern.permute.xlu0 0
      %948 = vperm.xlu0 %947, %v694
      %v949 = vpop.permute.xlu0 %948
      %952 = vset.pattern.permute.xlu0 0
      %953 = vperm.xlu0 %952, %v695
      %v954 = vpop.permute.xlu0 %953
      %957 = vset.pattern.permute.xlu0 0
      %958 = vperm.xlu0 %957, %v696
      %v959 = vpop.permute.xlu0 %958
      %962 = vset.pattern.permute.xlu0 0
      %963 = vperm.xlu0 %962, %v697
      %v964 = vpop.permute.xlu0 %963
      %967 = vset.pattern.permute.xlu0 0
      %968 = vperm.xlu0 %967, %v698
      %v969 = vpop.permute.xlu0 %968
      %972 = vset.pattern.permute.xlu0 0
      %973 = vperm.xlu0 %972, %v699
      %v974 = vpop.permute.xlu0 %973
      %977 = vset.pattern.permute.xlu0 0
      %978 = vperm.xlu0 %977, %v700
      %v979 = vpop.permute.xlu0 %978
      %982 = vset.pattern.permute.xlu0 0
      %983 = vperm.xlu0 %982, %v701
      %v984 = vpop.permute.xlu0 %983
      %987 = vset.pattern.permute.xlu0 0
      %988 = vperm.xlu0 %987, %v702
      %v989 = vpop.permute.xlu0 %988
      %992 = vset.pattern.permute.xlu0 0
      %993 = vperm.xlu0 %992, %v703
      %v994 = vpop.permute.xlu0 %993
      %997 = vset.pattern.permute.xlu0 0
      %998 = vperm.xlu0 %997, %v704
      %v999 = vpop.permute.xlu0 %998
      %1002 = vset.pattern.permute.xlu0 0
      %1003 = vperm.xlu0 %1002, %v705
      %v1004 = vpop.permute.xlu0 %1003
      %1007 = vset.pattern.permute.xlu0 0
      %1008 = vperm.xlu0 %1007, %v706
      %v1009 = vpop.permute.xlu0 %1008
      %1012 = vset.pattern.permute.xlu0 0
      %1013 = vperm.xlu0 %1012, %v707
      %v1014 = vpop.permute.xlu0 %1013
      %1017 = vset.pattern.permute.xlu0 0
      %1018 = vperm.xlu0 %1017, %v708
      %v1019 = vpop.permute.xlu0 %1018
      %1022 = vset.pattern.permute.xlu0 0
      %1023 = vperm.xlu0 %1022, %v709
      %v1024 = vpop.permute.xlu0 %1023
      %1027 = vset.pattern.permute.xlu0 0
      %1028 = vperm.xlu0 %1027, %v710
      %v1029 = vpop.permute.xlu0 %1028
      %vm1031 = vcmask 15360
      %v1033 = vsel %vm1031, %v583, 0
      %v1036 = vsel %vm1031, %v584, 0
      %v1039 = vsel %vm1031, %v585, 0
      %v1042 = vsel %vm1031, %v586, 0
      %v1045 = vsel %vm1031, %v587, 0
      %v1048 = vsel %vm1031, %v588, 0
      %v1051 = vsel %vm1031, %v589, 0
      %v1054 = vsel %vm1031, %v590, 0
      %v1057 = vsel %vm1031, %v591, 0
      %v1060 = vsel %vm1031, %v592, 0
      %v1063 = vsel %vm1031, %v593, 0
      %v1066 = vsel %vm1031, %v594, 0
      %v1069 = vsel %vm1031, %v595, 0
      %v1072 = vsel %vm1031, %v596, 0
      %v1075 = vsel %vm1031, %v597, 0
      %v1078 = vsel %vm1031, %v598, 0
      %v1081 = vsel %vm1031, %v599, 0
      %v1084 = vsel %vm1031, %v600, 0
      %v1087 = vsel %vm1031, %v601, 0
      %v1090 = vsel %vm1031, %v602, 0
      %v1093 = vsel %vm1031, %v603, 0
      %v1096 = vsel %vm1031, %v604, 0
      %v1099 = vsel %vm1031, %v605, 0
      %v1102 = vsel %vm1031, %v606, 0
      %v1105 = vsel %vm1031, %v607, 0
      %v1108 = vsel %vm1031, %v608, 0
      %v1111 = vsel %vm1031, %v609, 0
      %v1114 = vsel %vm1031, %v610, 0
      %v1117 = vsel %vm1031, %v611, 0
      %v1120 = vsel %vm1031, %v612, 0
      %v1123 = vsel %vm1031, %v613, 0
      %v1126 = vsel %vm1031, %v614, 0
      %v1129 = vsel %vm1031, %v615, 0
      %v1132 = vsel %vm1031, %v616, 0
      %v1135 = vsel %vm1031, %v617, 0
      %v1138 = vsel %vm1031, %v618, 0
      %v1141 = vsel %vm1031, %v619, 0
      %v1144 = vsel %vm1031, %v620, 0
      %v1147 = vsel %vm1031, %v621, 0
      %v1150 = vsel %vm1031, %v622, 0
      %v1153 = vsel %vm1031, %v623, 0
      %v1156 = vsel %vm1031, %v624, 0
      %v1159 = vsel %vm1031, %v625, 0
      %v1162 = vsel %vm1031, %v626, 0
      %v1165 = vsel %vm1031, %v627, 0
      %v1168 = vsel %vm1031, %v628, 0
      %v1171 = vsel %vm1031, %v629, 0
      %v1174 = vsel %vm1031, %v630, 0
      %v1177 = vsel %vm1031, %v631, 0
      %v1180 = vsel %vm1031, %v632, 0
      %v1183 = vsel %vm1031, %v633, 0
      %v1186 = vsel %vm1031, %v634, 0
      %v1189 = vsel %vm1031, %v635, 0
      %v1192 = vsel %vm1031, %v636, 0
      %v1195 = vsel %vm1031, %v637, 0
      %v1198 = vsel %vm1031, %v638, 0
      %v1201 = vsel %vm1031, %v639, 0
      %v1204 = vsel %vm1031, %v640, 0
      %v1207 = vsel %vm1031, %v641, 0
      %v1210 = vsel %vm1031, %v642, 0
      %v1213 = vsel %vm1031, %v643, 0
      %v1216 = vsel %vm1031, %v644, 0
      %v1219 = vsel %vm1031, %v645, 0
      %v1222 = vsel %vm1031, %v646, 0
      %vm1224 = vcmask 1041408
      %v1226 = vsel %vm1224, %v582, 0
      %1228 = vmatprep.subr.mxu0 0.0
      %1229 = vmatpush1.msra.mxu0 %v1226
      %1230 = vmatprep.subr.mxu0 0.0
      %1231 = vmatpush1.msra.mxu0 0.0
      %1232 = vmatprep.subr.mxu0 0.0
      %1233 = vmatpush1.msra.mxu0 0.0
      %1234 = vmatprep.subr.mxu0 0.0
      %1235 = vmatpush1.msra.mxu0 0.0
      %1236 = vmatprep.subr.mxu0 0.0
      %1237 = vmatpush1.msra.mxu0 0.0
      %1238 = vmatprep.subr.mxu0 0.0
      %1239 = vmatpush1.msra.mxu0 0.0
      %1240 = vmatprep.subr.mxu0 0.0
      %1241 = vmatpush1.msra.mxu0 0.0
      %1242 = vmatprep.subr.mxu0 0.0
      %1243 = vmatpush1.msra.mxu0 0.0
      %1244 = vmatprep.subr.mxu0 0.0
      %1245 = vmatpush1.msra.mxu0 0.0
      %1246 = vmatprep.subr.mxu0 0.0
      %1247 = vmatpush1.msra.mxu0 0.0
      %1248 = vmatprep.subr.mxu0 0.0
      %1249 = vmatpush1.msra.mxu0 0.0
      %1250 = vmatprep.subr.mxu0 0.0
      %1251 = vmatpush1.msra.mxu0 0.0
      %1252 = vmatprep.subr.mxu0 0.0
      %1253 = vmatpush1.msra.mxu0 0.0
      %1254 = vmatprep.subr.mxu0 0.0
      %1255 = vmatpush1.msra.mxu0 0.0
      %1256 = vmatprep.subr.mxu0 0.0
      %1257 = vmatpush1.msra.mxu0 0.0
      %1258 = vmatprep.subr.mxu0 0.0
      %1259 = vmatpush1.msra.mxu0 0.0
      %1260 = vmatprep.subr.mxu0 0.0
      %1261 = vmatpush1.msra.mxu0 0.0
      %1262 = vmatprep.subr.mxu0 0.0
      %1263 = vmatpush1.msra.mxu0 0.0
      %1264 = vmatprep.subr.mxu0 0.0
      %1265 = vmatpush1.msra.mxu0 0.0
      %1266 = vmatprep.subr.mxu0 0.0
      %1267 = vmatpush1.msra.mxu0 0.0
      %1268 = vmatprep.subr.mxu0 0.0
      %1269 = vmatpush1.msra.mxu0 0.0
      %1270 = vmatprep.subr.mxu0 0.0
      %1271 = vmatpush1.msra.mxu0 0.0
      %1272 = vmatprep.subr.mxu0 0.0
      %1273 = vmatpush1.msra.mxu0 0.0
      %1274 = vmatprep.subr.mxu0 0.0
      %1275 = vmatpush1.msra.mxu0 0.0
      %1276 = vmatprep.subr.mxu0 0.0
      %1277 = vmatpush1.msra.mxu0 0.0
      %1278 = vmatprep.subr.mxu0 0.0
      %1279 = vmatpush1.msra.mxu0 0.0
      %1280 = vmatprep.subr.mxu0 0.0
      %1281 = vmatpush1.msra.mxu0 0.0
      %1282 = vmatprep.subr.mxu0 0.0
      %1283 = vmatpush1.msra.mxu0 0.0
      %1284 = vmatprep.subr.mxu0 0.0
      %1285 = vmatpush1.msra.mxu0 0.0
      %1286 = vmatprep.subr.mxu0 0.0
      %1287 = vmatpush1.msra.mxu0 0.0
      %1288 = vmatprep.subr.mxu0 0.0
      %1289 = vmatpush1.msra.mxu0 0.0
      %1290 = vmatprep.subr.mxu0 0.0
      %1291 = vmatpush1.msra.mxu0 0.0
      %1292 = vmatprep.mubr.f32.mxu0 0.0
      %1293 = vmatmul.mubr.f32.gmra.mrb[0].mxu0 %v1033
      %v1294 = vpop.f32.mrb[0].mxu0
      %v1295 = vadd.f32 %v714, %v1294
      %v1296 = vpop.f32.mrb[0].mxu0
      %1297 = vmatprep.mubr.f32.mxu0 0.0
      %1298 = vmatmul.mubr.f32.gmra.mrb[0].mxu0 %v1036
      %v1299 = vpop.f32.mrb[0].mxu0
      %v1300 = vadd.f32 %v719, %v1299
      %v1301 = vpop.f32.mrb[0].mxu0
      %1302 = vmatprep.mubr.f32.mxu0 0.0
      %1303 = vmatmul.mubr.f32.gmra.mrb[0].mxu0 %v1039
      %v1304 = vpop.f32.mrb[0].mxu0
      %v1305 = vadd.f32 %v724, %v1304
      %v1306 = vpop.f32.mrb[0].mxu0
      %1307 = vmatprep.mubr.f32.mxu0 0.0
      %1308 = vmatmul.mubr.f32.gmra.mrb[0].mxu0 %v1042
      %v1309 = vpop.f32.mrb[0].mxu0
      %v1310 = vadd.f32 %v729, %v1309
      %v1311 = vpop.f32.mrb[0].mxu0
      %1312 = vmatprep.mubr.f32.mxu0 0.0
      %1313 = vmatmul.mubr.f32.gmra.mrb[0].mxu0 %v1045
      %v1314 = vpop.f32.mrb[0].mxu0
      %v1315 = vadd.f32 %v734, %v1314
      %v1316 = vpop.f32.mrb[0].mxu0
      %1317 = vmatprep.mubr.f32.mxu0 0.0
      %1318 = vmatmul.mubr.f32.gmra.mrb[0].mxu0 %v1048
      %v1319 = vpop.f32.mrb[0].mxu0
      %v1320 = vadd.f32 %v739, %v1319
      %v1321 = vpop.f32.mrb[0].mxu0
      %1322 = vmatprep.mubr.f32.mxu0 0.0
      %1323 = vmatmul.mubr.f32.gmra.mrb[0].mxu0 %v1051
      %v1324 = vpop.f32.mrb[0].mxu0
      %v1325 = vadd.f32 %v744, %v1324
      %v1326 = vpop.f32.mrb[0].mxu0
      %1327 = vmatprep.mubr.f32.mxu0 0.0
      %1328 = vmatmul.mubr.f32.gmra.mrb[0].mxu0 %v1054
      %v1329 = vpop.f32.mrb[0].mxu0
      %v1330 = vadd.f32 %v749, %v1329
      %v1331 = vpop.f32.mrb[0].mxu0
      %1332 = vmatprep.mubr.f32.mxu0 0.0
      %1333 = vmatmul.mubr.f32.gmra.mrb[0].mxu0 %v1057
      %v1334 = vpop.f32.mrb[0].mxu0
      %v1335 = vadd.f32 %v754, %v1334
      %v1336 = vpop.f32.mrb[0].mxu0
      %1337 = vmatprep.mubr.f32.mxu0 0.0
      %1338 = vmatmul.mubr.f32.gmra.mrb[0].mxu0 %v1060
      %v1339 = vpop.f32.mrb[0].mxu0
      %v1340 = vadd.f32 %v759, %v1339
      %v1341 = vpop.f32.mrb[0].mxu0
      %1342 = vmatprep.mubr.f32.mxu0 0.0
      %1343 = vmatmul.mubr.f32.gmra.mrb[0].mxu0 %v1063
      %v1344 = vpop.f32.mrb[0].mxu0
      %v1345 = vadd.f32 %v764, %v1344
      %v1346 = vpop.f32.mrb[0].mxu0
      %1347 = vmatprep.mubr.f32.mxu0 0.0
      %1348 = vmatmul.mubr.f32.gmra.mrb[0].mxu0 %v1066
      %v1349 = vpop.f32.mrb[0].mxu0
      %v1350 = vadd.f32 %v769, %v1349
      %v1351 = vpop.f32.mrb[0].mxu0
      %1352 = vmatprep.mubr.f32.mxu0 0.0
      %1353 = vmatmul.mubr.f32.gmra.mrb[0].mxu0 %v1069
      %v1354 = vpop.f32.mrb[0].mxu0
      %v1355 = vadd.f32 %v774, %v1354
      %v1356 = vpop.f32.mrb[0].mxu0
      %1357 = vmatprep.mubr.f32.mxu0 0.0
      %1358 = vmatmul.mubr.f32.gmra.mrb[0].mxu0 %v1072
      %v1359 = vpop.f32.mrb[0].mxu0
      %v1360 = vadd.f32 %v779, %v1359
      %v1361 = vpop.f32.mrb[0].mxu0
      %1362 = vmatprep.mubr.f32.mxu0 0.0
      %1363 = vmatmul.mubr.f32.gmra.mrb[0].mxu0 %v1075
      %v1364 = vpop.f32.mrb[0].mxu0
      %v1365 = vadd.f32 %v784, %v1364
      %v1366 = vpop.f32.mrb[0].mxu0
      %1367 = vmatprep.mubr.f32.mxu0 0.0
      %1368 = vmatmul.mubr.f32.gmra.mrb[0].mxu0 %v1078
      %v1369 = vpop.f32.mrb[0].mxu0
      %v1370 = vadd.f32 %v789, %v1369
      %v1371 = vpop.f32.mrb[0].mxu0
      %1372 = vmatprep.mubr.f32.mxu0 0.0
      %1373 = vmatmul.mubr.f32.gmra.mrb[0].mxu0 %v1081
      %v1374 = vpop.f32.mrb[0].mxu0
      %v1375 = vadd.f32 %v794, %v1374
      %v1376 = vpop.f32.mrb[0].mxu0
      %1377 = vmatprep.mubr.f32.mxu0 0.0
      %1378 = vmatmul.mubr.f32.gmra.mrb[0].mxu0 %v1084
      %v1379 = vpop.f32.mrb[0].mxu0
      %v1380 = vadd.f32 %v799, %v1379
      %v1381 = vpop.f32.mrb[0].mxu0
      %1382 = vmatprep.mubr.f32.mxu0 0.0
      %1383 = vmatmul.mubr.f32.gmra.mrb[0].mxu0 %v1087
      %v1384 = vpop.f32.mrb[0].mxu0
      %v1385 = vadd.f32 %v804, %v1384
      %v1386 = vpop.f32.mrb[0].mxu0
      %1387 = vmatprep.mubr.f32.mxu0 0.0
      %1388 = vmatmul.mubr.f32.gmra.mrb[0].mxu0 %v1090
      %v1389 = vpop.f32.mrb[0].mxu0
      %v1390 = vadd.f32 %v809, %v1389
      %v1391 = vpop.f32.mrb[0].mxu0
      %1392 = vmatprep.mubr.f32.mxu0 0.0
      %1393 = vmatmul.mubr.f32.gmra.mrb[0].mxu0 %v1093
      %v1394 = vpop.f32.mrb[0].mxu0
      %v1395 = vadd.f32 %v814, %v1394
      %v1396 = vpop.f32.mrb[0].mxu0
      %1397 = vmatprep.mubr.f32.mxu0 0.0
      %1398 = vmatmul.mubr.f32.gmra.mrb[0].mxu0 %v1096
      %v1399 = vpop.f32.mrb[0].mxu0
      %v1400 = vadd.f32 %v819, %v1399
      %v1401 = vpop.f32.mrb[0].mxu0
      %1402 = vmatprep.mubr.f32.mxu0 0.0
      %1403 = vmatmul.mubr.f32.gmra.mrb[0].mxu0 %v1099
      %v1404 = vpop.f32.mrb[0].mxu0
      %v1405 = vadd.f32 %v824, %v1404
      %v1406 = vpop.f32.mrb[0].mxu0
      %1407 = vmatprep.mubr.f32.mxu0 0.0
      %1408 = vmatmul.mubr.f32.gmra.mrb[0].mxu0 %v1102
      %v1409 = vpop.f32.mrb[0].mxu0
      %v1410 = vadd.f32 %v829, %v1409
      %v1411 = vpop.f32.mrb[0].mxu0
      %1412 = vmatprep.mubr.f32.mxu0 0.0
      %1413 = vmatmul.mubr.f32.gmra.mrb[0].mxu0 %v1105
      %v1414 = vpop.f32.mrb[0].mxu0
      %v1415 = vadd.f32 %v834, %v1414
      %v1416 = vpop.f32.mrb[0].mxu0
      %1417 = vmatprep.mubr.f32.mxu0 0.0
      %1418 = vmatmul.mubr.f32.gmra.mrb[0].mxu0 %v1108
      %v1419 = vpop.f32.mrb[0].mxu0
      %v1420 = vadd.f32 %v839, %v1419
      %v1421 = vpop.f32.mrb[0].mxu0
      %1422 = vmatprep.mubr.f32.mxu0 0.0
      %1423 = vmatmul.mubr.f32.gmra.mrb[0].mxu0 %v1111
      %v1424 = vpop.f32.mrb[0].mxu0
      %v1425 = vadd.f32 %v844, %v1424
      %v1426 = vpop.f32.mrb[0].mxu0
      %1427 = vmatprep.mubr.f32.mxu0 0.0
      %1428 = vmatmul.mubr.f32.gmra.mrb[0].mxu0 %v1114
      %v1429 = vpop.f32.mrb[0].mxu0
      %v1430 = vadd.f32 %v849, %v1429
      %v1431 = vpop.f32.mrb[0].mxu0
      %1432 = vmatprep.mubr.f32.mxu0 0.0
      %1433 = vmatmul.mubr.f32.gmra.mrb[0].mxu0 %v1117
      %v1434 = vpop.f32.mrb[0].mxu0
      %v1435 = vadd.f32 %v854, %v1434
      %v1436 = vpop.f32.mrb[0].mxu0
      %1437 = vmatprep.mubr.f32.mxu0 0.0
      %1438 = vmatmul.mubr.f32.gmra.mrb[0].mxu0 %v1120
      %v1439 = vpop.f32.mrb[0].mxu0
      %v1440 = vadd.f32 %v859, %v1439
      %v1441 = vpop.f32.mrb[0].mxu0
      %1442 = vmatprep.mubr.f32.mxu0 0.0
      %1443 = vmatmul.mubr.f32.gmra.mrb[0].mxu0 %v1123
      %v1444 = vpop.f32.mrb[0].mxu0
      %v1445 = vadd.f32 %v864, %v1444
      %v1446 = vpop.f32.mrb[0].mxu0
      %1447 = vmatprep.mubr.f32.mxu0 0.0
      %1448 = vmatmul.mubr.f32.gmra.mrb[0].mxu0 %v1126
      %v1449 = vpop.f32.mrb[0].mxu0
      %v1450 = vadd.f32 %v869, %v1449
      %v1451 = vpop.f32.mrb[0].mxu0
      %1452 = vmatprep.mubr.f32.mxu0 0.0
      %1453 = vmatmul.mubr.f32.gmra.mrb[0].mxu0 %v1129
      %v1454 = vpop.f32.mrb[0].mxu0
      %v1455 = vadd.f32 %v874, %v1454
      %v1456 = vpop.f32.mrb[0].mxu0
      %1457 = vmatprep.mubr.f32.mxu0 0.0
      %1458 = vmatmul.mubr.f32.gmra.mrb[0].mxu0 %v1132
      %v1459 = vpop.f32.mrb[0].mxu0
      %v1460 = vadd.f32 %v879, %v1459
      %v1461 = vpop.f32.mrb[0].mxu0
      %1462 = vmatprep.mubr.f32.mxu0 0.0
      %1463 = vmatmul.mubr.f32.gmra.mrb[0].mxu0 %v1135
      %v1464 = vpop.f32.mrb[0].mxu0
      %v1465 = vadd.f32 %v884, %v1464
      %v1466 = vpop.f32.mrb[0].mxu0
      %1467 = vmatprep.mubr.f32.mxu0 0.0
      %1468 = vmatmul.mubr.f32.gmra.mrb[0].mxu0 %v1138
      %v1469 = vpop.f32.mrb[0].mxu0
      %v1470 = vadd.f32 %v889, %v1469
      %v1471 = vpop.f32.mrb[0].mxu0
      %1472 = vmatprep.mubr.f32.mxu0 0.0
      %1473 = vmatmul.mubr.f32.gmra.mrb[0].mxu0 %v1141
      %v1474 = vpop.f32.mrb[0].mxu0
      %v1475 = vadd.f32 %v894, %v1474
      %v1476 = vpop.f32.mrb[0].mxu0
      %1477 = vmatprep.mubr.f32.mxu0 0.0
      %1478 = vmatmul.mubr.f32.gmra.mrb[0].mxu0 %v1144
      %v1479 = vpop.f32.mrb[0].mxu0
      %v1480 = vadd.f32 %v899, %v1479
      %v1481 = vpop.f32.mrb[0].mxu0
      %1482 = vmatprep.mubr.f32.mxu0 0.0
      %1483 = vmatmul.mubr.f32.gmra.mrb[0].mxu0 %v1147
      %v1484 = vpop.f32.mrb[0].mxu0
      %v1485 = vadd.f32 %v904, %v1484
      %v1486 = vpop.f32.mrb[0].mxu0
      %1487 = vmatprep.mubr.f32.mxu0 0.0
      %1488 = vmatmul.mubr.f32.gmra.mrb[0].mxu0 %v1150
      %v1489 = vpop.f32.mrb[0].mxu0
      %v1490 = vadd.f32 %v909, %v1489
      %v1491 = vpop.f32.mrb[0].mxu0
      %1492 = vmatprep.mubr.f32.mxu0 0.0
      %1493 = vmatmul.mubr.f32.gmra.mrb[0].mxu0 %v1153
      %v1494 = vpop.f32.mrb[0].mxu0
      %v1495 = vadd.f32 %v914, %v1494
      %v1496 = vpop.f32.mrb[0].mxu0
      %1497 = vmatprep.mubr.f32.mxu0 0.0
      %1498 = vmatmul.mubr.f32.gmra.mrb[0].mxu0 %v1156
      %v1499 = vpop.f32.mrb[0].mxu0
      %v1500 = vadd.f32 %v919, %v1499
      %v1501 = vpop.f32.mrb[0].mxu0
      %1502 = vmatprep.mubr.f32.mxu0 0.0
      %1503 = vmatmul.mubr.f32.gmra.mrb[0].mxu0 %v1159
      %v1504 = vpop.f32.mrb[0].mxu0
      %v1505 = vadd.f32 %v924, %v1504
      %v1506 = vpop.f32.mrb[0].mxu0
      %1507 = vmatprep.mubr.f32.mxu0 0.0
      %1508 = vmatmul.mubr.f32.gmra.mrb[0].mxu0 %v1162
      %v1509 = vpop.f32.mrb[0].mxu0
      %v1510 = vadd.f32 %v929, %v1509
      %v1511 = vpop.f32.mrb[0].mxu0
      %1512 = vmatprep.mubr.f32.mxu0 0.0
      %1513 = vmatmul.mubr.f32.gmra.mrb[0].mxu0 %v1165
      %v1514 = vpop.f32.mrb[0].mxu0
      %v1515 = vadd.f32 %v934, %v1514
      %v1516 = vpop.f32.mrb[0].mxu0
      %1517 = vmatprep.mubr.f32.mxu0 0.0
      %1518 = vmatmul.mubr.f32.gmra.mrb[0].mxu0 %v1168
      %v1519 = vpop.f32.mrb[0].mxu0
      %v1520 = vadd.f32 %v939, %v1519
      %v1521 = vpop.f32.mrb[0].mxu0
      %1522 = vmatprep.mubr.f32.mxu0 0.0
      %1523 = vmatmul.mubr.f32.gmra.mrb[0].mxu0 %v1171
      %v1524 = vpop.f32.mrb[0].mxu0
      %v1525 = vadd.f32 %v944, %v1524
      %v1526 = vpop.f32.mrb[0].mxu0
      %1527 = vmatprep.mubr.f32.mxu0 0.0
      %1528 = vmatmul.mubr.f32.gmra.mrb[0].mxu0 %v1174
      %v1529 = vpop.f32.mrb[0].mxu0
      %v1530 = vadd.f32 %v949, %v1529
      %v1531 = vpop.f32.mrb[0].mxu0
      %1532 = vmatprep.mubr.f32.mxu0 0.0
      %1533 = vmatmul.mubr.f32.gmra.mrb[0].mxu0 %v1177
      %v1534 = vpop.f32.mrb[0].mxu0
      %v1535 = vadd.f32 %v954, %v1534
      %v1536 = vpop.f32.mrb[0].mxu0
      %1537 = vmatprep.mubr.f32.mxu0 0.0
      %1538 = vmatmul.mubr.f32.gmra.mrb[0].mxu0 %v1180
      %v1539 = vpop.f32.mrb[0].mxu0
      %v1540 = vadd.f32 %v959, %v1539
      %v1541 = vpop.f32.mrb[0].mxu0
      %1542 = vmatprep.mubr.f32.mxu0 0.0
      %1543 = vmatmul.mubr.f32.gmra.mrb[0].mxu0 %v1183
      %v1544 = vpop.f32.mrb[0].mxu0
      %v1545 = vadd.f32 %v964, %v1544
      %v1546 = vpop.f32.mrb[0].mxu0
      %1547 = vmatprep.mubr.f32.mxu0 0.0
      %1548 = vmatmul.mubr.f32.gmra.mrb[0].mxu0 %v1186
      %v1549 = vpop.f32.mrb[0].mxu0
      %v1550 = vadd.f32 %v969, %v1549
      %v1551 = vpop.f32.mrb[0].mxu0
      %1552 = vmatprep.mubr.f32.mxu0 0.0
      %1553 = vmatmul.mubr.f32.gmra.mrb[0].mxu0 %v1189
      %v1554 = vpop.f32.mrb[0].mxu0
      %v1555 = vadd.f32 %v974, %v1554
      %v1556 = vpop.f32.mrb[0].mxu0
      %1557 = vmatprep.mubr.f32.mxu0 0.0
      %1558 = vmatmul.mubr.f32.gmra.mrb[0].mxu0 %v1192
      %v1559 = vpop.f32.mrb[0].mxu0
      %v1560 = vadd.f32 %v979, %v1559
      %v1561 = vpop.f32.mrb[0].mxu0
      %1562 = vmatprep.mubr.f32.mxu0 0.0
      %1563 = vmatmul.mubr.f32.gmra.mrb[0].mxu0 %v1195
      %v1564 = vpop.f32.mrb[0].mxu0
      %v1565 = vadd.f32 %v984, %v1564
      %v1566 = vpop.f32.mrb[0].mxu0
      %1567 = vmatprep.mubr.f32.mxu0 0.0
      %1568 = vmatmul.mubr.f32.gmra.mrb[0].mxu0 %v1198
      %v1569 = vpop.f32.mrb[0].mxu0
      %v1570 = vadd.f32 %v989, %v1569
      %v1571 = vpop.f32.mrb[0].mxu0
      %1572 = vmatprep.mubr.f32.mxu0 0.0
      %1573 = vmatmul.mubr.f32.gmra.mrb[0].mxu0 %v1201
      %v1574 = vpop.f32.mrb[0].mxu0
      %v1575 = vadd.f32 %v994, %v1574
      %v1576 = vpop.f32.mrb[0].mxu0
      %1577 = vmatprep.mubr.f32.mxu0 0.0
      %1578 = vmatmul.mubr.f32.gmra.mrb[0].mxu0 %v1204
      %v1579 = vpop.f32.mrb[0].mxu0
      %v1580 = vadd.f32 %v999, %v1579
      %v1581 = vpop.f32.mrb[0].mxu0
      %1582 = vmatprep.mubr.f32.mxu0 0.0
      %1583 = vmatmul.mubr.f32.gmra.mrb[0].mxu0 %v1207
      %v1584 = vpop.f32.mrb[0].mxu0
      %v1585 = vadd.f32 %v1004, %v1584
      %v1586 = vpop.f32.mrb[0].mxu0
      %1587 = vmatprep.mubr.f32.mxu0 0.0
      %1588 = vmatmul.mubr.f32.gmra.mrb[0].mxu0 %v1210
      %v1589 = vpop.f32.mrb[0].mxu0
      %v1590 = vadd.f32 %v1009, %v1589
      %v1591 = vpop.f32.mrb[0].mxu0
      %1592 = vmatprep.mubr.f32.mxu0 0.0
      %1593 = vmatmul.mubr.f32.gmra.mrb[0].mxu0 %v1213
      %v1594 = vpop.f32.mrb[0].mxu0
      %v1595 = vadd.f32 %v1014, %v1594
      %v1596 = vpop.f32.mrb[0].mxu0
      %1597 = vmatprep.mubr.f32.mxu0 0.0
      %1598 = vmatmul.mubr.f32.gmra.mrb[0].mxu0 %v1216
      %v1599 = vpop.f32.mrb[0].mxu0
      %v1600 = vadd.f32 %v1019, %v1599
      %v1601 = vpop.f32.mrb[0].mxu0
      %1602 = vmatprep.mubr.f32.mxu0 0.0
      %1603 = vmatmul.mubr.f32.gmra.mrb[0].mxu0 %v1219
      %v1604 = vpop.f32.mrb[0].mxu0
      %v1605 = vadd.f32 %v1024, %v1604
      %v1606 = vpop.f32.mrb[0].mxu0
      %1607 = vmatprep.mubr.f32.mxu0 0.0
      %1608 = vmatmul.mubr.f32.gmra.mrb[0].mxu0 %v1222
      %v1609 = vpop.f32.mrb[0].mxu0
      %v1610 = vadd.f32 %v1029, %v1609
      %v1611 = vpop.f32.mrb[0].mxu0
      %1612 = vdwg.mxu0
      %v1613 = vmax.f32 %v1295, 0.0
      %v1614 = vmax.f32 %v1300, 0.0
      %v1615 = vmax.f32 %v1305, 0.0
      %v1616 = vmax.f32 %v1310, 0.0
      %v1617 = vmax.f32 %v1315, 0.0
      %v1618 = vmax.f32 %v1320, 0.0
      %v1619 = vmax.f32 %v1325, 0.0
      %v1620 = vmax.f32 %v1330, 0.0
      %v1621 = vmax.f32 %v1335, 0.0
      %v1622 = vmax.f32 %v1340, 0.0
      %v1623 = vmax.f32 %v1345, 0.0
      %v1624 = vmax.f32 %v1350, 0.0
      %v1625 = vmax.f32 %v1355, 0.0
      %v1626 = vmax.f32 %v1360, 0.0
      %v1627 = vmax.f32 %v1365, 0.0
      %v1628 = vmax.f32 %v1370, 0.0
      %v1629 = vmax.f32 %v1375, 0.0
      %v1630 = vmax.f32 %v1380, 0.0
      %v1631 = vmax.f32 %v1385, 0.0
      %v1632 = vmax.f32 %v1390, 0.0
      %v1633 = vmax.f32 %v1395, 0.0
      %v1634 = vmax.f32 %v1400, 0.0
      %v1635 = vmax.f32 %v1405, 0.0
      %v1636 = vmax.f32 %v1410, 0.0
      %v1637 = vmax.f32 %v1415, 0.0
      %v1638 = vmax.f32 %v1420, 0.0
      %v1639 = vmax.f32 %v1425, 0.0
      %v1640 = vmax.f32 %v1430, 0.0
      %v1641 = vmax.f32 %v1435, 0.0
      %v1642 = vmax.f32 %v1440, 0.0
      %v1643 = vmax.f32 %v1445, 0.0
      %v1644 = vmax.f32 %v1450, 0.0
      %v1645 = vmax.f32 %v1455, 0.0
      %v1646 = vmax.f32 %v1460, 0.0
      %v1647 = vmax.f32 %v1465, 0.0
      %v1648 = vmax.f32 %v1470, 0.0
      %v1649 = vmax.f32 %v1475, 0.0
      %v1650 = vmax.f32 %v1480, 0.0
      %v1651 = vmax.f32 %v1485, 0.0
      %v1652 = vmax.f32 %v1490, 0.0
      %v1653 = vmax.f32 %v1495, 0.0
      %v1654 = vmax.f32 %v1500, 0.0
      %v1655 = vmax.f32 %v1505, 0.0
      %v1656 = vmax.f32 %v1510, 0.0
      %v1657 = vmax.f32 %v1515, 0.0
      %v1658 = vmax.f32 %v1520, 0.0
      %v1659 = vmax.f32 %v1525, 0.0
      %v1660 = vmax.f32 %v1530, 0.0
      %v1661 = vmax.f32 %v1535, 0.0
      %v1662 = vmax.f32 %v1540, 0.0
      %v1663 = vmax.f32 %v1545, 0.0
      %v1664 = vmax.f32 %v1550, 0.0
      %v1665 = vmax.f32 %v1555, 0.0
      %v1666 = vmax.f32 %v1560, 0.0
      %v1667 = vmax.f32 %v1565, 0.0
      %v1668 = vmax.f32 %v1570, 0.0
      %v1669 = vmax.f32 %v1575, 0.0
      %v1670 = vmax.f32 %v1580, 0.0
      %v1671 = vmax.f32 %v1585, 0.0
      %v1672 = vmax.f32 %v1590, 0.0
      %v1673 = vmax.f32 %v1595, 0.0
      %v1674 = vmax.f32 %v1600, 0.0
      %v1675 = vmax.f32 %v1605, 0.0
      %v1676 = vmax.f32 %v1610, 0.0
      %v1677 = vld [vmem:[%s5] sm:$0xff]
      %v1678 = vld [vmem:[%s5 + $0x8] sm:$0xff]
      %v1679 = vld [vmem:[%s5 + $0x10] sm:$0xff]
      %v1680 = vld [vmem:[%s5 + $0x18] sm:$0xff]
      %v1681 = vld [vmem:[%s5 + $0x20] sm:$0xff]
      %v1682 = vld [vmem:[%s5 + $0x28] sm:$0xff]
      %v1683 = vld [vmem:[%s5 + $0x30] sm:$0xff]
      %v1684 = vld [vmem:[%s5 + $0x38] sm:$0xff]
      %v1685 = vld [vmem:[%s5 + $0x40] sm:$0xff]
      %v1686 = vld [vmem:[%s5 + $0x48] sm:$0xff]
      %v1687 = vld [vmem:[%s5 + $0x50] sm:$0xff]
      %v1688 = vld [vmem:[%s5 + $0x58] sm:$0xff]
      %v1689 = vld [vmem:[%s5 + $0x60] sm:$0xff]
      %v1690 = vld [vmem:[%s5 + $0x68] sm:$0xff]
      %v1691 = vld [vmem:[%s5 + $0x70] sm:$0xff]
      %v1692 = vld [vmem:[%s5 + $0x78] sm:$0xff]
      %v1693 = vld [vmem:[%s5 + $0x80] sm:$0xff]
      %v1694 = vld [vmem:[%s5 + $0x88] sm:$0xff]
      %v1695 = vld [vmem:[%s5 + $0x90] sm:$0xff]
      %v1696 = vld [vmem:[%s5 + $0x98] sm:$0xff]
      %v1697 = vld [vmem:[%s5 + $0xa0] sm:$0xff]
      %v1698 = vld [vmem:[%s5 + $0xa8] sm:$0xff]
      %v1699 = vld [vmem:[%s5 + $0xb0] sm:$0xff]
      %v1700 = vld [vmem:[%s5 + $0xb8] sm:$0xff]
      %v1701 = vld [vmem:[%s5 + $0xc0] sm:$0xff]
      %v1702 = vld [vmem:[%s5 + $0xc8] sm:$0xff]
      %v1703 = vld [vmem:[%s5 + $0xd0] sm:$0xff]
      %v1704 = vld [vmem:[%s5 + $0xd8] sm:$0xff]
      %v1705 = vld [vmem:[%s5 + $0xe0] sm:$0xff]
      %v1706 = vld [vmem:[%s5 + $0xe8] sm:$0xff]
      %v1707 = vld [vmem:[%s5 + $0xf0] sm:$0xff]
      %v1708 = vld [vmem:[%s5 + $0xf8] sm:$0xff]
      %v1709 = vld [vmem:[%s6] sm:$0xff]
      %v1710 = vld [vmem:[%s6 + $0x8] sm:$0xff]
      %v1711 = vld [vmem:[%s6 + $0x10] sm:$0xff]
      %v1712 = vld [vmem:[%s6 + $0x18] sm:$0xff]
      %v1713 = vld [vmem:[%s6 + $0x20] sm:$0xff]
      %v1714 = vld [vmem:[%s6 + $0x28] sm:$0xff]
      %v1715 = vld [vmem:[%s6 + $0x30] sm:$0xff]
      %v1716 = vld [vmem:[%s6 + $0x38] sm:$0xff]
      %1718 = vset.pattern.permute.xlu0 0
      %1719 = vperm.xlu0 %1718, %v1709
      %v1720 = vpop.permute.xlu0 %1719
      %1723 = vset.pattern.permute.xlu0 0
      %1724 = vperm.xlu0 %1723, %v1710
      %v1725 = vpop.permute.xlu0 %1724
      %1728 = vset.pattern.permute.xlu0 0
      %1729 = vperm.xlu0 %1728, %v1711
      %v1730 = vpop.permute.xlu0 %1729
      %1733 = vset.pattern.permute.xlu0 0
      %1734 = vperm.xlu0 %1733, %v1712
      %v1735 = vpop.permute.xlu0 %1734
      %1738 = vset.pattern.permute.xlu0 0
      %1739 = vperm.xlu0 %1738, %v1713
      %v1740 = vpop.permute.xlu0 %1739
      %1743 = vset.pattern.permute.xlu0 0
      %1744 = vperm.xlu0 %1743, %v1714
      %v1745 = vpop.permute.xlu0 %1744
      %1748 = vset.pattern.permute.xlu0 0
      %1749 = vperm.xlu0 %1748, %v1715
      %v1750 = vpop.permute.xlu0 %1749
      %1753 = vset.pattern.permute.xlu0 0
      %1754 = vperm.xlu0 %1753, %v1716
      %v1755 = vpop.permute.xlu0 %1754
      %1757 = vmatprep.subr.mxu0 0.0
      %1758 = vmatpush1.msra.mxu0 %v1613
      %1759 = vmatprep.subr.mxu0 0.0
      %1760 = vmatpush1.msra.mxu0 %v1614
      %1761 = vmatprep.subr.mxu0 0.0
      %1762 = vmatpush1.msra.mxu0 %v1615
      %1763 = vmatprep.subr.mxu0 0.0
      %1764 = vmatpush1.msra.mxu0 %v1616
      %1765 = vmatprep.subr.mxu0 0.0
      %1766 = vmatpush1.msra.mxu0 %v1617
      %1767 = vmatprep.subr.mxu0 0.0
      %1768 = vmatpush1.msra.mxu0 %v1618
      %1769 = vmatprep.subr.mxu0 0.0
      %1770 = vmatpush1.msra.mxu0 %v1619
      %1771 = vmatprep.subr.mxu0 0.0
      %1772 = vmatpush1.msra.mxu0 %v1620
      %1773 = vmatprep.subr.mxu0 0.0
      %1774 = vmatpush1.msra.mxu0 %v1621
      %1775 = vmatprep.subr.mxu0 0.0
      %1776 = vmatpush1.msra.mxu0 %v1622
      %1777 = vmatprep.subr.mxu0 0.0
      %1778 = vmatpush1.msra.mxu0 %v1623
      %1779 = vmatprep.subr.mxu0 0.0
      %1780 = vmatpush1.msra.mxu0 %v1624
      %1781 = vmatprep.subr.mxu0 0.0
      %1782 = vmatpush1.msra.mxu0 %v1625
      %1783 = vmatprep.subr.mxu0 0.0
      %1784 = vmatpush1.msra.mxu0 %v1626
      %1785 = vmatprep.subr.mxu0 0.0
      %1786 = vmatpush1.msra.mxu0 %v1627
      %1787 = vmatprep.subr.mxu0 0.0
      %1788 = vmatpush1.msra.mxu0 %v1628
      %1789 = vmatprep.subr.mxu0 0.0
      %1790 = vmatpush1.msra.mxu0 %v1629
      %1791 = vmatprep.subr.mxu0 0.0
      %1792 = vmatpush1.msra.mxu0 %v1630
      %1793 = vmatprep.subr.mxu0 0.0
      %1794 = vmatpush1.msra.mxu0 %v1631
      %1795 = vmatprep.subr.mxu0 0.0
      %1796 = vmatpush1.msra.mxu0 %v1632
      %1797 = vmatprep.subr.mxu0 0.0
      %1798 = vmatpush1.msra.mxu0 %v1633
      %1799 = vmatprep.subr.mxu0 0.0
      %1800 = vmatpush1.msra.mxu0 %v1634
      %1801 = vmatprep.subr.mxu0 0.0
      %1802 = vmatpush1.msra.mxu0 %v1635
      %1803 = vmatprep.subr.mxu0 0.0
      %1804 = vmatpush1.msra.mxu0 %v1636
      %1805 = vmatprep.subr.mxu0 0.0
      %1806 = vmatpush1.msra.mxu0 %v1637
      %1807 = vmatprep.subr.mxu0 0.0
      %1808 = vmatpush1.msra.mxu0 %v1638
      %1809 = vmatprep.subr.mxu0 0.0
      %1810 = vmatpush1.msra.mxu0 %v1639
      %1811 = vmatprep.subr.mxu0 0.0
      %1812 = vmatpush1.msra.mxu0 %v1640
      %1813 = vmatprep.subr.mxu0 0.0
      %1814 = vmatpush1.msra.mxu0 %v1641
      %1815 = vmatprep.subr.mxu0 0.0
      %1816 = vmatpush1.msra.mxu0 %v1642
      %1817 = vmatprep.subr.mxu0 0.0
      %1818 = vmatpush1.msra.mxu0 %v1643
      %1819 = vmatprep.subr.mxu0 0.0
      %1820 = vmatpush1.msra.mxu0 %v1644
      %1821 = vmatprep.mubr.f32.mxu0 %v1678
      %1822 = vmatmul.mubr.f32.gmra.mrb[0].mxu0 %v1677
      %v1823 = vpop.f32.mrb[0].mxu0
      %v1824 = vadd.f32 %v1720, %v1823
      %v1825 = vpop.f32.mrb[0].mxu0
      %1826 = vmatprep.mubr.f32.mxu0 %v1682
      %1827 = vmatmul.mubr.f32.gmra.mrb[0].mxu0 %v1681
      %v1828 = vpop.f32.mrb[0].mxu0
      %v1829 = vadd.f32 %v1725, %v1828
      %v1830 = vpop.f32.mrb[0].mxu0
      %1831 = vmatprep.mubr.f32.mxu0 %v1686
      %1832 = vmatmul.mubr.f32.gmra.mrb[0].mxu0 %v1685
      %v1833 = vpop.f32.mrb[0].mxu0
      %v1834 = vadd.f32 %v1730, %v1833
      %v1835 = vpop.f32.mrb[0].mxu0
      %1836 = vmatprep.mubr.f32.mxu0 %v1690
      %1837 = vmatmul.mubr.f32.gmra.mrb[0].mxu0 %v1689
      %v1838 = vpop.f32.mrb[0].mxu0
      %v1839 = vadd.f32 %v1735, %v1838
      %v1840 = vpop.f32.mrb[0].mxu0
      %1841 = vmatprep.mubr.f32.mxu0 %v1694
      %1842 = vmatmul.mubr.f32.gmra.mrb[0].mxu0 %v1693
      %v1843 = vpop.f32.mrb[0].mxu0
      %v1844 = vadd.f32 %v1740, %v1843
      %v1845 = vpop.f32.mrb[0].mxu0
      %1846 = vmatprep.mubr.f32.mxu0 %v1698
      %1847 = vmatmul.mubr.f32.gmra.mrb[0].mxu0 %v1697
      %v1848 = vpop.f32.mrb[0].mxu0
      %v1849 = vadd.f32 %v1745, %v1848
      %v1850 = vpop.f32.mrb[0].mxu0
      %1851 = vmatprep.mubr.f32.mxu0 %v1702
      %1852 = vmatmul.mubr.f32.gmra.mrb[0].mxu0 %v1701
      %v1853 = vpop.f32.mrb[0].mxu0
      %v1854 = vadd.f32 %v1750, %v1853
      %v1855 = vpop.f32.mrb[0].mxu0
      %1856 = vmatprep.mubr.f32.mxu0 %v1706
      %1857 = vmatmul.mubr.f32.gmra.mrb[0].mxu0 %v1705
      %v1858 = vpop.f32.mrb[0].mxu0
      %v1859 = vadd.f32 %v1755, %v1858
      %v1860 = vpop.f32.mrb[0].mxu0
      %1861 = vdwg.mxu0
      %1862 = vmatprep.subr.mxu0 0.0
      %1863 = vmatpush1.msra.mxu0 %v1645
      %1864 = vmatprep.subr.mxu0 0.0
      %1865 = vmatpush1.msra.mxu0 %v1646
      %1866 = vmatprep.subr.mxu0 0.0
      %1867 = vmatpush1.msra.mxu0 %v1647
      %1868 = vmatprep.subr.mxu0 0.0
      %1869 = vmatpush1.msra.mxu0 %v1648
      %1870 = vmatprep.subr.mxu0 0.0
      %1871 = vmatpush1.msra.mxu0 %v1649
      %1872 = vmatprep.subr.mxu0 0.0
      %1873 = vmatpush1.msra.mxu0 %v1650
      %1874 = vmatprep.subr.mxu0 0.0
      %1875 = vmatpush1.msra.mxu0 %v1651
      %1876 = vmatprep.subr.mxu0 0.0
      %1877 = vmatpush1.msra.mxu0 %v1652
      %1878 = vmatprep.subr.mxu0 0.0
      %1879 = vmatpush1.msra.mxu0 %v1653
      %1880 = vmatprep.subr.mxu0 0.0
      %1881 = vmatpush1.msra.mxu0 %v1654
      %1882 = vmatprep.subr.mxu0 0.0
      %1883 = vmatpush1.msra.mxu0 %v1655
      %1884 = vmatprep.subr.mxu0 0.0
      %1885 = vmatpush1.msra.mxu0 %v1656
      %1886 = vmatprep.subr.mxu0 0.0
      %1887 = vmatpush1.msra.mxu0 %v1657
      %1888 = vmatprep.subr.mxu0 0.0
      %1889 = vmatpush1.msra.mxu0 %v1658
      %1890 = vmatprep.subr.mxu0 0.0
      %1891 = vmatpush1.msra.mxu0 %v1659
      %1892 = vmatprep.subr.mxu0 0.0
      %1893 = vmatpush1.msra.mxu0 %v1660
      %1894 = vmatprep.subr.mxu0 0.0
      %1895 = vmatpush1.msra.mxu0 %v1661
      %1896 = vmatprep.subr.mxu0 0.0
      %1897 = vmatpush1.msra.mxu0 %v1662
      %1898 = vmatprep.subr.mxu0 0.0
      %1899 = vmatpush1.msra.mxu0 %v1663
      %1900 = vmatprep.subr.mxu0 0.0
      %1901 = vmatpush1.msra.mxu0 %v1664
      %1902 = vmatprep.subr.mxu0 0.0
      %1903 = vmatpush1.msra.mxu0 %v1665
      %1904 = vmatprep.subr.mxu0 0.0
      %1905 = vmatpush1.msra.mxu0 %v1666
      %1906 = vmatprep.subr.mxu0 0.0
      %1907 = vmatpush1.msra.mxu0 %v1667
      %1908 = vmatprep.subr.mxu0 0.0
      %1909 = vmatpush1.msra.mxu0 %v1668
      %1910 = vmatprep.subr.mxu0 0.0
      %1911 = vmatpush1.msra.mxu0 %v1669
      %1912 = vmatprep.subr.mxu0 0.0
      %1913 = vmatpush1.msra.mxu0 %v1670
      %1914 = vmatprep.subr.mxu0 0.0
      %1915 = vmatpush1.msra.mxu0 %v1671
      %1916 = vmatprep.subr.mxu0 0.0
      %1917 = vmatpush1.msra.mxu0 %v1672
      %1918 = vmatprep.subr.mxu0 0.0
      %1919 = vmatpush1.msra.mxu0 %v1673
      %1920 = vmatprep.subr.mxu0 0.0
      %1921 = vmatpush1.msra.mxu0 %v1674
      %1922 = vmatprep.subr.mxu0 0.0
      %1923 = vmatpush1.msra.mxu0 %v1675
      %1924 = vmatprep.subr.mxu0 0.0
      %1925 = vmatpush1.msra.mxu0 %v1676
      %1926 = vmatprep.mubr.f32.mxu0 %v1680
      %1927 = vmatmul.mubr.f32.gmra.mrb[0].mxu0 %v1679
      %v1928 = vpop.f32.mrb[0].mxu0
      %v1929 = vadd.f32 %v1824, %v1928
      %v1930 = vpop.f32.mrb[0].mxu0
      %1931 = vmatprep.mubr.f32.mxu0 %v1684
      %1932 = vmatmul.mubr.f32.gmra.mrb[0].mxu0 %v1683
      %v1933 = vpop.f32.mrb[0].mxu0
      %v1934 = vadd.f32 %v1829, %v1933
      %v1935 = vpop.f32.mrb[0].mxu0
      %1936 = vmatprep.mubr.f32.mxu0 %v1688
      %1937 = vmatmul.mubr.f32.gmra.mrb[0].mxu0 %v1687
      %v1938 = vpop.f32.mrb[0].mxu0
      %v1939 = vadd.f32 %v1834, %v1938
      %v1940 = vpop.f32.mrb[0].mxu0
      %1941 = vmatprep.mubr.f32.mxu0 %v1692
      %1942 = vmatmul.mubr.f32.gmra.mrb[0].mxu0 %v1691
      %v1943 = vpop.f32.mrb[0].mxu0
      %v1944 = vadd.f32 %v1839, %v1943
      %v1945 = vpop.f32.mrb[0].mxu0
      %1946 = vmatprep.mubr.f32.mxu0 %v1696
      %1947 = vmatmul.mubr.f32.gmra.mrb[0].mxu0 %v1695
      %v1948 = vpop.f32.mrb[0].mxu0
      %v1949 = vadd.f32 %v1844, %v1948
      %v1950 = vpop.f32.mrb[0].mxu0
      %1951 = vmatprep.mubr.f32.mxu0 %v1700
      %1952 = vmatmul.mubr.f32.gmra.mrb[0].mxu0 %v1699
      %v1953 = vpop.f32.mrb[0].mxu0
      %v1954 = vadd.f32 %v1849, %v1953
      %v1955 = vpop.f32.mrb[0].mxu0
      %1956 = vmatprep.mubr.f32.mxu0 %v1704
      %1957 = vmatmul.mubr.f32.gmra.mrb[0].mxu0 %v1703
      %v1958 = vpop.f32.mrb[0].mxu0
      %v1959 = vadd.f32 %v1854, %v1958
      %v1960 = vpop.f32.mrb[0].mxu0
      %1961 = vmatprep.mubr.f32.mxu0 %v1708
      %1962 = vmatmul.mubr.f32.gmra.mrb[0].mxu0 %v1707
      %v1963 = vpop.f32.mrb[0].mxu0
      %v1964 = vadd.f32 %v1859, %v1963
      %v1965 = vpop.f32.mrb[0].mxu0
      %1966 = vdwg.mxu0
      %v1967 = vld [vmem:[%s568] sm:$0xff]
      %v1969 = vlaneseq
      %v1970 = vshrl.u32 %v1969, 7
      %v1971 = vsub.s32 0, %v1970
      %v1972 = vrot.slane %v1967, %v1971
      %v1973 = vlaneseq
      %v1974 = vshrl.u32 %v1973, 7
      %v1975 = vsub.s32 1, %v1974
      %v1976 = vrot.slane %v1967, %v1975
      %v1977 = vlaneseq
      %v1978 = vshrl.u32 %v1977, 7
      %v1979 = vsub.s32 2, %v1978
      %v1980 = vrot.slane %v1967, %v1979
      %v1981 = vlaneseq
      %v1982 = vshrl.u32 %v1981, 7
      %v1983 = vsub.s32 3, %v1982
      %v1984 = vrot.slane %v1967, %v1983
      %v1985 = vlaneseq
      %v1986 = vshrl.u32 %v1985, 7
      %v1987 = vsub.s32 4, %v1986
      %v1988 = vrot.slane %v1967, %v1987
      %v1989 = vlaneseq
      %v1990 = vshrl.u32 %v1989, 7
      %v1991 = vsub.s32 5, %v1990
      %v1992 = vrot.slane %v1967, %v1991
      %v1993 = vlaneseq
      %v1994 = vshrl.u32 %v1993, 7
      %v1995 = vsub.s32 6, %v1994
      %v1996 = vrot.slane %v1967, %v1995
      %v1997 = vlaneseq
      %v1998 = vshrl.u32 %v1997, 7
      %v1999 = vsub.s32 7, %v1998
      %v2000 = vrot.slane %v1967, %v1999
      %2009 = vrot.lane.b32.xlu0 %v1972, 17
      %v2010 = vpop.permute.xlu0 %2009
      %2011 = vrot.lane.b32.xlu0 %v1976, 17
      %v2012 = vpop.permute.xlu0 %2011
      %2013 = vrot.lane.b32.xlu0 %v1980, 17
      %v2014 = vpop.permute.xlu0 %2013
      %2015 = vrot.lane.b32.xlu0 %v1984, 17
      %v2016 = vpop.permute.xlu0 %2015
      %2017 = vrot.lane.b32.xlu0 %v1988, 17
      %v2018 = vpop.permute.xlu0 %2017
      %2019 = vrot.lane.b32.xlu0 %v1992, 17
      %v2020 = vpop.permute.xlu0 %2019
      %2021 = vrot.lane.b32.xlu0 %v1996, 17
      %v2022 = vpop.permute.xlu0 %2021
      %2023 = vrot.lane.b32.xlu0 %v2000, 17
      %v2024 = vpop.permute.xlu0 %2023
      %v2025 = vlaneseq
      %v2026 = vand.u32 %v2025, 127
      %vm2027 = vcmp.lt.s32.totalorder %v2026, 17
      %v2028 = vsel %vm2027, %v2022, %v2024
      %v2029 = vsel %vm2027, %v2020, %v2022
      %v2030 = vsel %vm2027, %v2018, %v2020
      %v2031 = vsel %vm2027, %v2016, %v2018
      %v2032 = vsel %vm2027, %v2014, %v2016
      %v2033 = vsel %vm2027, %v2012, %v2014
      %v2034 = vsel %vm2027, %v2010, %v2012
      %v2035 = vsel %vm2027, %v2024, %v2010
      %v2036 = vld [vmem:[%s15] ss:$8 sm:$0xf]
      %v2037 = vld [vmem:[%s15] ss:$8 sm:$0xf0]
      %v2038 = vor.u32 %v2036, %v2037
      %v2040 = vlaneseq
      %v2041 = vshrl.u32 %v2040, 7
      %v2042 = vsub.s32 0, %v2041
      %v2043 = vrot.slane %v2038, %v2042
      %v2044 = vlaneseq
      %v2045 = vshrl.u32 %v2044, 7
      %v2046 = vsub.s32 1, %v2045
      %v2047 = vrot.slane %v2038, %v2046
      %v2048 = vlaneseq
      %v2049 = vshrl.u32 %v2048, 7
      %v2050 = vsub.s32 2, %v2049
      %v2051 = vrot.slane %v2038, %v2050
      %v2052 = vlaneseq
      %v2053 = vshrl.u32 %v2052, 7
      %v2054 = vsub.s32 3, %v2053
      %v2055 = vrot.slane %v2038, %v2054
      %v2056 = vlaneseq
      %v2057 = vshrl.u32 %v2056, 7
      %v2058 = vsub.s32 4, %v2057
      %v2059 = vrot.slane %v2038, %v2058
      %v2060 = vlaneseq
      %v2061 = vshrl.u32 %v2060, 7
      %v2062 = vsub.s32 5, %v2061
      %v2063 = vrot.slane %v2038, %v2062
      %v2064 = vlaneseq
      %v2065 = vshrl.u32 %v2064, 7
      %v2066 = vsub.s32 6, %v2065
      %v2067 = vrot.slane %v2038, %v2066
      %v2068 = vlaneseq
      %v2069 = vshrl.u32 %v2068, 7
      %v2070 = vsub.s32 7, %v2069
      %v2071 = vrot.slane %v2038, %v2070
      %v2080 = vmul.f32 %v2035, %v2043
      %v2081 = vmul.f32 %v2034, %v2047
      %v2082 = vmul.f32 %v2033, %v2051
      %v2083 = vmul.f32 %v2032, %v2055
      %v2084 = vmul.f32 %v2031, %v2059
      %v2085 = vmul.f32 %v2030, %v2063
      %v2086 = vmul.f32 %v2029, %v2067
      %v2087 = vmul.f32 %v2028, %v2071
      %2088 = vrot.lane.b32.xlu0 %v1972, 16
      %v2089 = vpop.permute.xlu0 %2088
      %2090 = vrot.lane.b32.xlu0 %v1976, 16
      %v2091 = vpop.permute.xlu0 %2090
      %2092 = vrot.lane.b32.xlu0 %v1980, 16
      %v2093 = vpop.permute.xlu0 %2092
      %2094 = vrot.lane.b32.xlu0 %v1984, 16
      %v2095 = vpop.permute.xlu0 %2094
      %2096 = vrot.lane.b32.xlu0 %v1988, 16
      %v2097 = vpop.permute.xlu0 %2096
      %2098 = vrot.lane.b32.xlu0 %v1992, 16
      %v2099 = vpop.permute.xlu0 %2098
      %2100 = vrot.lane.b32.xlu0 %v1996, 16
      %v2101 = vpop.permute.xlu0 %2100
      %2102 = vrot.lane.b32.xlu0 %v2000, 16
      %v2103 = vpop.permute.xlu0 %2102
      %vm2104 = vcmp.lt.s32.totalorder %v2026, 16
      %v2105 = vsel %vm2104, %v2101, %v2103
      %v2106 = vsel %vm2104, %v2099, %v2101
      %v2107 = vsel %vm2104, %v2097, %v2099
      %v2108 = vsel %vm2104, %v2095, %v2097
      %v2109 = vsel %vm2104, %v2093, %v2095
      %v2110 = vsel %vm2104, %v2091, %v2093
      %v2111 = vsel %vm2104, %v2089, %v2091
      %v2112 = vsel %vm2104, %v2103, %v2089
      %s2113 = scalar_lea.vmem %s15, 1
      %v2114 = vld [vmem:[%s2113] ss:$8 sm:$0xf]
      %v2115 = vld [vmem:[%s2113] ss:$8 sm:$0xf0]
      %v2116 = vor.u32 %v2114, %v2115
      %v2118 = vlaneseq
      %v2119 = vshrl.u32 %v2118, 7
      %v2120 = vsub.s32 0, %v2119
      %v2121 = vrot.slane %v2116, %v2120
      %v2122 = vlaneseq
      %v2123 = vshrl.u32 %v2122, 7
      %v2124 = vsub.s32 1, %v2123
      %v2125 = vrot.slane %v2116, %v2124
      %v2126 = vlaneseq
      %v2127 = vshrl.u32 %v2126, 7
      %v2128 = vsub.s32 2, %v2127
      %v2129 = vrot.slane %v2116, %v2128
      %v2130 = vlaneseq
      %v2131 = vshrl.u32 %v2130, 7
      %v2132 = vsub.s32 3, %v2131
      %v2133 = vrot.slane %v2116, %v2132
      %v2134 = vlaneseq
      %v2135 = vshrl.u32 %v2134, 7
      %v2136 = vsub.s32 4, %v2135
      %v2137 = vrot.slane %v2116, %v2136
      %v2138 = vlaneseq
      %v2139 = vshrl.u32 %v2138, 7
      %v2140 = vsub.s32 5, %v2139
      %v2141 = vrot.slane %v2116, %v2140
      %v2142 = vlaneseq
      %v2143 = vshrl.u32 %v2142, 7
      %v2144 = vsub.s32 6, %v2143
      %v2145 = vrot.slane %v2116, %v2144
      %v2146 = vlaneseq
      %v2147 = vshrl.u32 %v2146, 7
      %v2148 = vsub.s32 7, %v2147
      %v2149 = vrot.slane %v2116, %v2148
      %v2158 = vmul.f32 %v2112, %v2121
      %v2159 = vmul.f32 %v2111, %v2125
      %v2160 = vmul.f32 %v2110, %v2129
      %v2161 = vmul.f32 %v2109, %v2133
      %v2162 = vmul.f32 %v2108, %v2137
      %v2163 = vmul.f32 %v2107, %v2141
      %v2164 = vmul.f32 %v2106, %v2145
      %v2165 = vmul.f32 %v2105, %v2149
      %2166 = vrot.lane.b32.xlu0 %v1972, 15
      %v2167 = vpop.permute.xlu0 %2166
      %2168 = vrot.lane.b32.xlu0 %v1976, 15
      %v2169 = vpop.permute.xlu0 %2168
      %2170 = vrot.lane.b32.xlu0 %v1980, 15
      %v2171 = vpop.permute.xlu0 %2170
      %2172 = vrot.lane.b32.xlu0 %v1984, 15
      %v2173 = vpop.permute.xlu0 %2172
      %2174 = vrot.lane.b32.xlu0 %v1988, 15
      %v2175 = vpop.permute.xlu0 %2174
      %2176 = vrot.lane.b32.xlu0 %v1992, 15
      %v2177 = vpop.permute.xlu0 %2176
      %2178 = vrot.lane.b32.xlu0 %v1996, 15
      %v2179 = vpop.permute.xlu0 %2178
      %2180 = vrot.lane.b32.xlu0 %v2000, 15
      %v2181 = vpop.permute.xlu0 %2180
      %vm2182 = vcmp.lt.s32.totalorder %v2026, 15
      %v2183 = vsel %vm2182, %v2179, %v2181
      %v2184 = vsel %vm2182, %v2177, %v2179
      %v2185 = vsel %vm2182, %v2175, %v2177
      %v2186 = vsel %vm2182, %v2173, %v2175
      %v2187 = vsel %vm2182, %v2171, %v2173
      %v2188 = vsel %vm2182, %v2169, %v2171
      %v2189 = vsel %vm2182, %v2167, %v2169
      %v2190 = vsel %vm2182, %v2181, %v2167
      %s2191 = scalar_lea.vmem %s15, 2
      %v2192 = vld [vmem:[%s2191] ss:$8 sm:$0xf]
      %v2193 = vld [vmem:[%s2191] ss:$8 sm:$0xf0]
      %v2194 = vor.u32 %v2192, %v2193
      %v2196 = vlaneseq
      %v2197 = vshrl.u32 %v2196, 7
      %v2198 = vsub.s32 0, %v2197
      %v2199 = vrot.slane %v2194, %v2198
      %v2200 = vlaneseq
      %v2201 = vshrl.u32 %v2200, 7
      %v2202 = vsub.s32 1, %v2201
      %v2203 = vrot.slane %v2194, %v2202
      %v2204 = vlaneseq
      %v2205 = vshrl.u32 %v2204, 7
      %v2206 = vsub.s32 2, %v2205
      %v2207 = vrot.slane %v2194, %v2206
      %v2208 = vlaneseq
      %v2209 = vshrl.u32 %v2208, 7
      %v2210 = vsub.s32 3, %v2209
      %v2211 = vrot.slane %v2194, %v2210
      %v2212 = vlaneseq
      %v2213 = vshrl.u32 %v2212, 7
      %v2214 = vsub.s32 4, %v2213
      %v2215 = vrot.slane %v2194, %v2214
      %v2216 = vlaneseq
      %v2217 = vshrl.u32 %v2216, 7
      %v2218 = vsub.s32 5, %v2217
      %v2219 = vrot.slane %v2194, %v2218
      %v2220 = vlaneseq
      %v2221 = vshrl.u32 %v2220, 7
      %v2222 = vsub.s32 6, %v2221
      %v2223 = vrot.slane %v2194, %v2222
      %v2224 = vlaneseq
      %v2225 = vshrl.u32 %v2224, 7
      %v2226 = vsub.s32 7, %v2225
      %v2227 = vrot.slane %v2194, %v2226
      %v2236 = vmul.f32 %v2190, %v2199
      %v2237 = vmul.f32 %v2189, %v2203
      %v2238 = vmul.f32 %v2188, %v2207
      %v2239 = vmul.f32 %v2187, %v2211
      %v2240 = vmul.f32 %v2186, %v2215
      %v2241 = vmul.f32 %v2185, %v2219
      %v2242 = vmul.f32 %v2184, %v2223
      %v2243 = vmul.f32 %v2183, %v2227
      %2244 = vrot.lane.b32.xlu0 %v1972, 1
      %v2245 = vpop.permute.xlu0 %2244
      %2246 = vrot.lane.b32.xlu0 %v1976, 1
      %v2247 = vpop.permute.xlu0 %2246
      %2248 = vrot.lane.b32.xlu0 %v1980, 1
      %v2249 = vpop.permute.xlu0 %2248
      %2250 = vrot.lane.b32.xlu0 %v1984, 1
      %v2251 = vpop.permute.xlu0 %2250
      %2252 = vrot.lane.b32.xlu0 %v1988, 1
      %v2253 = vpop.permute.xlu0 %2252
      %2254 = vrot.lane.b32.xlu0 %v1992, 1
      %v2255 = vpop.permute.xlu0 %2254
      %2256 = vrot.lane.b32.xlu0 %v1996, 1
      %v2257 = vpop.permute.xlu0 %2256
      %2258 = vrot.lane.b32.xlu0 %v2000, 1
      %v2259 = vpop.permute.xlu0 %2258
      %vm2260 = vcmp.lt.s32.totalorder %v2026, 1
      %v2261 = vsel %vm2260, %v2257, %v2259
      %v2262 = vsel %vm2260, %v2255, %v2257
      %v2263 = vsel %vm2260, %v2253, %v2255
      %v2264 = vsel %vm2260, %v2251, %v2253
      %v2265 = vsel %vm2260, %v2249, %v2251
      %v2266 = vsel %vm2260, %v2247, %v2249
      %v2267 = vsel %vm2260, %v2245, %v2247
      %v2268 = vsel %vm2260, %v2259, %v2245
      %s2269 = scalar_lea.vmem %s15, 3
      %v2270 = vld [vmem:[%s2269] ss:$8 sm:$0xf]
      %v2271 = vld [vmem:[%s2269] ss:$8 sm:$0xf0]
      %v2272 = vor.u32 %v2270, %v2271
      %v2274 = vlaneseq
      %v2275 = vshrl.u32 %v2274, 7
      %v2276 = vsub.s32 0, %v2275
      %v2277 = vrot.slane %v2272, %v2276
      %v2278 = vlaneseq
      %v2279 = vshrl.u32 %v2278, 7
      %v2280 = vsub.s32 1, %v2279
      %v2281 = vrot.slane %v2272, %v2280
      %v2282 = vlaneseq
      %v2283 = vshrl.u32 %v2282, 7
      %v2284 = vsub.s32 2, %v2283
      %v2285 = vrot.slane %v2272, %v2284
      %v2286 = vlaneseq
      %v2287 = vshrl.u32 %v2286, 7
      %v2288 = vsub.s32 3, %v2287
      %v2289 = vrot.slane %v2272, %v2288
      %v2290 = vlaneseq
      %v2291 = vshrl.u32 %v2290, 7
      %v2292 = vsub.s32 4, %v2291
      %v2293 = vrot.slane %v2272, %v2292
      %v2294 = vlaneseq
      %v2295 = vshrl.u32 %v2294, 7
      %v2296 = vsub.s32 5, %v2295
      %v2297 = vrot.slane %v2272, %v2296
      %v2298 = vlaneseq
      %v2299 = vshrl.u32 %v2298, 7
      %v2300 = vsub.s32 6, %v2299
      %v2301 = vrot.slane %v2272, %v2300
      %v2302 = vlaneseq
      %v2303 = vshrl.u32 %v2302, 7
      %v2304 = vsub.s32 7, %v2303
      %v2305 = vrot.slane %v2272, %v2304
      %v2314 = vmul.f32 %v2268, %v2277
      %v2315 = vmul.f32 %v2267, %v2281
      %v2316 = vmul.f32 %v2266, %v2285
      %v2317 = vmul.f32 %v2265, %v2289
      %v2318 = vmul.f32 %v2264, %v2293
      %v2319 = vmul.f32 %v2263, %v2297
      %v2320 = vmul.f32 %v2262, %v2301
      %v2321 = vmul.f32 %v2261, %v2305
      %2322 = vrot.lane.b32.xlu0 %v1972, 127
      %v2323 = vpop.permute.xlu0 %2322
      %2324 = vrot.lane.b32.xlu0 %v1976, 127
      %v2325 = vpop.permute.xlu0 %2324
      %2326 = vrot.lane.b32.xlu0 %v1980, 127
      %v2327 = vpop.permute.xlu0 %2326
      %2328 = vrot.lane.b32.xlu0 %v1984, 127
      %v2329 = vpop.permute.xlu0 %2328
      %2330 = vrot.lane.b32.xlu0 %v1988, 127
      %v2331 = vpop.permute.xlu0 %2330
      %2332 = vrot.lane.b32.xlu0 %v1992, 127
      %v2333 = vpop.permute.xlu0 %2332
      %2334 = vrot.lane.b32.xlu0 %v1996, 127
      %v2335 = vpop.permute.xlu0 %2334
      %2336 = vrot.lane.b32.xlu0 %v2000, 127
      %v2337 = vpop.permute.xlu0 %2336
      %vm2338 = vcmp.lt.s32.totalorder %v2026, 127
      %v2339 = vsel %vm2338, %v2335, %v2337
      %v2340 = vsel %vm2338, %v2333, %v2335
      %v2341 = vsel %vm2338, %v2331, %v2333
      %v2342 = vsel %vm2338, %v2329, %v2331
      %v2343 = vsel %vm2338, %v2327, %v2329
      %v2344 = vsel %vm2338, %v2325, %v2327
      %v2345 = vsel %vm2338, %v2323, %v2325
      %v2346 = vsel %vm2338, %v2337, %v2323
      %s2347 = scalar_lea.vmem %s15, 5
      %v2348 = vld [vmem:[%s2347] ss:$8 sm:$0xf]
      %v2349 = vld [vmem:[%s2347] ss:$8 sm:$0xf0]
      %v2350 = vor.u32 %v2348, %v2349
      %v2352 = vlaneseq
      %v2353 = vshrl.u32 %v2352, 7
      %v2354 = vsub.s32 0, %v2353
      %v2355 = vrot.slane %v2350, %v2354
      %v2356 = vlaneseq
      %v2357 = vshrl.u32 %v2356, 7
      %v2358 = vsub.s32 1, %v2357
      %v2359 = vrot.slane %v2350, %v2358
      %v2360 = vlaneseq
      %v2361 = vshrl.u32 %v2360, 7
      %v2362 = vsub.s32 2, %v2361
      %v2363 = vrot.slane %v2350, %v2362
      %v2364 = vlaneseq
      %v2365 = vshrl.u32 %v2364, 7
      %v2366 = vsub.s32 3, %v2365
      %v2367 = vrot.slane %v2350, %v2366
      %v2368 = vlaneseq
      %v2369 = vshrl.u32 %v2368, 7
      %v2370 = vsub.s32 4, %v2369
      %v2371 = vrot.slane %v2350, %v2370
      %v2372 = vlaneseq
      %v2373 = vshrl.u32 %v2372, 7
      %v2374 = vsub.s32 5, %v2373
      %v2375 = vrot.slane %v2350, %v2374
      %v2376 = vlaneseq
      %v2377 = vshrl.u32 %v2376, 7
      %v2378 = vsub.s32 6, %v2377
      %v2379 = vrot.slane %v2350, %v2378
      %v2380 = vlaneseq
      %v2381 = vshrl.u32 %v2380, 7
      %v2382 = vsub.s32 7, %v2381
      %v2383 = vrot.slane %v2350, %v2382
      %v2392 = vmul.f32 %v2345, %v2355
      %v2393 = vmul.f32 %v2344, %v2359
      %v2394 = vmul.f32 %v2343, %v2363
      %v2395 = vmul.f32 %v2342, %v2367
      %v2396 = vmul.f32 %v2341, %v2371
      %v2397 = vmul.f32 %v2340, %v2375
      %v2398 = vmul.f32 %v2339, %v2379
      %v2399 = vmul.f32 %v2346, %v2383
      %2400 = vrot.lane.b32.xlu0 %v1972, 113
      %v2401 = vpop.permute.xlu0 %2400
      %2402 = vrot.lane.b32.xlu0 %v1976, 113
      %v2403 = vpop.permute.xlu0 %2402
      %2404 = vrot.lane.b32.xlu0 %v1980, 113
      %v2405 = vpop.permute.xlu0 %2404
      %2406 = vrot.lane.b32.xlu0 %v1984, 113
      %v2407 = vpop.permute.xlu0 %2406
      %2408 = vrot.lane.b32.xlu0 %v1988, 113
      %v2409 = vpop.permute.xlu0 %2408
      %2410 = vrot.lane.b32.xlu0 %v1992, 113
      %v2411 = vpop.permute.xlu0 %2410
      %2412 = vrot.lane.b32.xlu0 %v1996, 113
      %v2413 = vpop.permute.xlu0 %2412
      %2414 = vrot.lane.b32.xlu0 %v2000, 113
      %v2415 = vpop.permute.xlu0 %2414
      %vm2416 = vcmp.lt.s32.totalorder %v2026, 113
      %v2417 = vsel %vm2416, %v2413, %v2415
      %v2418 = vsel %vm2416, %v2411, %v2413
      %v2419 = vsel %vm2416, %v2409, %v2411
      %v2420 = vsel %vm2416, %v2407, %v2409
      %v2421 = vsel %vm2416, %v2405, %v2407
      %v2422 = vsel %vm2416, %v2403, %v2405
      %v2423 = vsel %vm2416, %v2401, %v2403
      %v2424 = vsel %vm2416, %v2415, %v2401
      %s2425 = scalar_lea.vmem %s15, 6
      %v2426 = vld [vmem:[%s2425] ss:$8 sm:$0xf]
      %v2427 = vld [vmem:[%s2425] ss:$8 sm:$0xf0]
      %v2428 = vor.u32 %v2426, %v2427
      %v2430 = vlaneseq
      %v2431 = vshrl.u32 %v2430, 7
      %v2432 = vsub.s32 0, %v2431
      %v2433 = vrot.slane %v2428, %v2432
      %v2434 = vlaneseq
      %v2435 = vshrl.u32 %v2434, 7
      %v2436 = vsub.s32 1, %v2435
      %v2437 = vrot.slane %v2428, %v2436
      %v2438 = vlaneseq
      %v2439 = vshrl.u32 %v2438, 7
      %v2440 = vsub.s32 2, %v2439
      %v2441 = vrot.slane %v2428, %v2440
      %v2442 = vlaneseq
      %v2443 = vshrl.u32 %v2442, 7
      %v2444 = vsub.s32 3, %v2443
      %v2445 = vrot.slane %v2428, %v2444
      %v2446 = vlaneseq
      %v2447 = vshrl.u32 %v2446, 7
      %v2448 = vsub.s32 4, %v2447
      %v2449 = vrot.slane %v2428, %v2448
      %v2450 = vlaneseq
      %v2451 = vshrl.u32 %v2450, 7
      %v2452 = vsub.s32 5, %v2451
      %v2453 = vrot.slane %v2428, %v2452
      %v2454 = vlaneseq
      %v2455 = vshrl.u32 %v2454, 7
      %v2456 = vsub.s32 6, %v2455
      %v2457 = vrot.slane %v2428, %v2456
      %v2458 = vlaneseq
      %v2459 = vshrl.u32 %v2458, 7
      %v2460 = vsub.s32 7, %v2459
      %v2461 = vrot.slane %v2428, %v2460
      %v2470 = vmul.f32 %v2423, %v2433
      %v2471 = vmul.f32 %v2422, %v2437
      %v2472 = vmul.f32 %v2421, %v2441
      %v2473 = vmul.f32 %v2420, %v2445
      %v2474 = vmul.f32 %v2419, %v2449
      %v2475 = vmul.f32 %v2418, %v2453
      %v2476 = vmul.f32 %v2417, %v2457
      %v2477 = vmul.f32 %v2424, %v2461
      %2478 = vrot.lane.b32.xlu0 %v1972, 112
      %v2479 = vpop.permute.xlu0 %2478
      %2480 = vrot.lane.b32.xlu0 %v1976, 112
      %v2481 = vpop.permute.xlu0 %2480
      %2482 = vrot.lane.b32.xlu0 %v1980, 112
      %v2483 = vpop.permute.xlu0 %2482
      %2484 = vrot.lane.b32.xlu0 %v1984, 112
      %v2485 = vpop.permute.xlu0 %2484
      %2486 = vrot.lane.b32.xlu0 %v1988, 112
      %v2487 = vpop.permute.xlu0 %2486
      %2488 = vrot.lane.b32.xlu0 %v1992, 112
      %v2489 = vpop.permute.xlu0 %2488
      %2490 = vrot.lane.b32.xlu0 %v1996, 112
      %v2491 = vpop.permute.xlu0 %2490
      %2492 = vrot.lane.b32.xlu0 %v2000, 112
      %v2493 = vpop.permute.xlu0 %2492
      %vm2494 = vcmp.lt.s32.totalorder %v2026, 112
      %v2495 = vsel %vm2494, %v2491, %v2493
      %v2496 = vsel %vm2494, %v2489, %v2491
      %v2497 = vsel %vm2494, %v2487, %v2489
      %v2498 = vsel %vm2494, %v2485, %v2487
      %v2499 = vsel %vm2494, %v2483, %v2485
      %v2500 = vsel %vm2494, %v2481, %v2483
      %v2501 = vsel %vm2494, %v2479, %v2481
      %v2502 = vsel %vm2494, %v2493, %v2479
      %s2503 = scalar_lea.vmem %s15, 7
      %v2504 = vld [vmem:[%s2503] ss:$8 sm:$0xf]
      %v2505 = vld [vmem:[%s2503] ss:$8 sm:$0xf0]
      %v2506 = vor.u32 %v2504, %v2505
      %v2508 = vlaneseq
      %v2509 = vshrl.u32 %v2508, 7
      %v2510 = vsub.s32 0, %v2509
      %v2511 = vrot.slane %v2506, %v2510
      %v2512 = vlaneseq
      %v2513 = vshrl.u32 %v2512, 7
      %v2514 = vsub.s32 1, %v2513
      %v2515 = vrot.slane %v2506, %v2514
      %v2516 = vlaneseq
      %v2517 = vshrl.u32 %v2516, 7
      %v2518 = vsub.s32 2, %v2517
      %v2519 = vrot.slane %v2506, %v2518
      %v2520 = vlaneseq
      %v2521 = vshrl.u32 %v2520, 7
      %v2522 = vsub.s32 3, %v2521
      %v2523 = vrot.slane %v2506, %v2522
      %v2524 = vlaneseq
      %v2525 = vshrl.u32 %v2524, 7
      %v2526 = vsub.s32 4, %v2525
      %v2527 = vrot.slane %v2506, %v2526
      %v2528 = vlaneseq
      %v2529 = vshrl.u32 %v2528, 7
      %v2530 = vsub.s32 5, %v2529
      %v2531 = vrot.slane %v2506, %v2530
      %v2532 = vlaneseq
      %v2533 = vshrl.u32 %v2532, 7
      %v2534 = vsub.s32 6, %v2533
      %v2535 = vrot.slane %v2506, %v2534
      %v2536 = vlaneseq
      %v2537 = vshrl.u32 %v2536, 7
      %v2538 = vsub.s32 7, %v2537
      %v2539 = vrot.slane %v2506, %v2538
      %v2548 = vmul.f32 %v2501, %v2511
      %v2549 = vmul.f32 %v2500, %v2515
      %v2550 = vmul.f32 %v2499, %v2519
      %v2551 = vmul.f32 %v2498, %v2523
      %v2552 = vmul.f32 %v2497, %v2527
      %v2553 = vmul.f32 %v2496, %v2531
      %v2554 = vmul.f32 %v2495, %v2535
      %v2555 = vmul.f32 %v2502, %v2539
      %2556 = vrot.lane.b32.xlu0 %v1972, 111
      %v2557 = vpop.permute.xlu0 %2556
      %2558 = vrot.lane.b32.xlu0 %v1976, 111
      %v2559 = vpop.permute.xlu0 %2558
      %2560 = vrot.lane.b32.xlu0 %v1980, 111
      %v2561 = vpop.permute.xlu0 %2560
      %2562 = vrot.lane.b32.xlu0 %v1984, 111
      %v2563 = vpop.permute.xlu0 %2562
      %2564 = vrot.lane.b32.xlu0 %v1988, 111
      %v2565 = vpop.permute.xlu0 %2564
      %2566 = vrot.lane.b32.xlu0 %v1992, 111
      %v2567 = vpop.permute.xlu0 %2566
      %2568 = vrot.lane.b32.xlu0 %v1996, 111
      %v2569 = vpop.permute.xlu0 %2568
      %2570 = vrot.lane.b32.xlu0 %v2000, 111
      %v2571 = vpop.permute.xlu0 %2570
      %vm2572 = vcmp.lt.s32.totalorder %v2026, 111
      %v2573 = vsel %vm2572, %v2569, %v2571
      %v2574 = vsel %vm2572, %v2567, %v2569
      %v2575 = vsel %vm2572, %v2565, %v2567
      %v2576 = vsel %vm2572, %v2563, %v2565
      %v2577 = vsel %vm2572, %v2561, %v2563
      %v2578 = vsel %vm2572, %v2559, %v2561
      %v2579 = vsel %vm2572, %v2557, %v2559
      %v2580 = vsel %vm2572, %v2571, %v2557
      %s2581 = scalar_lea.vmem %s15, 64
      %v2582 = vld [vmem:[%s2581] ss:$8 sm:$0xf]
      %v2583 = vld [vmem:[%s2581] ss:$8 sm:$0xf0]
      %v2584 = vor.u32 %v2582, %v2583
      %v2586 = vlaneseq
      %v2587 = vshrl.u32 %v2586, 7
      %v2588 = vsub.s32 0, %v2587
      %v2589 = vrot.slane %v2584, %v2588
      %v2590 = vlaneseq
      %v2591 = vshrl.u32 %v2590, 7
      %v2592 = vsub.s32 1, %v2591
      %v2593 = vrot.slane %v2584, %v2592
      %v2594 = vlaneseq
      %v2595 = vshrl.u32 %v2594, 7
      %v2596 = vsub.s32 2, %v2595
      %v2597 = vrot.slane %v2584, %v2596
      %v2598 = vlaneseq
      %v2599 = vshrl.u32 %v2598, 7
      %v2600 = vsub.s32 3, %v2599
      %v2601 = vrot.slane %v2584, %v2600
      %v2602 = vlaneseq
      %v2603 = vshrl.u32 %v2602, 7
      %v2604 = vsub.s32 4, %v2603
      %v2605 = vrot.slane %v2584, %v2604
      %v2606 = vlaneseq
      %v2607 = vshrl.u32 %v2606, 7
      %v2608 = vsub.s32 5, %v2607
      %v2609 = vrot.slane %v2584, %v2608
      %v2610 = vlaneseq
      %v2611 = vshrl.u32 %v2610, 7
      %v2612 = vsub.s32 6, %v2611
      %v2613 = vrot.slane %v2584, %v2612
      %v2614 = vlaneseq
      %v2615 = vshrl.u32 %v2614, 7
      %v2616 = vsub.s32 7, %v2615
      %v2617 = vrot.slane %v2584, %v2616
      %v2626 = vmul.f32 %v2579, %v2589
      %v2627 = vmul.f32 %v2578, %v2593
      %v2628 = vmul.f32 %v2577, %v2597
      %v2629 = vmul.f32 %v2576, %v2601
      %v2630 = vmul.f32 %v2575, %v2605
      %v2631 = vmul.f32 %v2574, %v2609
      %v2632 = vmul.f32 %v2573, %v2613
      %v2633 = vmul.f32 %v2580, %v2617
      %v2642 = vrot.slane %v2158, 7
      %v2643 = vrot.slane %v2159, 7
      %v2644 = vrot.slane %v2160, 7
      %v2645 = vrot.slane %v2161, 7
      %v2646 = vrot.slane %v2162, 7
      %v2647 = vrot.slane %v2163, 7
      %v2648 = vrot.slane %v2164, 7
      %v2649 = vrot.slane %v2165, 7
      %v2666 = vrot.slane %v2236, 6
      %v2667 = vrot.slane %v2237, 6
      %v2668 = vrot.slane %v2238, 6
      %v2669 = vrot.slane %v2239, 6
      %v2670 = vrot.slane %v2240, 6
      %v2671 = vrot.slane %v2241, 6
      %v2672 = vrot.slane %v2242, 6
      %v2673 = vrot.slane %v2243, 6
      %v2690 = vrot.slane %v2314, 5
      %v2691 = vrot.slane %v2315, 5
      %v2692 = vrot.slane %v2316, 5
      %v2693 = vrot.slane %v2317, 5
      %v2694 = vrot.slane %v2318, 5
      %v2695 = vrot.slane %v2319, 5
      %v2696 = vrot.slane %v2320, 5
      %v2697 = vrot.slane %v2321, 5
      %v2714 = vrot.slane %v2392, 3
      %v2715 = vrot.slane %v2393, 3
      %v2716 = vrot.slane %v2394, 3
      %v2717 = vrot.slane %v2395, 3
      %v2718 = vrot.slane %v2396, 3
      %v2719 = vrot.slane %v2397, 3
      %v2720 = vrot.slane %v2398, 3
      %v2721 = vrot.slane %v2399, 3
      %v2738 = vrot.slane %v2470, 2
      %v2739 = vrot.slane %v2471, 2
      %v2740 = vrot.slane %v2472, 2
      %v2741 = vrot.slane %v2473, 2
      %v2742 = vrot.slane %v2474, 2
      %v2743 = vrot.slane %v2475, 2
      %v2744 = vrot.slane %v2476, 2
      %v2745 = vrot.slane %v2477, 2
      %v2762 = vrot.slane %v2548, 1
      %v2763 = vrot.slane %v2549, 1
      %v2764 = vrot.slane %v2550, 1
      %v2765 = vrot.slane %v2551, 1
      %v2766 = vrot.slane %v2552, 1
      %v2767 = vrot.slane %v2553, 1
      %v2768 = vrot.slane %v2554, 1
      %v2769 = vrot.slane %v2555, 1
      %v2778 = vsel %vm581, %v2080, %v2642
      %v2779 = vsel %vm581, %v2081, %v2643
      %v2780 = vsel %vm581, %v2082, %v2644
      %v2781 = vsel %vm581, %v2083, %v2645
      %v2782 = vsel %vm581, %v2084, %v2646
      %v2783 = vsel %vm581, %v2085, %v2647
      %v2784 = vsel %vm581, %v2086, %v2648
      %v2785 = vsel %vm581, %v2087, %v2649
      %v2786 = vsel %vm1224, %v2778, %v2666
      %v2787 = vsel %vm1224, %v2779, %v2667
      %v2788 = vsel %vm1224, %v2780, %v2668
      %v2789 = vsel %vm1224, %v2781, %v2669
      %v2790 = vsel %vm1224, %v2782, %v2670
      %v2791 = vsel %vm1224, %v2783, %v2671
      %v2792 = vsel %vm1224, %v2784, %v2672
      %v2793 = vsel %vm1224, %v2785, %v2673
      %vm2794 = vcmask 1042432
      %v2795 = vsel %vm2794, %v2786, %v2690
      %v2796 = vsel %vm2794, %v2787, %v2691
      %v2797 = vsel %vm2794, %v2788, %v2692
      %v2798 = vsel %vm2794, %v2789, %v2693
      %v2799 = vsel %vm2794, %v2790, %v2694
      %v2800 = vsel %vm2794, %v2791, %v2695
      %v2801 = vsel %vm2794, %v2792, %v2696
      %v2802 = vsel %vm2794, %v2793, %v2697
      %vm2803 = vcmask 1043456
      %v2804 = vsel %vm2803, %v2795, %v1972
      %v2805 = vsel %vm2803, %v2796, %v1976
      %v2806 = vsel %vm2803, %v2797, %v1980
      %v2807 = vsel %vm2803, %v2798, %v1984
      %v2808 = vsel %vm2803, %v2799, %v1988
      %v2809 = vsel %vm2803, %v2800, %v1992
      %v2810 = vsel %vm2803, %v2801, %v1996
      %v2811 = vsel %vm2803, %v2802, %v2000
      %vm2812 = vcmask 1044480
      %v2813 = vsel %vm2812, %v2804, %v2714
      %v2814 = vsel %vm2812, %v2805, %v2715
      %v2815 = vsel %vm2812, %v2806, %v2716
      %v2816 = vsel %vm2812, %v2807, %v2717
      %v2817 = vsel %vm2812, %v2808, %v2718
      %v2818 = vsel %vm2812, %v2809, %v2719
      %v2819 = vsel %vm2812, %v2810, %v2720
      %v2820 = vsel %vm2812, %v2811, %v2721
      %vm2821 = vcmask 1045504
      %v2822 = vsel %vm2821, %v2813, %v2738
      %v2823 = vsel %vm2821, %v2814, %v2739
      %v2824 = vsel %vm2821, %v2815, %v2740
      %v2825 = vsel %vm2821, %v2816, %v2741
      %v2826 = vsel %vm2821, %v2817, %v2742
      %v2827 = vsel %vm2821, %v2818, %v2743
      %v2828 = vsel %vm2821, %v2819, %v2744
      %v2829 = vsel %vm2821, %v2820, %v2745
      %vm2830 = vcmask 1046528
      %v2831 = vsel %vm2830, %v2822, %v2762
      %v2832 = vsel %vm2830, %v2823, %v2763
      %v2833 = vsel %vm2830, %v2824, %v2764
      %v2834 = vsel %vm2830, %v2825, %v2765
      %v2835 = vsel %vm2830, %v2826, %v2766
      %v2836 = vsel %vm2830, %v2827, %v2767
      %v2837 = vsel %vm2830, %v2828, %v2768
      %v2838 = vsel %vm2830, %v2829, %v2769
      %v2839 = vld [vmem:[%s7] sm:$0xff]
      %v2840 = vld [vmem:[%s7 + $0x8] sm:$0xff]
      %v2841 = vld [vmem:[%s7 + $0x10] sm:$0xff]
      %v2842 = vld [vmem:[%s7 + $0x18] sm:$0xff]
      %v2843 = vld [vmem:[%s7 + $0x20] sm:$0xff]
      %v2844 = vld [vmem:[%s7 + $0x28] sm:$0xff]
      %v2845 = vld [vmem:[%s7 + $0x30] sm:$0xff]
      %v2846 = vld [vmem:[%s7 + $0x38] sm:$0xff]
      %v2847 = vld [vmem:[%s8] sm:$0xff]
      %v2848 = vld [vmem:[%s8 + $0x8] sm:$0xff]
      %v2849 = vld [vmem:[%s8 + $0x10] sm:$0xff]
      %v2850 = vld [vmem:[%s8 + $0x18] sm:$0xff]
      %v2851 = vld [vmem:[%s8 + $0x20] sm:$0xff]
      %v2852 = vld [vmem:[%s8 + $0x28] sm:$0xff]
      %v2853 = vld [vmem:[%s8 + $0x30] sm:$0xff]
      %v2854 = vld [vmem:[%s8 + $0x38] sm:$0xff]
      %2856 = vset.pattern.permute.xlu0 0
      %2857 = vperm.xlu0 %2856, %v2847
      %v2858 = vpop.permute.xlu0 %2857
      %2861 = vset.pattern.permute.xlu0 0
      %2862 = vperm.xlu0 %2861, %v2848
      %v2863 = vpop.permute.xlu0 %2862
      %2866 = vset.pattern.permute.xlu0 0
      %2867 = vperm.xlu0 %2866, %v2849
      %v2868 = vpop.permute.xlu0 %2867
      %2871 = vset.pattern.permute.xlu0 0
      %2872 = vperm.xlu0 %2871, %v2850
      %v2873 = vpop.permute.xlu0 %2872
      %2876 = vset.pattern.permute.xlu0 0
      %2877 = vperm.xlu0 %2876, %v2851
      %v2878 = vpop.permute.xlu0 %2877
      %2881 = vset.pattern.permute.xlu0 0
      %2882 = vperm.xlu0 %2881, %v2852
      %v2883 = vpop.permute.xlu0 %2882
      %2886 = vset.pattern.permute.xlu0 0
      %2887 = vperm.xlu0 %2886, %v2853
      %v2888 = vpop.permute.xlu0 %2887
      %2891 = vset.pattern.permute.xlu0 0
      %2892 = vperm.xlu0 %2891, %v2854
      %v2893 = vpop.permute.xlu0 %2892
      %vm2895 = vcmask 72704
      %v2897 = vsel %vm2895, %v2839, 0
      %v2900 = vsel %vm2895, %v2840, 0
      %v2903 = vsel %vm2895, %v2841, 0
      %v2906 = vsel %vm2895, %v2842, 0
      %v2909 = vsel %vm2895, %v2843, 0
      %v2912 = vsel %vm2895, %v2844, 0
      %v2915 = vsel %vm2895, %v2845, 0
      %v2918 = vsel %vm2895, %v2846, 0
      %v2921 = vsel %vm581, %v2626, 0
      %v2924 = vsel %vm581, %v2627, 0
      %v2927 = vsel %vm581, %v2628, 0
      %v2930 = vsel %vm581, %v2629, 0
      %v2933 = vsel %vm581, %v2630, 0
      %v2936 = vsel %vm581, %v2631, 0
      %v2939 = vsel %vm581, %v2632, 0
      %v2942 = vsel %vm581, %v2633, 0
      %2944 = vmatprep.subr.mxu0 %v2832
      %2945 = vmatpush1.msra.mxu0 %v2831
      %2946 = vmatprep.subr.mxu0 %v2924
      %2947 = vmatpush1.msra.mxu0 %v2921
      %2948 = vmatprep.subr.mxu0 0.0
      %2949 = vmatpush1.msra.mxu0 0.0
      %2950 = vmatprep.subr.mxu0 0.0
      %2951 = vmatpush1.msra.mxu0 0.0
      %2952 = vmatprep.subr.mxu0 0.0
      %2953 = vmatpush1.msra.mxu0 0.0
      %2954 = vmatprep.subr.mxu0 0.0
      %2955 = vmatpush1.msra.mxu0 0.0
      %2956 = vmatprep.subr.mxu0 0.0
      %2957 = vmatpush1.msra.mxu0 0.0
      %2958 = vmatprep.subr.mxu0 0.0
      %2959 = vmatpush1.msra.mxu0 0.0
      %2960 = vmatprep.subr.mxu0 0.0
      %2961 = vmatpush1.msra.mxu0 0.0
      %2962 = vmatprep.subr.mxu0 0.0
      %2963 = vmatpush1.msra.mxu0 0.0
      %2964 = vmatprep.subr.mxu0 0.0
      %2965 = vmatpush1.msra.mxu0 0.0
      %2966 = vmatprep.subr.mxu0 0.0
      %2967 = vmatpush1.msra.mxu0 0.0
      %2968 = vmatprep.subr.mxu0 0.0
      %2969 = vmatpush1.msra.mxu0 0.0
      %2970 = vmatprep.subr.mxu0 0.0
      %2971 = vmatpush1.msra.mxu0 0.0
      %2972 = vmatprep.subr.mxu0 0.0
      %2973 = vmatpush1.msra.mxu0 0.0
      %2974 = vmatprep.subr.mxu0 0.0
      %2975 = vmatpush1.msra.mxu0 0.0
      %2976 = vmatprep.subr.mxu0 0.0
      %2977 = vmatpush1.msra.mxu0 0.0
      %2978 = vmatprep.subr.mxu0 0.0
      %2979 = vmatpush1.msra.mxu0 0.0
      %2980 = vmatprep.subr.mxu0 0.0
      %2981 = vmatpush1.msra.mxu0 0.0
      %2982 = vmatprep.subr.mxu0 0.0
      %2983 = vmatpush1.msra.mxu0 0.0
      %2984 = vmatprep.subr.mxu0 0.0
      %2985 = vmatpush1.msra.mxu0 0.0
      %2986 = vmatprep.subr.mxu0 0.0
      %2987 = vmatpush1.msra.mxu0 0.0
      %2988 = vmatprep.subr.mxu0 0.0
      %2989 = vmatpush1.msra.mxu0 0.0
      %2990 = vmatprep.subr.mxu0 0.0
      %2991 = vmatpush1.msra.mxu0 0.0
      %2992 = vmatprep.subr.mxu0 0.0
      %2993 = vmatpush1.msra.mxu0 0.0
      %2994 = vmatprep.subr.mxu0 0.0
      %2995 = vmatpush1.msra.mxu0 0.0
      %2996 = vmatprep.subr.mxu0 0.0
      %2997 = vmatpush1.msra.mxu0 0.0
      %2998 = vmatprep.subr.mxu0 0.0
      %2999 = vmatpush1.msra.mxu0 0.0
      %3000 = vmatprep.subr.mxu0 0.0
      %3001 = vmatpush1.msra.mxu0 0.0
      %3002 = vmatprep.subr.mxu0 0.0
      %3003 = vmatpush1.msra.mxu0 0.0
      %3004 = vmatprep.subr.mxu0 0.0
      %3005 = vmatpush1.msra.mxu0 0.0
      %3006 = vmatprep.subr.mxu0 0.0
      %3007 = vmatpush1.msra.mxu0 0.0
      %3008 = vmatprep.mubr.f32.mxu0 0.0
      %3009 = vmatmul.mubr.f32.gmra.mrb[0].mxu0 %v2897
      %v3010 = vpop.f32.mrb[0].mxu0
      %v3011 = vadd.f32 %v2858, %v3010
      %v3012 = vpop.f32.mrb[0].mxu0
      %v3013 = vadd.f32 %v2858, %v3012
      %3014 = vmatprep.mubr.f32.mxu0 0.0
      %3015 = vmatmul.mubr.f32.gmra.mrb[0].mxu0 %v2900
      %v3016 = vpop.f32.mrb[0].mxu0
      %v3017 = vadd.f32 %v2863, %v3016
      %v3018 = vpop.f32.mrb[0].mxu0
      %v3019 = vadd.f32 %v2863, %v3018
      %3020 = vmatprep.mubr.f32.mxu0 0.0
      %3021 = vmatmul.mubr.f32.gmra.mrb[0].mxu0 %v2903
      %v3022 = vpop.f32.mrb[0].mxu0
      %v3023 = vadd.f32 %v2868, %v3022
      %v3024 = vpop.f32.mrb[0].mxu0
      %v3025 = vadd.f32 %v2868, %v3024
      %3026 = vmatprep.mubr.f32.mxu0 0.0
      %3027 = vmatmul.mubr.f32.gmra.mrb[0].mxu0 %v2906
      %v3028 = vpop.f32.mrb[0].mxu0
      %v3029 = vadd.f32 %v2873, %v3028
      %v3030 = vpop.f32.mrb[0].mxu0
      %v3031 = vadd.f32 %v2873, %v3030
      %3032 = vmatprep.mubr.f32.mxu0 0.0
      %3033 = vmatmul.mubr.f32.gmra.mrb[0].mxu0 %v2909
      %v3034 = vpop.f32.mrb[0].mxu0
      %v3035 = vadd.f32 %v2878, %v3034
      %v3036 = vpop.f32.mrb[0].mxu0
      %v3037 = vadd.f32 %v2878, %v3036
      %3038 = vmatprep.mubr.f32.mxu0 0.0
      %3039 = vmatmul.mubr.f32.gmra.mrb[0].mxu0 %v2912
      %v3040 = vpop.f32.mrb[0].mxu0
      %v3041 = vadd.f32 %v2883, %v3040
      %v3042 = vpop.f32.mrb[0].mxu0
      %v3043 = vadd.f32 %v2883, %v3042
      %3044 = vmatprep.mubr.f32.mxu0 0.0
      %3045 = vmatmul.mubr.f32.gmra.mrb[0].mxu0 %v2915
      %v3046 = vpop.f32.mrb[0].mxu0
      %v3047 = vadd.f32 %v2888, %v3046
      %v3048 = vpop.f32.mrb[0].mxu0
      %v3049 = vadd.f32 %v2888, %v3048
      %3050 = vmatprep.mubr.f32.mxu0 0.0
      %3051 = vmatmul.mubr.f32.gmra.mrb[0].mxu0 %v2918
      %v3052 = vpop.f32.mrb[0].mxu0
      %v3053 = vadd.f32 %v2893, %v3052
      %v3054 = vpop.f32.mrb[0].mxu0
      %v3055 = vadd.f32 %v2893, %v3054
      %3056 = vdwg.mxu0
      %3057 = vmatprep.subr.mxu0 %v2834
      %3058 = vmatpush1.msra.mxu0 %v2833
      %3059 = vmatprep.subr.mxu0 %v2930
      %3060 = vmatpush1.msra.mxu0 %v2927
      %3061 = vmatprep.subr.mxu0 0.0
      %3062 = vmatpush1.msra.mxu0 0.0
      %3063 = vmatprep.subr.mxu0 0.0
      %3064 = vmatpush1.msra.mxu0 0.0
      %3065 = vmatprep.subr.mxu0 0.0
      %3066 = vmatpush1.msra.mxu0 0.0
      %3067 = vmatprep.subr.mxu0 0.0
      %3068 = vmatpush1.msra.mxu0 0.0
      %3069 = vmatprep.subr.mxu0 0.0
      %3070 = vmatpush1.msra.mxu0 0.0
      %3071 = vmatprep.subr.mxu0 0.0
      %3072 = vmatpush1.msra.mxu0 0.0
      %3073 = vmatprep.subr.mxu0 0.0
      %3074 = vmatpush1.msra.mxu0 0.0
      %3075 = vmatprep.subr.mxu0 0.0
      %3076 = vmatpush1.msra.mxu0 0.0
      %3077 = vmatprep.subr.mxu0 0.0
      %3078 = vmatpush1.msra.mxu0 0.0
      %3079 = vmatprep.subr.mxu0 0.0
      %3080 = vmatpush1.msra.mxu0 0.0
      %3081 = vmatprep.subr.mxu0 0.0
      %3082 = vmatpush1.msra.mxu0 0.0
      %3083 = vmatprep.subr.mxu0 0.0
      %3084 = vmatpush1.msra.mxu0 0.0
      %3085 = vmatprep.subr.mxu0 0.0
      %3086 = vmatpush1.msra.mxu0 0.0
      %3087 = vmatprep.subr.mxu0 0.0
      %3088 = vmatpush1.msra.mxu0 0.0
      %3089 = vmatprep.subr.mxu0 0.0
      %3090 = vmatpush1.msra.mxu0 0.0
      %3091 = vmatprep.subr.mxu0 0.0
      %3092 = vmatpush1.msra.mxu0 0.0
      %3093 = vmatprep.subr.mxu0 0.0
      %3094 = vmatpush1.msra.mxu0 0.0
      %3095 = vmatprep.subr.mxu0 0.0
      %3096 = vmatpush1.msra.mxu0 0.0
      %3097 = vmatprep.subr.mxu0 0.0
      %3098 = vmatpush1.msra.mxu0 0.0
      %3099 = vmatprep.subr.mxu0 0.0
      %3100 = vmatpush1.msra.mxu0 0.0
      %3101 = vmatprep.subr.mxu0 0.0
      %3102 = vmatpush1.msra.mxu0 0.0
      %3103 = vmatprep.subr.mxu0 0.0
      %3104 = vmatpush1.msra.mxu0 0.0
      %3105 = vmatprep.subr.mxu0 0.0
      %3106 = vmatpush1.msra.mxu0 0.0
      %3107 = vmatprep.subr.mxu0 0.0
      %3108 = vmatpush1.msra.mxu0 0.0
      %3109 = vmatprep.subr.mxu0 0.0
      %3110 = vmatpush1.msra.mxu0 0.0
      %3111 = vmatprep.subr.mxu0 0.0
      %3112 = vmatpush1.msra.mxu0 0.0
      %3113 = vmatprep.subr.mxu0 0.0
      %3114 = vmatpush1.msra.mxu0 0.0
      %3115 = vmatprep.subr.mxu0 0.0
      %3116 = vmatpush1.msra.mxu0 0.0
      %3117 = vmatprep.subr.mxu0 0.0
      %3118 = vmatpush1.msra.mxu0 0.0
      %3119 = vmatprep.subr.mxu0 0.0
      %3120 = vmatpush1.msra.mxu0 0.0
      %3121 = vmatprep.mubr.f32.mxu0 0.0
      %3122 = vmatmul.mubr.f32.gmra.mrb[0].mxu0 %v2897
      %v3123 = vpop.f32.mrb[0].mxu0
      %v3124 = vadd.f32 %v2858, %v3123
      %v3125 = vpop.f32.mrb[0].mxu0
      %v3126 = vadd.f32 %v2858, %v3125
      %3127 = vmatprep.mubr.f32.mxu0 0.0
      %3128 = vmatmul.mubr.f32.gmra.mrb[0].mxu0 %v2900
      %v3129 = vpop.f32.mrb[0].mxu0
      %v3130 = vadd.f32 %v2863, %v3129
      %v3131 = vpop.f32.mrb[0].mxu0
      %v3132 = vadd.f32 %v2863, %v3131
      %3133 = vmatprep.mubr.f32.mxu0 0.0
      %3134 = vmatmul.mubr.f32.gmra.mrb[0].mxu0 %v2903
      %v3135 = vpop.f32.mrb[0].mxu0
      %v3136 = vadd.f32 %v2868, %v3135
      %v3137 = vpop.f32.mrb[0].mxu0
      %v3138 = vadd.f32 %v2868, %v3137
      %3139 = vmatprep.mubr.f32.mxu0 0.0
      %3140 = vmatmul.mubr.f32.gmra.mrb[0].mxu0 %v2906
      %v3141 = vpop.f32.mrb[0].mxu0
      %v3142 = vadd.f32 %v2873, %v3141
      %v3143 = vpop.f32.mrb[0].mxu0
      %v3144 = vadd.f32 %v2873, %v3143
      %3145 = vmatprep.mubr.f32.mxu0 0.0
      %3146 = vmatmul.mubr.f32.gmra.mrb[0].mxu0 %v2909
      %v3147 = vpop.f32.mrb[0].mxu0
      %v3148 = vadd.f32 %v2878, %v3147
      %v3149 = vpop.f32.mrb[0].mxu0
      %v3150 = vadd.f32 %v2878, %v3149
      %3151 = vmatprep.mubr.f32.mxu0 0.0
      %3152 = vmatmul.mubr.f32.gmra.mrb[0].mxu0 %v2912
      %v3153 = vpop.f32.mrb[0].mxu0
      %v3154 = vadd.f32 %v2883, %v3153
      %v3155 = vpop.f32.mrb[0].mxu0
      %v3156 = vadd.f32 %v2883, %v3155
      %3157 = vmatprep.mubr.f32.mxu0 0.0
      %3158 = vmatmul.mubr.f32.gmra.mrb[0].mxu0 %v2915
      %v3159 = vpop.f32.mrb[0].mxu0
      %v3160 = vadd.f32 %v2888, %v3159
      %v3161 = vpop.f32.mrb[0].mxu0
      %v3162 = vadd.f32 %v2888, %v3161
      %3163 = vmatprep.mubr.f32.mxu0 0.0
      %3164 = vmatmul.mubr.f32.gmra.mrb[0].mxu0 %v2918
      %v3165 = vpop.f32.mrb[0].mxu0
      %v3166 = vadd.f32 %v2893, %v3165
      %v3167 = vpop.f32.mrb[0].mxu0
      %v3168 = vadd.f32 %v2893, %v3167
      %3169 = vdwg.mxu0
      %3170 = vmatprep.subr.mxu0 %v2836
      %3171 = vmatpush1.msra.mxu0 %v2835
      %3172 = vmatprep.subr.mxu0 %v2936
      %3173 = vmatpush1.msra.mxu0 %v2933
      %3174 = vmatprep.subr.mxu0 0.0
      %3175 = vmatpush1.msra.mxu0 0.0
      %3176 = vmatprep.subr.mxu0 0.0
      %3177 = vmatpush1.msra.mxu0 0.0
      %3178 = vmatprep.subr.mxu0 0.0
      %3179 = vmatpush1.msra.mxu0 0.0
      %3180 = vmatprep.subr.mxu0 0.0
      %3181 = vmatpush1.msra.mxu0 0.0
      %3182 = vmatprep.subr.mxu0 0.0
      %3183 = vmatpush1.msra.mxu0 0.0
      %3184 = vmatprep.subr.mxu0 0.0
      %3185 = vmatpush1.msra.mxu0 0.0
      %3186 = vmatprep.subr.mxu0 0.0
      %3187 = vmatpush1.msra.mxu0 0.0
      %3188 = vmatprep.subr.mxu0 0.0
      %3189 = vmatpush1.msra.mxu0 0.0
      %3190 = vmatprep.subr.mxu0 0.0
      %3191 = vmatpush1.msra.mxu0 0.0
      %3192 = vmatprep.subr.mxu0 0.0
      %3193 = vmatpush1.msra.mxu0 0.0
      %3194 = vmatprep.subr.mxu0 0.0
      %3195 = vmatpush1.msra.mxu0 0.0
      %3196 = vmatprep.subr.mxu0 0.0
      %3197 = vmatpush1.msra.mxu0 0.0
      %3198 = vmatprep.subr.mxu0 0.0
      %3199 = vmatpush1.msra.mxu0 0.0
      %3200 = vmatprep.subr.mxu0 0.0
      %3201 = vmatpush1.msra.mxu0 0.0
      %3202 = vmatprep.subr.mxu0 0.0
      %3203 = vmatpush1.msra.mxu0 0.0
      %3204 = vmatprep.subr.mxu0 0.0
      %3205 = vmatpush1.msra.mxu0 0.0
      %3206 = vmatprep.subr.mxu0 0.0
      %3207 = vmatpush1.msra.mxu0 0.0
      %3208 = vmatprep.subr.mxu0 0.0
      %3209 = vmatpush1.msra.mxu0 0.0
      %3210 = vmatprep.subr.mxu0 0.0
      %3211 = vmatpush1.msra.mxu0 0.0
      %3212 = vmatprep.subr.mxu0 0.0
      %3213 = vmatpush1.msra.mxu0 0.0
      %3214 = vmatprep.subr.mxu0 0.0
      %3215 = vmatpush1.msra.mxu0 0.0
      %3216 = vmatprep.subr.mxu0 0.0
      %3217 = vmatpush1.msra.mxu0 0.0
      %3218 = vmatprep.subr.mxu0 0.0
      %3219 = vmatpush1.msra.mxu0 0.0
      %3220 = vmatprep.subr.mxu0 0.0
      %3221 = vmatpush1.msra.mxu0 0.0
      %3222 = vmatprep.subr.mxu0 0.0
      %3223 = vmatpush1.msra.mxu0 0.0
      %3224 = vmatprep.subr.mxu0 0.0
      %3225 = vmatpush1.msra.mxu0 0.0
      %3226 = vmatprep.subr.mxu0 0.0
      %3227 = vmatpush1.msra.mxu0 0.0
      %3228 = vmatprep.subr.mxu0 0.0
      %3229 = vmatpush1.msra.mxu0 0.0
      %3230 = vmatprep.subr.mxu0 0.0
      %3231 = vmatpush1.msra.mxu0 0.0
      %3232 = vmatprep.subr.mxu0 0.0
      %3233 = vmatpush1.msra.mxu0 0.0
      %3234 = vmatprep.mubr.f32.mxu0 0.0
      %3235 = vmatmul.mubr.f32.gmra.mrb[0].mxu0 %v2897
      %v3236 = vpop.f32.mrb[0].mxu0
      %v3237 = vadd.f32 %v2858, %v3236
      %v3238 = vpop.f32.mrb[0].mxu0
      %v3239 = vadd.f32 %v2858, %v3238
      %3240 = vmatprep.mubr.f32.mxu0 0.0
      %3241 = vmatmul.mubr.f32.gmra.mrb[0].mxu0 %v2900
      %v3242 = vpop.f32.mrb[0].mxu0
      %v3243 = vadd.f32 %v2863, %v3242
      %v3244 = vpop.f32.mrb[0].mxu0
      %v3245 = vadd.f32 %v2863, %v3244
      %3246 = vmatprep.mubr.f32.mxu0 0.0
      %3247 = vmatmul.mubr.f32.gmra.mrb[0].mxu0 %v2903
      %v3248 = vpop.f32.mrb[0].mxu0
      %v3249 = vadd.f32 %v2868, %v3248
      %v3250 = vpop.f32.mrb[0].mxu0
      %v3251 = vadd.f32 %v2868, %v3250
      %3252 = vmatprep.mubr.f32.mxu0 0.0
      %3253 = vmatmul.mubr.f32.gmra.mrb[0].mxu0 %v2906
      %v3254 = vpop.f32.mrb[0].mxu0
      %v3255 = vadd.f32 %v2873, %v3254
      %v3256 = vpop.f32.mrb[0].mxu0
      %v3257 = vadd.f32 %v2873, %v3256
      %3258 = vmatprep.mubr.f32.mxu0 0.0
      %3259 = vmatmul.mubr.f32.gmra.mrb[0].mxu0 %v2909
      %v3260 = vpop.f32.mrb[0].mxu0
      %v3261 = vadd.f32 %v2878, %v3260
      %v3262 = vpop.f32.mrb[0].mxu0
      %v3263 = vadd.f32 %v2878, %v3262
      %3264 = vmatprep.mubr.f32.mxu0 0.0
      %3265 = vmatmul.mubr.f32.gmra.mrb[0].mxu0 %v2912
      %v3266 = vpop.f32.mrb[0].mxu0
      %v3267 = vadd.f32 %v2883, %v3266
      %v3268 = vpop.f32.mrb[0].mxu0
      %v3269 = vadd.f32 %v2883, %v3268
      %3270 = vmatprep.mubr.f32.mxu0 0.0
      %3271 = vmatmul.mubr.f32.gmra.mrb[0].mxu0 %v2915
      %v3272 = vpop.f32.mrb[0].mxu0
      %v3273 = vadd.f32 %v2888, %v3272
      %v3274 = vpop.f32.mrb[0].mxu0
      %v3275 = vadd.f32 %v2888, %v3274
      %3276 = vmatprep.mubr.f32.mxu0 0.0
      %3277 = vmatmul.mubr.f32.gmra.mrb[0].mxu0 %v2918
      %v3278 = vpop.f32.mrb[0].mxu0
      %v3279 = vadd.f32 %v2893, %v3278
      %v3280 = vpop.f32.mrb[0].mxu0
      %v3281 = vadd.f32 %v2893, %v3280
      %3282 = vdwg.mxu0
      %3283 = vmatprep.subr.mxu0 %v2838
      %3284 = vmatpush1.msra.mxu0 %v2837
      %3285 = vmatprep.subr.mxu0 %v2942
      %3286 = vmatpush1.msra.mxu0 %v2939
      %3287 = vmatprep.subr.mxu0 0.0
      %3288 = vmatpush1.msra.mxu0 0.0
      %3289 = vmatprep.subr.mxu0 0.0
      %3290 = vmatpush1.msra.mxu0 0.0
      %3291 = vmatprep.subr.mxu0 0.0
      %3292 = vmatpush1.msra.mxu0 0.0
      %3293 = vmatprep.subr.mxu0 0.0
      %3294 = vmatpush1.msra.mxu0 0.0
      %3295 = vmatprep.subr.mxu0 0.0
      %3296 = vmatpush1.msra.mxu0 0.0
      %3297 = vmatprep.subr.mxu0 0.0
      %3298 = vmatpush1.msra.mxu0 0.0
      %3299 = vmatprep.subr.mxu0 0.0
      %3300 = vmatpush1.msra.mxu0 0.0
      %3301 = vmatprep.subr.mxu0 0.0
      %3302 = vmatpush1.msra.mxu0 0.0
      %3303 = vmatprep.subr.mxu0 0.0
      %3304 = vmatpush1.msra.mxu0 0.0
      %3305 = vmatprep.subr.mxu0 0.0
      %3306 = vmatpush1.msra.mxu0 0.0
      %3307 = vmatprep.subr.mxu0 0.0
      %3308 = vmatpush1.msra.mxu0 0.0
      %3309 = vmatprep.subr.mxu0 0.0
      %3310 = vmatpush1.msra.mxu0 0.0
      %3311 = vmatprep.subr.mxu0 0.0
      %3312 = vmatpush1.msra.mxu0 0.0
      %3313 = vmatprep.subr.mxu0 0.0
      %3314 = vmatpush1.msra.mxu0 0.0
      %3315 = vmatprep.subr.mxu0 0.0
      %3316 = vmatpush1.msra.mxu0 0.0
      %3317 = vmatprep.subr.mxu0 0.0
      %3318 = vmatpush1.msra.mxu0 0.0
      %3319 = vmatprep.subr.mxu0 0.0
      %3320 = vmatpush1.msra.mxu0 0.0
      %3321 = vmatprep.subr.mxu0 0.0
      %3322 = vmatpush1.msra.mxu0 0.0
      %3323 = vmatprep.subr.mxu0 0.0
      %3324 = vmatpush1.msra.mxu0 0.0
      %3325 = vmatprep.subr.mxu0 0.0
      %3326 = vmatpush1.msra.mxu0 0.0
      %3327 = vmatprep.subr.mxu0 0.0
      %3328 = vmatpush1.msra.mxu0 0.0
      %3329 = vmatprep.subr.mxu0 0.0
      %3330 = vmatpush1.msra.mxu0 0.0
      %3331 = vmatprep.subr.mxu0 0.0
      %3332 = vmatpush1.msra.mxu0 0.0
      %3333 = vmatprep.subr.mxu0 0.0
      %3334 = vmatpush1.msra.mxu0 0.0
      %3335 = vmatprep.subr.mxu0 0.0
      %3336 = vmatpush1.msra.mxu0 0.0
      %3337 = vmatprep.subr.mxu0 0.0
      %3338 = vmatpush1.msra.mxu0 0.0
      %3339 = vmatprep.subr.mxu0 0.0
      %3340 = vmatpush1.msra.mxu0 0.0
      %3341 = vmatprep.subr.mxu0 0.0
      %3342 = vmatpush1.msra.mxu0 0.0
      %3343 = vmatprep.subr.mxu0 0.0
      %3344 = vmatpush1.msra.mxu0 0.0
      %3345 = vmatprep.subr.mxu0 0.0
      %3346 = vmatpush1.msra.mxu0 0.0
      %3347 = vmatprep.mubr.f32.mxu0 0.0
      %3348 = vmatmul.mubr.f32.gmra.mrb[0].mxu0 %v2897
      %v3349 = vpop.f32.mrb[0].mxu0
      %v3350 = vadd.f32 %v2858, %v3349
      %v3351 = vpop.f32.mrb[0].mxu0
      %v3352 = vadd.f32 %v2858, %v3351
      %3353 = vmatprep.mubr.f32.mxu0 0.0
      %3354 = vmatmul.mubr.f32.gmra.mrb[0].mxu0 %v2900
      %v3355 = vpop.f32.mrb[0].mxu0
      %v3356 = vadd.f32 %v2863, %v3355
      %v3357 = vpop.f32.mrb[0].mxu0
      %v3358 = vadd.f32 %v2863, %v3357
      %3359 = vmatprep.mubr.f32.mxu0 0.0
      %3360 = vmatmul.mubr.f32.gmra.mrb[0].mxu0 %v2903
      %v3361 = vpop.f32.mrb[0].mxu0
      %v3362 = vadd.f32 %v2868, %v3361
      %v3363 = vpop.f32.mrb[0].mxu0
      %v3364 = vadd.f32 %v2868, %v3363
      %3365 = vmatprep.mubr.f32.mxu0 0.0
      %3366 = vmatmul.mubr.f32.gmra.mrb[0].mxu0 %v2906
      %v3367 = vpop.f32.mrb[0].mxu0
      %v3368 = vadd.f32 %v2873, %v3367
      %v3369 = vpop.f32.mrb[0].mxu0
      %v3370 = vadd.f32 %v2873, %v3369
      %3371 = vmatprep.mubr.f32.mxu0 0.0
      %3372 = vmatmul.mubr.f32.gmra.mrb[0].mxu0 %v2909
      %v3373 = vpop.f32.mrb[0].mxu0
      %v3374 = vadd.f32 %v2878, %v3373
      %v3375 = vpop.f32.mrb[0].mxu0
      %v3376 = vadd.f32 %v2878, %v3375
      %3377 = vmatprep.mubr.f32.mxu0 0.0
      %3378 = vmatmul.mubr.f32.gmra.mrb[0].mxu0 %v2912
      %v3379 = vpop.f32.mrb[0].mxu0
      %v3380 = vadd.f32 %v2883, %v3379
      %v3381 = vpop.f32.mrb[0].mxu0
      %v3382 = vadd.f32 %v2883, %v3381
      %3383 = vmatprep.mubr.f32.mxu0 0.0
      %3384 = vmatmul.mubr.f32.gmra.mrb[0].mxu0 %v2915
      %v3385 = vpop.f32.mrb[0].mxu0
      %v3386 = vadd.f32 %v2888, %v3385
      %v3387 = vpop.f32.mrb[0].mxu0
      %v3388 = vadd.f32 %v2888, %v3387
      %3389 = vmatprep.mubr.f32.mxu0 0.0
      %3390 = vmatmul.mubr.f32.gmra.mrb[0].mxu0 %v2918
      %v3391 = vpop.f32.mrb[0].mxu0
      %v3392 = vadd.f32 %v2893, %v3391
      %v3393 = vpop.f32.mrb[0].mxu0
      %v3394 = vadd.f32 %v2893, %v3393
      %3395 = vdwg.mxu0
      %v3396 = vld [vmem:[%s13] sm:$0xff]
      %v3397 = vld [vmem:[%s13 + $0x8] sm:$0xff]
      %v3398 = vld [vmem:[%s13 + $0x10] sm:$0xff]
      %v3399 = vld [vmem:[%s13 + $0x18] sm:$0xff]
      %v3404 = vcombine.high %v3396, %v3396
      %v3405 = vcombine.high %v3397, %v3397
      %v3406 = vcombine.high %v3398, %v3398
      %v3407 = vcombine.high %v3399, %v3399
      %vm3408 = vcmask 31744
      %v3410 = vsel %vm3408, %v1929, 0
      %v3413 = vsel %vm3408, %v1934, 0
      %v3416 = vsel %vm3408, %v1939, 0
      %v3419 = vsel %vm3408, %v1944, 0
      %v3422 = vsel %vm3408, %v1949, 0
      %v3425 = vsel %vm3408, %v1954, 0
      %v3428 = vsel %vm3408, %v1959, 0
      %v3431 = vsel %vm3408, %v1964, 0
      %v3433 = vsel %vm2803, %v3396, 0
      %v3435 = vsel %vm2803, %v3404, 0
      %v3437 = vsel %vm2803, %v3397, 0
      %v3439 = vsel %vm2803, %v3405, 0
      %v3441 = vsel %vm2803, %v3398, 0
      %v3443 = vsel %vm2803, %v3406, 0
      %v3445 = vsel %vm2803, %v3399, 0
      %v3447 = vsel %vm2803, %v3407, 0
      %3449 = vmatprep.subr.mxu0 %v3435
      %3450 = vmatpush1.msra.mxu0 %v3433
      %3451 = vmatprep.subr.mxu0 0.0
      %3452 = vmatpush1.msra.mxu0 0.0
      %3453 = vmatprep.subr.mxu0 0.0
      %3454 = vmatpush1.msra.mxu0 0.0
      %3455 = vmatprep.subr.mxu0 0.0
      %3456 = vmatpush1.msra.mxu0 0.0
      %3457 = vmatprep.subr.mxu0 0.0
      %3458 = vmatpush1.msra.mxu0 0.0
      %3459 = vmatprep.subr.mxu0 0.0
      %3460 = vmatpush1.msra.mxu0 0.0
      %3461 = vmatprep.subr.mxu0 0.0
      %3462 = vmatpush1.msra.mxu0 0.0
      %3463 = vmatprep.subr.mxu0 0.0
      %3464 = vmatpush1.msra.mxu0 0.0
      %3465 = vmatprep.subr.mxu0 0.0
      %3466 = vmatpush1.msra.mxu0 0.0
      %3467 = vmatprep.subr.mxu0 0.0
      %3468 = vmatpush1.msra.mxu0 0.0
      %3469 = vmatprep.subr.mxu0 0.0
      %3470 = vmatpush1.msra.mxu0 0.0
      %3471 = vmatprep.subr.mxu0 0.0
      %3472 = vmatpush1.msra.mxu0 0.0
      %3473 = vmatprep.subr.mxu0 0.0
      %3474 = vmatpush1.msra.mxu0 0.0
      %3475 = vmatprep.subr.mxu0 0.0
      %3476 = vmatpush1.msra.mxu0 0.0
      %3477 = vmatprep.subr.mxu0 0.0
      %3478 = vmatpush1.msra.mxu0 0.0
      %3479 = vmatprep.subr.mxu0 0.0
      %3480 = vmatpush1.msra.mxu0 0.0
      %3481 = vmatprep.subr.mxu0 0.0
      %3482 = vmatpush1.msra.mxu0 0.0
      %3483 = vmatprep.subr.mxu0 0.0
      %3484 = vmatpush1.msra.mxu0 0.0
      %3485 = vmatprep.subr.mxu0 0.0
      %3486 = vmatpush1.msra.mxu0 0.0
      %3487 = vmatprep.subr.mxu0 0.0
      %3488 = vmatpush1.msra.mxu0 0.0
      %3489 = vmatprep.subr.mxu0 0.0
      %3490 = vmatpush1.msra.mxu0 0.0
      %3491 = vmatprep.subr.mxu0 0.0
      %3492 = vmatpush1.msra.mxu0 0.0
      %3493 = vmatprep.subr.mxu0 0.0
      %3494 = vmatpush1.msra.mxu0 0.0
      %3495 = vmatprep.subr.mxu0 0.0
      %3496 = vmatpush1.msra.mxu0 0.0
      %3497 = vmatprep.subr.mxu0 0.0
      %3498 = vmatpush1.msra.mxu0 0.0
      %3499 = vmatprep.subr.mxu0 0.0
      %3500 = vmatpush1.msra.mxu0 0.0
      %3501 = vmatprep.subr.mxu0 0.0
      %3502 = vmatpush1.msra.mxu0 0.0
      %3503 = vmatprep.subr.mxu0 0.0
      %3504 = vmatpush1.msra.mxu0 0.0
      %3505 = vmatprep.subr.mxu0 0.0
      %3506 = vmatpush1.msra.mxu0 0.0
      %3507 = vmatprep.subr.mxu0 0.0
      %3508 = vmatpush1.msra.mxu0 0.0
      %3509 = vmatprep.subr.mxu0 0.0
      %3510 = vmatpush1.msra.mxu0 0.0
      %3511 = vmatprep.subr.mxu0 0.0
      %3512 = vmatpush1.msra.mxu0 0.0
      %3513 = vmatprep.mubr.f32.mxu0 0.0
      %3514 = vmatmul.mubr.f32.gmra.mrb[0].mxu0 %v3410
      %v3515 = vpop.f32.mrb[0].mxu0
      %v3516 = vadd.f32 0.0, %v3515
      %v3517 = vpop.f32.mrb[0].mxu0
      %v3518 = vadd.f32 0.0, %v3517
      %3519 = vmatprep.mubr.f32.mxu0 0.0
      %3520 = vmatmul.mubr.f32.gmra.mrb[0].mxu0 %v3413
      %v3521 = vpop.f32.mrb[0].mxu0
      %v3522 = vadd.f32 0.0, %v3521
      %v3523 = vpop.f32.mrb[0].mxu0
      %v3524 = vadd.f32 0.0, %v3523
      %3525 = vmatprep.mubr.f32.mxu0 0.0
      %3526 = vmatmul.mubr.f32.gmra.mrb[0].mxu0 %v3416
      %v3527 = vpop.f32.mrb[0].mxu0
      %v3528 = vadd.f32 0.0, %v3527
      %v3529 = vpop.f32.mrb[0].mxu0
      %v3530 = vadd.f32 0.0, %v3529
      %3531 = vmatprep.mubr.f32.mxu0 0.0
      %3532 = vmatmul.mubr.f32.gmra.mrb[0].mxu0 %v3419
      %v3533 = vpop.f32.mrb[0].mxu0
      %v3534 = vadd.f32 0.0, %v3533
      %v3535 = vpop.f32.mrb[0].mxu0
      %v3536 = vadd.f32 0.0, %v3535
      %3537 = vmatprep.mubr.f32.mxu0 0.0
      %3538 = vmatmul.mubr.f32.gmra.mrb[0].mxu0 %v3422
      %v3539 = vpop.f32.mrb[0].mxu0
      %v3540 = vadd.f32 0.0, %v3539
      %v3541 = vpop.f32.mrb[0].mxu0
      %v3542 = vadd.f32 0.0, %v3541
      %3543 = vmatprep.mubr.f32.mxu0 0.0
      %3544 = vmatmul.mubr.f32.gmra.mrb[0].mxu0 %v3425
      %v3545 = vpop.f32.mrb[0].mxu0
      %v3546 = vadd.f32 0.0, %v3545
      %v3547 = vpop.f32.mrb[0].mxu0
      %v3548 = vadd.f32 0.0, %v3547
      %3549 = vmatprep.mubr.f32.mxu0 0.0
      %3550 = vmatmul.mubr.f32.gmra.mrb[0].mxu0 %v3428
      %v3551 = vpop.f32.mrb[0].mxu0
      %v3552 = vadd.f32 0.0, %v3551
      %v3553 = vpop.f32.mrb[0].mxu0
      %v3554 = vadd.f32 0.0, %v3553
      %3555 = vmatprep.mubr.f32.mxu0 0.0
      %3556 = vmatmul.mubr.f32.gmra.mrb[0].mxu0 %v3431
      %v3557 = vpop.f32.mrb[0].mxu0
      %v3558 = vadd.f32 0.0, %v3557
      %v3559 = vpop.f32.mrb[0].mxu0
      %v3560 = vadd.f32 0.0, %v3559
      %3561 = vdwg.mxu0
      %3562 = vmatprep.subr.mxu0 %v3439
      %3563 = vmatpush1.msra.mxu0 %v3437
      %3564 = vmatprep.subr.mxu0 0.0
      %3565 = vmatpush1.msra.mxu0 0.0
      %3566 = vmatprep.subr.mxu0 0.0
      %3567 = vmatpush1.msra.mxu0 0.0
      %3568 = vmatprep.subr.mxu0 0.0
      %3569 = vmatpush1.msra.mxu0 0.0
      %3570 = vmatprep.subr.mxu0 0.0
      %3571 = vmatpush1.msra.mxu0 0.0
      %3572 = vmatprep.subr.mxu0 0.0
      %3573 = vmatpush1.msra.mxu0 0.0
      %3574 = vmatprep.subr.mxu0 0.0
      %3575 = vmatpush1.msra.mxu0 0.0
      %3576 = vmatprep.subr.mxu0 0.0
      %3577 = vmatpush1.msra.mxu0 0.0
      %3578 = vmatprep.subr.mxu0 0.0
      %3579 = vmatpush1.msra.mxu0 0.0
      %3580 = vmatprep.subr.mxu0 0.0
      %3581 = vmatpush1.msra.mxu0 0.0
      %3582 = vmatprep.subr.mxu0 0.0
      %3583 = vmatpush1.msra.mxu0 0.0
      %3584 = vmatprep.subr.mxu0 0.0
      %3585 = vmatpush1.msra.mxu0 0.0
      %3586 = vmatprep.subr.mxu0 0.0
      %3587 = vmatpush1.msra.mxu0 0.0
      %3588 = vmatprep.subr.mxu0 0.0
      %3589 = vmatpush1.msra.mxu0 0.0
      %3590 = vmatprep.subr.mxu0 0.0
      %3591 = vmatpush1.msra.mxu0 0.0
      %3592 = vmatprep.subr.mxu0 0.0
      %3593 = vmatpush1.msra.mxu0 0.0
      %3594 = vmatprep.subr.mxu0 0.0
      %3595 = vmatpush1.msra.mxu0 0.0
      %3596 = vmatprep.subr.mxu0 0.0
      %3597 = vmatpush1.msra.mxu0 0.0
      %3598 = vmatprep.subr.mxu0 0.0
      %3599 = vmatpush1.msra.mxu0 0.0
      %3600 = vmatprep.subr.mxu0 0.0
      %3601 = vmatpush1.msra.mxu0 0.0
      %3602 = vmatprep.subr.mxu0 0.0
      %3603 = vmatpush1.msra.mxu0 0.0
      %3604 = vmatprep.subr.mxu0 0.0
      %3605 = vmatpush1.msra.mxu0 0.0
      %3606 = vmatprep.subr.mxu0 0.0
      %3607 = vmatpush1.msra.mxu0 0.0
      %3608 = vmatprep.subr.mxu0 0.0
      %3609 = vmatpush1.msra.mxu0 0.0
      %3610 = vmatprep.subr.mxu0 0.0
      %3611 = vmatpush1.msra.mxu0 0.0
      %3612 = vmatprep.subr.mxu0 0.0
      %3613 = vmatpush1.msra.mxu0 0.0
      %3614 = vmatprep.subr.mxu0 0.0
      %3615 = vmatpush1.msra.mxu0 0.0
      %3616 = vmatprep.subr.mxu0 0.0
      %3617 = vmatpush1.msra.mxu0 0.0
      %3618 = vmatprep.subr.mxu0 0.0
      %3619 = vmatpush1.msra.mxu0 0.0
      %3620 = vmatprep.subr.mxu0 0.0
      %3621 = vmatpush1.msra.mxu0 0.0
      %3622 = vmatprep.subr.mxu0 0.0
      %3623 = vmatpush1.msra.mxu0 0.0
      %3624 = vmatprep.subr.mxu0 0.0
      %3625 = vmatpush1.msra.mxu0 0.0
      %3626 = vmatprep.mubr.f32.mxu0 0.0
      %3627 = vmatmul.mubr.f32.gmra.mrb[0].mxu0 %v3410
      %v3628 = vpop.f32.mrb[0].mxu0
      %v3629 = vadd.f32 0.0, %v3628
      %v3630 = vpop.f32.mrb[0].mxu0
      %v3631 = vadd.f32 0.0, %v3630
      %3632 = vmatprep.mubr.f32.mxu0 0.0
      %3633 = vmatmul.mubr.f32.gmra.mrb[0].mxu0 %v3413
      %v3634 = vpop.f32.mrb[0].mxu0
      %v3635 = vadd.f32 0.0, %v3634
      %v3636 = vpop.f32.mrb[0].mxu0
      %v3637 = vadd.f32 0.0, %v3636
      %3638 = vmatprep.mubr.f32.mxu0 0.0
      %3639 = vmatmul.mubr.f32.gmra.mrb[0].mxu0 %v3416
      %v3640 = vpop.f32.mrb[0].mxu0
      %v3641 = vadd.f32 0.0, %v3640
      %v3642 = vpop.f32.mrb[0].mxu0
      %v3643 = vadd.f32 0.0, %v3642
      %3644 = vmatprep.mubr.f32.mxu0 0.0
      %3645 = vmatmul.mubr.f32.gmra.mrb[0].mxu0 %v3419
      %v3646 = vpop.f32.mrb[0].mxu0
      %v3647 = vadd.f32 0.0, %v3646
      %v3648 = vpop.f32.mrb[0].mxu0
      %v3649 = vadd.f32 0.0, %v3648
      %3650 = vmatprep.mubr.f32.mxu0 0.0
      %3651 = vmatmul.mubr.f32.gmra.mrb[0].mxu0 %v3422
      %v3652 = vpop.f32.mrb[0].mxu0
      %v3653 = vadd.f32 0.0, %v3652
      %v3654 = vpop.f32.mrb[0].mxu0
      %v3655 = vadd.f32 0.0, %v3654
      %3656 = vmatprep.mubr.f32.mxu0 0.0
      %3657 = vmatmul.mubr.f32.gmra.mrb[0].mxu0 %v3425
      %v3658 = vpop.f32.mrb[0].mxu0
      %v3659 = vadd.f32 0.0, %v3658
      %v3660 = vpop.f32.mrb[0].mxu0
      %v3661 = vadd.f32 0.0, %v3660
      %3662 = vmatprep.mubr.f32.mxu0 0.0
      %3663 = vmatmul.mubr.f32.gmra.mrb[0].mxu0 %v3428
      %v3664 = vpop.f32.mrb[0].mxu0
      %v3665 = vadd.f32 0.0, %v3664
      %v3666 = vpop.f32.mrb[0].mxu0
      %v3667 = vadd.f32 0.0, %v3666
      %3668 = vmatprep.mubr.f32.mxu0 0.0
      %3669 = vmatmul.mubr.f32.gmra.mrb[0].mxu0 %v3431
      %v3670 = vpop.f32.mrb[0].mxu0
      %v3671 = vadd.f32 0.0, %v3670
      %v3672 = vpop.f32.mrb[0].mxu0
      %v3673 = vadd.f32 0.0, %v3672
      %3674 = vdwg.mxu0
      %3675 = vmatprep.subr.mxu0 %v3443
      %3676 = vmatpush1.msra.mxu0 %v3441
      %3677 = vmatprep.subr.mxu0 0.0
      %3678 = vmatpush1.msra.mxu0 0.0
      %3679 = vmatprep.subr.mxu0 0.0
      %3680 = vmatpush1.msra.mxu0 0.0
      %3681 = vmatprep.subr.mxu0 0.0
      %3682 = vmatpush1.msra.mxu0 0.0
      %3683 = vmatprep.subr.mxu0 0.0
      %3684 = vmatpush1.msra.mxu0 0.0
      %3685 = vmatprep.subr.mxu0 0.0
      %3686 = vmatpush1.msra.mxu0 0.0
      %3687 = vmatprep.subr.mxu0 0.0
      %3688 = vmatpush1.msra.mxu0 0.0
      %3689 = vmatprep.subr.mxu0 0.0
      %3690 = vmatpush1.msra.mxu0 0.0
      %3691 = vmatprep.subr.mxu0 0.0
      %3692 = vmatpush1.msra.mxu0 0.0
      %3693 = vmatprep.subr.mxu0 0.0
      %3694 = vmatpush1.msra.mxu0 0.0
      %3695 = vmatprep.subr.mxu0 0.0
      %3696 = vmatpush1.msra.mxu0 0.0
      %3697 = vmatprep.subr.mxu0 0.0
      %3698 = vmatpush1.msra.mxu0 0.0
      %3699 = vmatprep.subr.mxu0 0.0
      %3700 = vmatpush1.msra.mxu0 0.0
      %3701 = vmatprep.subr.mxu0 0.0
      %3702 = vmatpush1.msra.mxu0 0.0
      %3703 = vmatprep.subr.mxu0 0.0
      %3704 = vmatpush1.msra.mxu0 0.0
      %3705 = vmatprep.subr.mxu0 0.0
      %3706 = vmatpush1.msra.mxu0 0.0
      %3707 = vmatprep.subr.mxu0 0.0
      %3708 = vmatpush1.msra.mxu0 0.0
      %3709 = vmatprep.subr.mxu0 0.0
      %3710 = vmatpush1.msra.mxu0 0.0
      %3711 = vmatprep.subr.mxu0 0.0
      %3712 = vmatpush1.msra.mxu0 0.0
      %3713 = vmatprep.subr.mxu0 0.0
      %3714 = vmatpush1.msra.mxu0 0.0
      %3715 = vmatprep.subr.mxu0 0.0
      %3716 = vmatpush1.msra.mxu0 0.0
      %3717 = vmatprep.subr.mxu0 0.0
      %3718 = vmatpush1.msra.mxu0 0.0
      %3719 = vmatprep.subr.mxu0 0.0
      %3720 = vmatpush1.msra.mxu0 0.0
      %3721 = vmatprep.subr.mxu0 0.0
      %3722 = vmatpush1.msra.mxu0 0.0
      %3723 = vmatprep.subr.mxu0 0.0
      %3724 = vmatpush1.msra.mxu0 0.0
      %3725 = vmatprep.subr.mxu0 0.0
      %3726 = vmatpush1.msra.mxu0 0.0
      %3727 = vmatprep.subr.mxu0 0.0
      %3728 = vmatpush1.msra.mxu0 0.0
      %3729 = vmatprep.subr.mxu0 0.0
      %3730 = vmatpush1.msra.mxu0 0.0
      %3731 = vmatprep.subr.mxu0 0.0
      %3732 = vmatpush1.msra.mxu0 0.0
      %3733 = vmatprep.subr.mxu0 0.0
      %3734 = vmatpush1.msra.mxu0 0.0
      %3735 = vmatprep.subr.mxu0 0.0
      %3736 = vmatpush1.msra.mxu0 0.0
      %3737 = vmatprep.subr.mxu0 0.0
      %3738 = vmatpush1.msra.mxu0 0.0
      %3739 = vmatprep.mubr.f32.mxu0 0.0
      %3740 = vmatmul.mubr.f32.gmra.mrb[0].mxu0 %v3410
      %v3741 = vpop.f32.mrb[0].mxu0
      %v3742 = vadd.f32 0.0, %v3741
      %v3743 = vpop.f32.mrb[0].mxu0
      %v3744 = vadd.f32 0.0, %v3743
      %3745 = vmatprep.mubr.f32.mxu0 0.0
      %3746 = vmatmul.mubr.f32.gmra.mrb[0].mxu0 %v3413
      %v3747 = vpop.f32.mrb[0].mxu0
      %v3748 = vadd.f32 0.0, %v3747
      %v3749 = vpop.f32.mrb[0].mxu0
      %v3750 = vadd.f32 0.0, %v3749
      %3751 = vmatprep.mubr.f32.mxu0 0.0
      %3752 = vmatmul.mubr.f32.gmra.mrb[0].mxu0 %v3416
      %v3753 = vpop.f32.mrb[0].mxu0
      %v3754 = vadd.f32 0.0, %v3753
      %v3755 = vpop.f32.mrb[0].mxu0
      %v3756 = vadd.f32 0.0, %v3755
      %3757 = vmatprep.mubr.f32.mxu0 0.0
      %3758 = vmatmul.mubr.f32.gmra.mrb[0].mxu0 %v3419
      %v3759 = vpop.f32.mrb[0].mxu0
      %v3760 = vadd.f32 0.0, %v3759
      %v3761 = vpop.f32.mrb[0].mxu0
      %v3762 = vadd.f32 0.0, %v3761
      %3763 = vmatprep.mubr.f32.mxu0 0.0
      %3764 = vmatmul.mubr.f32.gmra.mrb[0].mxu0 %v3422
      %v3765 = vpop.f32.mrb[0].mxu0
      %v3766 = vadd.f32 0.0, %v3765
      %v3767 = vpop.f32.mrb[0].mxu0
      %v3768 = vadd.f32 0.0, %v3767
      %3769 = vmatprep.mubr.f32.mxu0 0.0
      %3770 = vmatmul.mubr.f32.gmra.mrb[0].mxu0 %v3425
      %v3771 = vpop.f32.mrb[0].mxu0
      %v3772 = vadd.f32 0.0, %v3771
      %v3773 = vpop.f32.mrb[0].mxu0
      %v3774 = vadd.f32 0.0, %v3773
      %3775 = vmatprep.mubr.f32.mxu0 0.0
      %3776 = vmatmul.mubr.f32.gmra.mrb[0].mxu0 %v3428
      %v3777 = vpop.f32.mrb[0].mxu0
      %v3778 = vadd.f32 0.0, %v3777
      %v3779 = vpop.f32.mrb[0].mxu0
      %v3780 = vadd.f32 0.0, %v3779
      %3781 = vmatprep.mubr.f32.mxu0 0.0
      %3782 = vmatmul.mubr.f32.gmra.mrb[0].mxu0 %v3431
      %v3783 = vpop.f32.mrb[0].mxu0
      %v3784 = vadd.f32 0.0, %v3783
      %v3785 = vpop.f32.mrb[0].mxu0
      %v3786 = vadd.f32 0.0, %v3785
      %3787 = vdwg.mxu0
      %3788 = vmatprep.subr.mxu0 %v3447
      %3789 = vmatpush1.msra.mxu0 %v3445
      %3790 = vmatprep.subr.mxu0 0.0
      %3791 = vmatpush1.msra.mxu0 0.0
      %3792 = vmatprep.subr.mxu0 0.0
      %3793 = vmatpush1.msra.mxu0 0.0
      %3794 = vmatprep.subr.mxu0 0.0
      %3795 = vmatpush1.msra.mxu0 0.0
      %3796 = vmatprep.subr.mxu0 0.0
      %3797 = vmatpush1.msra.mxu0 0.0
      %3798 = vmatprep.subr.mxu0 0.0
      %3799 = vmatpush1.msra.mxu0 0.0
      %3800 = vmatprep.subr.mxu0 0.0
      %3801 = vmatpush1.msra.mxu0 0.0
      %3802 = vmatprep.subr.mxu0 0.0
      %3803 = vmatpush1.msra.mxu0 0.0
      %3804 = vmatprep.subr.mxu0 0.0
      %3805 = vmatpush1.msra.mxu0 0.0
      %3806 = vmatprep.subr.mxu0 0.0
      %3807 = vmatpush1.msra.mxu0 0.0
      %3808 = vmatprep.subr.mxu0 0.0
      %3809 = vmatpush1.msra.mxu0 0.0
      %3810 = vmatprep.subr.mxu0 0.0
      %3811 = vmatpush1.msra.mxu0 0.0
      %3812 = vmatprep.subr.mxu0 0.0
      %3813 = vmatpush1.msra.mxu0 0.0
      %3814 = vmatprep.subr.mxu0 0.0
      %3815 = vmatpush1.msra.mxu0 0.0
      %3816 = vmatprep.subr.mxu0 0.0
      %3817 = vmatpush1.msra.mxu0 0.0
      %3818 = vmatprep.subr.mxu0 0.0
      %3819 = vmatpush1.msra.mxu0 0.0
      %3820 = vmatprep.subr.mxu0 0.0
      %3821 = vmatpush1.msra.mxu0 0.0
      %3822 = vmatprep.subr.mxu0 0.0
      %3823 = vmatpush1.msra.mxu0 0.0
      %3824 = vmatprep.subr.mxu0 0.0
      %3825 = vmatpush1.msra.mxu0 0.0
      %3826 = vmatprep.subr.mxu0 0.0
      %3827 = vmatpush1.msra.mxu0 0.0
      %3828 = vmatprep.subr.mxu0 0.0
      %3829 = vmatpush1.msra.mxu0 0.0
      %3830 = vmatprep.subr.mxu0 0.0
      %3831 = vmatpush1.msra.mxu0 0.0
      %3832 = vmatprep.subr.mxu0 0.0
      %3833 = vmatpush1.msra.mxu0 0.0
      %3834 = vmatprep.subr.mxu0 0.0
      %3835 = vmatpush1.msra.mxu0 0.0
      %3836 = vmatprep.subr.mxu0 0.0
      %3837 = vmatpush1.msra.mxu0 0.0
      %3838 = vmatprep.subr.mxu0 0.0
      %3839 = vmatpush1.msra.mxu0 0.0
      %3840 = vmatprep.subr.mxu0 0.0
      %3841 = vmatpush1.msra.mxu0 0.0
      %3842 = vmatprep.subr.mxu0 0.0
      %3843 = vmatpush1.msra.mxu0 0.0
      %3844 = vmatprep.subr.mxu0 0.0
      %3845 = vmatpush1.msra.mxu0 0.0
      %3846 = vmatprep.subr.mxu0 0.0
      %3847 = vmatpush1.msra.mxu0 0.0
      %3848 = vmatprep.subr.mxu0 0.0
      %3849 = vmatpush1.msra.mxu0 0.0
      %3850 = vmatprep.subr.mxu0 0.0
      %3851 = vmatpush1.msra.mxu0 0.0
      %3852 = vmatprep.mubr.f32.mxu0 0.0
      %3853 = vmatmul.mubr.f32.gmra.mrb[0].mxu0 %v3410
      %v3854 = vpop.f32.mrb[0].mxu0
      %v3855 = vadd.f32 0.0, %v3854
      %v3856 = vpop.f32.mrb[0].mxu0
      %v3857 = vadd.f32 0.0, %v3856
      %3858 = vmatprep.mubr.f32.mxu0 0.0
      %3859 = vmatmul.mubr.f32.gmra.mrb[0].mxu0 %v3413
      %v3860 = vpop.f32.mrb[0].mxu0
      %v3861 = vadd.f32 0.0, %v3860
      %v3862 = vpop.f32.mrb[0].mxu0
      %v3863 = vadd.f32 0.0, %v3862
      %3864 = vmatprep.mubr.f32.mxu0 0.0
      %3865 = vmatmul.mubr.f32.gmra.mrb[0].mxu0 %v3416
      %v3866 = vpop.f32.mrb[0].mxu0
      %v3867 = vadd.f32 0.0, %v3866
      %v3868 = vpop.f32.mrb[0].mxu0
      %v3869 = vadd.f32 0.0, %v3868
      %3870 = vmatprep.mubr.f32.mxu0 0.0
      %3871 = vmatmul.mubr.f32.gmra.mrb[0].mxu0 %v3419
      %v3872 = vpop.f32.mrb[0].mxu0
      %v3873 = vadd.f32 0.0, %v3872
      %v3874 = vpop.f32.mrb[0].mxu0
      %v3875 = vadd.f32 0.0, %v3874
      %3876 = vmatprep.mubr.f32.mxu0 0.0
      %3877 = vmatmul.mubr.f32.gmra.mrb[0].mxu0 %v3422
      %v3878 = vpop.f32.mrb[0].mxu0
      %v3879 = vadd.f32 0.0, %v3878
      %v3880 = vpop.f32.mrb[0].mxu0
      %v3881 = vadd.f32 0.0, %v3880
      %3882 = vmatprep.mubr.f32.mxu0 0.0
      %3883 = vmatmul.mubr.f32.gmra.mrb[0].mxu0 %v3425
      %v3884 = vpop.f32.mrb[0].mxu0
      %v3885 = vadd.f32 0.0, %v3884
      %v3886 = vpop.f32.mrb[0].mxu0
      %v3887 = vadd.f32 0.0, %v3886
      %3888 = vmatprep.mubr.f32.mxu0 0.0
      %3889 = vmatmul.mubr.f32.gmra.mrb[0].mxu0 %v3428
      %v3890 = vpop.f32.mrb[0].mxu0
      %v3891 = vadd.f32 0.0, %v3890
      %v3892 = vpop.f32.mrb[0].mxu0
      %v3893 = vadd.f32 0.0, %v3892
      %3894 = vmatprep.mubr.f32.mxu0 0.0
      %3895 = vmatmul.mubr.f32.gmra.mrb[0].mxu0 %v3431
      %v3896 = vpop.f32.mrb[0].mxu0
      %v3897 = vadd.f32 0.0, %v3896
      %v3898 = vpop.f32.mrb[0].mxu0
      %v3899 = vadd.f32 0.0, %v3898
      %3900 = vdwg.mxu0
      %v3901 = vadd.f32 %v3011, %v3516
      %v3902 = vadd.f32 %v3013, %v3518
      %v3903 = vadd.f32 %v3124, %v3629
      %v3904 = vadd.f32 %v3126, %v3631
      %v3905 = vadd.f32 %v3237, %v3742
      %v3906 = vadd.f32 %v3239, %v3744
      %v3907 = vadd.f32 %v3350, %v3855
      %v3908 = vadd.f32 %v3352, %v3857
      %v3909 = vadd.f32 %v3017, %v3522
      %v3910 = vadd.f32 %v3019, %v3524
      %v3911 = vadd.f32 %v3130, %v3635
      %v3912 = vadd.f32 %v3132, %v3637
      %v3913 = vadd.f32 %v3243, %v3748
      %v3914 = vadd.f32 %v3245, %v3750
      %v3915 = vadd.f32 %v3356, %v3861
      %v3916 = vadd.f32 %v3358, %v3863
      %v3917 = vadd.f32 %v3023, %v3528
      %v3918 = vadd.f32 %v3025, %v3530
      %v3919 = vadd.f32 %v3136, %v3641
      %v3920 = vadd.f32 %v3138, %v3643
      %v3921 = vadd.f32 %v3249, %v3754
      %v3922 = vadd.f32 %v3251, %v3756
      %v3923 = vadd.f32 %v3362, %v3867
      %v3924 = vadd.f32 %v3364, %v3869
      %v3925 = vadd.f32 %v3029, %v3534
      %v3926 = vadd.f32 %v3031, %v3536
      %v3927 = vadd.f32 %v3142, %v3647
      %v3928 = vadd.f32 %v3144, %v3649
      %v3929 = vadd.f32 %v3255, %v3760
      %v3930 = vadd.f32 %v3257, %v3762
      %v3931 = vadd.f32 %v3368, %v3873
      %v3932 = vadd.f32 %v3370, %v3875
      %v3933 = vadd.f32 %v3035, %v3540
      %v3934 = vadd.f32 %v3037, %v3542
      %v3935 = vadd.f32 %v3148, %v3653
      %v3936 = vadd.f32 %v3150, %v3655
      %v3937 = vadd.f32 %v3261, %v3766
      %v3938 = vadd.f32 %v3263, %v3768
      %v3939 = vadd.f32 %v3374, %v3879
      %v3940 = vadd.f32 %v3376, %v3881
      %v3941 = vadd.f32 %v3041, %v3546
      %v3942 = vadd.f32 %v3043, %v3548
      %v3943 = vadd.f32 %v3154, %v3659
      %v3944 = vadd.f32 %v3156, %v3661
      %v3945 = vadd.f32 %v3267, %v3772
      %v3946 = vadd.f32 %v3269, %v3774
      %v3947 = vadd.f32 %v3380, %v3885
      %v3948 = vadd.f32 %v3382, %v3887
      %v3949 = vadd.f32 %v3047, %v3552
      %v3950 = vadd.f32 %v3049, %v3554
      %v3951 = vadd.f32 %v3160, %v3665
      %v3952 = vadd.f32 %v3162, %v3667
      %v3953 = vadd.f32 %v3273, %v3778
      %v3954 = vadd.f32 %v3275, %v3780
      %v3955 = vadd.f32 %v3386, %v3891
      %v3956 = vadd.f32 %v3388, %v3893
      %v3957 = vadd.f32 %v3053, %v3558
      %v3958 = vadd.f32 %v3055, %v3560
      %v3959 = vadd.f32 %v3166, %v3671
      %v3960 = vadd.f32 %v3168, %v3673
      %v3961 = vadd.f32 %v3279, %v3784
      %v3962 = vadd.f32 %v3281, %v3786
      %v3963 = vadd.f32 %v3392, %v3897
      %v3964 = vadd.f32 %v3394, %v3899
      %v3965 = vld [vmem:[%s14] sm:$0xff]
      %v3966 = vld [vmem:[%s14 + $0x8] sm:$0xff]
      %v3967 = vld [vmem:[%s14 + $0x10] sm:$0xff]
      %v3968 = vld [vmem:[%s14 + $0x18] sm:$0xff]
      %v3969 = vld [vmem:[%s14 + $0x20] sm:$0xff]
      %v3970 = vld [vmem:[%s14 + $0x28] sm:$0xff]
      %v3971 = vld [vmem:[%s14 + $0x30] sm:$0xff]
      %v3972 = vld [vmem:[%s14 + $0x38] sm:$0xff]
      %v3973 = vld [vmem:[%s14 + $0x40] sm:$0xff]
      %v3974 = vld [vmem:[%s14 + $0x48] sm:$0xff]
      %v3975 = vld [vmem:[%s14 + $0x50] sm:$0xff]
      %v3976 = vld [vmem:[%s14 + $0x58] sm:$0xff]
      %v3977 = vld [vmem:[%s14 + $0x60] sm:$0xff]
      %v3978 = vld [vmem:[%s14 + $0x68] sm:$0xff]
      %v3979 = vld [vmem:[%s14 + $0x70] sm:$0xff]
      %v3980 = vld [vmem:[%s14 + $0x78] sm:$0xff]
      %v3981 = vld [vmem:[%s14 + $0x80] sm:$0xff]
      %v3982 = vld [vmem:[%s14 + $0x88] sm:$0xff]
      %v3983 = vld [vmem:[%s14 + $0x90] sm:$0xff]
      %v3984 = vld [vmem:[%s14 + $0x98] sm:$0xff]
      %v3985 = vld [vmem:[%s14 + $0xa0] sm:$0xff]
      %v3986 = vld [vmem:[%s14 + $0xa8] sm:$0xff]
      %v3987 = vld [vmem:[%s14 + $0xb0] sm:$0xff]
      %v3988 = vld [vmem:[%s14 + $0xb8] sm:$0xff]
      %v3989 = vld [vmem:[%s14 + $0xc0] sm:$0xff]
      %v3990 = vld [vmem:[%s14 + $0xc8] sm:$0xff]
      %v3991 = vld [vmem:[%s14 + $0xd0] sm:$0xff]
      %v3992 = vld [vmem:[%s14 + $0xd8] sm:$0xff]
      %v3993 = vld [vmem:[%s14 + $0xe0] sm:$0xff]
      %v3994 = vld [vmem:[%s14 + $0xe8] sm:$0xff]
      %v3995 = vld [vmem:[%s14 + $0xf0] sm:$0xff]
      %v3996 = vld [vmem:[%s14 + $0xf8] sm:$0xff]
      %v3997 = vld [vmem:[%s14 + $0x100] sm:$0xff]
      %v3998 = vld [vmem:[%s14 + $0x108] sm:$0xff]
      %v3999 = vld [vmem:[%s14 + $0x110] sm:$0xff]
      %v4000 = vld [vmem:[%s14 + $0x118] sm:$0xff]
      %v4001 = vld [vmem:[%s14 + $0x120] sm:$0xff]
      %v4002 = vld [vmem:[%s14 + $0x128] sm:$0xff]
      %v4003 = vld [vmem:[%s14 + $0x130] sm:$0xff]
      %v4004 = vld [vmem:[%s14 + $0x138] sm:$0xff]
      %v4005 = vld [vmem:[%s14 + $0x140] sm:$0xff]
      %v4006 = vld [vmem:[%s14 + $0x148] sm:$0xff]
      %v4007 = vld [vmem:[%s14 + $0x150] sm:$0xff]
      %v4008 = vld [vmem:[%s14 + $0x158] sm:$0xff]
      %v4009 = vld [vmem:[%s14 + $0x160] sm:$0xff]
      %v4010 = vld [vmem:[%s14 + $0x168] sm:$0xff]
      %v4011 = vld [vmem:[%s14 + $0x170] sm:$0xff]
      %v4012 = vld [vmem:[%s14 + $0x178] sm:$0xff]
      %v4013 = vld [vmem:[%s14 + $0x180] sm:$0xff]
      %v4014 = vld [vmem:[%s14 + $0x188] sm:$0xff]
      %v4015 = vld [vmem:[%s14 + $0x190] sm:$0xff]
      %v4016 = vld [vmem:[%s14 + $0x198] sm:$0xff]
      %v4017 = vld [vmem:[%s14 + $0x1a0] sm:$0xff]
      %v4018 = vld [vmem:[%s14 + $0x1a8] sm:$0xff]
      %v4019 = vld [vmem:[%s14 + $0x1b0] sm:$0xff]
      %v4020 = vld [vmem:[%s14 + $0x1b8] sm:$0xff]
      %v4021 = vld [vmem:[%s14 + $0x1c0] sm:$0xff]
      %v4022 = vld [vmem:[%s14 + $0x1c8] sm:$0xff]
      %v4023 = vld [vmem:[%s14 + $0x1d0] sm:$0xff]
      %v4024 = vld [vmem:[%s14 + $0x1d8] sm:$0xff]
      %v4025 = vld [vmem:[%s14 + $0x1e0] sm:$0xff]
      %v4026 = vld [vmem:[%s14 + $0x1e8] sm:$0xff]
      %v4027 = vld [vmem:[%s14 + $0x1f0] sm:$0xff]
      %v4028 = vld [vmem:[%s14 + $0x1f8] sm:$0xff]
      %v4029 = vld [vmem:[%s14 + $0x200] sm:$0xff]
      %v4030 = vld [vmem:[%s14 + $0x208] sm:$0xff]
      %v4031 = vld [vmem:[%s14 + $0x210] sm:$0xff]
      %v4032 = vld [vmem:[%s14 + $0x218] sm:$0xff]
      %v4033 = vld [vmem:[%s14 + $0x220] sm:$0xff]
      %v4034 = vld [vmem:[%s14 + $0x228] sm:$0xff]
      %v4035 = vld [vmem:[%s14 + $0x230] sm:$0xff]
      %v4036 = vld [vmem:[%s14 + $0x238] sm:$0xff]
      %v4037 = vld [vmem:[%s14 + $0x240] sm:$0xff]
      %v4038 = vld [vmem:[%s14 + $0x248] sm:$0xff]
      %v4039 = vld [vmem:[%s14 + $0x250] sm:$0xff]
      %v4040 = vld [vmem:[%s14 + $0x258] sm:$0xff]
      %v4041 = vld [vmem:[%s14 + $0x260] sm:$0xff]
      %v4042 = vld [vmem:[%s14 + $0x268] sm:$0xff]
      %v4043 = vld [vmem:[%s14 + $0x270] sm:$0xff]
      %v4044 = vld [vmem:[%s14 + $0x278] sm:$0xff]
      %v4045 = vld [vmem:[%s14 + $0x280] sm:$0xff]
      %v4046 = vld [vmem:[%s14 + $0x288] sm:$0xff]
      %v4047 = vld [vmem:[%s14 + $0x290] sm:$0xff]
      %v4048 = vld [vmem:[%s14 + $0x298] sm:$0xff]
      %v4049 = vld [vmem:[%s14 + $0x2a0] sm:$0xff]
      %v4050 = vld [vmem:[%s14 + $0x2a8] sm:$0xff]
      %v4051 = vld [vmem:[%s14 + $0x2b0] sm:$0xff]
      %v4052 = vld [vmem:[%s14 + $0x2b8] sm:$0xff]
      %v4053 = vld [vmem:[%s14 + $0x2c0] sm:$0xff]
      %v4054 = vld [vmem:[%s14 + $0x2c8] sm:$0xff]
      %v4055 = vld [vmem:[%s14 + $0x2d0] sm:$0xff]
      %v4056 = vld [vmem:[%s14 + $0x2d8] sm:$0xff]
      %v4057 = vld [vmem:[%s14 + $0x2e0] sm:$0xff]
      %v4058 = vld [vmem:[%s14 + $0x2e8] sm:$0xff]
      %v4059 = vld [vmem:[%s14 + $0x2f0] sm:$0xff]
      %v4060 = vld [vmem:[%s14 + $0x2f8] sm:$0xff]
      %v4061 = vld [vmem:[%s14 + $0x300] sm:$0xff]
      %v4062 = vld [vmem:[%s14 + $0x308] sm:$0xff]
      %v4063 = vld [vmem:[%s14 + $0x310] sm:$0xff]
      %v4064 = vld [vmem:[%s14 + $0x318] sm:$0xff]
      %v4065 = vld [vmem:[%s14 + $0x320] sm:$0xff]
      %v4066 = vld [vmem:[%s14 + $0x328] sm:$0xff]
      %v4067 = vld [vmem:[%s14 + $0x330] sm:$0xff]
      %v4068 = vld [vmem:[%s14 + $0x338] sm:$0xff]
      %v4069 = vld [vmem:[%s14 + $0x340] sm:$0xff]
      %v4070 = vld [vmem:[%s14 + $0x348] sm:$0xff]
      %v4071 = vld [vmem:[%s14 + $0x350] sm:$0xff]
      %v4072 = vld [vmem:[%s14 + $0x358] sm:$0xff]
      %v4073 = vld [vmem:[%s14 + $0x360] sm:$0xff]
      %v4074 = vld [vmem:[%s14 + $0x368] sm:$0xff]
      %v4075 = vld [vmem:[%s14 + $0x370] sm:$0xff]
      %v4076 = vld [vmem:[%s14 + $0x378] sm:$0xff]
      %v4077 = vld [vmem:[%s14 + $0x380] sm:$0xff]
      %v4078 = vld [vmem:[%s14 + $0x388] sm:$0xff]
      %v4079 = vld [vmem:[%s14 + $0x390] sm:$0xff]
      %v4080 = vld [vmem:[%s14 + $0x398] sm:$0xff]
      %v4081 = vld [vmem:[%s14 + $0x3a0] sm:$0xff]
      %v4082 = vld [vmem:[%s14 + $0x3a8] sm:$0xff]
      %v4083 = vld [vmem:[%s14 + $0x3b0] sm:$0xff]
      %v4084 = vld [vmem:[%s14 + $0x3b8] sm:$0xff]
      %v4085 = vld [vmem:[%s14 + $0x3c0] sm:$0xff]
      %v4086 = vld [vmem:[%s14 + $0x3c8] sm:$0xff]
      %v4087 = vld [vmem:[%s14 + $0x3d0] sm:$0xff]
      %v4088 = vld [vmem:[%s14 + $0x3d8] sm:$0xff]
      %v4089 = vld [vmem:[%s14 + $0x3e0] sm:$0xff]
      %v4090 = vld [vmem:[%s14 + $0x3e8] sm:$0xff]
      %v4091 = vld [vmem:[%s14 + $0x3f0] sm:$0xff]
      %v4092 = vld [vmem:[%s14 + $0x3f8] sm:$0xff]
      %4093 = vmatprep.subr.mxu0 0.0
      %4094 = vmatpush1.msra.mxu0 %v3965
      %4095 = vmatprep.subr.mxu0 0.0
      %4096 = vmatpush1.msra.mxu0 %v3966
      %4097 = vmatprep.subr.mxu0 0.0
      %4098 = vmatpush1.msra.mxu0 %v3967
      %4099 = vmatprep.subr.mxu0 0.0
      %4100 = vmatpush1.msra.mxu0 %v3968
      %4101 = vmatprep.subr.mxu0 0.0
      %4102 = vmatpush1.msra.mxu0 %v3969
      %4103 = vmatprep.subr.mxu0 0.0
      %4104 = vmatpush1.msra.mxu0 %v3970
      %4105 = vmatprep.subr.mxu0 0.0
      %4106 = vmatpush1.msra.mxu0 %v3971
      %4107 = vmatprep.subr.mxu0 0.0
      %4108 = vmatpush1.msra.mxu0 %v3972
      %4109 = vmatprep.subr.mxu0 0.0
      %4110 = vmatpush1.msra.mxu0 %v3973
      %4111 = vmatprep.subr.mxu0 0.0
      %4112 = vmatpush1.msra.mxu0 %v3974
      %4113 = vmatprep.subr.mxu0 0.0
      %4114 = vmatpush1.msra.mxu0 %v3975
      %4115 = vmatprep.subr.mxu0 0.0
      %4116 = vmatpush1.msra.mxu0 %v3976
      %4117 = vmatprep.subr.mxu0 0.0
      %4118 = vmatpush1.msra.mxu0 %v3977
      %4119 = vmatprep.subr.mxu0 0.0
      %4120 = vmatpush1.msra.mxu0 %v3978
      %4121 = vmatprep.subr.mxu0 0.0
      %4122 = vmatpush1.msra.mxu0 %v3979
      %4123 = vmatprep.subr.mxu0 0.0
      %4124 = vmatpush1.msra.mxu0 %v3980
      %4125 = vmatprep.subr.mxu0 0.0
      %4126 = vmatpush1.msra.mxu0 %v3981
      %4127 = vmatprep.subr.mxu0 0.0
      %4128 = vmatpush1.msra.mxu0 %v3982
      %4129 = vmatprep.subr.mxu0 0.0
      %4130 = vmatpush1.msra.mxu0 %v3983
      %4131 = vmatprep.subr.mxu0 0.0
      %4132 = vmatpush1.msra.mxu0 %v3984
      %4133 = vmatprep.subr.mxu0 0.0
      %4134 = vmatpush1.msra.mxu0 %v3985
      %4135 = vmatprep.subr.mxu0 0.0
      %4136 = vmatpush1.msra.mxu0 %v3986
      %4137 = vmatprep.subr.mxu0 0.0
      %4138 = vmatpush1.msra.mxu0 %v3987
      %4139 = vmatprep.subr.mxu0 0.0
      %4140 = vmatpush1.msra.mxu0 %v3988
      %4141 = vmatprep.subr.mxu0 0.0
      %4142 = vmatpush1.msra.mxu0 %v3989
      %4143 = vmatprep.subr.mxu0 0.0
      %4144 = vmatpush1.msra.mxu0 %v3990
      %4145 = vmatprep.subr.mxu0 0.0
      %4146 = vmatpush1.msra.mxu0 %v3991
      %4147 = vmatprep.subr.mxu0 0.0
      %4148 = vmatpush1.msra.mxu0 %v3992
      %4149 = vmatprep.subr.mxu0 0.0
      %4150 = vmatpush1.msra.mxu0 %v3993
      %4151 = vmatprep.subr.mxu0 0.0
      %4152 = vmatpush1.msra.mxu0 %v3994
      %4153 = vmatprep.subr.mxu0 0.0
      %4154 = vmatpush1.msra.mxu0 %v3995
      %4155 = vmatprep.subr.mxu0 0.0
      %4156 = vmatpush1.msra.mxu0 %v3996
      %4157 = vmatprep.mubr.f32.mxu0 %v3902
      %4158 = vmatmul.mubr.f32.gmra.mrb[0].mxu0 %v3901
      %v4159 = vpop.f32.mrb[0].mxu0
      %v4160 = vadd.f32 0.0, %v4159
      %v4161 = vpop.f32.mrb[0].mxu0
      %4162 = vmatprep.mubr.f32.mxu0 %v3910
      %4163 = vmatmul.mubr.f32.gmra.mrb[0].mxu0 %v3909
      %v4164 = vpop.f32.mrb[0].mxu0
      %v4165 = vadd.f32 0.0, %v4164
      %v4166 = vpop.f32.mrb[0].mxu0
      %4167 = vmatprep.mubr.f32.mxu0 %v3918
      %4168 = vmatmul.mubr.f32.gmra.mrb[0].mxu0 %v3917
      %v4169 = vpop.f32.mrb[0].mxu0
      %v4170 = vadd.f32 0.0, %v4169
      %v4171 = vpop.f32.mrb[0].mxu0
      %4172 = vmatprep.mubr.f32.mxu0 %v3926
      %4173 = vmatmul.mubr.f32.gmra.mrb[0].mxu0 %v3925
      %v4174 = vpop.f32.mrb[0].mxu0
      %v4175 = vadd.f32 0.0, %v4174
      %v4176 = vpop.f32.mrb[0].mxu0
      %4177 = vmatprep.mubr.f32.mxu0 %v3934
      %4178 = vmatmul.mubr.f32.gmra.mrb[0].mxu0 %v3933
      %v4179 = vpop.f32.mrb[0].mxu0
      %v4180 = vadd.f32 0.0, %v4179
      %v4181 = vpop.f32.mrb[0].mxu0
      %4182 = vmatprep.mubr.f32.mxu0 %v3942
      %4183 = vmatmul.mubr.f32.gmra.mrb[0].mxu0 %v3941
      %v4184 = vpop.f32.mrb[0].mxu0
      %v4185 = vadd.f32 0.0, %v4184
      %v4186 = vpop.f32.mrb[0].mxu0
      %4187 = vmatprep.mubr.f32.mxu0 %v3950
      %4188 = vmatmul.mubr.f32.gmra.mrb[0].mxu0 %v3949
      %v4189 = vpop.f32.mrb[0].mxu0
      %v4190 = vadd.f32 0.0, %v4189
      %v4191 = vpop.f32.mrb[0].mxu0
      %4192 = vmatprep.mubr.f32.mxu0 %v3958
      %4193 = vmatmul.mubr.f32.gmra.mrb[0].mxu0 %v3957
      %v4194 = vpop.f32.mrb[0].mxu0
      %v4195 = vadd.f32 0.0, %v4194
      %v4196 = vpop.f32.mrb[0].mxu0
      %4197 = vdwg.mxu0
      %4198 = vmatprep.subr.mxu0 0.0
      %4199 = vmatpush1.msra.mxu0 %v3997
      %4200 = vmatprep.subr.mxu0 0.0
      %4201 = vmatpush1.msra.mxu0 %v3998
      %4202 = vmatprep.subr.mxu0 0.0
      %4203 = vmatpush1.msra.mxu0 %v3999
      %4204 = vmatprep.subr.mxu0 0.0
      %4205 = vmatpush1.msra.mxu0 %v4000
      %4206 = vmatprep.subr.mxu0 0.0
      %4207 = vmatpush1.msra.mxu0 %v4001
      %4208 = vmatprep.subr.mxu0 0.0
      %4209 = vmatpush1.msra.mxu0 %v4002
      %4210 = vmatprep.subr.mxu0 0.0
      %4211 = vmatpush1.msra.mxu0 %v4003
      %4212 = vmatprep.subr.mxu0 0.0
      %4213 = vmatpush1.msra.mxu0 %v4004
      %4214 = vmatprep.subr.mxu0 0.0
      %4215 = vmatpush1.msra.mxu0 %v4005
      %4216 = vmatprep.subr.mxu0 0.0
      %4217 = vmatpush1.msra.mxu0 %v4006
      %4218 = vmatprep.subr.mxu0 0.0
      %4219 = vmatpush1.msra.mxu0 %v4007
      %4220 = vmatprep.subr.mxu0 0.0
      %4221 = vmatpush1.msra.mxu0 %v4008
      %4222 = vmatprep.subr.mxu0 0.0
      %4223 = vmatpush1.msra.mxu0 %v4009
      %4224 = vmatprep.subr.mxu0 0.0
      %4225 = vmatpush1.msra.mxu0 %v4010
      %4226 = vmatprep.subr.mxu0 0.0
      %4227 = vmatpush1.msra.mxu0 %v4011
      %4228 = vmatprep.subr.mxu0 0.0
      %4229 = vmatpush1.msra.mxu0 %v4012
      %4230 = vmatprep.subr.mxu0 0.0
      %4231 = vmatpush1.msra.mxu0 %v4013
      %4232 = vmatprep.subr.mxu0 0.0
      %4233 = vmatpush1.msra.mxu0 %v4014
      %4234 = vmatprep.subr.mxu0 0.0
      %4235 = vmatpush1.msra.mxu0 %v4015
      %4236 = vmatprep.subr.mxu0 0.0
      %4237 = vmatpush1.msra.mxu0 %v4016
      %4238 = vmatprep.subr.mxu0 0.0
      %4239 = vmatpush1.msra.mxu0 %v4017
      %4240 = vmatprep.subr.mxu0 0.0
      %4241 = vmatpush1.msra.mxu0 %v4018
      %4242 = vmatprep.subr.mxu0 0.0
      %4243 = vmatpush1.msra.mxu0 %v4019
      %4244 = vmatprep.subr.mxu0 0.0
      %4245 = vmatpush1.msra.mxu0 %v4020
      %4246 = vmatprep.subr.mxu0 0.0
      %4247 = vmatpush1.msra.mxu0 %v4021
      %4248 = vmatprep.subr.mxu0 0.0
      %4249 = vmatpush1.msra.mxu0 %v4022
      %4250 = vmatprep.subr.mxu0 0.0
      %4251 = vmatpush1.msra.mxu0 %v4023
      %4252 = vmatprep.subr.mxu0 0.0
      %4253 = vmatpush1.msra.mxu0 %v4024
      %4254 = vmatprep.subr.mxu0 0.0
      %4255 = vmatpush1.msra.mxu0 %v4025
      %4256 = vmatprep.subr.mxu0 0.0
      %4257 = vmatpush1.msra.mxu0 %v4026
      %4258 = vmatprep.subr.mxu0 0.0
      %4259 = vmatpush1.msra.mxu0 %v4027
      %4260 = vmatprep.subr.mxu0 0.0
      %4261 = vmatpush1.msra.mxu0 %v4028
      %4262 = vmatprep.mubr.f32.mxu0 %v3904
      %4263 = vmatmul.mubr.f32.gmra.mrb[0].mxu0 %v3903
      %v4264 = vpop.f32.mrb[0].mxu0
      %v4265 = vadd.f32 %v4160, %v4264
      %v4266 = vpop.f32.mrb[0].mxu0
      %4267 = vmatprep.mubr.f32.mxu0 %v3912
      %4268 = vmatmul.mubr.f32.gmra.mrb[0].mxu0 %v3911
      %v4269 = vpop.f32.mrb[0].mxu0
      %v4270 = vadd.f32 %v4165, %v4269
      %v4271 = vpop.f32.mrb[0].mxu0
      %4272 = vmatprep.mubr.f32.mxu0 %v3920
      %4273 = vmatmul.mubr.f32.gmra.mrb[0].mxu0 %v3919
      %v4274 = vpop.f32.mrb[0].mxu0
      %v4275 = vadd.f32 %v4170, %v4274
      %v4276 = vpop.f32.mrb[0].mxu0
      %4277 = vmatprep.mubr.f32.mxu0 %v3928
      %4278 = vmatmul.mubr.f32.gmra.mrb[0].mxu0 %v3927
      %v4279 = vpop.f32.mrb[0].mxu0
      %v4280 = vadd.f32 %v4175, %v4279
      %v4281 = vpop.f32.mrb[0].mxu0
      %4282 = vmatprep.mubr.f32.mxu0 %v3936
      %4283 = vmatmul.mubr.f32.gmra.mrb[0].mxu0 %v3935
      %v4284 = vpop.f32.mrb[0].mxu0
      %v4285 = vadd.f32 %v4180, %v4284
      %v4286 = vpop.f32.mrb[0].mxu0
      %4287 = vmatprep.mubr.f32.mxu0 %v3944
      %4288 = vmatmul.mubr.f32.gmra.mrb[0].mxu0 %v3943
      %v4289 = vpop.f32.mrb[0].mxu0
      %v4290 = vadd.f32 %v4185, %v4289
      %v4291 = vpop.f32.mrb[0].mxu0
      %4292 = vmatprep.mubr.f32.mxu0 %v3952
      %4293 = vmatmul.mubr.f32.gmra.mrb[0].mxu0 %v3951
      %v4294 = vpop.f32.mrb[0].mxu0
      %v4295 = vadd.f32 %v4190, %v4294
      %v4296 = vpop.f32.mrb[0].mxu0
      %4297 = vmatprep.mubr.f32.mxu0 %v3960
      %4298 = vmatmul.mubr.f32.gmra.mrb[0].mxu0 %v3959
      %v4299 = vpop.f32.mrb[0].mxu0
      %v4300 = vadd.f32 %v4195, %v4299
      %v4301 = vpop.f32.mrb[0].mxu0
      %4302 = vdwg.mxu0
      %4303 = vmatprep.subr.mxu0 0.0
      %4304 = vmatpush1.msra.mxu0 %v4029
      %4305 = vmatprep.subr.mxu0 0.0
      %4306 = vmatpush1.msra.mxu0 %v4030
      %4307 = vmatprep.subr.mxu0 0.0
      %4308 = vmatpush1.msra.mxu0 %v4031
      %4309 = vmatprep.subr.mxu0 0.0
      %4310 = vmatpush1.msra.mxu0 %v4032
      %4311 = vmatprep.subr.mxu0 0.0
      %4312 = vmatpush1.msra.mxu0 %v4033
      %4313 = vmatprep.subr.mxu0 0.0
      %4314 = vmatpush1.msra.mxu0 %v4034
      %4315 = vmatprep.subr.mxu0 0.0
      %4316 = vmatpush1.msra.mxu0 %v4035
      %4317 = vmatprep.subr.mxu0 0.0
      %4318 = vmatpush1.msra.mxu0 %v4036
      %4319 = vmatprep.subr.mxu0 0.0
      %4320 = vmatpush1.msra.mxu0 %v4037
      %4321 = vmatprep.subr.mxu0 0.0
      %4322 = vmatpush1.msra.mxu0 %v4038
      %4323 = vmatprep.subr.mxu0 0.0
      %4324 = vmatpush1.msra.mxu0 %v4039
      %4325 = vmatprep.subr.mxu0 0.0
      %4326 = vmatpush1.msra.mxu0 %v4040
      %4327 = vmatprep.subr.mxu0 0.0
      %4328 = vmatpush1.msra.mxu0 %v4041
      %4329 = vmatprep.subr.mxu0 0.0
      %4330 = vmatpush1.msra.mxu0 %v4042
      %4331 = vmatprep.subr.mxu0 0.0
      %4332 = vmatpush1.msra.mxu0 %v4043
      %4333 = vmatprep.subr.mxu0 0.0
      %4334 = vmatpush1.msra.mxu0 %v4044
      %4335 = vmatprep.subr.mxu0 0.0
      %4336 = vmatpush1.msra.mxu0 %v4045
      %4337 = vmatprep.subr.mxu0 0.0
      %4338 = vmatpush1.msra.mxu0 %v4046
      %4339 = vmatprep.subr.mxu0 0.0
      %4340 = vmatpush1.msra.mxu0 %v4047
      %4341 = vmatprep.subr.mxu0 0.0
      %4342 = vmatpush1.msra.mxu0 %v4048
      %4343 = vmatprep.subr.mxu0 0.0
      %4344 = vmatpush1.msra.mxu0 %v4049
      %4345 = vmatprep.subr.mxu0 0.0
      %4346 = vmatpush1.msra.mxu0 %v4050
      %4347 = vmatprep.subr.mxu0 0.0
      %4348 = vmatpush1.msra.mxu0 %v4051
      %4349 = vmatprep.subr.mxu0 0.0
      %4350 = vmatpush1.msra.mxu0 %v4052
      %4351 = vmatprep.subr.mxu0 0.0
      %4352 = vmatpush1.msra.mxu0 %v4053
      %4353 = vmatprep.subr.mxu0 0.0
      %4354 = vmatpush1.msra.mxu0 %v4054
      %4355 = vmatprep.subr.mxu0 0.0
      %4356 = vmatpush1.msra.mxu0 %v4055
      %4357 = vmatprep.subr.mxu0 0.0
      %4358 = vmatpush1.msra.mxu0 %v4056
      %4359 = vmatprep.subr.mxu0 0.0
      %4360 = vmatpush1.msra.mxu0 %v4057
      %4361 = vmatprep.subr.mxu0 0.0
      %4362 = vmatpush1.msra.mxu0 %v4058
      %4363 = vmatprep.subr.mxu0 0.0
      %4364 = vmatpush1.msra.mxu0 %v4059
      %4365 = vmatprep.subr.mxu0 0.0
      %4366 = vmatpush1.msra.mxu0 %v4060
      %4367 = vmatprep.mubr.f32.mxu0 %v3906
      %4368 = vmatmul.mubr.f32.gmra.mrb[0].mxu0 %v3905
      %v4369 = vpop.f32.mrb[0].mxu0
      %v4370 = vadd.f32 %v4265, %v4369
      %v4371 = vpop.f32.mrb[0].mxu0
      %4372 = vmatprep.mubr.f32.mxu0 %v3914
      %4373 = vmatmul.mubr.f32.gmra.mrb[0].mxu0 %v3913
      %v4374 = vpop.f32.mrb[0].mxu0
      %v4375 = vadd.f32 %v4270, %v4374
      %v4376 = vpop.f32.mrb[0].mxu0
      %4377 = vmatprep.mubr.f32.mxu0 %v3922
      %4378 = vmatmul.mubr.f32.gmra.mrb[0].mxu0 %v3921
      %v4379 = vpop.f32.mrb[0].mxu0
      %v4380 = vadd.f32 %v4275, %v4379
      %v4381 = vpop.f32.mrb[0].mxu0
      %4382 = vmatprep.mubr.f32.mxu0 %v3930
      %4383 = vmatmul.mubr.f32.gmra.mrb[0].mxu0 %v3929
      %v4384 = vpop.f32.mrb[0].mxu0
      %v4385 = vadd.f32 %v4280, %v4384
      %v4386 = vpop.f32.mrb[0].mxu0
      %4387 = vmatprep.mubr.f32.mxu0 %v3938
      %4388 = vmatmul.mubr.f32.gmra.mrb[0].mxu0 %v3937
      %v4389 = vpop.f32.mrb[0].mxu0
      %v4390 = vadd.f32 %v4285, %v4389
      %v4391 = vpop.f32.mrb[0].mxu0
      %4392 = vmatprep.mubr.f32.mxu0 %v3946
      %4393 = vmatmul.mubr.f32.gmra.mrb[0].mxu0 %v3945
      %v4394 = vpop.f32.mrb[0].mxu0
      %v4395 = vadd.f32 %v4290, %v4394
      %v4396 = vpop.f32.mrb[0].mxu0
      %4397 = vmatprep.mubr.f32.mxu0 %v3954
      %4398 = vmatmul.mubr.f32.gmra.mrb[0].mxu0 %v3953
      %v4399 = vpop.f32.mrb[0].mxu0
      %v4400 = vadd.f32 %v4295, %v4399
      %v4401 = vpop.f32.mrb[0].mxu0
      %4402 = vmatprep.mubr.f32.mxu0 %v3962
      %4403 = vmatmul.mubr.f32.gmra.mrb[0].mxu0 %v3961
      %v4404 = vpop.f32.mrb[0].mxu0
      %v4405 = vadd.f32 %v4300, %v4404
      %v4406 = vpop.f32.mrb[0].mxu0
      %4407 = vdwg.mxu0
      %4408 = vmatprep.subr.mxu0 0.0
      %4409 = vmatpush1.msra.mxu0 %v4061
      %4410 = vmatprep.subr.mxu0 0.0
      %4411 = vmatpush1.msra.mxu0 %v4062
      %4412 = vmatprep.subr.mxu0 0.0
      %4413 = vmatpush1.msra.mxu0 %v4063
      %4414 = vmatprep.subr.mxu0 0.0
      %4415 = vmatpush1.msra.mxu0 %v4064
      %4416 = vmatprep.subr.mxu0 0.0
      %4417 = vmatpush1.msra.mxu0 %v4065
      %4418 = vmatprep.subr.mxu0 0.0
      %4419 = vmatpush1.msra.mxu0 %v4066
      %4420 = vmatprep.subr.mxu0 0.0
      %4421 = vmatpush1.msra.mxu0 %v4067
      %4422 = vmatprep.subr.mxu0 0.0
      %4423 = vmatpush1.msra.mxu0 %v4068
      %4424 = vmatprep.subr.mxu0 0.0
      %4425 = vmatpush1.msra.mxu0 %v4069
      %4426 = vmatprep.subr.mxu0 0.0
      %4427 = vmatpush1.msra.mxu0 %v4070
      %4428 = vmatprep.subr.mxu0 0.0
      %4429 = vmatpush1.msra.mxu0 %v4071
      %4430 = vmatprep.subr.mxu0 0.0
      %4431 = vmatpush1.msra.mxu0 %v4072
      %4432 = vmatprep.subr.mxu0 0.0
      %4433 = vmatpush1.msra.mxu0 %v4073
      %4434 = vmatprep.subr.mxu0 0.0
      %4435 = vmatpush1.msra.mxu0 %v4074
      %4436 = vmatprep.subr.mxu0 0.0
      %4437 = vmatpush1.msra.mxu0 %v4075
      %4438 = vmatprep.subr.mxu0 0.0
      %4439 = vmatpush1.msra.mxu0 %v4076
      %4440 = vmatprep.subr.mxu0 0.0
      %4441 = vmatpush1.msra.mxu0 %v4077
      %4442 = vmatprep.subr.mxu0 0.0
      %4443 = vmatpush1.msra.mxu0 %v4078
      %4444 = vmatprep.subr.mxu0 0.0
      %4445 = vmatpush1.msra.mxu0 %v4079
      %4446 = vmatprep.subr.mxu0 0.0
      %4447 = vmatpush1.msra.mxu0 %v4080
      %4448 = vmatprep.subr.mxu0 0.0
      %4449 = vmatpush1.msra.mxu0 %v4081
      %4450 = vmatprep.subr.mxu0 0.0
      %4451 = vmatpush1.msra.mxu0 %v4082
      %4452 = vmatprep.subr.mxu0 0.0
      %4453 = vmatpush1.msra.mxu0 %v4083
      %4454 = vmatprep.subr.mxu0 0.0
      %4455 = vmatpush1.msra.mxu0 %v4084
      %4456 = vmatprep.subr.mxu0 0.0
      %4457 = vmatpush1.msra.mxu0 %v4085
      %4458 = vmatprep.subr.mxu0 0.0
      %4459 = vmatpush1.msra.mxu0 %v4086
      %4460 = vmatprep.subr.mxu0 0.0
      %4461 = vmatpush1.msra.mxu0 %v4087
      %4462 = vmatprep.subr.mxu0 0.0
      %4463 = vmatpush1.msra.mxu0 %v4088
      %4464 = vmatprep.subr.mxu0 0.0
      %4465 = vmatpush1.msra.mxu0 %v4089
      %4466 = vmatprep.subr.mxu0 0.0
      %4467 = vmatpush1.msra.mxu0 %v4090
      %4468 = vmatprep.subr.mxu0 0.0
      %4469 = vmatpush1.msra.mxu0 %v4091
      %4470 = vmatprep.subr.mxu0 0.0
      %4471 = vmatpush1.msra.mxu0 %v4092
      %4472 = vmatprep.mubr.f32.mxu0 %v3908
      %4473 = vmatmul.mubr.f32.gmra.mrb[0].mxu0 %v3907
      %v4474 = vpop.f32.mrb[0].mxu0
      %v4475 = vadd.f32 %v4370, %v4474
      %v4476 = vpop.f32.mrb[0].mxu0
      %4477 = vmatprep.mubr.f32.mxu0 %v3916
      %4478 = vmatmul.mubr.f32.gmra.mrb[0].mxu0 %v3915
      %v4479 = vpop.f32.mrb[0].mxu0
      %v4480 = vadd.f32 %v4375, %v4479
      %v4481 = vpop.f32.mrb[0].mxu0
      %4482 = vmatprep.mubr.f32.mxu0 %v3924
      %4483 = vmatmul.mubr.f32.gmra.mrb[0].mxu0 %v3923
      %v4484 = vpop.f32.mrb[0].mxu0
      %v4485 = vadd.f32 %v4380, %v4484
      %v4486 = vpop.f32.mrb[0].mxu0
      %4487 = vmatprep.mubr.f32.mxu0 %v3932
      %4488 = vmatmul.mubr.f32.gmra.mrb[0].mxu0 %v3931
      %v4489 = vpop.f32.mrb[0].mxu0
      %v4490 = vadd.f32 %v4385, %v4489
      %v4491 = vpop.f32.mrb[0].mxu0
      %4492 = vmatprep.mubr.f32.mxu0 %v3940
      %4493 = vmatmul.mubr.f32.gmra.mrb[0].mxu0 %v3939
      %v4494 = vpop.f32.mrb[0].mxu0
      %v4495 = vadd.f32 %v4390, %v4494
      %v4496 = vpop.f32.mrb[0].mxu0
      %4497 = vmatprep.mubr.f32.mxu0 %v3948
      %4498 = vmatmul.mubr.f32.gmra.mrb[0].mxu0 %v3947
      %v4499 = vpop.f32.mrb[0].mxu0
      %v4500 = vadd.f32 %v4395, %v4499
      %v4501 = vpop.f32.mrb[0].mxu0
      %4502 = vmatprep.mubr.f32.mxu0 %v3956
      %4503 = vmatmul.mubr.f32.gmra.mrb[0].mxu0 %v3955
      %v4504 = vpop.f32.mrb[0].mxu0
      %v4505 = vadd.f32 %v4400, %v4504
      %v4506 = vpop.f32.mrb[0].mxu0
      %4507 = vmatprep.mubr.f32.mxu0 %v3964
      %4508 = vmatmul.mubr.f32.gmra.mrb[0].mxu0 %v3963
      %v4509 = vpop.f32.mrb[0].mxu0
      %v4510 = vadd.f32 %v4405, %v4509
      %v4511 = vpop.f32.mrb[0].mxu0
      %4512 = vdwg.mxu0
      %v4513 = vmul.f32 %v3901, %v3901
      %v4514 = vmul.f32 %v3902, %v3902
      %v4515 = vmul.f32 %v3903, %v3903
      %v4516 = vmul.f32 %v3904, %v3904
      %v4517 = vmul.f32 %v3905, %v3905
      %v4518 = vmul.f32 %v3906, %v3906
      %v4519 = vmul.f32 %v3907, %v3907
      %v4520 = vmul.f32 %v3908, %v3908
      %v4521 = vmul.f32 %v3909, %v3909
      %v4522 = vmul.f32 %v3910, %v3910
      %v4523 = vmul.f32 %v3911, %v3911
      %v4524 = vmul.f32 %v3912, %v3912
      %v4525 = vmul.f32 %v3913, %v3913
      %v4526 = vmul.f32 %v3914, %v3914
      %v4527 = vmul.f32 %v3915, %v3915
      %v4528 = vmul.f32 %v3916, %v3916
      %v4529 = vmul.f32 %v3917, %v3917
      %v4530 = vmul.f32 %v3918, %v3918
      %v4531 = vmul.f32 %v3919, %v3919
      %v4532 = vmul.f32 %v3920, %v3920
      %v4533 = vmul.f32 %v3921, %v3921
      %v4534 = vmul.f32 %v3922, %v3922
      %v4535 = vmul.f32 %v3923, %v3923
      %v4536 = vmul.f32 %v3924, %v3924
      %v4537 = vmul.f32 %v3925, %v3925
      %v4538 = vmul.f32 %v3926, %v3926
      %v4539 = vmul.f32 %v3927, %v3927
      %v4540 = vmul.f32 %v3928, %v3928
      %v4541 = vmul.f32 %v3929, %v3929
      %v4542 = vmul.f32 %v3930, %v3930
      %v4543 = vmul.f32 %v3931, %v3931
      %v4544 = vmul.f32 %v3932, %v3932
      %v4545 = vmul.f32 %v3933, %v3933
      %v4546 = vmul.f32 %v3934, %v3934
      %v4547 = vmul.f32 %v3935, %v3935
      %v4548 = vmul.f32 %v3936, %v3936
      %v4549 = vmul.f32 %v3937, %v3937
      %v4550 = vmul.f32 %v3938, %v3938
      %v4551 = vmul.f32 %v3939, %v3939
      %v4552 = vmul.f32 %v3940, %v3940
      %v4553 = vmul.f32 %v3941, %v3941
      %v4554 = vmul.f32 %v3942, %v3942
      %v4555 = vmul.f32 %v3943, %v3943
      %v4556 = vmul.f32 %v3944, %v3944
      %v4557 = vmul.f32 %v3945, %v3945
      %v4558 = vmul.f32 %v3946, %v3946
      %v4559 = vmul.f32 %v3947, %v3947
      %v4560 = vmul.f32 %v3948, %v3948
      %v4561 = vmul.f32 %v3949, %v3949
      %v4562 = vmul.f32 %v3950, %v3950
      %v4563 = vmul.f32 %v3951, %v3951
      %v4564 = vmul.f32 %v3952, %v3952
      %v4565 = vmul.f32 %v3953, %v3953
      %v4566 = vmul.f32 %v3954, %v3954
      %v4567 = vmul.f32 %v3955, %v3955
      %v4568 = vmul.f32 %v3956, %v3956
      %v4569 = vmul.f32 %v3957, %v3957
      %v4570 = vmul.f32 %v3958, %v3958
      %v4571 = vmul.f32 %v3959, %v3959
      %v4572 = vmul.f32 %v3960, %v3960
      %v4573 = vmul.f32 %v3961, %v3961
      %v4574 = vmul.f32 %v3962, %v3962
      %v4575 = vmul.f32 %v3963, %v3963
      %v4576 = vmul.f32 %v3964, %v3964
      %4577 = vmatprep.subr.mxu0 0.0
      %4578 = vmatpush1.msra.mxu0 %v3965
      %4579 = vmatprep.subr.mxu0 0.0
      %4580 = vmatpush1.msra.mxu0 %v3966
      %4581 = vmatprep.subr.mxu0 0.0
      %4582 = vmatpush1.msra.mxu0 %v3967
      %4583 = vmatprep.subr.mxu0 0.0
      %4584 = vmatpush1.msra.mxu0 %v3968
      %4585 = vmatprep.subr.mxu0 0.0
      %4586 = vmatpush1.msra.mxu0 %v3969
      %4587 = vmatprep.subr.mxu0 0.0
      %4588 = vmatpush1.msra.mxu0 %v3970
      %4589 = vmatprep.subr.mxu0 0.0
      %4590 = vmatpush1.msra.mxu0 %v3971
      %4591 = vmatprep.subr.mxu0 0.0
      %4592 = vmatpush1.msra.mxu0 %v3972
      %4593 = vmatprep.subr.mxu0 0.0
      %4594 = vmatpush1.msra.mxu0 %v3973
      %4595 = vmatprep.subr.mxu0 0.0
      %4596 = vmatpush1.msra.mxu0 %v3974
      %4597 = vmatprep.subr.mxu0 0.0
      %4598 = vmatpush1.msra.mxu0 %v3975
      %4599 = vmatprep.subr.mxu0 0.0
      %4600 = vmatpush1.msra.mxu0 %v3976
      %4601 = vmatprep.subr.mxu0 0.0
      %4602 = vmatpush1.msra.mxu0 %v3977
      %4603 = vmatprep.subr.mxu0 0.0
      %4604 = vmatpush1.msra.mxu0 %v3978
      %4605 = vmatprep.subr.mxu0 0.0
      %4606 = vmatpush1.msra.mxu0 %v3979
      %4607 = vmatprep.subr.mxu0 0.0
      %4608 = vmatpush1.msra.mxu0 %v3980
      %4609 = vmatprep.subr.mxu0 0.0
      %4610 = vmatpush1.msra.mxu0 %v3981
      %4611 = vmatprep.subr.mxu0 0.0
      %4612 = vmatpush1.msra.mxu0 %v3982
      %4613 = vmatprep.subr.mxu0 0.0
      %4614 = vmatpush1.msra.mxu0 %v3983
      %4615 = vmatprep.subr.mxu0 0.0
      %4616 = vmatpush1.msra.mxu0 %v3984
      %4617 = vmatprep.subr.mxu0 0.0
      %4618 = vmatpush1.msra.mxu0 %v3985
      %4619 = vmatprep.subr.mxu0 0.0
      %4620 = vmatpush1.msra.mxu0 %v3986
      %4621 = vmatprep.subr.mxu0 0.0
      %4622 = vmatpush1.msra.mxu0 %v3987
      %4623 = vmatprep.subr.mxu0 0.0
      %4624 = vmatpush1.msra.mxu0 %v3988
      %4625 = vmatprep.subr.mxu0 0.0
      %4626 = vmatpush1.msra.mxu0 %v3989
      %4627 = vmatprep.subr.mxu0 0.0
      %4628 = vmatpush1.msra.mxu0 %v3990
      %4629 = vmatprep.subr.mxu0 0.0
      %4630 = vmatpush1.msra.mxu0 %v3991
      %4631 = vmatprep.subr.mxu0 0.0
      %4632 = vmatpush1.msra.mxu0 %v3992
      %4633 = vmatprep.subr.mxu0 0.0
      %4634 = vmatpush1.msra.mxu0 %v3993
      %4635 = vmatprep.subr.mxu0 0.0
      %4636 = vmatpush1.msra.mxu0 %v3994
      %4637 = vmatprep.subr.mxu0 0.0
      %4638 = vmatpush1.msra.mxu0 %v3995
      %4639 = vmatprep.subr.mxu0 0.0
      %4640 = vmatpush1.msra.mxu0 %v3996
      %4641 = vmatprep.mubr.f32.mxu0 %v4514
      %4642 = vmatmul.mubr.f32.gmra.mrb[0].mxu0 %v4513
      %v4643 = vpop.f32.mrb[0].mxu0
      %v4644 = vadd.f32 0.0, %v4643
      %v4645 = vpop.f32.mrb[0].mxu0
      %4646 = vmatprep.mubr.f32.mxu0 %v4522
      %4647 = vmatmul.mubr.f32.gmra.mrb[0].mxu0 %v4521
      %v4648 = vpop.f32.mrb[0].mxu0
      %v4649 = vadd.f32 0.0, %v4648
      %v4650 = vpop.f32.mrb[0].mxu0
      %4651 = vmatprep.mubr.f32.mxu0 %v4530
      %4652 = vmatmul.mubr.f32.gmra.mrb[0].mxu0 %v4529
      %v4653 = vpop.f32.mrb[0].mxu0
      %v4654 = vadd.f32 0.0, %v4653
      %v4655 = vpop.f32.mrb[0].mxu0
      %4656 = vmatprep.mubr.f32.mxu0 %v4538
      %4657 = vmatmul.mubr.f32.gmra.mrb[0].mxu0 %v4537
      %v4658 = vpop.f32.mrb[0].mxu0
      %v4659 = vadd.f32 0.0, %v4658
      %v4660 = vpop.f32.mrb[0].mxu0
      %4661 = vmatprep.mubr.f32.mxu0 %v4546
      %4662 = vmatmul.mubr.f32.gmra.mrb[0].mxu0 %v4545
      %v4663 = vpop.f32.mrb[0].mxu0
      %v4664 = vadd.f32 0.0, %v4663
      %v4665 = vpop.f32.mrb[0].mxu0
      %4666 = vmatprep.mubr.f32.mxu0 %v4554
      %4667 = vmatmul.mubr.f32.gmra.mrb[0].mxu0 %v4553
      %v4668 = vpop.f32.mrb[0].mxu0
      %v4669 = vadd.f32 0.0, %v4668
      %v4670 = vpop.f32.mrb[0].mxu0
      %4671 = vmatprep.mubr.f32.mxu0 %v4562
      %4672 = vmatmul.mubr.f32.gmra.mrb[0].mxu0 %v4561
      %v4673 = vpop.f32.mrb[0].mxu0
      %v4674 = vadd.f32 0.0, %v4673
      %v4675 = vpop.f32.mrb[0].mxu0
      %4676 = vmatprep.mubr.f32.mxu0 %v4570
      %4677 = vmatmul.mubr.f32.gmra.mrb[0].mxu0 %v4569
      %v4678 = vpop.f32.mrb[0].mxu0
      %v4679 = vadd.f32 0.0, %v4678
      %v4680 = vpop.f32.mrb[0].mxu0
      %4681 = vdwg.mxu0
      %4682 = vmatprep.subr.mxu0 0.0
      %4683 = vmatpush1.msra.mxu0 %v3997
      %4684 = vmatprep.subr.mxu0 0.0
      %4685 = vmatpush1.msra.mxu0 %v3998
      %4686 = vmatprep.subr.mxu0 0.0
      %4687 = vmatpush1.msra.mxu0 %v3999
      %4688 = vmatprep.subr.mxu0 0.0
      %4689 = vmatpush1.msra.mxu0 %v4000
      %4690 = vmatprep.subr.mxu0 0.0
      %4691 = vmatpush1.msra.mxu0 %v4001
      %4692 = vmatprep.subr.mxu0 0.0
      %4693 = vmatpush1.msra.mxu0 %v4002
      %4694 = vmatprep.subr.mxu0 0.0
      %4695 = vmatpush1.msra.mxu0 %v4003
      %4696 = vmatprep.subr.mxu0 0.0
      %4697 = vmatpush1.msra.mxu0 %v4004
      %4698 = vmatprep.subr.mxu0 0.0
      %4699 = vmatpush1.msra.mxu0 %v4005
      %4700 = vmatprep.subr.mxu0 0.0
      %4701 = vmatpush1.msra.mxu0 %v4006
      %4702 = vmatprep.subr.mxu0 0.0
      %4703 = vmatpush1.msra.mxu0 %v4007
      %4704 = vmatprep.subr.mxu0 0.0
      %4705 = vmatpush1.msra.mxu0 %v4008
      %4706 = vmatprep.subr.mxu0 0.0
      %4707 = vmatpush1.msra.mxu0 %v4009
      %4708 = vmatprep.subr.mxu0 0.0
      %4709 = vmatpush1.msra.mxu0 %v4010
      %4710 = vmatprep.subr.mxu0 0.0
      %4711 = vmatpush1.msra.mxu0 %v4011
      %4712 = vmatprep.subr.mxu0 0.0
      %4713 = vmatpush1.msra.mxu0 %v4012
      %4714 = vmatprep.subr.mxu0 0.0
      %4715 = vmatpush1.msra.mxu0 %v4013
      %4716 = vmatprep.subr.mxu0 0.0
      %4717 = vmatpush1.msra.mxu0 %v4014
      %4718 = vmatprep.subr.mxu0 0.0
      %4719 = vmatpush1.msra.mxu0 %v4015
      %4720 = vmatprep.subr.mxu0 0.0
      %4721 = vmatpush1.msra.mxu0 %v4016
      %4722 = vmatprep.subr.mxu0 0.0
      %4723 = vmatpush1.msra.mxu0 %v4017
      %4724 = vmatprep.subr.mxu0 0.0
      %4725 = vmatpush1.msra.mxu0 %v4018
      %4726 = vmatprep.subr.mxu0 0.0
      %4727 = vmatpush1.msra.mxu0 %v4019
      %4728 = vmatprep.subr.mxu0 0.0
      %4729 = vmatpush1.msra.mxu0 %v4020
      %4730 = vmatprep.subr.mxu0 0.0
      %4731 = vmatpush1.msra.mxu0 %v4021
      %4732 = vmatprep.subr.mxu0 0.0
      %4733 = vmatpush1.msra.mxu0 %v4022
      %4734 = vmatprep.subr.mxu0 0.0
      %4735 = vmatpush1.msra.mxu0 %v4023
      %4736 = vmatprep.subr.mxu0 0.0
      %4737 = vmatpush1.msra.mxu0 %v4024
      %4738 = vmatprep.subr.mxu0 0.0
      %4739 = vmatpush1.msra.mxu0 %v4025
      %4740 = vmatprep.subr.mxu0 0.0
      %4741 = vmatpush1.msra.mxu0 %v4026
      %4742 = vmatprep.subr.mxu0 0.0
      %4743 = vmatpush1.msra.mxu0 %v4027
      %4744 = vmatprep.subr.mxu0 0.0
      %4745 = vmatpush1.msra.mxu0 %v4028
      %4746 = vmatprep.mubr.f32.mxu0 %v4516
      %4747 = vmatmul.mubr.f32.gmra.mrb[0].mxu0 %v4515
      %v4748 = vpop.f32.mrb[0].mxu0
      %v4749 = vadd.f32 %v4644, %v4748
      %v4750 = vpop.f32.mrb[0].mxu0
      %4751 = vmatprep.mubr.f32.mxu0 %v4524
      %4752 = vmatmul.mubr.f32.gmra.mrb[0].mxu0 %v4523
      %v4753 = vpop.f32.mrb[0].mxu0
      %v4754 = vadd.f32 %v4649, %v4753
      %v4755 = vpop.f32.mrb[0].mxu0
      %4756 = vmatprep.mubr.f32.mxu0 %v4532
      %4757 = vmatmul.mubr.f32.gmra.mrb[0].mxu0 %v4531
      %v4758 = vpop.f32.mrb[0].mxu0
      %v4759 = vadd.f32 %v4654, %v4758
      %v4760 = vpop.f32.mrb[0].mxu0
      %4761 = vmatprep.mubr.f32.mxu0 %v4540
      %4762 = vmatmul.mubr.f32.gmra.mrb[0].mxu0 %v4539
      %v4763 = vpop.f32.mrb[0].mxu0
      %v4764 = vadd.f32 %v4659, %v4763
      %v4765 = vpop.f32.mrb[0].mxu0
      %4766 = vmatprep.mubr.f32.mxu0 %v4548
      %4767 = vmatmul.mubr.f32.gmra.mrb[0].mxu0 %v4547
      %v4768 = vpop.f32.mrb[0].mxu0
      %v4769 = vadd.f32 %v4664, %v4768
      %v4770 = vpop.f32.mrb[0].mxu0
      %4771 = vmatprep.mubr.f32.mxu0 %v4556
      %4772 = vmatmul.mubr.f32.gmra.mrb[0].mxu0 %v4555
      %v4773 = vpop.f32.mrb[0].mxu0
      %v4774 = vadd.f32 %v4669, %v4773
      %v4775 = vpop.f32.mrb[0].mxu0
      %4776 = vmatprep.mubr.f32.mxu0 %v4564
      %4777 = vmatmul.mubr.f32.gmra.mrb[0].mxu0 %v4563
      %v4778 = vpop.f32.mrb[0].mxu0
      %v4779 = vadd.f32 %v4674, %v4778
      %v4780 = vpop.f32.mrb[0].mxu0
      %4781 = vmatprep.mubr.f32.mxu0 %v4572
      %4782 = vmatmul.mubr.f32.gmra.mrb[0].mxu0 %v4571
      %v4783 = vpop.f32.mrb[0].mxu0
      %v4784 = vadd.f32 %v4679, %v4783
      %v4785 = vpop.f32.mrb[0].mxu0
      %4786 = vdwg.mxu0
      %4787 = vmatprep.subr.mxu0 0.0
      %4788 = vmatpush1.msra.mxu0 %v4029
      %4789 = vmatprep.subr.mxu0 0.0
      %4790 = vmatpush1.msra.mxu0 %v4030
      %4791 = vmatprep.subr.mxu0 0.0
      %4792 = vmatpush1.msra.mxu0 %v4031
      %4793 = vmatprep.subr.mxu0 0.0
      %4794 = vmatpush1.msra.mxu0 %v4032
      %4795 = vmatprep.subr.mxu0 0.0
      %4796 = vmatpush1.msra.mxu0 %v4033
      %4797 = vmatprep.subr.mxu0 0.0
      %4798 = vmatpush1.msra.mxu0 %v4034
      %4799 = vmatprep.subr.mxu0 0.0
      %4800 = vmatpush1.msra.mxu0 %v4035
      %4801 = vmatprep.subr.mxu0 0.0
      %4802 = vmatpush1.msra.mxu0 %v4036
      %4803 = vmatprep.subr.mxu0 0.0
      %4804 = vmatpush1.msra.mxu0 %v4037
      %4805 = vmatprep.subr.mxu0 0.0
      %4806 = vmatpush1.msra.mxu0 %v4038
      %4807 = vmatprep.subr.mxu0 0.0
      %4808 = vmatpush1.msra.mxu0 %v4039
      %4809 = vmatprep.subr.mxu0 0.0
      %4810 = vmatpush1.msra.mxu0 %v4040
      %4811 = vmatprep.subr.mxu0 0.0
      %4812 = vmatpush1.msra.mxu0 %v4041
      %4813 = vmatprep.subr.mxu0 0.0
      %4814 = vmatpush1.msra.mxu0 %v4042
      %4815 = vmatprep.subr.mxu0 0.0
      %4816 = vmatpush1.msra.mxu0 %v4043
      %4817 = vmatprep.subr.mxu0 0.0
      %4818 = vmatpush1.msra.mxu0 %v4044
      %4819 = vmatprep.subr.mxu0 0.0
      %4820 = vmatpush1.msra.mxu0 %v4045
      %4821 = vmatprep.subr.mxu0 0.0
      %4822 = vmatpush1.msra.mxu0 %v4046
      %4823 = vmatprep.subr.mxu0 0.0
      %4824 = vmatpush1.msra.mxu0 %v4047
      %4825 = vmatprep.subr.mxu0 0.0
      %4826 = vmatpush1.msra.mxu0 %v4048
      %4827 = vmatprep.subr.mxu0 0.0
      %4828 = vmatpush1.msra.mxu0 %v4049
      %4829 = vmatprep.subr.mxu0 0.0
      %4830 = vmatpush1.msra.mxu0 %v4050
      %4831 = vmatprep.subr.mxu0 0.0
      %4832 = vmatpush1.msra.mxu0 %v4051
      %4833 = vmatprep.subr.mxu0 0.0
      %4834 = vmatpush1.msra.mxu0 %v4052
      %4835 = vmatprep.subr.mxu0 0.0
      %4836 = vmatpush1.msra.mxu0 %v4053
      %4837 = vmatprep.subr.mxu0 0.0
      %4838 = vmatpush1.msra.mxu0 %v4054
      %4839 = vmatprep.subr.mxu0 0.0
      %4840 = vmatpush1.msra.mxu0 %v4055
      %4841 = vmatprep.subr.mxu0 0.0
      %4842 = vmatpush1.msra.mxu0 %v4056
      %4843 = vmatprep.subr.mxu0 0.0
      %4844 = vmatpush1.msra.mxu0 %v4057
      %4845 = vmatprep.subr.mxu0 0.0
      %4846 = vmatpush1.msra.mxu0 %v4058
      %4847 = vmatprep.subr.mxu0 0.0
      %4848 = vmatpush1.msra.mxu0 %v4059
      %4849 = vmatprep.subr.mxu0 0.0
      %4850 = vmatpush1.msra.mxu0 %v4060
      %4851 = vmatprep.mubr.f32.mxu0 %v4518
      %4852 = vmatmul.mubr.f32.gmra.mrb[0].mxu0 %v4517
      %v4853 = vpop.f32.mrb[0].mxu0
      %v4854 = vadd.f32 %v4749, %v4853
      %v4855 = vpop.f32.mrb[0].mxu0
      %4856 = vmatprep.mubr.f32.mxu0 %v4526
      %4857 = vmatmul.mubr.f32.gmra.mrb[0].mxu0 %v4525
      %v4858 = vpop.f32.mrb[0].mxu0
      %v4859 = vadd.f32 %v4754, %v4858
      %v4860 = vpop.f32.mrb[0].mxu0
      %4861 = vmatprep.mubr.f32.mxu0 %v4534
      %4862 = vmatmul.mubr.f32.gmra.mrb[0].mxu0 %v4533
      %v4863 = vpop.f32.mrb[0].mxu0
      %v4864 = vadd.f32 %v4759, %v4863
      %v4865 = vpop.f32.mrb[0].mxu0
      %4866 = vmatprep.mubr.f32.mxu0 %v4542
      %4867 = vmatmul.mubr.f32.gmra.mrb[0].mxu0 %v4541
      %v4868 = vpop.f32.mrb[0].mxu0
      %v4869 = vadd.f32 %v4764, %v4868
      %v4870 = vpop.f32.mrb[0].mxu0
      %4871 = vmatprep.mubr.f32.mxu0 %v4550
      %4872 = vmatmul.mubr.f32.gmra.mrb[0].mxu0 %v4549
      %v4873 = vpop.f32.mrb[0].mxu0
      %v4874 = vadd.f32 %v4769, %v4873
      %v4875 = vpop.f32.mrb[0].mxu0
      %4876 = vmatprep.mubr.f32.mxu0 %v4558
      %4877 = vmatmul.mubr.f32.gmra.mrb[0].mxu0 %v4557
      %v4878 = vpop.f32.mrb[0].mxu0
      %v4879 = vadd.f32 %v4774, %v4878
      %v4880 = vpop.f32.mrb[0].mxu0
      %4881 = vmatprep.mubr.f32.mxu0 %v4566
      %4882 = vmatmul.mubr.f32.gmra.mrb[0].mxu0 %v4565
      %v4883 = vpop.f32.mrb[0].mxu0
      %v4884 = vadd.f32 %v4779, %v4883
      %v4885 = vpop.f32.mrb[0].mxu0
      %4886 = vmatprep.mubr.f32.mxu0 %v4574
      %4887 = vmatmul.mubr.f32.gmra.mrb[0].mxu0 %v4573
      %v4888 = vpop.f32.mrb[0].mxu0
      %v4889 = vadd.f32 %v4784, %v4888
      %v4890 = vpop.f32.mrb[0].mxu0
      %4891 = vdwg.mxu0
      %4892 = vmatprep.subr.mxu0 0.0
      %4893 = vmatpush1.msra.mxu0 %v4061
      %4894 = vmatprep.subr.mxu0 0.0
      %4895 = vmatpush1.msra.mxu0 %v4062
      %4896 = vmatprep.subr.mxu0 0.0
      %4897 = vmatpush1.msra.mxu0 %v4063
      %4898 = vmatprep.subr.mxu0 0.0
      %4899 = vmatpush1.msra.mxu0 %v4064
      %4900 = vmatprep.subr.mxu0 0.0
      %4901 = vmatpush1.msra.mxu0 %v4065
      %4902 = vmatprep.subr.mxu0 0.0
      %4903 = vmatpush1.msra.mxu0 %v4066
      %4904 = vmatprep.subr.mxu0 0.0
      %4905 = vmatpush1.msra.mxu0 %v4067
      %4906 = vmatprep.subr.mxu0 0.0
      %4907 = vmatpush1.msra.mxu0 %v4068
      %4908 = vmatprep.subr.mxu0 0.0
      %4909 = vmatpush1.msra.mxu0 %v4069
      %4910 = vmatprep.subr.mxu0 0.0
      %4911 = vmatpush1.msra.mxu0 %v4070
      %4912 = vmatprep.subr.mxu0 0.0
      %4913 = vmatpush1.msra.mxu0 %v4071
      %4914 = vmatprep.subr.mxu0 0.0
      %4915 = vmatpush1.msra.mxu0 %v4072
      %4916 = vmatprep.subr.mxu0 0.0
      %4917 = vmatpush1.msra.mxu0 %v4073
      %4918 = vmatprep.subr.mxu0 0.0
      %4919 = vmatpush1.msra.mxu0 %v4074
      %4920 = vmatprep.subr.mxu0 0.0
      %4921 = vmatpush1.msra.mxu0 %v4075
      %4922 = vmatprep.subr.mxu0 0.0
      %4923 = vmatpush1.msra.mxu0 %v4076
      %4924 = vmatprep.subr.mxu0 0.0
      %4925 = vmatpush1.msra.mxu0 %v4077
      %4926 = vmatprep.subr.mxu0 0.0
      %4927 = vmatpush1.msra.mxu0 %v4078
      %4928 = vmatprep.subr.mxu0 0.0
      %4929 = vmatpush1.msra.mxu0 %v4079
      %4930 = vmatprep.subr.mxu0 0.0
      %4931 = vmatpush1.msra.mxu0 %v4080
      %4932 = vmatprep.subr.mxu0 0.0
      %4933 = vmatpush1.msra.mxu0 %v4081
      %4934 = vmatprep.subr.mxu0 0.0
      %4935 = vmatpush1.msra.mxu0 %v4082
      %4936 = vmatprep.subr.mxu0 0.0
      %4937 = vmatpush1.msra.mxu0 %v4083
      %4938 = vmatprep.subr.mxu0 0.0
      %4939 = vmatpush1.msra.mxu0 %v4084
      %4940 = vmatprep.subr.mxu0 0.0
      %4941 = vmatpush1.msra.mxu0 %v4085
      %4942 = vmatprep.subr.mxu0 0.0
      %4943 = vmatpush1.msra.mxu0 %v4086
      %4944 = vmatprep.subr.mxu0 0.0
      %4945 = vmatpush1.msra.mxu0 %v4087
      %4946 = vmatprep.subr.mxu0 0.0
      %4947 = vmatpush1.msra.mxu0 %v4088
      %4948 = vmatprep.subr.mxu0 0.0
      %4949 = vmatpush1.msra.mxu0 %v4089
      %4950 = vmatprep.subr.mxu0 0.0
      %4951 = vmatpush1.msra.mxu0 %v4090
      %4952 = vmatprep.subr.mxu0 0.0
      %4953 = vmatpush1.msra.mxu0 %v4091
      %4954 = vmatprep.subr.mxu0 0.0
      %4955 = vmatpush1.msra.mxu0 %v4092
      %4956 = vmatprep.mubr.f32.mxu0 %v4520
      %4957 = vmatmul.mubr.f32.gmra.mrb[0].mxu0 %v4519
      %v4958 = vpop.f32.mrb[0].mxu0
      %v4959 = vadd.f32 %v4854, %v4958
      %v4960 = vpop.f32.mrb[0].mxu0
      %4961 = vmatprep.mubr.f32.mxu0 %v4528
      %4962 = vmatmul.mubr.f32.gmra.mrb[0].mxu0 %v4527
      %v4963 = vpop.f32.mrb[0].mxu0
      %v4964 = vadd.f32 %v4859, %v4963
      %v4965 = vpop.f32.mrb[0].mxu0
      %4966 = vmatprep.mubr.f32.mxu0 %v4536
      %4967 = vmatmul.mubr.f32.gmra.mrb[0].mxu0 %v4535
      %v4968 = vpop.f32.mrb[0].mxu0
      %v4969 = vadd.f32 %v4864, %v4968
      %v4970 = vpop.f32.mrb[0].mxu0
      %4971 = vmatprep.mubr.f32.mxu0 %v4544
      %4972 = vmatmul.mubr.f32.gmra.mrb[0].mxu0 %v4543
      %v4973 = vpop.f32.mrb[0].mxu0
      %v4974 = vadd.f32 %v4869, %v4973
      %v4975 = vpop.f32.mrb[0].mxu0
      %4976 = vmatprep.mubr.f32.mxu0 %v4552
      %4977 = vmatmul.mubr.f32.gmra.mrb[0].mxu0 %v4551
      %v4978 = vpop.f32.mrb[0].mxu0
      %v4979 = vadd.f32 %v4874, %v4978
      %v4980 = vpop.f32.mrb[0].mxu0
      %4981 = vmatprep.mubr.f32.mxu0 %v4560
      %4982 = vmatmul.mubr.f32.gmra.mrb[0].mxu0 %v4559
      %v4983 = vpop.f32.mrb[0].mxu0
      %v4984 = vadd.f32 %v4879, %v4983
      %v4985 = vpop.f32.mrb[0].mxu0
      %4986 = vmatprep.mubr.f32.mxu0 %v4568
      %4987 = vmatmul.mubr.f32.gmra.mrb[0].mxu0 %v4567
      %v4988 = vpop.f32.mrb[0].mxu0
      %v4989 = vadd.f32 %v4884, %v4988
      %v4990 = vpop.f32.mrb[0].mxu0
      %4991 = vmatprep.mubr.f32.mxu0 %v4576
      %4992 = vmatmul.mubr.f32.gmra.mrb[0].mxu0 %v4575
      %v4993 = vpop.f32.mrb[0].mxu0
      %v4994 = vadd.f32 %v4889, %v4993
      %v4995 = vpop.f32.mrb[0].mxu0
      %4996 = vdwg.mxu0
      %v4997 = vld [vmem:[%s12] sm:$0xff]
      %v4998 = vld [vmem:[%s12 + $0x8] sm:$0xff]
      %v4999 = vld [vmem:[%s12 + $0x10] sm:$0xff]
      %v5000 = vld [vmem:[%s12 + $0x18] sm:$0xff]
      %v5001 = vld [vmem:[%s12 + $0x20] sm:$0xff]
      %v5002 = vld [vmem:[%s12 + $0x28] sm:$0xff]
      %v5003 = vld [vmem:[%s12 + $0x30] sm:$0xff]
      %v5004 = vld [vmem:[%s12 + $0x38] sm:$0xff]
      %vm5005 = vcmask 523264
      %v5007 = vsel %vm5005, %v4997, 0
      %v5010 = vsel %vm5005, %v4998, 0
      %v5013 = vsel %vm5005, %v4999, 0
      %v5016 = vsel %vm5005, %v5000, 0
      %v5019 = vsel %vm5005, %v5001, 0
      %v5022 = vsel %vm5005, %v5002, 0
      %v5025 = vsel %vm5005, %v5003, 0
      %v5028 = vsel %vm5005, %v5004, 0
      %5030 = vmatprep.subr.mxu0 0.0
      %5031 = vmatpush1.msra.mxu0 %v4475
      %5032 = vmatprep.subr.mxu0 0.0
      %5033 = vmatpush1.msra.mxu0 %v4480
      %5034 = vmatprep.subr.mxu0 0.0
      %5035 = vmatpush1.msra.mxu0 %v4485
      %5036 = vmatprep.subr.mxu0 0.0
      %5037 = vmatpush1.msra.mxu0 %v4490
      %5038 = vmatprep.subr.mxu0 0.0
      %5039 = vmatpush1.msra.mxu0 %v4495
      %5040 = vmatprep.subr.mxu0 0.0
      %5041 = vmatpush1.msra.mxu0 %v4500
      %5042 = vmatprep.subr.mxu0 0.0
      %5043 = vmatpush1.msra.mxu0 %v4505
      %5044 = vmatprep.subr.mxu0 0.0
      %5045 = vmatpush1.msra.mxu0 %v4510
      %5046 = vmatprep.subr.mxu0 0.0
      %5047 = vmatpush1.msra.mxu0 0.0
      %5048 = vmatprep.subr.mxu0 0.0
      %5049 = vmatpush1.msra.mxu0 0.0
      %5050 = vmatprep.subr.mxu0 0.0
      %5051 = vmatpush1.msra.mxu0 0.0
      %5052 = vmatprep.subr.mxu0 0.0
      %5053 = vmatpush1.msra.mxu0 0.0
      %5054 = vmatprep.subr.mxu0 0.0
      %5055 = vmatpush1.msra.mxu0 0.0
      %5056 = vmatprep.subr.mxu0 0.0
      %5057 = vmatpush1.msra.mxu0 0.0
      %5058 = vmatprep.subr.mxu0 0.0
      %5059 = vmatpush1.msra.mxu0 0.0
      %5060 = vmatprep.subr.mxu0 0.0
      %5061 = vmatpush1.msra.mxu0 0.0
      %5062 = vmatprep.subr.mxu0 0.0
      %5063 = vmatpush1.msra.mxu0 0.0
      %5064 = vmatprep.subr.mxu0 0.0
      %5065 = vmatpush1.msra.mxu0 0.0
      %5066 = vmatprep.subr.mxu0 0.0
      %5067 = vmatpush1.msra.mxu0 0.0
      %5068 = vmatprep.subr.mxu0 0.0
      %5069 = vmatpush1.msra.mxu0 0.0
      %5070 = vmatprep.subr.mxu0 0.0
      %5071 = vmatpush1.msra.mxu0 0.0
      %5072 = vmatprep.subr.mxu0 0.0
      %5073 = vmatpush1.msra.mxu0 0.0
      %5074 = vmatprep.subr.mxu0 0.0
      %5075 = vmatpush1.msra.mxu0 0.0
      %5076 = vmatprep.subr.mxu0 0.0
      %5077 = vmatpush1.msra.mxu0 0.0
      %5078 = vmatprep.subr.mxu0 0.0
      %5079 = vmatpush1.msra.mxu0 0.0
      %5080 = vmatprep.subr.mxu0 0.0
      %5081 = vmatpush1.msra.mxu0 0.0
      %5082 = vmatprep.subr.mxu0 0.0
      %5083 = vmatpush1.msra.mxu0 0.0
      %5084 = vmatprep.subr.mxu0 0.0
      %5085 = vmatpush1.msra.mxu0 0.0
      %5086 = vmatprep.subr.mxu0 0.0
      %5087 = vmatpush1.msra.mxu0 0.0
      %5088 = vmatprep.subr.mxu0 0.0
      %5089 = vmatpush1.msra.mxu0 0.0
      %5090 = vmatprep.subr.mxu0 0.0
      %5091 = vmatpush1.msra.mxu0 0.0
      %5092 = vmatprep.subr.mxu0 0.0
      %5093 = vmatpush1.msra.mxu0 0.0
      %5094 = vmatprep.mubr.f32.mxu0 0.0
      %5095 = vmatmul.mubr.f32.gmra.mrb[0].mxu0 %v5007
      %v5096 = vpop.f32.mrb[0].mxu0
      %v5097 = vadd.f32 0.0, %v5096
      %v5098 = vpop.f32.mrb[0].mxu0
      %5099 = vmatprep.mubr.f32.mxu0 0.0
      %5100 = vmatmul.mubr.f32.gmra.mrb[0].mxu0 %v5010
      %v5101 = vpop.f32.mrb[0].mxu0
      %v5102 = vadd.f32 0.0, %v5101
      %v5103 = vpop.f32.mrb[0].mxu0
      %5104 = vmatprep.mubr.f32.mxu0 0.0
      %5105 = vmatmul.mubr.f32.gmra.mrb[0].mxu0 %v5013
      %v5106 = vpop.f32.mrb[0].mxu0
      %v5107 = vadd.f32 0.0, %v5106
      %v5108 = vpop.f32.mrb[0].mxu0
      %5109 = vmatprep.mubr.f32.mxu0 0.0
      %5110 = vmatmul.mubr.f32.gmra.mrb[0].mxu0 %v5016
      %v5111 = vpop.f32.mrb[0].mxu0
      %v5112 = vadd.f32 0.0, %v5111
      %v5113 = vpop.f32.mrb[0].mxu0
      %5114 = vmatprep.mubr.f32.mxu0 0.0
      %5115 = vmatmul.mubr.f32.gmra.mrb[0].mxu0 %v5019
      %v5116 = vpop.f32.mrb[0].mxu0
      %v5117 = vadd.f32 0.0, %v5116
      %v5118 = vpop.f32.mrb[0].mxu0
      %5119 = vmatprep.mubr.f32.mxu0 0.0
      %5120 = vmatmul.mubr.f32.gmra.mrb[0].mxu0 %v5022
      %v5121 = vpop.f32.mrb[0].mxu0
      %v5122 = vadd.f32 0.0, %v5121
      %v5123 = vpop.f32.mrb[0].mxu0
      %5124 = vmatprep.mubr.f32.mxu0 0.0
      %5125 = vmatmul.mubr.f32.gmra.mrb[0].mxu0 %v5025
      %v5126 = vpop.f32.mrb[0].mxu0
      %v5127 = vadd.f32 0.0, %v5126
      %v5128 = vpop.f32.mrb[0].mxu0
      %5129 = vmatprep.mubr.f32.mxu0 0.0
      %5130 = vmatmul.mubr.f32.gmra.mrb[0].mxu0 %v5028
      %v5131 = vpop.f32.mrb[0].mxu0
      %v5132 = vadd.f32 0.0, %v5131
      %v5133 = vpop.f32.mrb[0].mxu0
      %5134 = vdwg.mxu0
      %5135 = vmatprep.subr.mxu0 0.0
      %5136 = vmatpush1.msra.mxu0 %v4959
      %5137 = vmatprep.subr.mxu0 0.0
      %5138 = vmatpush1.msra.mxu0 %v4964
      %5139 = vmatprep.subr.mxu0 0.0
      %5140 = vmatpush1.msra.mxu0 %v4969
      %5141 = vmatprep.subr.mxu0 0.0
      %5142 = vmatpush1.msra.mxu0 %v4974
      %5143 = vmatprep.subr.mxu0 0.0
      %5144 = vmatpush1.msra.mxu0 %v4979
      %5145 = vmatprep.subr.mxu0 0.0
      %5146 = vmatpush1.msra.mxu0 %v4984
      %5147 = vmatprep.subr.mxu0 0.0
      %5148 = vmatpush1.msra.mxu0 %v4989
      %5149 = vmatprep.subr.mxu0 0.0
      %5150 = vmatpush1.msra.mxu0 %v4994
      %5151 = vmatprep.subr.mxu0 0.0
      %5152 = vmatpush1.msra.mxu0 0.0
      %5153 = vmatprep.subr.mxu0 0.0
      %5154 = vmatpush1.msra.mxu0 0.0
      %5155 = vmatprep.subr.mxu0 0.0
      %5156 = vmatpush1.msra.mxu0 0.0
      %5157 = vmatprep.subr.mxu0 0.0
      %5158 = vmatpush1.msra.mxu0 0.0
      %5159 = vmatprep.subr.mxu0 0.0
      %5160 = vmatpush1.msra.mxu0 0.0
      %5161 = vmatprep.subr.mxu0 0.0
      %5162 = vmatpush1.msra.mxu0 0.0
      %5163 = vmatprep.subr.mxu0 0.0
      %5164 = vmatpush1.msra.mxu0 0.0
      %5165 = vmatprep.subr.mxu0 0.0
      %5166 = vmatpush1.msra.mxu0 0.0
      %5167 = vmatprep.subr.mxu0 0.0
      %5168 = vmatpush1.msra.mxu0 0.0
      %5169 = vmatprep.subr.mxu0 0.0
      %5170 = vmatpush1.msra.mxu0 0.0
      %5171 = vmatprep.subr.mxu0 0.0
      %5172 = vmatpush1.msra.mxu0 0.0
      %5173 = vmatprep.subr.mxu0 0.0
      %5174 = vmatpush1.msra.mxu0 0.0
      %5175 = vmatprep.subr.mxu0 0.0
      %5176 = vmatpush1.msra.mxu0 0.0
      %5177 = vmatprep.subr.mxu0 0.0
      %5178 = vmatpush1.msra.mxu0 0.0
      %5179 = vmatprep.subr.mxu0 0.0
      %5180 = vmatpush1.msra.mxu0 0.0
      %5181 = vmatprep.subr.mxu0 0.0
      %5182 = vmatpush1.msra.mxu0 0.0
      %5183 = vmatprep.subr.mxu0 0.0
      %5184 = vmatpush1.msra.mxu0 0.0
      %5185 = vmatprep.subr.mxu0 0.0
      %5186 = vmatpush1.msra.mxu0 0.0
      %5187 = vmatprep.subr.mxu0 0.0
      %5188 = vmatpush1.msra.mxu0 0.0
      %5189 = vmatprep.subr.mxu0 0.0
      %5190 = vmatpush1.msra.mxu0 0.0
      %5191 = vmatprep.subr.mxu0 0.0
      %5192 = vmatpush1.msra.mxu0 0.0
      %5193 = vmatprep.subr.mxu0 0.0
      %5194 = vmatpush1.msra.mxu0 0.0
      %5195 = vmatprep.subr.mxu0 0.0
      %5196 = vmatpush1.msra.mxu0 0.0
      %5197 = vmatprep.subr.mxu0 0.0
      %5198 = vmatpush1.msra.mxu0 0.0
      %5199 = vmatprep.mubr.f32.mxu0 0.0
      %5200 = vmatmul.mubr.f32.gmra.mrb[0].mxu0 %v5007
      %v5201 = vpop.f32.mrb[0].mxu0
      %v5202 = vadd.f32 0.0, %v5201
      %v5203 = vpop.f32.mrb[0].mxu0
      %5204 = vmatprep.mubr.f32.mxu0 0.0
      %5205 = vmatmul.mubr.f32.gmra.mrb[0].mxu0 %v5010
      %v5206 = vpop.f32.mrb[0].mxu0
      %v5207 = vadd.f32 0.0, %v5206
      %v5208 = vpop.f32.mrb[0].mxu0
      %5209 = vmatprep.mubr.f32.mxu0 0.0
      %5210 = vmatmul.mubr.f32.gmra.mrb[0].mxu0 %v5013
      %v5211 = vpop.f32.mrb[0].mxu0
      %v5212 = vadd.f32 0.0, %v5211
      %v5213 = vpop.f32.mrb[0].mxu0
      %5214 = vmatprep.mubr.f32.mxu0 0.0
      %5215 = vmatmul.mubr.f32.gmra.mrb[0].mxu0 %v5016
      %v5216 = vpop.f32.mrb[0].mxu0
      %v5217 = vadd.f32 0.0, %v5216
      %v5218 = vpop.f32.mrb[0].mxu0
      %5219 = vmatprep.mubr.f32.mxu0 0.0
      %5220 = vmatmul.mubr.f32.gmra.mrb[0].mxu0 %v5019
      %v5221 = vpop.f32.mrb[0].mxu0
      %v5222 = vadd.f32 0.0, %v5221
      %v5223 = vpop.f32.mrb[0].mxu0
      %5224 = vmatprep.mubr.f32.mxu0 0.0
      %5225 = vmatmul.mubr.f32.gmra.mrb[0].mxu0 %v5022
      %v5226 = vpop.f32.mrb[0].mxu0
      %v5227 = vadd.f32 0.0, %v5226
      %v5228 = vpop.f32.mrb[0].mxu0
      %5229 = vmatprep.mubr.f32.mxu0 0.0
      %5230 = vmatmul.mubr.f32.gmra.mrb[0].mxu0 %v5025
      %v5231 = vpop.f32.mrb[0].mxu0
      %v5232 = vadd.f32 0.0, %v5231
      %v5233 = vpop.f32.mrb[0].mxu0
      %5234 = vmatprep.mubr.f32.mxu0 0.0
      %5235 = vmatmul.mubr.f32.gmra.mrb[0].mxu0 %v5028
      %v5236 = vpop.f32.mrb[0].mxu0
      %v5237 = vadd.f32 0.0, %v5236
      %v5238 = vpop.f32.mrb[0].mxu0
      %5239 = vdwg.mxu0
      %v5240 = vmul.f32 %v5097, 0.001953125
      %v5241 = vmul.f32 %v5102, 0.001953125
      %v5242 = vmul.f32 %v5107, 0.001953125
      %v5243 = vmul.f32 %v5112, 0.001953125
      %v5244 = vmul.f32 %v5117, 0.001953125
      %v5245 = vmul.f32 %v5122, 0.001953125
      %v5246 = vmul.f32 %v5127, 0.001953125
      %v5247 = vmul.f32 %v5132, 0.001953125
      %v5248 = vmul.f32 %v5202, 0.001953125
      %v5249 = vmul.f32 %v5207, 0.001953125
      %v5250 = vmul.f32 %v5212, 0.001953125
      %v5251 = vmul.f32 %v5217, 0.001953125
      %v5252 = vmul.f32 %v5222, 0.001953125
      %v5253 = vmul.f32 %v5227, 0.001953125
      %v5254 = vmul.f32 %v5232, 0.001953125
      %v5255 = vmul.f32 %v5237, 0.001953125
      %v5256 = vmul.f32 %v5240, %v5240
      %v5257 = vmul.f32 %v5241, %v5241
      %v5258 = vmul.f32 %v5242, %v5242
      %v5259 = vmul.f32 %v5243, %v5243
      %v5260 = vmul.f32 %v5244, %v5244
      %v5261 = vmul.f32 %v5245, %v5245
      %v5262 = vmul.f32 %v5246, %v5246
      %v5263 = vmul.f32 %v5247, %v5247
      %v5264 = vsub.f32 %v5248, %v5256
      %v5265 = vsub.f32 %v5249, %v5257
      %v5266 = vsub.f32 %v5250, %v5258
      %v5267 = vsub.f32 %v5251, %v5259
      %v5268 = vsub.f32 %v5252, %v5260
      %v5269 = vsub.f32 %v5253, %v5261
      %v5270 = vsub.f32 %v5254, %v5262
      %v5271 = vsub.f32 %v5255, %v5263
      %v5272 = vmax.f32 %v5264, 0.0
      %v5273 = vmax.f32 %v5265, 0.0
      %v5274 = vmax.f32 %v5266, 0.0
      %v5275 = vmax.f32 %v5267, 0.0
      %v5276 = vmax.f32 %v5268, 0.0
      %v5277 = vmax.f32 %v5269, 0.0
      %v5278 = vmax.f32 %v5270, 0.0
      %v5279 = vmax.f32 %v5271, 0.0
      %v5280 = vadd.f32 %v5272, 1e-05
      %v5281 = vadd.f32 %v5273, 1e-05
      %v5282 = vadd.f32 %v5274, 1e-05
      %v5283 = vadd.f32 %v5275, 1e-05
      %v5284 = vadd.f32 %v5276, 1e-05
      %v5285 = vadd.f32 %v5277, 1e-05
      %v5286 = vadd.f32 %v5278, 1e-05
      %v5287 = vadd.f32 %v5279, 1e-05
      %v5288 = vrsqrt.pop %v5280
      %v5289 = vrsqrt.pop %v5281
      %v5290 = vrsqrt.pop %v5282
      %v5291 = vrsqrt.pop %v5283
      %v5292 = vrsqrt.pop %v5284
      %v5293 = vrsqrt.pop %v5285
      %v5294 = vrsqrt.pop %v5286
      %v5295 = vrsqrt.pop %v5287
      %v5296 = vld [vmem:[%s9] sm:$0xff]
      %v5297 = vld [vmem:[%s9 + $0x8] sm:$0xff]
      %v5298 = vld [vmem:[%s9 + $0x10] sm:$0xff]
      %v5299 = vld [vmem:[%s9 + $0x18] sm:$0xff]
      %v5300 = vld [vmem:[%s9 + $0x20] sm:$0xff]
      %v5301 = vld [vmem:[%s9 + $0x28] sm:$0xff]
      %v5302 = vld [vmem:[%s9 + $0x30] sm:$0xff]
      %v5303 = vld [vmem:[%s9 + $0x38] sm:$0xff]
      %5305 = vset.pattern.permute.xlu0 0
      %5306 = vperm.xlu0 %5305, %v5296
      %v5307 = vpop.permute.xlu0 %5306
      %5310 = vset.pattern.permute.xlu0 0
      %5311 = vperm.xlu0 %5310, %v5297
      %v5312 = vpop.permute.xlu0 %5311
      %5315 = vset.pattern.permute.xlu0 0
      %5316 = vperm.xlu0 %5315, %v5298
      %v5317 = vpop.permute.xlu0 %5316
      %5320 = vset.pattern.permute.xlu0 0
      %5321 = vperm.xlu0 %5320, %v5299
      %v5322 = vpop.permute.xlu0 %5321
      %5325 = vset.pattern.permute.xlu0 0
      %5326 = vperm.xlu0 %5325, %v5300
      %v5327 = vpop.permute.xlu0 %5326
      %5330 = vset.pattern.permute.xlu0 0
      %5331 = vperm.xlu0 %5330, %v5301
      %v5332 = vpop.permute.xlu0 %5331
      %5335 = vset.pattern.permute.xlu0 0
      %5336 = vperm.xlu0 %5335, %v5302
      %v5337 = vpop.permute.xlu0 %5336
      %5340 = vset.pattern.permute.xlu0 0
      %5341 = vperm.xlu0 %5340, %v5303
      %v5342 = vpop.permute.xlu0 %5341
      %v5344 = vmul.f32 %v5307, %v5288
      %v5345 = vmul.f32 %v5312, %v5289
      %v5346 = vmul.f32 %v5317, %v5290
      %v5347 = vmul.f32 %v5322, %v5291
      %v5348 = vmul.f32 %v5327, %v5292
      %v5349 = vmul.f32 %v5332, %v5293
      %v5350 = vmul.f32 %v5337, %v5294
      %v5351 = vmul.f32 %v5342, %v5295
      %v5352 = vld [vmem:[%s10] sm:$0xff]
      %v5353 = vld [vmem:[%s10 + $0x8] sm:$0xff]
      %v5354 = vld [vmem:[%s10 + $0x10] sm:$0xff]
      %v5355 = vld [vmem:[%s10 + $0x18] sm:$0xff]
      %v5356 = vld [vmem:[%s10 + $0x20] sm:$0xff]
      %v5357 = vld [vmem:[%s10 + $0x28] sm:$0xff]
      %v5358 = vld [vmem:[%s10 + $0x30] sm:$0xff]
      %v5359 = vld [vmem:[%s10 + $0x38] sm:$0xff]
      %v5360 = vmul.f32 %v5240, %v5344
      %v5361 = vmul.f32 %v5241, %v5345
      %v5362 = vmul.f32 %v5242, %v5346
      %v5363 = vmul.f32 %v5243, %v5347
      %v5364 = vmul.f32 %v5244, %v5348
      %v5365 = vmul.f32 %v5245, %v5349
      %v5366 = vmul.f32 %v5246, %v5350
      %v5367 = vmul.f32 %v5247, %v5351
      %5369 = vset.pattern.permute.xlu0 0
      %5370 = vperm.xlu0 %5369, %v5352
      %v5371 = vpop.permute.xlu0 %5370
      %5374 = vset.pattern.permute.xlu0 0
      %5375 = vperm.xlu0 %5374, %v5353
      %v5376 = vpop.permute.xlu0 %5375
      %5379 = vset.pattern.permute.xlu0 0
      %5380 = vperm.xlu0 %5379, %v5354
      %v5381 = vpop.permute.xlu0 %5380
      %5384 = vset.pattern.permute.xlu0 0
      %5385 = vperm.xlu0 %5384, %v5355
      %v5386 = vpop.permute.xlu0 %5385
      %5389 = vset.pattern.permute.xlu0 0
      %5390 = vperm.xlu0 %5389, %v5356
      %v5391 = vpop.permute.xlu0 %5390
      %5394 = vset.pattern.permute.xlu0 0
      %5395 = vperm.xlu0 %5394, %v5357
      %v5396 = vpop.permute.xlu0 %5395
      %5399 = vset.pattern.permute.xlu0 0
      %5400 = vperm.xlu0 %5399, %v5358
      %v5401 = vpop.permute.xlu0 %5400
      %5404 = vset.pattern.permute.xlu0 0
      %5405 = vperm.xlu0 %5404, %v5359
      %v5406 = vpop.permute.xlu0 %5405
      %v5408 = vsub.f32 %v5371, %v5360
      %v5409 = vsub.f32 %v5376, %v5361
      %v5410 = vsub.f32 %v5381, %v5362
      %v5411 = vsub.f32 %v5386, %v5363
      %v5412 = vsub.f32 %v5391, %v5364
      %v5413 = vsub.f32 %v5396, %v5365
      %v5414 = vsub.f32 %v5401, %v5366
      %v5415 = vsub.f32 %v5406, %v5367
      %v5417 = vsel %vm3408, %v5344, 0
      %v5420 = vsel %vm3408, %v5345, 0
      %v5423 = vsel %vm3408, %v5346, 0
      %v5426 = vsel %vm3408, %v5347, 0
      %v5429 = vsel %vm3408, %v5348, 0
      %v5432 = vsel %vm3408, %v5349, 0
      %v5435 = vsel %vm3408, %v5350, 0
      %v5438 = vsel %vm3408, %v5351, 0
      %5440 = vmatprep.subr.mxu0 %v3435
      %5441 = vmatpush1.msra.mxu0 %v3433
      %5442 = vmatprep.subr.mxu0 0.0
      %5443 = vmatpush1.msra.mxu0 0.0
      %5444 = vmatprep.subr.mxu0 0.0
      %5445 = vmatpush1.msra.mxu0 0.0
      %5446 = vmatprep.subr.mxu0 0.0
      %5447 = vmatpush1.msra.mxu0 0.0
      %5448 = vmatprep.subr.mxu0 0.0
      %5449 = vmatpush1.msra.mxu0 0.0
      %5450 = vmatprep.subr.mxu0 0.0
      %5451 = vmatpush1.msra.mxu0 0.0
      %5452 = vmatprep.subr.mxu0 0.0
      %5453 = vmatpush1.msra.mxu0 0.0
      %5454 = vmatprep.subr.mxu0 0.0
      %5455 = vmatpush1.msra.mxu0 0.0
      %5456 = vmatprep.subr.mxu0 0.0
      %5457 = vmatpush1.msra.mxu0 0.0
      %5458 = vmatprep.subr.mxu0 0.0
      %5459 = vmatpush1.msra.mxu0 0.0
      %5460 = vmatprep.subr.mxu0 0.0
      %5461 = vmatpush1.msra.mxu0 0.0
      %5462 = vmatprep.subr.mxu0 0.0
      %5463 = vmatpush1.msra.mxu0 0.0
      %5464 = vmatprep.subr.mxu0 0.0
      %5465 = vmatpush1.msra.mxu0 0.0
      %5466 = vmatprep.subr.mxu0 0.0
      %5467 = vmatpush1.msra.mxu0 0.0
      %5468 = vmatprep.subr.mxu0 0.0
      %5469 = vmatpush1.msra.mxu0 0.0
      %5470 = vmatprep.subr.mxu0 0.0
      %5471 = vmatpush1.msra.mxu0 0.0
      %5472 = vmatprep.subr.mxu0 0.0
      %5473 = vmatpush1.msra.mxu0 0.0
      %5474 = vmatprep.subr.mxu0 0.0
      %5475 = vmatpush1.msra.mxu0 0.0
      %5476 = vmatprep.subr.mxu0 0.0
      %5477 = vmatpush1.msra.mxu0 0.0
      %5478 = vmatprep.subr.mxu0 0.0
      %5479 = vmatpush1.msra.mxu0 0.0
      %5480 = vmatprep.subr.mxu0 0.0
      %5481 = vmatpush1.msra.mxu0 0.0
      %5482 = vmatprep.subr.mxu0 0.0
      %5483 = vmatpush1.msra.mxu0 0.0
      %5484 = vmatprep.subr.mxu0 0.0
      %5485 = vmatpush1.msra.mxu0 0.0
      %5486 = vmatprep.subr.mxu0 0.0
      %5487 = vmatpush1.msra.mxu0 0.0
      %5488 = vmatprep.subr.mxu0 0.0
      %5489 = vmatpush1.msra.mxu0 0.0
      %5490 = vmatprep.subr.mxu0 0.0
      %5491 = vmatpush1.msra.mxu0 0.0
      %5492 = vmatprep.subr.mxu0 0.0
      %5493 = vmatpush1.msra.mxu0 0.0
      %5494 = vmatprep.subr.mxu0 0.0
      %5495 = vmatpush1.msra.mxu0 0.0
      %5496 = vmatprep.subr.mxu0 0.0
      %5497 = vmatpush1.msra.mxu0 0.0
      %5498 = vmatprep.subr.mxu0 0.0
      %5499 = vmatpush1.msra.mxu0 0.0
      %5500 = vmatprep.subr.mxu0 0.0
      %5501 = vmatpush1.msra.mxu0 0.0
      %5502 = vmatprep.subr.mxu0 0.0
      %5503 = vmatpush1.msra.mxu0 0.0
      %5504 = vmatprep.mubr.f32.mxu0 0.0
      %5505 = vmatmul.mubr.f32.gmra.mrb[0].mxu0 %v5417
      %v5506 = vpop.f32.mrb[0].mxu0
      %v5507 = vadd.f32 0.0, %v5506
      %v5508 = vpop.f32.mrb[0].mxu0
      %v5509 = vadd.f32 0.0, %v5508
      %5510 = vmatprep.mubr.f32.mxu0 0.0
      %5511 = vmatmul.mubr.f32.gmra.mrb[0].mxu0 %v5420
      %v5512 = vpop.f32.mrb[0].mxu0
      %v5513 = vadd.f32 0.0, %v5512
      %v5514 = vpop.f32.mrb[0].mxu0
      %v5515 = vadd.f32 0.0, %v5514
      %5516 = vmatprep.mubr.f32.mxu0 0.0
      %5517 = vmatmul.mubr.f32.gmra.mrb[0].mxu0 %v5423
      %v5518 = vpop.f32.mrb[0].mxu0
      %v5519 = vadd.f32 0.0, %v5518
      %v5520 = vpop.f32.mrb[0].mxu0
      %v5521 = vadd.f32 0.0, %v5520
      %5522 = vmatprep.mubr.f32.mxu0 0.0
      %5523 = vmatmul.mubr.f32.gmra.mrb[0].mxu0 %v5426
      %v5524 = vpop.f32.mrb[0].mxu0
      %v5525 = vadd.f32 0.0, %v5524
      %v5526 = vpop.f32.mrb[0].mxu0
      %v5527 = vadd.f32 0.0, %v5526
      %5528 = vmatprep.mubr.f32.mxu0 0.0
      %5529 = vmatmul.mubr.f32.gmra.mrb[0].mxu0 %v5429
      %v5530 = vpop.f32.mrb[0].mxu0
      %v5531 = vadd.f32 0.0, %v5530
      %v5532 = vpop.f32.mrb[0].mxu0
      %v5533 = vadd.f32 0.0, %v5532
      %5534 = vmatprep.mubr.f32.mxu0 0.0
      %5535 = vmatmul.mubr.f32.gmra.mrb[0].mxu0 %v5432
      %v5536 = vpop.f32.mrb[0].mxu0
      %v5537 = vadd.f32 0.0, %v5536
      %v5538 = vpop.f32.mrb[0].mxu0
      %v5539 = vadd.f32 0.0, %v5538
      %5540 = vmatprep.mubr.f32.mxu0 0.0
      %5541 = vmatmul.mubr.f32.gmra.mrb[0].mxu0 %v5435
      %v5542 = vpop.f32.mrb[0].mxu0
      %v5543 = vadd.f32 0.0, %v5542
      %v5544 = vpop.f32.mrb[0].mxu0
      %v5545 = vadd.f32 0.0, %v5544
      %5546 = vmatprep.mubr.f32.mxu0 0.0
      %5547 = vmatmul.mubr.f32.gmra.mrb[0].mxu0 %v5438
      %v5548 = vpop.f32.mrb[0].mxu0
      %v5549 = vadd.f32 0.0, %v5548
      %v5550 = vpop.f32.mrb[0].mxu0
      %v5551 = vadd.f32 0.0, %v5550
      %5552 = vdwg.mxu0
      %5553 = vmatprep.subr.mxu0 %v3439
      %5554 = vmatpush1.msra.mxu0 %v3437
      %5555 = vmatprep.subr.mxu0 0.0
      %5556 = vmatpush1.msra.mxu0 0.0
      %5557 = vmatprep.subr.mxu0 0.0
      %5558 = vmatpush1.msra.mxu0 0.0
      %5559 = vmatprep.subr.mxu0 0.0
      %5560 = vmatpush1.msra.mxu0 0.0
      %5561 = vmatprep.subr.mxu0 0.0
      %5562 = vmatpush1.msra.mxu0 0.0
      %5563 = vmatprep.subr.mxu0 0.0
      %5564 = vmatpush1.msra.mxu0 0.0
      %5565 = vmatprep.subr.mxu0 0.0
      %5566 = vmatpush1.msra.mxu0 0.0
      %5567 = vmatprep.subr.mxu0 0.0
      %5568 = vmatpush1.msra.mxu0 0.0
      %5569 = vmatprep.subr.mxu0 0.0
      %5570 = vmatpush1.msra.mxu0 0.0
      %5571 = vmatprep.subr.mxu0 0.0
      %5572 = vmatpush1.msra.mxu0 0.0
      %5573 = vmatprep.subr.mxu0 0.0
      %5574 = vmatpush1.msra.mxu0 0.0
      %5575 = vmatprep.subr.mxu0 0.0
      %5576 = vmatpush1.msra.mxu0 0.0
      %5577 = vmatprep.subr.mxu0 0.0
      %5578 = vmatpush1.msra.mxu0 0.0
      %5579 = vmatprep.subr.mxu0 0.0
      %5580 = vmatpush1.msra.mxu0 0.0
      %5581 = vmatprep.subr.mxu0 0.0
      %5582 = vmatpush1.msra.mxu0 0.0
      %5583 = vmatprep.subr.mxu0 0.0
      %5584 = vmatpush1.msra.mxu0 0.0
      %5585 = vmatprep.subr.mxu0 0.0
      %5586 = vmatpush1.msra.mxu0 0.0
      %5587 = vmatprep.subr.mxu0 0.0
      %5588 = vmatpush1.msra.mxu0 0.0
      %5589 = vmatprep.subr.mxu0 0.0
      %5590 = vmatpush1.msra.mxu0 0.0
      %5591 = vmatprep.subr.mxu0 0.0
      %5592 = vmatpush1.msra.mxu0 0.0
      %5593 = vmatprep.subr.mxu0 0.0
      %5594 = vmatpush1.msra.mxu0 0.0
      %5595 = vmatprep.subr.mxu0 0.0
      %5596 = vmatpush1.msra.mxu0 0.0
      %5597 = vmatprep.subr.mxu0 0.0
      %5598 = vmatpush1.msra.mxu0 0.0
      %5599 = vmatprep.subr.mxu0 0.0
      %5600 = vmatpush1.msra.mxu0 0.0
      %5601 = vmatprep.subr.mxu0 0.0
      %5602 = vmatpush1.msra.mxu0 0.0
      %5603 = vmatprep.subr.mxu0 0.0
      %5604 = vmatpush1.msra.mxu0 0.0
      %5605 = vmatprep.subr.mxu0 0.0
      %5606 = vmatpush1.msra.mxu0 0.0
      %5607 = vmatprep.subr.mxu0 0.0
      %5608 = vmatpush1.msra.mxu0 0.0
      %5609 = vmatprep.subr.mxu0 0.0
      %5610 = vmatpush1.msra.mxu0 0.0
      %5611 = vmatprep.subr.mxu0 0.0
      %5612 = vmatpush1.msra.mxu0 0.0
      %5613 = vmatprep.subr.mxu0 0.0
      %5614 = vmatpush1.msra.mxu0 0.0
      %5615 = vmatprep.subr.mxu0 0.0
      %5616 = vmatpush1.msra.mxu0 0.0
      %5617 = vmatprep.mubr.f32.mxu0 0.0
      %5618 = vmatmul.mubr.f32.gmra.mrb[0].mxu0 %v5417
      %v5619 = vpop.f32.mrb[0].mxu0
      %v5620 = vadd.f32 0.0, %v5619
      %v5621 = vpop.f32.mrb[0].mxu0
      %v5622 = vadd.f32 0.0, %v5621
      %5623 = vmatprep.mubr.f32.mxu0 0.0
      %5624 = vmatmul.mubr.f32.gmra.mrb[0].mxu0 %v5420
      %v5625 = vpop.f32.mrb[0].mxu0
      %v5626 = vadd.f32 0.0, %v5625
      %v5627 = vpop.f32.mrb[0].mxu0
      %v5628 = vadd.f32 0.0, %v5627
      %5629 = vmatprep.mubr.f32.mxu0 0.0
      %5630 = vmatmul.mubr.f32.gmra.mrb[0].mxu0 %v5423
      %v5631 = vpop.f32.mrb[0].mxu0
      %v5632 = vadd.f32 0.0, %v5631
      %v5633 = vpop.f32.mrb[0].mxu0
      %v5634 = vadd.f32 0.0, %v5633
      %5635 = vmatprep.mubr.f32.mxu0 0.0
      %5636 = vmatmul.mubr.f32.gmra.mrb[0].mxu0 %v5426
      %v5637 = vpop.f32.mrb[0].mxu0
      %v5638 = vadd.f32 0.0, %v5637
      %v5639 = vpop.f32.mrb[0].mxu0
      %v5640 = vadd.f32 0.0, %v5639
      %5641 = vmatprep.mubr.f32.mxu0 0.0
      %5642 = vmatmul.mubr.f32.gmra.mrb[0].mxu0 %v5429
      %v5643 = vpop.f32.mrb[0].mxu0
      %v5644 = vadd.f32 0.0, %v5643
      %v5645 = vpop.f32.mrb[0].mxu0
      %v5646 = vadd.f32 0.0, %v5645
      %5647 = vmatprep.mubr.f32.mxu0 0.0
      %5648 = vmatmul.mubr.f32.gmra.mrb[0].mxu0 %v5432
      %v5649 = vpop.f32.mrb[0].mxu0
      %v5650 = vadd.f32 0.0, %v5649
      %v5651 = vpop.f32.mrb[0].mxu0
      %v5652 = vadd.f32 0.0, %v5651
      %5653 = vmatprep.mubr.f32.mxu0 0.0
      %5654 = vmatmul.mubr.f32.gmra.mrb[0].mxu0 %v5435
      %v5655 = vpop.f32.mrb[0].mxu0
      %v5656 = vadd.f32 0.0, %v5655
      %v5657 = vpop.f32.mrb[0].mxu0
      %v5658 = vadd.f32 0.0, %v5657
      %5659 = vmatprep.mubr.f32.mxu0 0.0
      %5660 = vmatmul.mubr.f32.gmra.mrb[0].mxu0 %v5438
      %v5661 = vpop.f32.mrb[0].mxu0
      %v5662 = vadd.f32 0.0, %v5661
      %v5663 = vpop.f32.mrb[0].mxu0
      %v5664 = vadd.f32 0.0, %v5663
      %5665 = vdwg.mxu0
      %5666 = vmatprep.subr.mxu0 %v3443
      %5667 = vmatpush1.msra.mxu0 %v3441
      %5668 = vmatprep.subr.mxu0 0.0
      %5669 = vmatpush1.msra.mxu0 0.0
      %5670 = vmatprep.subr.mxu0 0.0
      %5671 = vmatpush1.msra.mxu0 0.0
      %5672 = vmatprep.subr.mxu0 0.0
      %5673 = vmatpush1.msra.mxu0 0.0
      %5674 = vmatprep.subr.mxu0 0.0
      %5675 = vmatpush1.msra.mxu0 0.0
      %5676 = vmatprep.subr.mxu0 0.0
      %5677 = vmatpush1.msra.mxu0 0.0
      %5678 = vmatprep.subr.mxu0 0.0
      %5679 = vmatpush1.msra.mxu0 0.0
      %5680 = vmatprep.subr.mxu0 0.0
      %5681 = vmatpush1.msra.mxu0 0.0
      %5682 = vmatprep.subr.mxu0 0.0
      %5683 = vmatpush1.msra.mxu0 0.0
      %5684 = vmatprep.subr.mxu0 0.0
      %5685 = vmatpush1.msra.mxu0 0.0
      %5686 = vmatprep.subr.mxu0 0.0
      %5687 = vmatpush1.msra.mxu0 0.0
      %5688 = vmatprep.subr.mxu0 0.0
      %5689 = vmatpush1.msra.mxu0 0.0
      %5690 = vmatprep.subr.mxu0 0.0
      %5691 = vmatpush1.msra.mxu0 0.0
      %5692 = vmatprep.subr.mxu0 0.0
      %5693 = vmatpush1.msra.mxu0 0.0
      %5694 = vmatprep.subr.mxu0 0.0
      %5695 = vmatpush1.msra.mxu0 0.0
      %5696 = vmatprep.subr.mxu0 0.0
      %5697 = vmatpush1.msra.mxu0 0.0
      %5698 = vmatprep.subr.mxu0 0.0
      %5699 = vmatpush1.msra.mxu0 0.0
      %5700 = vmatprep.subr.mxu0 0.0
      %5701 = vmatpush1.msra.mxu0 0.0
      %5702 = vmatprep.subr.mxu0 0.0
      %5703 = vmatpush1.msra.mxu0 0.0
      %5704 = vmatprep.subr.mxu0 0.0
      %5705 = vmatpush1.msra.mxu0 0.0
      %5706 = vmatprep.subr.mxu0 0.0
      %5707 = vmatpush1.msra.mxu0 0.0
      %5708 = vmatprep.subr.mxu0 0.0
      %5709 = vmatpush1.msra.mxu0 0.0
      %5710 = vmatprep.subr.mxu0 0.0
      %5711 = vmatpush1.msra.mxu0 0.0
      %5712 = vmatprep.subr.mxu0 0.0
      %5713 = vmatpush1.msra.mxu0 0.0
      %5714 = vmatprep.subr.mxu0 0.0
      %5715 = vmatpush1.msra.mxu0 0.0
      %5716 = vmatprep.subr.mxu0 0.0
      %5717 = vmatpush1.msra.mxu0 0.0
      %5718 = vmatprep.subr.mxu0 0.0
      %5719 = vmatpush1.msra.mxu0 0.0
      %5720 = vmatprep.subr.mxu0 0.0
      %5721 = vmatpush1.msra.mxu0 0.0
      %5722 = vmatprep.subr.mxu0 0.0
      %5723 = vmatpush1.msra.mxu0 0.0
      %5724 = vmatprep.subr.mxu0 0.0
      %5725 = vmatpush1.msra.mxu0 0.0
      %5726 = vmatprep.subr.mxu0 0.0
      %5727 = vmatpush1.msra.mxu0 0.0
      %5728 = vmatprep.subr.mxu0 0.0
      %5729 = vmatpush1.msra.mxu0 0.0
      %5730 = vmatprep.mubr.f32.mxu0 0.0
      %5731 = vmatmul.mubr.f32.gmra.mrb[0].mxu0 %v5417
      %v5732 = vpop.f32.mrb[0].mxu0
      %v5733 = vadd.f32 0.0, %v5732
      %v5734 = vpop.f32.mrb[0].mxu0
      %v5735 = vadd.f32 0.0, %v5734
      %5736 = vmatprep.mubr.f32.mxu0 0.0
      %5737 = vmatmul.mubr.f32.gmra.mrb[0].mxu0 %v5420
      %v5738 = vpop.f32.mrb[0].mxu0
      %v5739 = vadd.f32 0.0, %v5738
      %v5740 = vpop.f32.mrb[0].mxu0
      %v5741 = vadd.f32 0.0, %v5740
      %5742 = vmatprep.mubr.f32.mxu0 0.0
      %5743 = vmatmul.mubr.f32.gmra.mrb[0].mxu0 %v5423
      %v5744 = vpop.f32.mrb[0].mxu0
      %v5745 = vadd.f32 0.0, %v5744
      %v5746 = vpop.f32.mrb[0].mxu0
      %v5747 = vadd.f32 0.0, %v5746
      %5748 = vmatprep.mubr.f32.mxu0 0.0
      %5749 = vmatmul.mubr.f32.gmra.mrb[0].mxu0 %v5426
      %v5750 = vpop.f32.mrb[0].mxu0
      %v5751 = vadd.f32 0.0, %v5750
      %v5752 = vpop.f32.mrb[0].mxu0
      %v5753 = vadd.f32 0.0, %v5752
      %5754 = vmatprep.mubr.f32.mxu0 0.0
      %5755 = vmatmul.mubr.f32.gmra.mrb[0].mxu0 %v5429
      %v5756 = vpop.f32.mrb[0].mxu0
      %v5757 = vadd.f32 0.0, %v5756
      %v5758 = vpop.f32.mrb[0].mxu0
      %v5759 = vadd.f32 0.0, %v5758
      %5760 = vmatprep.mubr.f32.mxu0 0.0
      %5761 = vmatmul.mubr.f32.gmra.mrb[0].mxu0 %v5432
      %v5762 = vpop.f32.mrb[0].mxu0
      %v5763 = vadd.f32 0.0, %v5762
      %v5764 = vpop.f32.mrb[0].mxu0
      %v5765 = vadd.f32 0.0, %v5764
      %5766 = vmatprep.mubr.f32.mxu0 0.0
      %5767 = vmatmul.mubr.f32.gmra.mrb[0].mxu0 %v5435
      %v5768 = vpop.f32.mrb[0].mxu0
      %v5769 = vadd.f32 0.0, %v5768
      %v5770 = vpop.f32.mrb[0].mxu0
      %v5771 = vadd.f32 0.0, %v5770
      %5772 = vmatprep.mubr.f32.mxu0 0.0
      %5773 = vmatmul.mubr.f32.gmra.mrb[0].mxu0 %v5438
      %v5774 = vpop.f32.mrb[0].mxu0
      %v5775 = vadd.f32 0.0, %v5774
      %v5776 = vpop.f32.mrb[0].mxu0
      %v5777 = vadd.f32 0.0, %v5776
      %5778 = vdwg.mxu0
      %5779 = vmatprep.subr.mxu0 %v3447
      %5780 = vmatpush1.msra.mxu0 %v3445
      %5781 = vmatprep.subr.mxu0 0.0
      %5782 = vmatpush1.msra.mxu0 0.0
      %5783 = vmatprep.subr.mxu0 0.0
      %5784 = vmatpush1.msra.mxu0 0.0
      %5785 = vmatprep.subr.mxu0 0.0
      %5786 = vmatpush1.msra.mxu0 0.0
      %5787 = vmatprep.subr.mxu0 0.0
      %5788 = vmatpush1.msra.mxu0 0.0
      %5789 = vmatprep.subr.mxu0 0.0
      %5790 = vmatpush1.msra.mxu0 0.0
      %5791 = vmatprep.subr.mxu0 0.0
      %5792 = vmatpush1.msra.mxu0 0.0
      %5793 = vmatprep.subr.mxu0 0.0
      %5794 = vmatpush1.msra.mxu0 0.0
      %5795 = vmatprep.subr.mxu0 0.0
      %5796 = vmatpush1.msra.mxu0 0.0
      %5797 = vmatprep.subr.mxu0 0.0
      %5798 = vmatpush1.msra.mxu0 0.0
      %5799 = vmatprep.subr.mxu0 0.0
      %5800 = vmatpush1.msra.mxu0 0.0
      %5801 = vmatprep.subr.mxu0 0.0
      %5802 = vmatpush1.msra.mxu0 0.0
      %5803 = vmatprep.subr.mxu0 0.0
      %5804 = vmatpush1.msra.mxu0 0.0
      %5805 = vmatprep.subr.mxu0 0.0
      %5806 = vmatpush1.msra.mxu0 0.0
      %5807 = vmatprep.subr.mxu0 0.0
      %5808 = vmatpush1.msra.mxu0 0.0
      %5809 = vmatprep.subr.mxu0 0.0
      %5810 = vmatpush1.msra.mxu0 0.0
      %5811 = vmatprep.subr.mxu0 0.0
      %5812 = vmatpush1.msra.mxu0 0.0
      %5813 = vmatprep.subr.mxu0 0.0
      %5814 = vmatpush1.msra.mxu0 0.0
      %5815 = vmatprep.subr.mxu0 0.0
      %5816 = vmatpush1.msra.mxu0 0.0
      %5817 = vmatprep.subr.mxu0 0.0
      %5818 = vmatpush1.msra.mxu0 0.0
      %5819 = vmatprep.subr.mxu0 0.0
      %5820 = vmatpush1.msra.mxu0 0.0
      %5821 = vmatprep.subr.mxu0 0.0
      %5822 = vmatpush1.msra.mxu0 0.0
      %5823 = vmatprep.subr.mxu0 0.0
      %5824 = vmatpush1.msra.mxu0 0.0
      %5825 = vmatprep.subr.mxu0 0.0
      %5826 = vmatpush1.msra.mxu0 0.0
      %5827 = vmatprep.subr.mxu0 0.0
      %5828 = vmatpush1.msra.mxu0 0.0
      %5829 = vmatprep.subr.mxu0 0.0
      %5830 = vmatpush1.msra.mxu0 0.0
      %5831 = vmatprep.subr.mxu0 0.0
      %5832 = vmatpush1.msra.mxu0 0.0
      %5833 = vmatprep.subr.mxu0 0.0
      %5834 = vmatpush1.msra.mxu0 0.0
      %5835 = vmatprep.subr.mxu0 0.0
      %5836 = vmatpush1.msra.mxu0 0.0
      %5837 = vmatprep.subr.mxu0 0.0
      %5838 = vmatpush1.msra.mxu0 0.0
      %5839 = vmatprep.subr.mxu0 0.0
      %5840 = vmatpush1.msra.mxu0 0.0
      %5841 = vmatprep.subr.mxu0 0.0
      %5842 = vmatpush1.msra.mxu0 0.0
      %5843 = vmatprep.mubr.f32.mxu0 0.0
      %5844 = vmatmul.mubr.f32.gmra.mrb[0].mxu0 %v5417
      %v5845 = vpop.f32.mrb[0].mxu0
      %v5846 = vadd.f32 0.0, %v5845
      %v5847 = vpop.f32.mrb[0].mxu0
      %v5848 = vadd.f32 0.0, %v5847
      %5849 = vmatprep.mubr.f32.mxu0 0.0
      %5850 = vmatmul.mubr.f32.gmra.mrb[0].mxu0 %v5420
      %v5851 = vpop.f32.mrb[0].mxu0
      %v5852 = vadd.f32 0.0, %v5851
      %v5853 = vpop.f32.mrb[0].mxu0
      %v5854 = vadd.f32 0.0, %v5853
      %5855 = vmatprep.mubr.f32.mxu0 0.0
      %5856 = vmatmul.mubr.f32.gmra.mrb[0].mxu0 %v5423
      %v5857 = vpop.f32.mrb[0].mxu0
      %v5858 = vadd.f32 0.0, %v5857
      %v5859 = vpop.f32.mrb[0].mxu0
      %v5860 = vadd.f32 0.0, %v5859
      %5861 = vmatprep.mubr.f32.mxu0 0.0
      %5862 = vmatmul.mubr.f32.gmra.mrb[0].mxu0 %v5426
      %v5863 = vpop.f32.mrb[0].mxu0
      %v5864 = vadd.f32 0.0, %v5863
      %v5865 = vpop.f32.mrb[0].mxu0
      %v5866 = vadd.f32 0.0, %v5865
      %5867 = vmatprep.mubr.f32.mxu0 0.0
      %5868 = vmatmul.mubr.f32.gmra.mrb[0].mxu0 %v5429
      %v5869 = vpop.f32.mrb[0].mxu0
      %v5870 = vadd.f32 0.0, %v5869
      %v5871 = vpop.f32.mrb[0].mxu0
      %v5872 = vadd.f32 0.0, %v5871
      %5873 = vmatprep.mubr.f32.mxu0 0.0
      %5874 = vmatmul.mubr.f32.gmra.mrb[0].mxu0 %v5432
      %v5875 = vpop.f32.mrb[0].mxu0
      %v5876 = vadd.f32 0.0, %v5875
      %v5877 = vpop.f32.mrb[0].mxu0
      %v5878 = vadd.f32 0.0, %v5877
      %5879 = vmatprep.mubr.f32.mxu0 0.0
      %5880 = vmatmul.mubr.f32.gmra.mrb[0].mxu0 %v5435
      %v5881 = vpop.f32.mrb[0].mxu0
      %v5882 = vadd.f32 0.0, %v5881
      %v5883 = vpop.f32.mrb[0].mxu0
      %v5884 = vadd.f32 0.0, %v5883
      %5885 = vmatprep.mubr.f32.mxu0 0.0
      %5886 = vmatmul.mubr.f32.gmra.mrb[0].mxu0 %v5438
      %v5887 = vpop.f32.mrb[0].mxu0
      %v5888 = vadd.f32 0.0, %v5887
      %v5889 = vpop.f32.mrb[0].mxu0
      %v5890 = vadd.f32 0.0, %v5889
      %5891 = vdwg.mxu0
      %v5893 = vsel %vm3408, %v5408, 0
      %v5896 = vsel %vm3408, %v5409, 0
      %v5899 = vsel %vm3408, %v5410, 0
      %v5902 = vsel %vm3408, %v5411, 0
      %v5905 = vsel %vm3408, %v5412, 0
      %v5908 = vsel %vm3408, %v5413, 0
      %v5911 = vsel %vm3408, %v5414, 0
      %v5914 = vsel %vm3408, %v5415, 0
      %5916 = vmatprep.subr.mxu0 %v3435
      %5917 = vmatpush1.msra.mxu0 %v3433
      %5918 = vmatprep.subr.mxu0 0.0
      %5919 = vmatpush1.msra.mxu0 0.0
      %5920 = vmatprep.subr.mxu0 0.0
      %5921 = vmatpush1.msra.mxu0 0.0
      %5922 = vmatprep.subr.mxu0 0.0
      %5923 = vmatpush1.msra.mxu0 0.0
      %5924 = vmatprep.subr.mxu0 0.0
      %5925 = vmatpush1.msra.mxu0 0.0
      %5926 = vmatprep.subr.mxu0 0.0
      %5927 = vmatpush1.msra.mxu0 0.0
      %5928 = vmatprep.subr.mxu0 0.0
      %5929 = vmatpush1.msra.mxu0 0.0
      %5930 = vmatprep.subr.mxu0 0.0
      %5931 = vmatpush1.msra.mxu0 0.0
      %5932 = vmatprep.subr.mxu0 0.0
      %5933 = vmatpush1.msra.mxu0 0.0
      %5934 = vmatprep.subr.mxu0 0.0
      %5935 = vmatpush1.msra.mxu0 0.0
      %5936 = vmatprep.subr.mxu0 0.0
      %5937 = vmatpush1.msra.mxu0 0.0
      %5938 = vmatprep.subr.mxu0 0.0
      %5939 = vmatpush1.msra.mxu0 0.0
      %5940 = vmatprep.subr.mxu0 0.0
      %5941 = vmatpush1.msra.mxu0 0.0
      %5942 = vmatprep.subr.mxu0 0.0
      %5943 = vmatpush1.msra.mxu0 0.0
      %5944 = vmatprep.subr.mxu0 0.0
      %5945 = vmatpush1.msra.mxu0 0.0
      %5946 = vmatprep.subr.mxu0 0.0
      %5947 = vmatpush1.msra.mxu0 0.0
      %5948 = vmatprep.subr.mxu0 0.0
      %5949 = vmatpush1.msra.mxu0 0.0
      %5950 = vmatprep.subr.mxu0 0.0
      %5951 = vmatpush1.msra.mxu0 0.0
      %5952 = vmatprep.subr.mxu0 0.0
      %5953 = vmatpush1.msra.mxu0 0.0
      %5954 = vmatprep.subr.mxu0 0.0
      %5955 = vmatpush1.msra.mxu0 0.0
      %5956 = vmatprep.subr.mxu0 0.0
      %5957 = vmatpush1.msra.mxu0 0.0
      %5958 = vmatprep.subr.mxu0 0.0
      %5959 = vmatpush1.msra.mxu0 0.0
      %5960 = vmatprep.subr.mxu0 0.0
      %5961 = vmatpush1.msra.mxu0 0.0
      %5962 = vmatprep.subr.mxu0 0.0
      %5963 = vmatpush1.msra.mxu0 0.0
      %5964 = vmatprep.subr.mxu0 0.0
      %5965 = vmatpush1.msra.mxu0 0.0
      %5966 = vmatprep.subr.mxu0 0.0
      %5967 = vmatpush1.msra.mxu0 0.0
      %5968 = vmatprep.subr.mxu0 0.0
      %5969 = vmatpush1.msra.mxu0 0.0
      %5970 = vmatprep.subr.mxu0 0.0
      %5971 = vmatpush1.msra.mxu0 0.0
      %5972 = vmatprep.subr.mxu0 0.0
      %5973 = vmatpush1.msra.mxu0 0.0
      %5974 = vmatprep.subr.mxu0 0.0
      %5975 = vmatpush1.msra.mxu0 0.0
      %5976 = vmatprep.subr.mxu0 0.0
      %5977 = vmatpush1.msra.mxu0 0.0
      %5978 = vmatprep.subr.mxu0 0.0
      %5979 = vmatpush1.msra.mxu0 0.0
      %5980 = vmatprep.mubr.f32.mxu0 0.0
      %5981 = vmatmul.mubr.f32.gmra.mrb[0].mxu0 %v5893
      %v5982 = vpop.f32.mrb[0].mxu0
      %v5983 = vadd.f32 0.0, %v5982
      %v5984 = vpop.f32.mrb[0].mxu0
      %v5985 = vadd.f32 0.0, %v5984
      %5986 = vmatprep.mubr.f32.mxu0 0.0
      %5987 = vmatmul.mubr.f32.gmra.mrb[0].mxu0 %v5896
      %v5988 = vpop.f32.mrb[0].mxu0
      %v5989 = vadd.f32 0.0, %v5988
      %v5990 = vpop.f32.mrb[0].mxu0
      %v5991 = vadd.f32 0.0, %v5990
      %5992 = vmatprep.mubr.f32.mxu0 0.0
      %5993 = vmatmul.mubr.f32.gmra.mrb[0].mxu0 %v5899
      %v5994 = vpop.f32.mrb[0].mxu0
      %v5995 = vadd.f32 0.0, %v5994
      %v5996 = vpop.f32.mrb[0].mxu0
      %v5997 = vadd.f32 0.0, %v5996
      %5998 = vmatprep.mubr.f32.mxu0 0.0
      %5999 = vmatmul.mubr.f32.gmra.mrb[0].mxu0 %v5902
      %v6000 = vpop.f32.mrb[0].mxu0
      %v6001 = vadd.f32 0.0, %v6000
      %v6002 = vpop.f32.mrb[0].mxu0
      %v6003 = vadd.f32 0.0, %v6002
      %6004 = vmatprep.mubr.f32.mxu0 0.0
      %6005 = vmatmul.mubr.f32.gmra.mrb[0].mxu0 %v5905
      %v6006 = vpop.f32.mrb[0].mxu0
      %v6007 = vadd.f32 0.0, %v6006
      %v6008 = vpop.f32.mrb[0].mxu0
      %v6009 = vadd.f32 0.0, %v6008
      %6010 = vmatprep.mubr.f32.mxu0 0.0
      %6011 = vmatmul.mubr.f32.gmra.mrb[0].mxu0 %v5908
      %v6012 = vpop.f32.mrb[0].mxu0
      %v6013 = vadd.f32 0.0, %v6012
      %v6014 = vpop.f32.mrb[0].mxu0
      %v6015 = vadd.f32 0.0, %v6014
      %6016 = vmatprep.mubr.f32.mxu0 0.0
      %6017 = vmatmul.mubr.f32.gmra.mrb[0].mxu0 %v5911
      %v6018 = vpop.f32.mrb[0].mxu0
      %v6019 = vadd.f32 0.0, %v6018
      %v6020 = vpop.f32.mrb[0].mxu0
      %v6021 = vadd.f32 0.0, %v6020
      %6022 = vmatprep.mubr.f32.mxu0 0.0
      %6023 = vmatmul.mubr.f32.gmra.mrb[0].mxu0 %v5914
      %v6024 = vpop.f32.mrb[0].mxu0
      %v6025 = vadd.f32 0.0, %v6024
      %v6026 = vpop.f32.mrb[0].mxu0
      %v6027 = vadd.f32 0.0, %v6026
      %6028 = vdwg.mxu0
      %6029 = vmatprep.subr.mxu0 %v3439
      %6030 = vmatpush1.msra.mxu0 %v3437
      %6031 = vmatprep.subr.mxu0 0.0
      %6032 = vmatpush1.msra.mxu0 0.0
      %6033 = vmatprep.subr.mxu0 0.0
      %6034 = vmatpush1.msra.mxu0 0.0
      %6035 = vmatprep.subr.mxu0 0.0
      %6036 = vmatpush1.msra.mxu0 0.0
      %6037 = vmatprep.subr.mxu0 0.0
      %6038 = vmatpush1.msra.mxu0 0.0
      %6039 = vmatprep.subr.mxu0 0.0
      %6040 = vmatpush1.msra.mxu0 0.0
      %6041 = vmatprep.subr.mxu0 0.0
      %6042 = vmatpush1.msra.mxu0 0.0
      %6043 = vmatprep.subr.mxu0 0.0
      %6044 = vmatpush1.msra.mxu0 0.0
      %6045 = vmatprep.subr.mxu0 0.0
      %6046 = vmatpush1.msra.mxu0 0.0
      %6047 = vmatprep.subr.mxu0 0.0
      %6048 = vmatpush1.msra.mxu0 0.0
      %6049 = vmatprep.subr.mxu0 0.0
      %6050 = vmatpush1.msra.mxu0 0.0
      %6051 = vmatprep.subr.mxu0 0.0
      %6052 = vmatpush1.msra.mxu0 0.0
      %6053 = vmatprep.subr.mxu0 0.0
      %6054 = vmatpush1.msra.mxu0 0.0
      %6055 = vmatprep.subr.mxu0 0.0
      %6056 = vmatpush1.msra.mxu0 0.0
      %6057 = vmatprep.subr.mxu0 0.0
      %6058 = vmatpush1.msra.mxu0 0.0
      %6059 = vmatprep.subr.mxu0 0.0
      %6060 = vmatpush1.msra.mxu0 0.0
      %6061 = vmatprep.subr.mxu0 0.0
      %6062 = vmatpush1.msra.mxu0 0.0
      %6063 = vmatprep.subr.mxu0 0.0
      %6064 = vmatpush1.msra.mxu0 0.0
      %6065 = vmatprep.subr.mxu0 0.0
      %6066 = vmatpush1.msra.mxu0 0.0
      %6067 = vmatprep.subr.mxu0 0.0
      %6068 = vmatpush1.msra.mxu0 0.0
      %6069 = vmatprep.subr.mxu0 0.0
      %6070 = vmatpush1.msra.mxu0 0.0
      %6071 = vmatprep.subr.mxu0 0.0
      %6072 = vmatpush1.msra.mxu0 0.0
      %6073 = vmatprep.subr.mxu0 0.0
      %6074 = vmatpush1.msra.mxu0 0.0
      %6075 = vmatprep.subr.mxu0 0.0
      %6076 = vmatpush1.msra.mxu0 0.0
      %6077 = vmatprep.subr.mxu0 0.0
      %6078 = vmatpush1.msra.mxu0 0.0
      %6079 = vmatprep.subr.mxu0 0.0
      %6080 = vmatpush1.msra.mxu0 0.0
      %6081 = vmatprep.subr.mxu0 0.0
      %6082 = vmatpush1.msra.mxu0 0.0
      %6083 = vmatprep.subr.mxu0 0.0
      %6084 = vmatpush1.msra.mxu0 0.0
      %6085 = vmatprep.subr.mxu0 0.0
      %6086 = vmatpush1.msra.mxu0 0.0
      %6087 = vmatprep.subr.mxu0 0.0
      %6088 = vmatpush1.msra.mxu0 0.0
      %6089 = vmatprep.subr.mxu0 0.0
      %6090 = vmatpush1.msra.mxu0 0.0
      %6091 = vmatprep.subr.mxu0 0.0
      %6092 = vmatpush1.msra.mxu0 0.0
      %6093 = vmatprep.mubr.f32.mxu0 0.0
      %6094 = vmatmul.mubr.f32.gmra.mrb[0].mxu0 %v5893
      %v6095 = vpop.f32.mrb[0].mxu0
      %v6096 = vadd.f32 0.0, %v6095
      %v6097 = vpop.f32.mrb[0].mxu0
      %v6098 = vadd.f32 0.0, %v6097
      %6099 = vmatprep.mubr.f32.mxu0 0.0
      %6100 = vmatmul.mubr.f32.gmra.mrb[0].mxu0 %v5896
      %v6101 = vpop.f32.mrb[0].mxu0
      %v6102 = vadd.f32 0.0, %v6101
      %v6103 = vpop.f32.mrb[0].mxu0
      %v6104 = vadd.f32 0.0, %v6103
      %6105 = vmatprep.mubr.f32.mxu0 0.0
      %6106 = vmatmul.mubr.f32.gmra.mrb[0].mxu0 %v5899
      %v6107 = vpop.f32.mrb[0].mxu0
      %v6108 = vadd.f32 0.0, %v6107
      %v6109 = vpop.f32.mrb[0].mxu0
      %v6110 = vadd.f32 0.0, %v6109
      %6111 = vmatprep.mubr.f32.mxu0 0.0
      %6112 = vmatmul.mubr.f32.gmra.mrb[0].mxu0 %v5902
      %v6113 = vpop.f32.mrb[0].mxu0
      %v6114 = vadd.f32 0.0, %v6113
      %v6115 = vpop.f32.mrb[0].mxu0
      %v6116 = vadd.f32 0.0, %v6115
      %6117 = vmatprep.mubr.f32.mxu0 0.0
      %6118 = vmatmul.mubr.f32.gmra.mrb[0].mxu0 %v5905
      %v6119 = vpop.f32.mrb[0].mxu0
      %v6120 = vadd.f32 0.0, %v6119
      %v6121 = vpop.f32.mrb[0].mxu0
      %v6122 = vadd.f32 0.0, %v6121
      %6123 = vmatprep.mubr.f32.mxu0 0.0
      %6124 = vmatmul.mubr.f32.gmra.mrb[0].mxu0 %v5908
      %v6125 = vpop.f32.mrb[0].mxu0
      %v6126 = vadd.f32 0.0, %v6125
      %v6127 = vpop.f32.mrb[0].mxu0
      %v6128 = vadd.f32 0.0, %v6127
      %6129 = vmatprep.mubr.f32.mxu0 0.0
      %6130 = vmatmul.mubr.f32.gmra.mrb[0].mxu0 %v5911
      %v6131 = vpop.f32.mrb[0].mxu0
      %v6132 = vadd.f32 0.0, %v6131
      %v6133 = vpop.f32.mrb[0].mxu0
      %v6134 = vadd.f32 0.0, %v6133
      %6135 = vmatprep.mubr.f32.mxu0 0.0
      %6136 = vmatmul.mubr.f32.gmra.mrb[0].mxu0 %v5914
      %v6137 = vpop.f32.mrb[0].mxu0
      %v6138 = vadd.f32 0.0, %v6137
      %v6139 = vpop.f32.mrb[0].mxu0
      %v6140 = vadd.f32 0.0, %v6139
      %6141 = vdwg.mxu0
      %6142 = vmatprep.subr.mxu0 %v3443
      %6143 = vmatpush1.msra.mxu0 %v3441
      %6144 = vmatprep.subr.mxu0 0.0
      %6145 = vmatpush1.msra.mxu0 0.0
      %6146 = vmatprep.subr.mxu0 0.0
      %6147 = vmatpush1.msra.mxu0 0.0
      %6148 = vmatprep.subr.mxu0 0.0
      %6149 = vmatpush1.msra.mxu0 0.0
      %6150 = vmatprep.subr.mxu0 0.0
      %6151 = vmatpush1.msra.mxu0 0.0
      %6152 = vmatprep.subr.mxu0 0.0
      %6153 = vmatpush1.msra.mxu0 0.0
      %6154 = vmatprep.subr.mxu0 0.0
      %6155 = vmatpush1.msra.mxu0 0.0
      %6156 = vmatprep.subr.mxu0 0.0
      %6157 = vmatpush1.msra.mxu0 0.0
      %6158 = vmatprep.subr.mxu0 0.0
      %6159 = vmatpush1.msra.mxu0 0.0
      %6160 = vmatprep.subr.mxu0 0.0
      %6161 = vmatpush1.msra.mxu0 0.0
      %6162 = vmatprep.subr.mxu0 0.0
      %6163 = vmatpush1.msra.mxu0 0.0
      %6164 = vmatprep.subr.mxu0 0.0
      %6165 = vmatpush1.msra.mxu0 0.0
      %6166 = vmatprep.subr.mxu0 0.0
      %6167 = vmatpush1.msra.mxu0 0.0
      %6168 = vmatprep.subr.mxu0 0.0
      %6169 = vmatpush1.msra.mxu0 0.0
      %6170 = vmatprep.subr.mxu0 0.0
      %6171 = vmatpush1.msra.mxu0 0.0
      %6172 = vmatprep.subr.mxu0 0.0
      %6173 = vmatpush1.msra.mxu0 0.0
      %6174 = vmatprep.subr.mxu0 0.0
      %6175 = vmatpush1.msra.mxu0 0.0
      %6176 = vmatprep.subr.mxu0 0.0
      %6177 = vmatpush1.msra.mxu0 0.0
      %6178 = vmatprep.subr.mxu0 0.0
      %6179 = vmatpush1.msra.mxu0 0.0
      %6180 = vmatprep.subr.mxu0 0.0
      %6181 = vmatpush1.msra.mxu0 0.0
      %6182 = vmatprep.subr.mxu0 0.0
      %6183 = vmatpush1.msra.mxu0 0.0
      %6184 = vmatprep.subr.mxu0 0.0
      %6185 = vmatpush1.msra.mxu0 0.0
      %6186 = vmatprep.subr.mxu0 0.0
      %6187 = vmatpush1.msra.mxu0 0.0
      %6188 = vmatprep.subr.mxu0 0.0
      %6189 = vmatpush1.msra.mxu0 0.0
      %6190 = vmatprep.subr.mxu0 0.0
      %6191 = vmatpush1.msra.mxu0 0.0
      %6192 = vmatprep.subr.mxu0 0.0
      %6193 = vmatpush1.msra.mxu0 0.0
      %6194 = vmatprep.subr.mxu0 0.0
      %6195 = vmatpush1.msra.mxu0 0.0
      %6196 = vmatprep.subr.mxu0 0.0
      %6197 = vmatpush1.msra.mxu0 0.0
      %6198 = vmatprep.subr.mxu0 0.0
      %6199 = vmatpush1.msra.mxu0 0.0
      %6200 = vmatprep.subr.mxu0 0.0
      %6201 = vmatpush1.msra.mxu0 0.0
      %6202 = vmatprep.subr.mxu0 0.0
      %6203 = vmatpush1.msra.mxu0 0.0
      %6204 = vmatprep.subr.mxu0 0.0
      %6205 = vmatpush1.msra.mxu0 0.0
      %6206 = vmatprep.mubr.f32.mxu0 0.0
      %6207 = vmatmul.mubr.f32.gmra.mrb[0].mxu0 %v5893
      %v6208 = vpop.f32.mrb[0].mxu0
      %v6209 = vadd.f32 0.0, %v6208
      %v6210 = vpop.f32.mrb[0].mxu0
      %v6211 = vadd.f32 0.0, %v6210
      %6212 = vmatprep.mubr.f32.mxu0 0.0
      %6213 = vmatmul.mubr.f32.gmra.mrb[0].mxu0 %v5896
      %v6214 = vpop.f32.mrb[0].mxu0
      %v6215 = vadd.f32 0.0, %v6214
      %v6216 = vpop.f32.mrb[0].mxu0
      %v6217 = vadd.f32 0.0, %v6216
      %6218 = vmatprep.mubr.f32.mxu0 0.0
      %6219 = vmatmul.mubr.f32.gmra.mrb[0].mxu0 %v5899
      %v6220 = vpop.f32.mrb[0].mxu0
      %v6221 = vadd.f32 0.0, %v6220
      %v6222 = vpop.f32.mrb[0].mxu0
      %v6223 = vadd.f32 0.0, %v6222
      %6224 = vmatprep.mubr.f32.mxu0 0.0
      %6225 = vmatmul.mubr.f32.gmra.mrb[0].mxu0 %v5902
      %v6226 = vpop.f32.mrb[0].mxu0
      %v6227 = vadd.f32 0.0, %v6226
      %v6228 = vpop.f32.mrb[0].mxu0
      %v6229 = vadd.f32 0.0, %v6228
      %6230 = vmatprep.mubr.f32.mxu0 0.0
      %6231 = vmatmul.mubr.f32.gmra.mrb[0].mxu0 %v5905
      %v6232 = vpop.f32.mrb[0].mxu0
      %v6233 = vadd.f32 0.0, %v6232
      %v6234 = vpop.f32.mrb[0].mxu0
      %v6235 = vadd.f32 0.0, %v6234
      %6236 = vmatprep.mubr.f32.mxu0 0.0
      %6237 = vmatmul.mubr.f32.gmra.mrb[0].mxu0 %v5908
      %v6238 = vpop.f32.mrb[0].mxu0
      %v6239 = vadd.f32 0.0, %v6238
      %v6240 = vpop.f32.mrb[0].mxu0
      %v6241 = vadd.f32 0.0, %v6240
      %6242 = vmatprep.mubr.f32.mxu0 0.0
      %6243 = vmatmul.mubr.f32.gmra.mrb[0].mxu0 %v5911
      %v6244 = vpop.f32.mrb[0].mxu0
      %v6245 = vadd.f32 0.0, %v6244
      %v6246 = vpop.f32.mrb[0].mxu0
      %v6247 = vadd.f32 0.0, %v6246
      %6248 = vmatprep.mubr.f32.mxu0 0.0
      %6249 = vmatmul.mubr.f32.gmra.mrb[0].mxu0 %v5914
      %v6250 = vpop.f32.mrb[0].mxu0
      %v6251 = vadd.f32 0.0, %v6250
      %v6252 = vpop.f32.mrb[0].mxu0
      %v6253 = vadd.f32 0.0, %v6252
      %6254 = vdwg.mxu0
      %6255 = vmatprep.subr.mxu0 %v3447
      %6256 = vmatpush1.msra.mxu0 %v3445
      %6257 = vmatprep.subr.mxu0 0.0
      %6258 = vmatpush1.msra.mxu0 0.0
      %6259 = vmatprep.subr.mxu0 0.0
      %6260 = vmatpush1.msra.mxu0 0.0
      %6261 = vmatprep.subr.mxu0 0.0
      %6262 = vmatpush1.msra.mxu0 0.0
      %6263 = vmatprep.subr.mxu0 0.0
      %6264 = vmatpush1.msra.mxu0 0.0
      %6265 = vmatprep.subr.mxu0 0.0
      %6266 = vmatpush1.msra.mxu0 0.0
      %6267 = vmatprep.subr.mxu0 0.0
      %6268 = vmatpush1.msra.mxu0 0.0
      %6269 = vmatprep.subr.mxu0 0.0
      %6270 = vmatpush1.msra.mxu0 0.0
      %6271 = vmatprep.subr.mxu0 0.0
      %6272 = vmatpush1.msra.mxu0 0.0
      %6273 = vmatprep.subr.mxu0 0.0
      %6274 = vmatpush1.msra.mxu0 0.0
      %6275 = vmatprep.subr.mxu0 0.0
      %6276 = vmatpush1.msra.mxu0 0.0
      %6277 = vmatprep.subr.mxu0 0.0
      %6278 = vmatpush1.msra.mxu0 0.0
      %6279 = vmatprep.subr.mxu0 0.0
      %6280 = vmatpush1.msra.mxu0 0.0
      %6281 = vmatprep.subr.mxu0 0.0
      %6282 = vmatpush1.msra.mxu0 0.0
      %6283 = vmatprep.subr.mxu0 0.0
      %6284 = vmatpush1.msra.mxu0 0.0
      %6285 = vmatprep.subr.mxu0 0.0
      %6286 = vmatpush1.msra.mxu0 0.0
      %6287 = vmatprep.subr.mxu0 0.0
      %6288 = vmatpush1.msra.mxu0 0.0
      %6289 = vmatprep.subr.mxu0 0.0
      %6290 = vmatpush1.msra.mxu0 0.0
      %6291 = vmatprep.subr.mxu0 0.0
      %6292 = vmatpush1.msra.mxu0 0.0
      %6293 = vmatprep.subr.mxu0 0.0
      %6294 = vmatpush1.msra.mxu0 0.0
      %6295 = vmatprep.subr.mxu0 0.0
      %6296 = vmatpush1.msra.mxu0 0.0
      %6297 = vmatprep.subr.mxu0 0.0
      %6298 = vmatpush1.msra.mxu0 0.0
      %6299 = vmatprep.subr.mxu0 0.0
      %6300 = vmatpush1.msra.mxu0 0.0
      %6301 = vmatprep.subr.mxu0 0.0
      %6302 = vmatpush1.msra.mxu0 0.0
      %6303 = vmatprep.subr.mxu0 0.0
      %6304 = vmatpush1.msra.mxu0 0.0
      %6305 = vmatprep.subr.mxu0 0.0
      %6306 = vmatpush1.msra.mxu0 0.0
      %6307 = vmatprep.subr.mxu0 0.0
      %6308 = vmatpush1.msra.mxu0 0.0
      %6309 = vmatprep.subr.mxu0 0.0
      %6310 = vmatpush1.msra.mxu0 0.0
      %6311 = vmatprep.subr.mxu0 0.0
      %6312 = vmatpush1.msra.mxu0 0.0
      %6313 = vmatprep.subr.mxu0 0.0
      %6314 = vmatpush1.msra.mxu0 0.0
      %6315 = vmatprep.subr.mxu0 0.0
      %6316 = vmatpush1.msra.mxu0 0.0
      %6317 = vmatprep.subr.mxu0 0.0
      %6318 = vmatpush1.msra.mxu0 0.0
      %6319 = vmatprep.mubr.f32.mxu0 0.0
      %6320 = vmatmul.mubr.f32.gmra.mrb[0].mxu0 %v5893
      %v6321 = vpop.f32.mrb[0].mxu0
      %v6322 = vadd.f32 0.0, %v6321
      %v6323 = vpop.f32.mrb[0].mxu0
      %v6324 = vadd.f32 0.0, %v6323
      %6325 = vmatprep.mubr.f32.mxu0 0.0
      %6326 = vmatmul.mubr.f32.gmra.mrb[0].mxu0 %v5896
      %v6327 = vpop.f32.mrb[0].mxu0
      %v6328 = vadd.f32 0.0, %v6327
      %v6329 = vpop.f32.mrb[0].mxu0
      %v6330 = vadd.f32 0.0, %v6329
      %6331 = vmatprep.mubr.f32.mxu0 0.0
      %6332 = vmatmul.mubr.f32.gmra.mrb[0].mxu0 %v5899
      %v6333 = vpop.f32.mrb[0].mxu0
      %v6334 = vadd.f32 0.0, %v6333
      %v6335 = vpop.f32.mrb[0].mxu0
      %v6336 = vadd.f32 0.0, %v6335
      %6337 = vmatprep.mubr.f32.mxu0 0.0
      %6338 = vmatmul.mubr.f32.gmra.mrb[0].mxu0 %v5902
      %v6339 = vpop.f32.mrb[0].mxu0
      %v6340 = vadd.f32 0.0, %v6339
      %v6341 = vpop.f32.mrb[0].mxu0
      %v6342 = vadd.f32 0.0, %v6341
      %6343 = vmatprep.mubr.f32.mxu0 0.0
      %6344 = vmatmul.mubr.f32.gmra.mrb[0].mxu0 %v5905
      %v6345 = vpop.f32.mrb[0].mxu0
      %v6346 = vadd.f32 0.0, %v6345
      %v6347 = vpop.f32.mrb[0].mxu0
      %v6348 = vadd.f32 0.0, %v6347
      %6349 = vmatprep.mubr.f32.mxu0 0.0
      %6350 = vmatmul.mubr.f32.gmra.mrb[0].mxu0 %v5908
      %v6351 = vpop.f32.mrb[0].mxu0
      %v6352 = vadd.f32 0.0, %v6351
      %v6353 = vpop.f32.mrb[0].mxu0
      %v6354 = vadd.f32 0.0, %v6353
      %6355 = vmatprep.mubr.f32.mxu0 0.0
      %6356 = vmatmul.mubr.f32.gmra.mrb[0].mxu0 %v5911
      %v6357 = vpop.f32.mrb[0].mxu0
      %v6358 = vadd.f32 0.0, %v6357
      %v6359 = vpop.f32.mrb[0].mxu0
      %v6360 = vadd.f32 0.0, %v6359
      %6361 = vmatprep.mubr.f32.mxu0 0.0
      %6362 = vmatmul.mubr.f32.gmra.mrb[0].mxu0 %v5914
      %v6363 = vpop.f32.mrb[0].mxu0
      %v6364 = vadd.f32 0.0, %v6363
      %v6365 = vpop.f32.mrb[0].mxu0
      %v6366 = vadd.f32 0.0, %v6365
      %6367 = vdwg.mxu0
      %v6368 = vmul.f32 %v3901, %v5507
      %v6369 = vmul.f32 %v3902, %v5509
      %v6370 = vmul.f32 %v3903, %v5620
      %v6371 = vmul.f32 %v3904, %v5622
      %v6372 = vmul.f32 %v3905, %v5733
      %v6373 = vmul.f32 %v3906, %v5735
      %v6374 = vmul.f32 %v3907, %v5846
      %v6375 = vmul.f32 %v3908, %v5848
      %v6376 = vmul.f32 %v3909, %v5513
      %v6377 = vmul.f32 %v3910, %v5515
      %v6378 = vmul.f32 %v3911, %v5626
      %v6379 = vmul.f32 %v3912, %v5628
      %v6380 = vmul.f32 %v3913, %v5739
      %v6381 = vmul.f32 %v3914, %v5741
      %v6382 = vmul.f32 %v3915, %v5852
      %v6383 = vmul.f32 %v3916, %v5854
      %v6384 = vmul.f32 %v3917, %v5519
      %v6385 = vmul.f32 %v3918, %v5521
      %v6386 = vmul.f32 %v3919, %v5632
      %v6387 = vmul.f32 %v3920, %v5634
      %v6388 = vmul.f32 %v3921, %v5745
      %v6389 = vmul.f32 %v3922, %v5747
      %v6390 = vmul.f32 %v3923, %v5858
      %v6391 = vmul.f32 %v3924, %v5860
      %v6392 = vmul.f32 %v3925, %v5525
      %v6393 = vmul.f32 %v3926, %v5527
      %v6394 = vmul.f32 %v3927, %v5638
      %v6395 = vmul.f32 %v3928, %v5640
      %v6396 = vmul.f32 %v3929, %v5751
      %v6397 = vmul.f32 %v3930, %v5753
      %v6398 = vmul.f32 %v3931, %v5864
      %v6399 = vmul.f32 %v3932, %v5866
      %v6400 = vmul.f32 %v3933, %v5531
      %v6401 = vmul.f32 %v3934, %v5533
      %v6402 = vmul.f32 %v3935, %v5644
      %v6403 = vmul.f32 %v3936, %v5646
      %v6404 = vmul.f32 %v3937, %v5757
      %v6405 = vmul.f32 %v3938, %v5759
      %v6406 = vmul.f32 %v3939, %v5870
      %v6407 = vmul.f32 %v3940, %v5872
      %v6408 = vmul.f32 %v3941, %v5537
      %v6409 = vmul.f32 %v3942, %v5539
      %v6410 = vmul.f32 %v3943, %v5650
      %v6411 = vmul.f32 %v3944, %v5652
      %v6412 = vmul.f32 %v3945, %v5763
      %v6413 = vmul.f32 %v3946, %v5765
      %v6414 = vmul.f32 %v3947, %v5876
      %v6415 = vmul.f32 %v3948, %v5878
      %v6416 = vmul.f32 %v3949, %v5543
      %v6417 = vmul.f32 %v3950, %v5545
      %v6418 = vmul.f32 %v3951, %v5656
      %v6419 = vmul.f32 %v3952, %v5658
      %v6420 = vmul.f32 %v3953, %v5769
      %v6421 = vmul.f32 %v3954, %v5771
      %v6422 = vmul.f32 %v3955, %v5882
      %v6423 = vmul.f32 %v3956, %v5884
      %v6424 = vmul.f32 %v3957, %v5549
      %v6425 = vmul.f32 %v3958, %v5551
      %v6426 = vmul.f32 %v3959, %v5662
      %v6427 = vmul.f32 %v3960, %v5664
      %v6428 = vmul.f32 %v3961, %v5775
      %v6429 = vmul.f32 %v3962, %v5777
      %v6430 = vmul.f32 %v3963, %v5888
      %v6431 = vmul.f32 %v3964, %v5890
      %v6432 = vadd.f32 %v6368, %v5983
      %v6433 = vadd.f32 %v6369, %v5985
      %v6434 = vadd.f32 %v6370, %v6096
      %v6435 = vadd.f32 %v6371, %v6098
      %v6436 = vadd.f32 %v6372, %v6209
      %v6437 = vadd.f32 %v6373, %v6211
      %v6438 = vadd.f32 %v6374, %v6322
      %v6439 = vadd.f32 %v6375, %v6324
      %v6440 = vadd.f32 %v6376, %v5989
      %v6441 = vadd.f32 %v6377, %v5991
      %v6442 = vadd.f32 %v6378, %v6102
      %v6443 = vadd.f32 %v6379, %v6104
      %v6444 = vadd.f32 %v6380, %v6215
      %v6445 = vadd.f32 %v6381, %v6217
      %v6446 = vadd.f32 %v6382, %v6328
      %v6447 = vadd.f32 %v6383, %v6330
      %v6448 = vadd.f32 %v6384, %v5995
      %v6449 = vadd.f32 %v6385, %v5997
      %v6450 = vadd.f32 %v6386, %v6108
      %v6451 = vadd.f32 %v6387, %v6110
      %v6452 = vadd.f32 %v6388, %v6221
      %v6453 = vadd.f32 %v6389, %v6223
      %v6454 = vadd.f32 %v6390, %v6334
      %v6455 = vadd.f32 %v6391, %v6336
      %v6456 = vadd.f32 %v6392, %v6001
      %v6457 = vadd.f32 %v6393, %v6003
      %v6458 = vadd.f32 %v6394, %v6114
      %v6459 = vadd.f32 %v6395, %v6116
      %v6460 = vadd.f32 %v6396, %v6227
      %v6461 = vadd.f32 %v6397, %v6229
      %v6462 = vadd.f32 %v6398, %v6340
      %v6463 = vadd.f32 %v6399, %v6342
      %v6464 = vadd.f32 %v6400, %v6007
      %v6465 = vadd.f32 %v6401, %v6009
      %v6466 = vadd.f32 %v6402, %v6120
      %v6467 = vadd.f32 %v6403, %v6122
      %v6468 = vadd.f32 %v6404, %v6233
      %v6469 = vadd.f32 %v6405, %v6235
      %v6470 = vadd.f32 %v6406, %v6346
      %v6471 = vadd.f32 %v6407, %v6348
      %v6472 = vadd.f32 %v6408, %v6013
      %v6473 = vadd.f32 %v6409, %v6015
      %v6474 = vadd.f32 %v6410, %v6126
      %v6475 = vadd.f32 %v6411, %v6128
      %v6476 = vadd.f32 %v6412, %v6239
      %v6477 = vadd.f32 %v6413, %v6241
      %v6478 = vadd.f32 %v6414, %v6352
      %v6479 = vadd.f32 %v6415, %v6354
      %v6480 = vadd.f32 %v6416, %v6019
      %v6481 = vadd.f32 %v6417, %v6021
      %v6482 = vadd.f32 %v6418, %v6132
      %v6483 = vadd.f32 %v6419, %v6134
      %v6484 = vadd.f32 %v6420, %v6245
      %v6485 = vadd.f32 %v6421, %v6247
      %v6486 = vadd.f32 %v6422, %v6358
      %v6487 = vadd.f32 %v6423, %v6360
      %v6488 = vadd.f32 %v6424, %v6025
      %v6489 = vadd.f32 %v6425, %v6027
      %v6490 = vadd.f32 %v6426, %v6138
      %v6491 = vadd.f32 %v6427, %v6140
      %v6492 = vadd.f32 %v6428, %v6251
      %v6493 = vadd.f32 %v6429, %v6253
      %v6494 = vadd.f32 %v6430, %v6364
      %v6495 = vadd.f32 %v6431, %v6366
      %v6496 = vmax.f32 %v6432, 0.0
      %v6497 = vmax.f32 %v6433, 0.0
      %v6498 = vmax.f32 %v6434, 0.0
      %v6499 = vmax.f32 %v6435, 0.0
      %v6500 = vmax.f32 %v6436, 0.0
      %v6501 = vmax.f32 %v6437, 0.0
      %v6502 = vmax.f32 %v6438, 0.0
      %v6503 = vmax.f32 %v6439, 0.0
      %v6504 = vmax.f32 %v6440, 0.0
      %v6505 = vmax.f32 %v6441, 0.0
      %v6506 = vmax.f32 %v6442, 0.0
      %v6507 = vmax.f32 %v6443, 0.0
      %v6508 = vmax.f32 %v6444, 0.0
      %v6509 = vmax.f32 %v6445, 0.0
      %v6510 = vmax.f32 %v6446, 0.0
      %v6511 = vmax.f32 %v6447, 0.0
      %v6512 = vmax.f32 %v6448, 0.0
      %v6513 = vmax.f32 %v6449, 0.0
      %v6514 = vmax.f32 %v6450, 0.0
      %v6515 = vmax.f32 %v6451, 0.0
      %v6516 = vmax.f32 %v6452, 0.0
      %v6517 = vmax.f32 %v6453, 0.0
      %v6518 = vmax.f32 %v6454, 0.0
      %v6519 = vmax.f32 %v6455, 0.0
      %v6520 = vmax.f32 %v6456, 0.0
      %v6521 = vmax.f32 %v6457, 0.0
      %v6522 = vmax.f32 %v6458, 0.0
      %v6523 = vmax.f32 %v6459, 0.0
      %v6524 = vmax.f32 %v6460, 0.0
      %v6525 = vmax.f32 %v6461, 0.0
      %v6526 = vmax.f32 %v6462, 0.0
      %v6527 = vmax.f32 %v6463, 0.0
      %v6528 = vmax.f32 %v6464, 0.0
      %v6529 = vmax.f32 %v6465, 0.0
      %v6530 = vmax.f32 %v6466, 0.0
      %v6531 = vmax.f32 %v6467, 0.0
      %v6532 = vmax.f32 %v6468, 0.0
      %v6533 = vmax.f32 %v6469, 0.0
      %v6534 = vmax.f32 %v6470, 0.0
      %v6535 = vmax.f32 %v6471, 0.0
      %v6536 = vmax.f32 %v6472, 0.0
      %v6537 = vmax.f32 %v6473, 0.0
      %v6538 = vmax.f32 %v6474, 0.0
      %v6539 = vmax.f32 %v6475, 0.0
      %v6540 = vmax.f32 %v6476, 0.0
      %v6541 = vmax.f32 %v6477, 0.0
      %v6542 = vmax.f32 %v6478, 0.0
      %v6543 = vmax.f32 %v6479, 0.0
      %v6544 = vmax.f32 %v6480, 0.0
      %v6545 = vmax.f32 %v6481, 0.0
      %v6546 = vmax.f32 %v6482, 0.0
      %v6547 = vmax.f32 %v6483, 0.0
      %v6548 = vmax.f32 %v6484, 0.0
      %v6549 = vmax.f32 %v6485, 0.0
      %v6550 = vmax.f32 %v6486, 0.0
      %v6551 = vmax.f32 %v6487, 0.0
      %v6552 = vmax.f32 %v6488, 0.0
      %v6553 = vmax.f32 %v6489, 0.0
      %v6554 = vmax.f32 %v6490, 0.0
      %v6555 = vmax.f32 %v6491, 0.0
      %v6556 = vmax.f32 %v6492, 0.0
      %v6557 = vmax.f32 %v6493, 0.0
      %v6558 = vmax.f32 %v6494, 0.0
      %v6559 = vmax.f32 %v6495, 0.0
      %v6560 = vld [vmem:[%s11] sm:$0xff]
      %v6561 = vld [vmem:[%s11 + $0x8] sm:$0x1]
      %v6563 = vsel %vm5005, %v6560, 0
      %v6566 = vsel %vm5005, %v6561, 0
      %6568 = vmatprep.subr.mxu0 %v6497
      %6569 = vmatpush1.msra.mxu0 %v6496
      %6570 = vmatprep.subr.mxu0 %v6505
      %6571 = vmatpush1.msra.mxu0 %v6504
      %6572 = vmatprep.subr.mxu0 %v6513
      %6573 = vmatpush1.msra.mxu0 %v6512
      %6574 = vmatprep.subr.mxu0 %v6521
      %6575 = vmatpush1.msra.mxu0 %v6520
      %6576 = vmatprep.subr.mxu0 %v6529
      %6577 = vmatpush1.msra.mxu0 %v6528
      %6578 = vmatprep.subr.mxu0 %v6537
      %6579 = vmatpush1.msra.mxu0 %v6536
      %6580 = vmatprep.subr.mxu0 %v6545
      %6581 = vmatpush1.msra.mxu0 %v6544
      %6582 = vmatprep.subr.mxu0 %v6553
      %6583 = vmatpush1.msra.mxu0 %v6552
      %6584 = vmatprep.subr.mxu0 0.0
      %6585 = vmatpush1.msra.mxu0 0.0
      %6586 = vmatprep.subr.mxu0 0.0
      %6587 = vmatpush1.msra.mxu0 0.0
      %6588 = vmatprep.subr.mxu0 0.0
      %6589 = vmatpush1.msra.mxu0 0.0
      %6590 = vmatprep.subr.mxu0 0.0
      %6591 = vmatpush1.msra.mxu0 0.0
      %6592 = vmatprep.subr.mxu0 0.0
      %6593 = vmatpush1.msra.mxu0 0.0
      %6594 = vmatprep.subr.mxu0 0.0
      %6595 = vmatpush1.msra.mxu0 0.0
      %6596 = vmatprep.subr.mxu0 0.0
      %6597 = vmatpush1.msra.mxu0 0.0
      %6598 = vmatprep.subr.mxu0 0.0
      %6599 = vmatpush1.msra.mxu0 0.0
      %6600 = vmatprep.subr.mxu0 0.0
      %6601 = vmatpush1.msra.mxu0 0.0
      %6602 = vmatprep.subr.mxu0 0.0
      %6603 = vmatpush1.msra.mxu0 0.0
      %6604 = vmatprep.subr.mxu0 0.0
      %6605 = vmatpush1.msra.mxu0 0.0
      %6606 = vmatprep.subr.mxu0 0.0
      %6607 = vmatpush1.msra.mxu0 0.0
      %6608 = vmatprep.subr.mxu0 0.0
      %6609 = vmatpush1.msra.mxu0 0.0
      %6610 = vmatprep.subr.mxu0 0.0
      %6611 = vmatpush1.msra.mxu0 0.0
      %6612 = vmatprep.subr.mxu0 0.0
      %6613 = vmatpush1.msra.mxu0 0.0
      %6614 = vmatprep.subr.mxu0 0.0
      %6615 = vmatpush1.msra.mxu0 0.0
      %6616 = vmatprep.subr.mxu0 0.0
      %6617 = vmatpush1.msra.mxu0 0.0
      %6618 = vmatprep.subr.mxu0 0.0
      %6619 = vmatpush1.msra.mxu0 0.0
      %6620 = vmatprep.subr.mxu0 0.0
      %6621 = vmatpush1.msra.mxu0 0.0
      %6622 = vmatprep.subr.mxu0 0.0
      %6623 = vmatpush1.msra.mxu0 0.0
      %6624 = vmatprep.subr.mxu0 0.0
      %6625 = vmatpush1.msra.mxu0 0.0
      %6626 = vmatprep.subr.mxu0 0.0
      %6627 = vmatpush1.msra.mxu0 0.0
      %6628 = vmatprep.subr.mxu0 0.0
      %6629 = vmatpush1.msra.mxu0 0.0
      %6630 = vmatprep.subr.mxu0 0.0
      %6631 = vmatpush1.msra.mxu0 0.0
      %6632 = vmatprep.mubr.f32.mxu0 0.0
      %6633 = vmatmul.mubr.f32.gmra.mrb[0].mxu0 %v6563
      %v6634 = vpop.f32.mrb[0].mxu0
      %v6635 = vadd.f32 0.0, %v6634
      %v6636 = vpop.f32.mrb[0].mxu0
      %v6637 = vadd.f32 0.0, %v6636
      %6638 = vmatprep.mubr.f32.mxu0 0.0
      %6639 = vmatmul.mubr.f32.gmra.mrb[0].mxu0 %v6566
      %v6640 = vpop.f32.mrb[0].mxu0
      %v6641 = vadd.f32 0.0, %v6640
      %v6642 = vpop.f32.mrb[0].mxu0
      %v6643 = vadd.f32 0.0, %v6642
      %6644 = vdwg.mxu0
      %6645 = vmatprep.subr.mxu0 %v6499
      %6646 = vmatpush1.msra.mxu0 %v6498
      %6647 = vmatprep.subr.mxu0 %v6507
      %6648 = vmatpush1.msra.mxu0 %v6506
      %6649 = vmatprep.subr.mxu0 %v6515
      %6650 = vmatpush1.msra.mxu0 %v6514
      %6651 = vmatprep.subr.mxu0 %v6523
      %6652 = vmatpush1.msra.mxu0 %v6522
      %6653 = vmatprep.subr.mxu0 %v6531
      %6654 = vmatpush1.msra.mxu0 %v6530
      %6655 = vmatprep.subr.mxu0 %v6539
      %6656 = vmatpush1.msra.mxu0 %v6538
      %6657 = vmatprep.subr.mxu0 %v6547
      %6658 = vmatpush1.msra.mxu0 %v6546
      %6659 = vmatprep.subr.mxu0 %v6555
      %6660 = vmatpush1.msra.mxu0 %v6554
      %6661 = vmatprep.subr.mxu0 0.0
      %6662 = vmatpush1.msra.mxu0 0.0
      %6663 = vmatprep.subr.mxu0 0.0
      %6664 = vmatpush1.msra.mxu0 0.0
      %6665 = vmatprep.subr.mxu0 0.0
      %6666 = vmatpush1.msra.mxu0 0.0
      %6667 = vmatprep.subr.mxu0 0.0
      %6668 = vmatpush1.msra.mxu0 0.0
      %6669 = vmatprep.subr.mxu0 0.0
      %6670 = vmatpush1.msra.mxu0 0.0
      %6671 = vmatprep.subr.mxu0 0.0
      %6672 = vmatpush1.msra.mxu0 0.0
      %6673 = vmatprep.subr.mxu0 0.0
      %6674 = vmatpush1.msra.mxu0 0.0
      %6675 = vmatprep.subr.mxu0 0.0
      %6676 = vmatpush1.msra.mxu0 0.0
      %6677 = vmatprep.subr.mxu0 0.0
      %6678 = vmatpush1.msra.mxu0 0.0
      %6679 = vmatprep.subr.mxu0 0.0
      %6680 = vmatpush1.msra.mxu0 0.0
      %6681 = vmatprep.subr.mxu0 0.0
      %6682 = vmatpush1.msra.mxu0 0.0
      %6683 = vmatprep.subr.mxu0 0.0
      %6684 = vmatpush1.msra.mxu0 0.0
      %6685 = vmatprep.subr.mxu0 0.0
      %6686 = vmatpush1.msra.mxu0 0.0
      %6687 = vmatprep.subr.mxu0 0.0
      %6688 = vmatpush1.msra.mxu0 0.0
      %6689 = vmatprep.subr.mxu0 0.0
      %6690 = vmatpush1.msra.mxu0 0.0
      %6691 = vmatprep.subr.mxu0 0.0
      %6692 = vmatpush1.msra.mxu0 0.0
      %6693 = vmatprep.subr.mxu0 0.0
      %6694 = vmatpush1.msra.mxu0 0.0
      %6695 = vmatprep.subr.mxu0 0.0
      %6696 = vmatpush1.msra.mxu0 0.0
      %6697 = vmatprep.subr.mxu0 0.0
      %6698 = vmatpush1.msra.mxu0 0.0
      %6699 = vmatprep.subr.mxu0 0.0
      %6700 = vmatpush1.msra.mxu0 0.0
      %6701 = vmatprep.subr.mxu0 0.0
      %6702 = vmatpush1.msra.mxu0 0.0
      %6703 = vmatprep.subr.mxu0 0.0
      %6704 = vmatpush1.msra.mxu0 0.0
      %6705 = vmatprep.subr.mxu0 0.0
      %6706 = vmatpush1.msra.mxu0 0.0
      %6707 = vmatprep.subr.mxu0 0.0
      %6708 = vmatpush1.msra.mxu0 0.0
      %6709 = vmatprep.mubr.f32.mxu0 0.0
      %6710 = vmatmul.mubr.f32.gmra.mrb[0].mxu0 %v6563
      %v6711 = vpop.f32.mrb[0].mxu0
      %v6712 = vadd.f32 0.0, %v6711
      %v6713 = vpop.f32.mrb[0].mxu0
      %v6714 = vadd.f32 0.0, %v6713
      %6715 = vmatprep.mubr.f32.mxu0 0.0
      %6716 = vmatmul.mubr.f32.gmra.mrb[0].mxu0 %v6566
      %v6717 = vpop.f32.mrb[0].mxu0
      %v6718 = vadd.f32 0.0, %v6717
      %v6719 = vpop.f32.mrb[0].mxu0
      %v6720 = vadd.f32 0.0, %v6719
      %6721 = vdwg.mxu0
      %6722 = vmatprep.subr.mxu0 %v6501
      %6723 = vmatpush1.msra.mxu0 %v6500
      %6724 = vmatprep.subr.mxu0 %v6509
      %6725 = vmatpush1.msra.mxu0 %v6508
      %6726 = vmatprep.subr.mxu0 %v6517
      %6727 = vmatpush1.msra.mxu0 %v6516
      %6728 = vmatprep.subr.mxu0 %v6525
      %6729 = vmatpush1.msra.mxu0 %v6524
      %6730 = vmatprep.subr.mxu0 %v6533
      %6731 = vmatpush1.msra.mxu0 %v6532
      %6732 = vmatprep.subr.mxu0 %v6541
      %6733 = vmatpush1.msra.mxu0 %v6540
      %6734 = vmatprep.subr.mxu0 %v6549
      %6735 = vmatpush1.msra.mxu0 %v6548
      %6736 = vmatprep.subr.mxu0 %v6557
      %6737 = vmatpush1.msra.mxu0 %v6556
      %6738 = vmatprep.subr.mxu0 0.0
      %6739 = vmatpush1.msra.mxu0 0.0
      %6740 = vmatprep.subr.mxu0 0.0
      %6741 = vmatpush1.msra.mxu0 0.0
      %6742 = vmatprep.subr.mxu0 0.0
      %6743 = vmatpush1.msra.mxu0 0.0
      %6744 = vmatprep.subr.mxu0 0.0
      %6745 = vmatpush1.msra.mxu0 0.0
      %6746 = vmatprep.subr.mxu0 0.0
      %6747 = vmatpush1.msra.mxu0 0.0
      %6748 = vmatprep.subr.mxu0 0.0
      %6749 = vmatpush1.msra.mxu0 0.0
      %6750 = vmatprep.subr.mxu0 0.0
      %6751 = vmatpush1.msra.mxu0 0.0
      %6752 = vmatprep.subr.mxu0 0.0
      %6753 = vmatpush1.msra.mxu0 0.0
      %6754 = vmatprep.subr.mxu0 0.0
      %6755 = vmatpush1.msra.mxu0 0.0
      %6756 = vmatprep.subr.mxu0 0.0
      %6757 = vmatpush1.msra.mxu0 0.0
      %6758 = vmatprep.subr.mxu0 0.0
      %6759 = vmatpush1.msra.mxu0 0.0
      %6760 = vmatprep.subr.mxu0 0.0
      %6761 = vmatpush1.msra.mxu0 0.0
      %6762 = vmatprep.subr.mxu0 0.0
      %6763 = vmatpush1.msra.mxu0 0.0
      %6764 = vmatprep.subr.mxu0 0.0
      %6765 = vmatpush1.msra.mxu0 0.0
      %6766 = vmatprep.subr.mxu0 0.0
      %6767 = vmatpush1.msra.mxu0 0.0
      %6768 = vmatprep.subr.mxu0 0.0
      %6769 = vmatpush1.msra.mxu0 0.0
      %6770 = vmatprep.subr.mxu0 0.0
      %6771 = vmatpush1.msra.mxu0 0.0
      %6772 = vmatprep.subr.mxu0 0.0
      %6773 = vmatpush1.msra.mxu0 0.0
      %6774 = vmatprep.subr.mxu0 0.0
      %6775 = vmatpush1.msra.mxu0 0.0
      %6776 = vmatprep.subr.mxu0 0.0
      %6777 = vmatpush1.msra.mxu0 0.0
      %6778 = vmatprep.subr.mxu0 0.0
      %6779 = vmatpush1.msra.mxu0 0.0
      %6780 = vmatprep.subr.mxu0 0.0
      %6781 = vmatpush1.msra.mxu0 0.0
      %6782 = vmatprep.subr.mxu0 0.0
      %6783 = vmatpush1.msra.mxu0 0.0
      %6784 = vmatprep.subr.mxu0 0.0
      %6785 = vmatpush1.msra.mxu0 0.0
      %6786 = vmatprep.mubr.f32.mxu0 0.0
      %6787 = vmatmul.mubr.f32.gmra.mrb[0].mxu0 %v6563
      %v6788 = vpop.f32.mrb[0].mxu0
      %v6789 = vadd.f32 0.0, %v6788
      %v6790 = vpop.f32.mrb[0].mxu0
      %v6791 = vadd.f32 0.0, %v6790
      %6792 = vmatprep.mubr.f32.mxu0 0.0
      %6793 = vmatmul.mubr.f32.gmra.mrb[0].mxu0 %v6566
      %v6794 = vpop.f32.mrb[0].mxu0
      %v6795 = vadd.f32 0.0, %v6794
      %v6796 = vpop.f32.mrb[0].mxu0
      %v6797 = vadd.f32 0.0, %v6796
      %6798 = vdwg.mxu0
      %6799 = vmatprep.subr.mxu0 %v6503
      %6800 = vmatpush1.msra.mxu0 %v6502
      %6801 = vmatprep.subr.mxu0 %v6511
      %6802 = vmatpush1.msra.mxu0 %v6510
      %6803 = vmatprep.subr.mxu0 %v6519
      %6804 = vmatpush1.msra.mxu0 %v6518
      %6805 = vmatprep.subr.mxu0 %v6527
      %6806 = vmatpush1.msra.mxu0 %v6526
      %6807 = vmatprep.subr.mxu0 %v6535
      %6808 = vmatpush1.msra.mxu0 %v6534
      %6809 = vmatprep.subr.mxu0 %v6543
      %6810 = vmatpush1.msra.mxu0 %v6542
      %6811 = vmatprep.subr.mxu0 %v6551
      %6812 = vmatpush1.msra.mxu0 %v6550
      %6813 = vmatprep.subr.mxu0 %v6559
      %6814 = vmatpush1.msra.mxu0 %v6558
      %6815 = vmatprep.subr.mxu0 0.0
      %6816 = vmatpush1.msra.mxu0 0.0
      %6817 = vmatprep.subr.mxu0 0.0
      %6818 = vmatpush1.msra.mxu0 0.0
      %6819 = vmatprep.subr.mxu0 0.0
      %6820 = vmatpush1.msra.mxu0 0.0
      %6821 = vmatprep.subr.mxu0 0.0
      %6822 = vmatpush1.msra.mxu0 0.0
      %6823 = vmatprep.subr.mxu0 0.0
      %6824 = vmatpush1.msra.mxu0 0.0
      %6825 = vmatprep.subr.mxu0 0.0
      %6826 = vmatpush1.msra.mxu0 0.0
      %6827 = vmatprep.subr.mxu0 0.0
      %6828 = vmatpush1.msra.mxu0 0.0
      %6829 = vmatprep.subr.mxu0 0.0
      %6830 = vmatpush1.msra.mxu0 0.0
      %6831 = vmatprep.subr.mxu0 0.0
      %6832 = vmatpush1.msra.mxu0 0.0
      %6833 = vmatprep.subr.mxu0 0.0
      %6834 = vmatpush1.msra.mxu0 0.0
      %6835 = vmatprep.subr.mxu0 0.0
      %6836 = vmatpush1.msra.mxu0 0.0
      %6837 = vmatprep.subr.mxu0 0.0
      %6838 = vmatpush1.msra.mxu0 0.0
      %6839 = vmatprep.subr.mxu0 0.0
      %6840 = vmatpush1.msra.mxu0 0.0
      %6841 = vmatprep.subr.mxu0 0.0
      %6842 = vmatpush1.msra.mxu0 0.0
      %6843 = vmatprep.subr.mxu0 0.0
      %6844 = vmatpush1.msra.mxu0 0.0
      %6845 = vmatprep.subr.mxu0 0.0
      %6846 = vmatpush1.msra.mxu0 0.0
      %6847 = vmatprep.subr.mxu0 0.0
      %6848 = vmatpush1.msra.mxu0 0.0
      %6849 = vmatprep.subr.mxu0 0.0
      %6850 = vmatpush1.msra.mxu0 0.0
      %6851 = vmatprep.subr.mxu0 0.0
      %6852 = vmatpush1.msra.mxu0 0.0
      %6853 = vmatprep.subr.mxu0 0.0
      %6854 = vmatpush1.msra.mxu0 0.0
      %6855 = vmatprep.subr.mxu0 0.0
      %6856 = vmatpush1.msra.mxu0 0.0
      %6857 = vmatprep.subr.mxu0 0.0
      %6858 = vmatpush1.msra.mxu0 0.0
      %6859 = vmatprep.subr.mxu0 0.0
      %6860 = vmatpush1.msra.mxu0 0.0
      %6861 = vmatprep.subr.mxu0 0.0
      %6862 = vmatpush1.msra.mxu0 0.0
      %6863 = vmatprep.mubr.f32.mxu0 0.0
      %6864 = vmatmul.mubr.f32.gmra.mrb[0].mxu0 %v6563
      %v6865 = vpop.f32.mrb[0].mxu0
      %v6866 = vadd.f32 0.0, %v6865
      %v6867 = vpop.f32.mrb[0].mxu0
      %v6868 = vadd.f32 0.0, %v6867
      %6869 = vmatprep.mubr.f32.mxu0 0.0
      %6870 = vmatmul.mubr.f32.gmra.mrb[0].mxu0 %v6566
      %v6871 = vpop.f32.mrb[0].mxu0
      %v6872 = vadd.f32 0.0, %v6871
      %v6873 = vpop.f32.mrb[0].mxu0
      %v6874 = vadd.f32 0.0, %v6873
      %6875 = vdwg.mxu0
      %6876 = vrot.lane.b32.xlu0 %v6635, 17
      %v6877 = vpop.permute.xlu0 %6876
      %6878 = vrot.lane.b32.xlu0 %v6637, 17
      %v6879 = vpop.permute.xlu0 %6878
      %6880 = vrot.lane.b32.xlu0 %v6712, 17
      %v6881 = vpop.permute.xlu0 %6880
      %6882 = vrot.lane.b32.xlu0 %v6714, 17
      %v6883 = vpop.permute.xlu0 %6882
      %6884 = vrot.lane.b32.xlu0 %v6789, 17
      %v6885 = vpop.permute.xlu0 %6884
      %6886 = vrot.lane.b32.xlu0 %v6791, 17
      %v6887 = vpop.permute.xlu0 %6886
      %6888 = vrot.lane.b32.xlu0 %v6866, 17
      %v6889 = vpop.permute.xlu0 %6888
      %6890 = vrot.lane.b32.xlu0 %v6868, 17
      %v6891 = vpop.permute.xlu0 %6890
      %v6892 = vsel %vm2027, %v6889, %v6891
      %v6893 = vsel %vm2027, %v6887, %v6889
      %v6894 = vsel %vm2027, %v6885, %v6887
      %v6895 = vsel %vm2027, %v6883, %v6885
      %v6896 = vsel %vm2027, %v6881, %v6883
      %v6897 = vsel %vm2027, %v6879, %v6881
      %v6898 = vsel %vm2027, %v6877, %v6879
      %v6899 = vsel %vm2027, %v6891, %v6877
      %v6900 = vmul.f32 %v6899, %v2043
      %v6901 = vmul.f32 %v6898, %v2047
      %v6902 = vmul.f32 %v6897, %v2051
      %v6903 = vmul.f32 %v6896, %v2055
      %v6904 = vmul.f32 %v6895, %v2059
      %v6905 = vmul.f32 %v6894, %v2063
      %v6906 = vmul.f32 %v6893, %v2067
      %v6907 = vmul.f32 %v6892, %v2071
      %v6916 = vrot.slane %v6900, 4
      %v6917 = vrot.slane %v6901, 4
      %v6918 = vrot.slane %v6902, 4
      %v6919 = vrot.slane %v6903, 4
      %v6920 = vrot.slane %v6904, 4
      %v6921 = vrot.slane %v6905, 4
      %v6922 = vrot.slane %v6906, 4
      %v6923 = vrot.slane %v6907, 4
      %v6932 = vadd.f32 %v6635, %v6916
      %v6933 = vadd.f32 %v6637, %v6917
      %v6934 = vadd.f32 %v6712, %v6918
      %v6935 = vadd.f32 %v6714, %v6919
      %v6936 = vadd.f32 %v6789, %v6920
      %v6937 = vadd.f32 %v6791, %v6921
      %v6938 = vadd.f32 %v6866, %v6922
      %v6939 = vadd.f32 %v6868, %v6923
      %v6948 = vrot.slane %v6635, 1
      %v6949 = vrot.slane %v6637, 1
      %v6950 = vrot.slane %v6712, 1
      %v6951 = vrot.slane %v6714, 1
      %v6952 = vrot.slane %v6789, 1
      %v6953 = vrot.slane %v6791, 1
      %v6954 = vrot.slane %v6866, 1
      %v6955 = vrot.slane %v6868, 1
      %6964 = vrot.lane.b32.xlu0 %v6948, 16
      %v6965 = vpop.permute.xlu0 %6964
      %6966 = vrot.lane.b32.xlu0 %v6949, 16
      %v6967 = vpop.permute.xlu0 %6966
      %6968 = vrot.lane.b32.xlu0 %v6950, 16
      %v6969 = vpop.permute.xlu0 %6968
      %6970 = vrot.lane.b32.xlu0 %v6951, 16
      %v6971 = vpop.permute.xlu0 %6970
      %6972 = vrot.lane.b32.xlu0 %v6952, 16
      %v6973 = vpop.permute.xlu0 %6972
      %6974 = vrot.lane.b32.xlu0 %v6953, 16
      %v6975 = vpop.permute.xlu0 %6974
      %6976 = vrot.lane.b32.xlu0 %v6954, 16
      %v6977 = vpop.permute.xlu0 %6976
      %6978 = vrot.lane.b32.xlu0 %v6955, 16
      %v6979 = vpop.permute.xlu0 %6978
      %v6980 = vsel %vm2104, %v6977, %v6979
      %v6981 = vsel %vm2104, %v6975, %v6977
      %v6982 = vsel %vm2104, %v6973, %v6975
      %v6983 = vsel %vm2104, %v6971, %v6973
      %v6984 = vsel %vm2104, %v6969, %v6971
      %v6985 = vsel %vm2104, %v6967, %v6969
      %v6986 = vsel %vm2104, %v6965, %v6967
      %v6987 = vsel %vm2104, %v6979, %v6965
      %v6988 = vmul.f32 %v6987, %v2121
      %v6989 = vmul.f32 %v6986, %v2125
      %v6990 = vmul.f32 %v6985, %v2129
      %v6991 = vmul.f32 %v6984, %v2133
      %v6992 = vmul.f32 %v6983, %v2137
      %v6993 = vmul.f32 %v6982, %v2141
      %v6994 = vmul.f32 %v6981, %v2145
      %v6995 = vmul.f32 %v6980, %v2149
      %v7004 = vrot.slane %v6988, 4
      %v7005 = vrot.slane %v6989, 4
      %v7006 = vrot.slane %v6990, 4
      %v7007 = vrot.slane %v6991, 4
      %v7008 = vrot.slane %v6992, 4
      %v7009 = vrot.slane %v6993, 4
      %v7010 = vrot.slane %v6994, 4
      %v7011 = vrot.slane %v6995, 4
      %v7020 = vadd.f32 %v6932, %v7004
      %v7021 = vadd.f32 %v6933, %v7005
      %v7022 = vadd.f32 %v6934, %v7006
      %v7023 = vadd.f32 %v6935, %v7007
      %v7024 = vadd.f32 %v6936, %v7008
      %v7025 = vadd.f32 %v6937, %v7009
      %v7026 = vadd.f32 %v6938, %v7010
      %v7027 = vadd.f32 %v6939, %v7011
      %v7028 = vrot.slane %v6635, 2
      %v7029 = vrot.slane %v6637, 2
      %v7030 = vrot.slane %v6712, 2
      %v7031 = vrot.slane %v6714, 2
      %v7032 = vrot.slane %v6789, 2
      %v7033 = vrot.slane %v6791, 2
      %v7034 = vrot.slane %v6866, 2
      %v7035 = vrot.slane %v6868, 2
      %7044 = vrot.lane.b32.xlu0 %v7028, 15
      %v7045 = vpop.permute.xlu0 %7044
      %7046 = vrot.lane.b32.xlu0 %v7029, 15
      %v7047 = vpop.permute.xlu0 %7046
      %7048 = vrot.lane.b32.xlu0 %v7030, 15
      %v7049 = vpop.permute.xlu0 %7048
      %7050 = vrot.lane.b32.xlu0 %v7031, 15
      %v7051 = vpop.permute.xlu0 %7050
      %7052 = vrot.lane.b32.xlu0 %v7032, 15
      %v7053 = vpop.permute.xlu0 %7052
      %7054 = vrot.lane.b32.xlu0 %v7033, 15
      %v7055 = vpop.permute.xlu0 %7054
      %7056 = vrot.lane.b32.xlu0 %v7034, 15
      %v7057 = vpop.permute.xlu0 %7056
      %7058 = vrot.lane.b32.xlu0 %v7035, 15
      %v7059 = vpop.permute.xlu0 %7058
      %v7060 = vsel %vm2182, %v7057, %v7059
      %v7061 = vsel %vm2182, %v7055, %v7057
      %v7062 = vsel %vm2182, %v7053, %v7055
      %v7063 = vsel %vm2182, %v7051, %v7053
      %v7064 = vsel %vm2182, %v7049, %v7051
      %v7065 = vsel %vm2182, %v7047, %v7049
      %v7066 = vsel %vm2182, %v7045, %v7047
      %v7067 = vsel %vm2182, %v7059, %v7045
      %v7068 = vmul.f32 %v7067, %v2199
      %v7069 = vmul.f32 %v7066, %v2203
      %v7070 = vmul.f32 %v7065, %v2207
      %v7071 = vmul.f32 %v7064, %v2211
      %v7072 = vmul.f32 %v7063, %v2215
      %v7073 = vmul.f32 %v7062, %v2219
      %v7074 = vmul.f32 %v7061, %v2223
      %v7075 = vmul.f32 %v7060, %v2227
      %v7084 = vrot.slane %v7068, 4
      %v7085 = vrot.slane %v7069, 4
      %v7086 = vrot.slane %v7070, 4
      %v7087 = vrot.slane %v7071, 4
      %v7088 = vrot.slane %v7072, 4
      %v7089 = vrot.slane %v7073, 4
      %v7090 = vrot.slane %v7074, 4
      %v7091 = vrot.slane %v7075, 4
      %v7100 = vadd.f32 %v7020, %v7084
      %v7101 = vadd.f32 %v7021, %v7085
      %v7102 = vadd.f32 %v7022, %v7086
      %v7103 = vadd.f32 %v7023, %v7087
      %v7104 = vadd.f32 %v7024, %v7088
      %v7105 = vadd.f32 %v7025, %v7089
      %v7106 = vadd.f32 %v7026, %v7090
      %v7107 = vadd.f32 %v7027, %v7091
      %v7108 = vrot.slane %v6635, 3
      %v7109 = vrot.slane %v6637, 3
      %v7110 = vrot.slane %v6712, 3
      %v7111 = vrot.slane %v6714, 3
      %v7112 = vrot.slane %v6789, 3
      %v7113 = vrot.slane %v6791, 3
      %v7114 = vrot.slane %v6866, 3
      %v7115 = vrot.slane %v6868, 3
      %7124 = vrot.lane.b32.xlu0 %v7108, 1
      %v7125 = vpop.permute.xlu0 %7124
      %7126 = vrot.lane.b32.xlu0 %v7109, 1
      %v7127 = vpop.permute.xlu0 %7126
      %7128 = vrot.lane.b32.xlu0 %v7110, 1
      %v7129 = vpop.permute.xlu0 %7128
      %7130 = vrot.lane.b32.xlu0 %v7111, 1
      %v7131 = vpop.permute.xlu0 %7130
      %7132 = vrot.lane.b32.xlu0 %v7112, 1
      %v7133 = vpop.permute.xlu0 %7132
      %7134 = vrot.lane.b32.xlu0 %v7113, 1
      %v7135 = vpop.permute.xlu0 %7134
      %7136 = vrot.lane.b32.xlu0 %v7114, 1
      %v7137 = vpop.permute.xlu0 %7136
      %7138 = vrot.lane.b32.xlu0 %v7115, 1
      %v7139 = vpop.permute.xlu0 %7138
      %v7140 = vsel %vm2260, %v7137, %v7139
      %v7141 = vsel %vm2260, %v7135, %v7137
      %v7142 = vsel %vm2260, %v7133, %v7135
      %v7143 = vsel %vm2260, %v7131, %v7133
      %v7144 = vsel %vm2260, %v7129, %v7131
      %v7145 = vsel %vm2260, %v7127, %v7129
      %v7146 = vsel %vm2260, %v7125, %v7127
      %v7147 = vsel %vm2260, %v7139, %v7125
      %v7148 = vmul.f32 %v7147, %v2277
      %v7149 = vmul.f32 %v7146, %v2281
      %v7150 = vmul.f32 %v7145, %v2285
      %v7151 = vmul.f32 %v7144, %v2289
      %v7152 = vmul.f32 %v7143, %v2293
      %v7153 = vmul.f32 %v7142, %v2297
      %v7154 = vmul.f32 %v7141, %v2301
      %v7155 = vmul.f32 %v7140, %v2305
      %v7164 = vrot.slane %v7148, 4
      %v7165 = vrot.slane %v7149, 4
      %v7166 = vrot.slane %v7150, 4
      %v7167 = vrot.slane %v7151, 4
      %v7168 = vrot.slane %v7152, 4
      %v7169 = vrot.slane %v7153, 4
      %v7170 = vrot.slane %v7154, 4
      %v7171 = vrot.slane %v7155, 4
      %v7180 = vadd.f32 %v7100, %v7164
      %v7181 = vadd.f32 %v7101, %v7165
      %v7182 = vadd.f32 %v7102, %v7166
      %v7183 = vadd.f32 %v7103, %v7167
      %v7184 = vadd.f32 %v7104, %v7168
      %v7185 = vadd.f32 %v7105, %v7169
      %v7186 = vadd.f32 %v7106, %v7170
      %v7187 = vadd.f32 %v7107, %v7171
      %v7188 = vrot.slane %v6635, 5
      %v7189 = vrot.slane %v6637, 5
      %v7190 = vrot.slane %v6712, 5
      %v7191 = vrot.slane %v6714, 5
      %v7192 = vrot.slane %v6789, 5
      %v7193 = vrot.slane %v6791, 5
      %v7194 = vrot.slane %v6866, 5
      %v7195 = vrot.slane %v6868, 5
      %7204 = vrot.lane.b32.xlu0 %v7188, 127
      %v7205 = vpop.permute.xlu0 %7204
      %7206 = vrot.lane.b32.xlu0 %v7189, 127
      %v7207 = vpop.permute.xlu0 %7206
      %7208 = vrot.lane.b32.xlu0 %v7190, 127
      %v7209 = vpop.permute.xlu0 %7208
      %7210 = vrot.lane.b32.xlu0 %v7191, 127
      %v7211 = vpop.permute.xlu0 %7210
      %7212 = vrot.lane.b32.xlu0 %v7192, 127
      %v7213 = vpop.permute.xlu0 %7212
      %7214 = vrot.lane.b32.xlu0 %v7193, 127
      %v7215 = vpop.permute.xlu0 %7214
      %7216 = vrot.lane.b32.xlu0 %v7194, 127
      %v7217 = vpop.permute.xlu0 %7216
      %7218 = vrot.lane.b32.xlu0 %v7195, 127
      %v7219 = vpop.permute.xlu0 %7218
      %v7220 = vsel %vm2338, %v7217, %v7219
      %v7221 = vsel %vm2338, %v7215, %v7217
      %v7222 = vsel %vm2338, %v7213, %v7215
      %v7223 = vsel %vm2338, %v7211, %v7213
      %v7224 = vsel %vm2338, %v7209, %v7211
      %v7225 = vsel %vm2338, %v7207, %v7209
      %v7226 = vsel %vm2338, %v7205, %v7207
      %v7227 = vsel %vm2338, %v7219, %v7205
      %v7228 = vmul.f32 %v7226, %v2355
      %v7229 = vmul.f32 %v7225, %v2359
      %v7230 = vmul.f32 %v7224, %v2363
      %v7231 = vmul.f32 %v7223, %v2367
      %v7232 = vmul.f32 %v7222, %v2371
      %v7233 = vmul.f32 %v7221, %v2375
      %v7234 = vmul.f32 %v7220, %v2379
      %v7235 = vmul.f32 %v7227, %v2383
      %v7244 = vrot.slane %v7228, 4
      %v7245 = vrot.slane %v7229, 4
      %v7246 = vrot.slane %v7230, 4
      %v7247 = vrot.slane %v7231, 4
      %v7248 = vrot.slane %v7232, 4
      %v7249 = vrot.slane %v7233, 4
      %v7250 = vrot.slane %v7234, 4
      %v7251 = vrot.slane %v7235, 4
      %v7260 = vadd.f32 %v7180, %v7244
      %v7261 = vadd.f32 %v7181, %v7245
      %v7262 = vadd.f32 %v7182, %v7246
      %v7263 = vadd.f32 %v7183, %v7247
      %v7264 = vadd.f32 %v7184, %v7248
      %v7265 = vadd.f32 %v7185, %v7249
      %v7266 = vadd.f32 %v7186, %v7250
      %v7267 = vadd.f32 %v7187, %v7251
      %v7268 = vrot.slane %v6635, 6
      %v7269 = vrot.slane %v6637, 6
      %v7270 = vrot.slane %v6712, 6
      %v7271 = vrot.slane %v6714, 6
      %v7272 = vrot.slane %v6789, 6
      %v7273 = vrot.slane %v6791, 6
      %v7274 = vrot.slane %v6866, 6
      %v7275 = vrot.slane %v6868, 6
      %7284 = vrot.lane.b32.xlu0 %v7268, 113
      %v7285 = vpop.permute.xlu0 %7284
      %7286 = vrot.lane.b32.xlu0 %v7269, 113
      %v7287 = vpop.permute.xlu0 %7286
      %7288 = vrot.lane.b32.xlu0 %v7270, 113
      %v7289 = vpop.permute.xlu0 %7288
      %7290 = vrot.lane.b32.xlu0 %v7271, 113
      %v7291 = vpop.permute.xlu0 %7290
      %7292 = vrot.lane.b32.xlu0 %v7272, 113
      %v7293 = vpop.permute.xlu0 %7292
      %7294 = vrot.lane.b32.xlu0 %v7273, 113
      %v7295 = vpop.permute.xlu0 %7294
      %7296 = vrot.lane.b32.xlu0 %v7274, 113
      %v7297 = vpop.permute.xlu0 %7296
      %7298 = vrot.lane.b32.xlu0 %v7275, 113
      %v7299 = vpop.permute.xlu0 %7298
      %v7300 = vsel %vm2416, %v7297, %v7299
      %v7301 = vsel %vm2416, %v7295, %v7297
      %v7302 = vsel %vm2416, %v7293, %v7295
      %v7303 = vsel %vm2416, %v7291, %v7293
      %v7304 = vsel %vm2416, %v7289, %v7291
      %v7305 = vsel %vm2416, %v7287, %v7289
      %v7306 = vsel %vm2416, %v7285, %v7287
      %v7307 = vsel %vm2416, %v7299, %v7285
      %v7308 = vmul.f32 %v7306, %v2433
      %v7309 = vmul.f32 %v7305, %v2437
      %v7310 = vmul.f32 %v7304, %v2441
      %v7311 = vmul.f32 %v7303, %v2445
      %v7312 = vmul.f32 %v7302, %v2449
      %v7313 = vmul.f32 %v7301, %v2453
      %v7314 = vmul.f32 %v7300, %v2457
      %v7315 = vmul.f32 %v7307, %v2461
      %v7324 = vrot.slane %v7308, 4
      %v7325 = vrot.slane %v7309, 4
      %v7326 = vrot.slane %v7310, 4
      %v7327 = vrot.slane %v7311, 4
      %v7328 = vrot.slane %v7312, 4
      %v7329 = vrot.slane %v7313, 4
      %v7330 = vrot.slane %v7314, 4
      %v7331 = vrot.slane %v7315, 4
      %v7340 = vadd.f32 %v7260, %v7324
      %v7341 = vadd.f32 %v7261, %v7325
      %v7342 = vadd.f32 %v7262, %v7326
      %v7343 = vadd.f32 %v7263, %v7327
      %v7344 = vadd.f32 %v7264, %v7328
      %v7345 = vadd.f32 %v7265, %v7329
      %v7346 = vadd.f32 %v7266, %v7330
      %v7347 = vadd.f32 %v7267, %v7331
      %v7348 = vrot.slane %v6635, 7
      %v7349 = vrot.slane %v6637, 7
      %v7350 = vrot.slane %v6712, 7
      %v7351 = vrot.slane %v6714, 7
      %v7352 = vrot.slane %v6789, 7
      %v7353 = vrot.slane %v6791, 7
      %v7354 = vrot.slane %v6866, 7
      %v7355 = vrot.slane %v6868, 7
      %7364 = vrot.lane.b32.xlu0 %v7348, 112
      %v7365 = vpop.permute.xlu0 %7364
      %7366 = vrot.lane.b32.xlu0 %v7349, 112
      %v7367 = vpop.permute.xlu0 %7366
      %7368 = vrot.lane.b32.xlu0 %v7350, 112
      %v7369 = vpop.permute.xlu0 %7368
      %7370 = vrot.lane.b32.xlu0 %v7351, 112
      %v7371 = vpop.permute.xlu0 %7370
      %7372 = vrot.lane.b32.xlu0 %v7352, 112
      %v7373 = vpop.permute.xlu0 %7372
      %7374 = vrot.lane.b32.xlu0 %v7353, 112
      %v7375 = vpop.permute.xlu0 %7374
      %7376 = vrot.lane.b32.xlu0 %v7354, 112
      %v7377 = vpop.permute.xlu0 %7376
      %7378 = vrot.lane.b32.xlu0 %v7355, 112
      %v7379 = vpop.permute.xlu0 %7378
      %v7380 = vsel %vm2494, %v7377, %v7379
      %v7381 = vsel %vm2494, %v7375, %v7377
      %v7382 = vsel %vm2494, %v7373, %v7375
      %v7383 = vsel %vm2494, %v7371, %v7373
      %v7384 = vsel %vm2494, %v7369, %v7371
      %v7385 = vsel %vm2494, %v7367, %v7369
      %v7386 = vsel %vm2494, %v7365, %v7367
      %v7387 = vsel %vm2494, %v7379, %v7365
      %v7388 = vmul.f32 %v7386, %v2511
      %v7389 = vmul.f32 %v7385, %v2515
      %v7390 = vmul.f32 %v7384, %v2519
      %v7391 = vmul.f32 %v7383, %v2523
      %v7392 = vmul.f32 %v7382, %v2527
      %v7393 = vmul.f32 %v7381, %v2531
      %v7394 = vmul.f32 %v7380, %v2535
      %v7395 = vmul.f32 %v7387, %v2539
      %v7404 = vrot.slane %v7388, 4
      %v7405 = vrot.slane %v7389, 4
      %v7406 = vrot.slane %v7390, 4
      %v7407 = vrot.slane %v7391, 4
      %v7408 = vrot.slane %v7392, 4
      %v7409 = vrot.slane %v7393, 4
      %v7410 = vrot.slane %v7394, 4
      %v7411 = vrot.slane %v7395, 4
      %v7420 = vadd.f32 %v7340, %v7404
      %v7421 = vadd.f32 %v7341, %v7405
      %v7422 = vadd.f32 %v7342, %v7406
      %v7423 = vadd.f32 %v7343, %v7407
      %v7424 = vadd.f32 %v7344, %v7408
      %v7425 = vadd.f32 %v7345, %v7409
      %v7426 = vadd.f32 %v7346, %v7410
      %v7427 = vadd.f32 %v7347, %v7411
      %7428 = vrot.lane.b32.xlu0 %v6641, 111
      %v7429 = vpop.permute.xlu0 %7428
      %7430 = vrot.lane.b32.xlu0 %v6643, 111
      %v7431 = vpop.permute.xlu0 %7430
      %7432 = vrot.lane.b32.xlu0 %v6718, 111
      %v7433 = vpop.permute.xlu0 %7432
      %7434 = vrot.lane.b32.xlu0 %v6720, 111
      %v7435 = vpop.permute.xlu0 %7434
      %7436 = vrot.lane.b32.xlu0 %v6795, 111
      %v7437 = vpop.permute.xlu0 %7436
      %7438 = vrot.lane.b32.xlu0 %v6797, 111
      %v7439 = vpop.permute.xlu0 %7438
      %7440 = vrot.lane.b32.xlu0 %v6872, 111
      %v7441 = vpop.permute.xlu0 %7440
      %7442 = vrot.lane.b32.xlu0 %v6874, 111
      %v7443 = vpop.permute.xlu0 %7442
      %v7444 = vsel %vm2572, %v7441, %v7443
      %v7445 = vsel %vm2572, %v7439, %v7441
      %v7446 = vsel %vm2572, %v7437, %v7439
      %v7447 = vsel %vm2572, %v7435, %v7437
      %v7448 = vsel %vm2572, %v7433, %v7435
      %v7449 = vsel %vm2572, %v7431, %v7433
      %v7450 = vsel %vm2572, %v7429, %v7431
      %v7451 = vsel %vm2572, %v7443, %v7429
      %v7452 = vmul.f32 %v7450, %v2589
      %v7453 = vmul.f32 %v7449, %v2593
      %v7454 = vmul.f32 %v7448, %v2597
      %v7455 = vmul.f32 %v7447, %v2601
      %v7456 = vmul.f32 %v7446, %v2605
      %v7457 = vmul.f32 %v7445, %v2609
      %v7458 = vmul.f32 %v7444, %v2613
      %v7459 = vmul.f32 %v7451, %v2617
      %v7468 = vrot.slane %v7452, 4
      %v7469 = vrot.slane %v7453, 4
      %v7470 = vrot.slane %v7454, 4
      %v7471 = vrot.slane %v7455, 4
      %v7472 = vrot.slane %v7456, 4
      %v7473 = vrot.slane %v7457, 4
      %v7474 = vrot.slane %v7458, 4
      %v7475 = vrot.slane %v7459, 4
      %v7484 = vadd.f32 %v7420, %v7468
      %v7485 = vadd.f32 %v7421, %v7469
      %v7486 = vadd.f32 %v7422, %v7470
      %v7487 = vadd.f32 %v7423, %v7471
      %v7488 = vadd.f32 %v7424, %v7472
      %v7489 = vadd.f32 %v7425, %v7473
      %v7490 = vadd.f32 %v7426, %v7474
      %v7491 = vadd.f32 %v7427, %v7475
      %s7492 = sld [smem:[#allocation2]]
      %v7493 = vstv %s7492
      %v7494 = vadd.f32 %v7484, %v7493
      %v7495 = vadd.f32 %v7485, %v7493
      %v7496 = vadd.f32 %v7486, %v7493
      %v7497 = vadd.f32 %v7487, %v7493
      %v7498 = vadd.f32 %v7488, %v7493
      %v7499 = vadd.f32 %v7489, %v7493
      %v7500 = vadd.f32 %v7490, %v7493
      %v7501 = vadd.f32 %v7491, %v7493
      %v7510 = vcombine.high %v7494, %v7495
      %v7511 = vcombine.high %v7496, %v7497
      %v7512 = vcombine.high %v7498, %v7499
      %v7513 = vcombine.high %v7500, %v7501
      %v7515 = vunpack.c.l.s4 1966171168
      %v7516 = vunpack.c.0.s8 %v7515
      %v7517 = vlaneseq
      %v7518 = vshrl.u32 %v7517, 7
      %v7519 = vsub.s32 %v7516, %v7518
      %v7520 = vrot.slane %v7510, %v7519
      %v7522 = vunpack.c.l.s4 1966171168
      %v7523 = vunpack.c.0.s8 %v7522
      %v7524 = vlaneseq
      %v7525 = vshrl.u32 %v7524, 7
      %v7526 = vsub.s32 %v7523, %v7525
      %v7527 = vrot.slane %v7511, %v7526
      %v7529 = vunpack.c.l.s4 1966171168
      %v7530 = vunpack.c.0.s8 %v7529
      %v7531 = vlaneseq
      %v7532 = vshrl.u32 %v7531, 7
      %v7533 = vsub.s32 %v7530, %v7532
      %v7534 = vrot.slane %v7512, %v7533
      %v7536 = vunpack.c.l.s4 1966171168
      %v7537 = vunpack.c.0.s8 %v7536
      %v7538 = vlaneseq
      %v7539 = vshrl.u32 %v7538, 7
      %v7540 = vsub.s32 %v7537, %v7539
      %v7541 = vrot.slane %v7513, %v7540
      %v7542 = vcombine.low %v7520, %v7527
      %v7543 = vcombine.low %v7534, %v7541
      %v7545 = vunpack.c.l.s4 1966171168
      %v7546 = vunpack.c.0.s8 %v7545
      %v7547 = vlaneseq
      %v7548 = vshrl.u32 %v7547, 7
      %v7549 = vsub.s32 %v7546, %v7548
      %v7550 = vrot.slane %v7542, %v7549
      %v7552 = vunpack.c.l.s4 1966171168
      %v7553 = vunpack.c.0.s8 %v7552
      %v7554 = vlaneseq
      %v7555 = vshrl.u32 %v7554, 7
      %v7556 = vsub.s32 %v7553, %v7555
      %v7557 = vrot.slane %v7543, %v7556
      %v7558 = vcombine.low %v7550, %v7557
      %7560 = vst [vmem:[%s572] sm:$0xff] %v7558
      %p7561 = scmp.lt.s32.totalorder %s29, 1
      %s7562 = scalar_select %p7561, %s29, 1
      %s7563 = smul.addr %s7562, 8
      %s7564 = scalar_lea.vmem %s17, %s7563
      // Predicated region
      $region89: #{combined_forward.1} parent=87 // pred_check
        %p7565 = pneg %p419
      $region90: #{combined_forward.1} parent=87 // pred_check_branch
        %7567 = sbr.rel (%p7565) target = $region92
      $region91: #{combined_forward.1} parent=87 // pred_region
        _
      $region92: #{combined_forward.1} parent=87 // pred_fallthru
        _
    $region88: #{combined_forward.1} parent=5 // pred_fallthru
      _
    %p7568 = scmp.le.s32.totalorder 2, %s24
    // Predicated region
    $region93: #{combined_forward.1} parent=5 // pred_check
      %p7569 = pneg %p7568
    $region94: #{combined_forward.1} parent=5 // pred_check_branch
      %7571 = sbr.rel (%p7569) target = $region96
    $region95: #{combined_forward.1} parent=5 // pred_region
      %s7572 = ssub.s32 %s24, 2
      // Predicated region
      $region97: #{combined_forward.1} parent=95 // pred_check
        %p7573 = pneg %p425
      $region98: #{combined_forward.1} parent=95 // pred_check_branch
        %7575 = sbr.rel (%p7573) target = $region100
      $region99: #{combined_forward.1} parent=95 // pred_region
        %p7576 = scmp.lt.s32.totalorder %s30, 1
        %s7577 = scalar_select %p7576, %s30, 1
        %s7578 = smul.addr %s7577, 8
        %s7579 = scalar_lea.vmem %s17, %s7578
      $region100: #{combined_forward.1} parent=95 // pred_fallthru
        _
    $region96: #{combined_forward.1} parent=5 // pred_fallthru
      _
  $region6: #{combined_forward.1} parent=0 // loop_footer
    %s28 = sadd.s32 1, %s24
  $region7: #{combined_forward.1} parent=0 // loop_footer_branch
    %23 = sbr.rel target = $region3
  $region8: #{combined_forward.1} parent=0 // loop_exit
    _

</llo_original>
